<compile_context>
chip_gen: v7x
topology: tpu7x:2x2x1
jax: 0.10.0
libtpu: 0.0.40
codegen_flags: <defaults>
</compile_context>

<pallas_src>
import jax
import jax.numpy as jnp
import numpy as np
from jax import lax
from jax.experimental import pallas as pl
from jax.experimental.pallas import tpu as pltpu

HEADS = 4  # SuperGlue-style AttentionalPropagation uses 4 heads


# ----------------------------------------------------------------------------
# Fused kernel: self-attention propagation layer + healpix avg-pool-of-4 epilogue
# ----------------------------------------------------------------------------
def _attn_pool_kernel(x_ref, wqkv_ref, bqkv_ref, wm_ref, bm_ref,
                      w1t_ref, b1_ref, w2t_ref, b2_ref, pmat_ref,
                      out_ref, pool_ref):
    f32, bf16 = jnp.float32, jnp.bfloat16
    x = x_ref[0]                                   # (N, C) f32, kept for the residual
    N, C = x.shape
    x_bf = x.astype(bf16)                          # bf16 operands, f32 accumulation (MXU)

    merged = jnp.zeros((N, C), f32)
    for h in range(HEADS):                         # static unroll (H=4), head-major weights:
        # no lane slicing and no channel concatenation anywhere in the head loop.
        qh = jnp.dot(x_bf, wqkv_ref[h], preferred_element_type=f32) + bqkv_ref[h]
        kh = jnp.dot(x_bf, wqkv_ref[HEADS + h], preferred_element_type=f32) + bqkv_ref[HEADS + h]
        vh = jnp.dot(x_bf, wqkv_ref[2 * HEADS + h], preferred_element_type=f32) + bqkv_ref[2 * HEADS + h]
        # scores = q @ k^T; 1/sqrt(d) is folded into wq/bq host-side. Contract the d axis
        # of both operands (same pattern as the flash-attention einsum 'nd,md->nm').
        s = lax.dot_general(qh.astype(bf16), kh.astype(bf16),
                            dimension_numbers=(((1,), (1,)), ((), ())),
                            preferred_element_type=f32)                      # (N, N) f32
        s = s - jnp.max(s, axis=-1, keepdims=True)
        p = jnp.exp(s)
        # EUP approximate reciprocal instead of a VALU divide.
        p = p * pl.reciprocal(jnp.sum(p, axis=-1, keepdims=True), approx=True)
        msg_h = jnp.dot(p.astype(bf16), vh.astype(bf16), preferred_element_type=f32)  # (N, d)
        # concat-free merge conv: accumulate msg_h @ (rows h*d:(h+1)*d of Wm^T).
        merged = merged + jnp.dot(msg_h.astype(bf16), wm_ref[h], preferred_element_type=f32)
    merged = merged + bm_ref[...]

    # concat-free MLP: [x | merged] @ W1^T  ==  x @ W1^T[:C] + merged @ W1^T[C:]
    h1 = (jnp.dot(x_bf, w1t_ref[0:C, :], preferred_element_type=f32)
          + jnp.dot(merged.astype(bf16), w1t_ref[C:2 * C, :], preferred_element_type=f32)
          + b1_ref[...])
    h1 = jnp.maximum(h1, 0.0)
    delta = jnp.dot(h1.astype(bf16), w2t_ref[...], preferred_element_type=f32) + b2_ref[...]
    out = x + delta                                # residual in f32
    out_ref[0] = out.astype(out_ref.dtype)

    # Fused HealpixAvgPool epilogue: average NESTED children in groups of 4, expressed as a
    # 0.25-valued (P, N) matmul on the MXU (no strided sublane gathers, no extra pallas_call).
    pool_ref[0] = jnp.dot(pmat_ref[...], out, preferred_element_type=f32).astype(pool_ref.dtype)


def attn_pool_layer(x_nwc, kp):
    """x_nwc: (G, N, C) channels-last float32.

    Returns (attention output (G, N, C), healpix-pooled parent features (G, N//4, C))."""
    G, N, C = x_nwc.shape
    assert C % HEADS == 0 and N % 4 == 0
    P = N // 4
    # TODO(synk): at finer healpix levels (N >~ 2k) the (N,N) f32 score temporaries stress
    # v7x's 64 MiB VMEM; switch to a KV-tiled online-softmax inner loop before scaling N.
    assert 3 * N * N * 4 < 16 * 1024 * 1024, "add flash-style KV tiling before using larger N"

    # Avg-of-4 pooling operator: row p has 0.25 at columns 4p..4p+3.
    pmat = jnp.repeat(jnp.eye(P, dtype=jnp.float32), 4, axis=1) * 0.25        # (P, N)

    resident = lambda arr: pl.BlockSpec(arr.shape, lambda g: (0,) * arr.ndim)

    out_full, out_pool = pl.pallas_call(
        _attn_pool_kernel,
        out_shape=(jax.ShapeDtypeStruct((G, N, C), x_nwc.dtype),
                   jax.ShapeDtypeStruct((G, P, C), x_nwc.dtype)),
        grid_spec=pltpu.PrefetchScalarGridSpec(
            num_scalar_prefetch=0,
            grid=(G,),
            in_specs=[
                pl.BlockSpec((1, N, C), lambda g: (g, 0, 0)),   # activations, one image per step
                resident(kp['wqkv']), resident(kp['bqkv']),     # head-major q/k/v weights + biases
                resident(kp['wm']), resident(kp['bm']),         # per-head merge weights + bias
                resident(kp['w1t']), resident(kp['b1']),        # MLP layer 1 (pre-transposed)
                resident(kp['w2t']), resident(kp['b2']),        # MLP layer 2 (pre-transposed)
                resident(pmat),                                 # avg-of-4 pooling operator
            ],
            out_specs=[pl.BlockSpec((1, N, C), lambda g: (g, 0, 0)),
                       pl.BlockSpec((1, P, C), lambda g: (g, 0, 0))],
        ),
        compiler_params=pltpu.CompilerParams(dimension_semantics=("parallel",)),
    )(x_nwc, kp['wqkv'], kp['bqkv'], kp['wm'], kp['bm'],
      kp['w1t'], kp['b1'], kp['w2t'], kp['b2'], pmat)
    return out_full, out_pool


# ----------------------------------------------------------------------------
# Host-side (one-time) weight preparation: PyTorch Conv1d layout -> kernel layout
# ----------------------------------------------------------------------------
def prepare_attn_params(p, C):
    H, d = HEADS, C // HEADS
    scale = 1.0 / float(d) ** 0.5

    def heads_in(w, b, s=1.0):
        # Conv1d weight (C_out, C_in) -> pre-transposed head-major (H, C_in, d); bias -> (H, 1, d).
        wt = jnp.transpose(w * s).reshape(C, H, d).transpose(1, 0, 2)
        bt = (b.reshape(-1) * s).reshape(H, 1, d)
        return wt, bt

    wq, bq = heads_in(p['wq'], p['bq'], scale)     # 1/sqrt(d) folded into Wq AND bq
    wk, bk = heads_in(p['wk'], p['bk'])
    wv, bv = heads_in(p['wv'], p['bv'])
    wm = jnp.transpose(p['wm']).reshape(H, d, C)   # rows h*d:(h+1)*d of Wm^T per head

    return {
        'wqkv': jnp.concatenate([wq, wk, wv], axis=0).astype(jnp.bfloat16),   # (3H, C, d)
        'bqkv': jnp.concatenate([bq, bk, bv], axis=0).astype(jnp.float32),    # (3H, 1, d)
        'wm':   wm.astype(jnp.bfloat16),                                       # (H, d, C)
        'bm':   p['bm'].reshape(1, C).astype(jnp.float32),
        'w1t':  jnp.transpose(p['w1']).astype(jnp.bfloat16),   # (2C, 2C); rows [:C]=x, [C:]=merged
        'b1':   p['b1'].reshape(1, 2 * C).astype(jnp.float32),
        'w2t':  jnp.transpose(p['w2']).astype(jnp.bfloat16),   # (2C, C)
        'b2':   p['b2'].reshape(1, C).astype(jnp.float32),
    }


# ----------------------------------------------------------------------------
# Module-level glue mirroring SphericalPooling / HealpixHierarchy.forward
# ----------------------------------------------------------------------------
def spherical_pool(nside, f0, f1, data):
    # Features are already pooled inside the kernel epilogue; only the tiny (F=3) position
    # pooling is done here in plain jnp (a pallas_call would be launch/lane-padding bound).
    B, P = f0.shape[0], f0.shape[1]
    p0 = data['img0_position'].reshape(B, P, 4, 3).mean(axis=2)
    p1 = data['img1_position'].reshape(B, P, 4, 3).mean(axis=2)
    pooled = {'nside': nside,
              'img0_parent_features': f0, 'img1_parent_features': f1,
              'img0_parent_position': p0, 'img1_parent_position': p1}
    return pooled, f0, f1


def healpix_hierarchy_forward(x0, x1, data, params, config):
    # attn1 ('self' layer): SuperGlue-style dense multi-head self-attention + MLP residual.
    # TODO(synk): SelfAttentionalGNN source is not provided; the knn edge lists in
    # data['edges1'/'edges2'] are not used to mask attention (dense over all N nodes).
    B = x0.shape[0]
    # Single NCW -> channels-last transpose of the batched input; everything downstream
    # stays channels-last (removes 3 of the previous 4 activation transposes).
    x_nwc = jnp.transpose(jnp.concatenate([x0, x1], axis=0), (0, 2, 1))      # (2B, N, C)
    _attn_full, pooled = attn_pool_layer(x_nwc, params['attn1_kernel'])      # (2B,N,C),(2B,N//4,C)
    f0, f1 = pooled[:B], pooled[B:]

    output_, x0_, x1_ = {}, {}, {}
    NSIDE = config['nsides'][0]
    output_[NSIDE], x0_[NSIDE], x1_[NSIDE] = spherical_pool(NSIDE, f0, f1, data)
    # TODO(synk): the reference forward calls exit() at this point; attn2/3/4, deeper pooling
    # levels and the torch_geometric knn_graph edge construction are dead code.
    return output_, x0_, x1_


# ----------------------------------------------------------------------------
# Init + pure-JAX f32 reference (original concat-based formulation) for checking
# ----------------------------------------------------------------------------
def init_params(key, C):
    ks = jax.random.split(key, 12)
    w = lambda k, shape, fan_in: (jax.random.normal(k, shape, jnp.float32)
                                  / jnp.sqrt(jnp.float32(fan_in)))
    attn1 = {
        'wq': w(ks[0], (C, C), C),             'bq': w(ks[1], (C,), C),
        'wk': w(ks[2], (C, C), C),             'bk': w(ks[3], (C,), C),
        'wv': w(ks[4], (C, C), C),             'bv': w(ks[5], (C,), C),
        'wm': w(ks[6], (C, C), C),             'bm': w(ks[7], (C,), C),
        'w1': w(ks[8], (2 * C, 2 * C), 2 * C), 'b1': w(ks[9], (2 * C,), 2 * C),
        'w2': w(ks[10], (C, 2 * C), 2 * C),    'b2': jnp.zeros((C,), jnp.float32),
    }
    # TODO(synk): PyTorch Conv1d uses uniform init; scaled normals are fine for kernel testing.
    return {'attn1': attn1, 'attn1_kernel': prepare_attn_params(attn1, C)}


def attn_ref(x, p):
    """Pure-JAX f32 reference of the 'self' AttentionalPropagation layer. x: (G, N, C)."""
    G, N, C = x.shape
    d = C // HEADS
    proj = lambda w, b: jnp.einsum('gnc,oc->gno', x, w) + b.reshape(1, 1, -1)
    q = proj(p['wq'], p['bq']).reshape(G, N, HEADS, d)
    k = proj(p['wk'], p['bk']).reshape(G, N, HEADS, d)
    v = proj(p['wv'], p['bv']).reshape(G, N, HEADS, d)
    s = jnp.einsum('gnhd,gmhd->ghnm', q, k) / (d ** 0.5)
    a = jax.nn.softmax(s, axis=-1)
    msg = jnp.einsum('ghnm,gmhd->gnhd', a, v).reshape(G, N, C)
    merged = jnp.einsum('gnc,oc->gno', msg, p['wm']) + p['bm'].reshape(1, 1, -1)
    y = jnp.concatenate([x, merged], axis=-1)
    h1 = jax.nn.relu(jnp.einsum('gny,oy->gno', y, p['w1']) + p['b1'].reshape(1, 1, -1))
    delta = jnp.einsum('gnh,oh->gno', h1, p['w2']) + p['b2'].reshape(1, 1, -1)
    return x + delta


if __name__ == "__main__":
    key = jax.random.PRNGKey(0)
    B, C = 1, 32
    NSIDE_IN = 4
    N = 12 * NSIDE_IN * NSIDE_IN        # 192 healpix pixels at nside=4
    P = N // 4
    config = {'nsides': [2, 1, 1, 1]}   # only nsides[0] is reached before exit()

    k0, k1, k2, k3, k4, k5 = jax.random.split(key, 6)
    x0 = jax.random.normal(k0, (B, C, N), jnp.float32)
    x1 = jax.random.normal(k1, (B, C, N), jnp.float32)
    data = {
        'edges1': jax.random.randint(k2, (1, 2, 80 * N), 0, N, dtype=jnp.int32),
        'edges2': jax.random.randint(k3, (1, 2, 80 * N), 0, N, dtype=jnp.int32),
        'img0_position': jax.random.normal(k4, (B, N, 3), jnp.float32),
        'img1_position': jax.random.normal(k5, (B, N, 3), jnp.float32),
    }
    params = init_params(key, C)

    fwd = jax.jit(lambda a, b, d, prm: healpix_hierarchy_forward(a, b, d, prm, config))
    output_, x0_, x1_ = fwd(x0, x1, data, params)

    NSIDE = config['nsides'][0]
    f0 = jax.block_until_ready(output_[NSIDE]['img0_parent_features'])
    f1 = jax.block_until_ready(output_[NSIDE]['img1_parent_features'])
    p0 = jax.block_until_ready(output_[NSIDE]['img0_parent_position'])
    jax.block_until_ready(x0_[NSIDE]); jax.block_until_ready(x1_[NSIDE])

    assert x0_[NSIDE].shape == (B, P, C)
    assert output_[NSIDE]['img0_parent_position'].shape == (B, P, 3)

    # Correctness check against the pure-JAX f32 reference (bf16 MXU inputs -> loose tolerance).
    x_nwc = jnp.transpose(jnp.concatenate([x0, x1], axis=0), (0, 2, 1))       # (2B, N, C)
    full, pooled = attn_pool_layer(x_nwc, params['attn1_kernel'])
    jax.block_until_ready(full); jax.block_until_ready(pooled)
    ref_full = attn_ref(x_nwc, params['attn1'])
    ref_pool = ref_full.reshape(2 * B, P, 4, C).mean(axis=2)
    np.testing.assert_allclose(np.asarray(full), np.asarray(ref_full), rtol=5e-2, atol=5e-2)
    np.testing.assert_allclose(np.asarray(pooled), np.asarray(ref_pool), rtol=5e-2, atol=5e-2)
    np.testing.assert_allclose(np.asarray(jnp.concatenate([f0, f1], axis=0)),
                               np.asarray(ref_pool), rtol=5e-2, atol=5e-2)
    ref_p0 = data['img0_position'].reshape(B, P, 4, 3).mean(axis=2)
    np.testing.assert_allclose(np.asarray(p0), np.asarray(ref_p0), rtol=1e-5, atol=1e-5)

    print("KERNEL_OK")
</pallas_src>

<mosaic_0001>
module attributes {stable_mosaic.version = 11 : i64} {
  func.func @_attn_pool_kernel(%arg0: i32, %arg1: memref<1x192x32xf32, #tpu.memory_space<vmem>>, %arg2: memref<12x32x8xbf16, #tpu.memory_space<vmem>>, %arg3: memref<12x1x8xf32, #tpu.memory_space<vmem>>, %arg4: memref<4x8x32xbf16, #tpu.memory_space<vmem>>, %arg5: memref<1x32xf32, #tpu.memory_space<vmem>>, %arg6: memref<64x64xbf16, #tpu.memory_space<vmem>>, %arg7: memref<1x64xf32, #tpu.memory_space<vmem>>, %arg8: memref<64x32xbf16, #tpu.memory_space<vmem>>, %arg9: memref<1x32xf32, #tpu.memory_space<vmem>>, %arg10: memref<48x192xf32, #tpu.memory_space<vmem>>, %arg11: memref<1x192x32xf32, #tpu.memory_space<vmem>>, %arg12: memref<1x48x32xf32, #tpu.memory_space<vmem>>) attributes {dimension_semantics = [#tpu.dimension_semantics<parallel>], iteration_bounds = array<i64: 2>, scalar_prefetch = 0 : i64, scratch_operands = 0 : i64, tpu.core_type = #tpu.core_type<tc>, window_params = [{transform_indices = @transform_0, window_bounds = array<i64: 1, 192, 32>}, {pipeline_mode = #tpu.pipeline_mode<synchronous>, transform_indices = @transform_1, window_bounds = array<i64: 12, 32, 8>}, {pipeline_mode = #tpu.pipeline_mode<synchronous>, transform_indices = @transform_2, window_bounds = array<i64: 12, 1, 8>}, {pipeline_mode = #tpu.pipeline_mode<synchronous>, transform_indices = @transform_3, window_bounds = array<i64: 4, 8, 32>}, {pipeline_mode = #tpu.pipeline_mode<synchronous>, transform_indices = @transform_4, window_bounds = array<i64: 1, 32>}, {pipeline_mode = #tpu.pipeline_mode<synchronous>, transform_indices = @transform_5, window_bounds = array<i64: 64, 64>}, {pipeline_mode = #tpu.pipeline_mode<synchronous>, transform_indices = @transform_6, window_bounds = array<i64: 1, 64>}, {pipeline_mode = #tpu.pipeline_mode<synchronous>, transform_indices = @transform_7, window_bounds = array<i64: 64, 32>}, {pipeline_mode = #tpu.pipeline_mode<synchronous>, transform_indices = @transform_8, window_bounds = array<i64: 1, 32>}, {pipeline_mode = #tpu.pipeline_mode<synchronous>, transform_indices = @transform_9, window_bounds = array<i64: 48, 192>}, {transform_indices = @transform_10, window_bounds = array<i64: 1, 192, 32>}, {transform_indices = @transform_11, window_bounds = array<i64: 1, 48, 32>}]} {
    %c0 = arith.constant 0 : index
    %c0_0 = arith.constant 0 : index
    %c0_1 = arith.constant 0 : index
    %0 = vector.load %arg1[%c0, %c0_0, %c0_1] : memref<1x192x32xf32, #tpu.memory_space<vmem>>, vector<1x192x32xf32>
    %1 = vector.shape_cast %0 : vector<1x192x32xf32> to vector<192x32xf32>
    %2 = arith.truncf %1 : vector<192x32xf32> to vector<192x32xbf16>
    %cst = arith.constant 0.000000e+00 : f32
    %3 = vector.broadcast %cst : f32 to vector<192x32xf32>
    %c0_2 = arith.constant 0 : index
    %c0_3 = arith.constant 0 : index
    %c0_4 = arith.constant 0 : index
    %4 = vector.load %arg2[%c0_2, %c0_3, %c0_4] : memref<12x32x8xbf16, #tpu.memory_space<vmem>>, vector<1x32x8xbf16>
    %5 = vector.shape_cast %4 : vector<1x32x8xbf16> to vector<32x8xbf16>
    %cst_5 = arith.constant dense<0.000000e+00> : vector<192x8xf32>
    %6 = tpu.matmul %2, %5, %cst_5 {dimension_numbers = #tpu.dot_dimension_numbers<[1], [0], [0], [1], [0, 0, 1, 1], [], []>} : vector<192x32xbf16>, vector<32x8xbf16>, vector<192x8xf32> -> vector<192x8xf32>
    %c0_6 = arith.constant 0 : index
    %c0_7 = arith.constant 0 : index
    %c0_8 = arith.constant 0 : index
    %7 = vector.load %arg3[%c0_6, %c0_7, %c0_8] : memref<12x1x8xf32, #tpu.memory_space<vmem>>, vector<1x1x8xf32>
    %8 = vector.shape_cast %7 : vector<1x1x8xf32> to vector<1x8xf32>
    %9 = vector.broadcast %8 : vector<1x8xf32> to vector<192x8xf32>
    %10 = arith.addf %6, %9 : vector<192x8xf32>
    %c4 = arith.constant 4 : index
    %c0_9 = arith.constant 0 : index
    %c0_10 = arith.constant 0 : index
    %11 = vector.load %arg2[%c4, %c0_9, %c0_10] : memref<12x32x8xbf16, #tpu.memory_space<vmem>>, vector<1x32x8xbf16>
    %12 = vector.shape_cast %11 : vector<1x32x8xbf16> to vector<32x8xbf16>
    %cst_11 = arith.constant dense<0.000000e+00> : vector<192x8xf32>
    %13 = tpu.matmul %2, %12, %cst_11 {dimension_numbers = #tpu.dot_dimension_numbers<[1], [0], [0], [1], [0, 0, 1, 1], [], []>} : vector<192x32xbf16>, vector<32x8xbf16>, vector<192x8xf32> -> vector<192x8xf32>
    %c4_12 = arith.constant 4 : index
    %c0_13 = arith.constant 0 : index
    %c0_14 = arith.constant 0 : index
    %14 = vector.load %arg3[%c4_12, %c0_13, %c0_14] : memref<12x1x8xf32, #tpu.memory_space<vmem>>, vector<1x1x8xf32>
    %15 = vector.shape_cast %14 : vector<1x1x8xf32> to vector<1x8xf32>
    %16 = vector.broadcast %15 : vector<1x8xf32> to vector<192x8xf32>
    %17 = arith.addf %13, %16 : vector<192x8xf32>
    %c8 = arith.constant 8 : index
    %c0_15 = arith.constant 0 : index
    %c0_16 = arith.constant 0 : index
    %18 = vector.load %arg2[%c8, %c0_15, %c0_16] : memref<12x32x8xbf16, #tpu.memory_space<vmem>>, vector<1x32x8xbf16>
    %19 = vector.shape_cast %18 : vector<1x32x8xbf16> to vector<32x8xbf16>
    %cst_17 = arith.constant dense<0.000000e+00> : vector<192x8xf32>
    %20 = tpu.matmul %2, %19, %cst_17 {dimension_numbers = #tpu.dot_dimension_numbers<[1], [0], [0], [1], [0, 0, 1, 1], [], []>} : vector<192x32xbf16>, vector<32x8xbf16>, vector<192x8xf32> -> vector<192x8xf32>
    %c8_18 = arith.constant 8 : index
    %c0_19 = arith.constant 0 : index
    %c0_20 = arith.constant 0 : index
    %21 = vector.load %arg3[%c8_18, %c0_19, %c0_20] : memref<12x1x8xf32, #tpu.memory_space<vmem>>, vector<1x1x8xf32>
    %22 = vector.shape_cast %21 : vector<1x1x8xf32> to vector<1x8xf32>
    %23 = vector.broadcast %22 : vector<1x8xf32> to vector<192x8xf32>
    %24 = arith.addf %20, %23 : vector<192x8xf32>
    %25 = arith.truncf %10 : vector<192x8xf32> to vector<192x8xbf16>
    %26 = arith.truncf %17 : vector<192x8xf32> to vector<192x8xbf16>
    %cst_21 = arith.constant dense<0.000000e+00> : vector<192x192xf32>
    %27 = tpu.matmul %25, %26, %cst_21 {dimension_numbers = #tpu.dot_dimension_numbers<[1], [1], [0], [0], [0, 0, 1, 0], [], []>} : vector<192x8xbf16>, vector<192x8xbf16>, vector<192x192xf32> -> vector<192x192xf32>
    %cst_22 = arith.constant dense<0xFF800000> : vector<192xf32>
    %28 = vector.multi_reduction <maximumf>, %27, %cst_22 [1] : vector<192x192xf32> to vector<192xf32>
    %29 = vector.shape_cast %28 : vector<192xf32> to vector<192x1xf32>
    %30 = vector.broadcast %29 : vector<192x1xf32> to vector<192x192xf32>
    %31 = arith.subf %27, %30 : vector<192x192xf32>
    %32 = math.exp %31 : vector<192x192xf32>
    %cst_23 = arith.constant dense<0.000000e+00> : vector<192xf32>
    %33 = vector.multi_reduction <add>, %32, %cst_23 [1] : vector<192x192xf32> to vector<192xf32>
    %34 = vector.shape_cast %33 : vector<192xf32> to vector<192x1xf32>
    %35 = tpu.reciprocal %34 {approx = true} : vector<192x1xf32> -> vector<192x1xf32>
    %36 = vector.broadcast %35 : vector<192x1xf32> to vector<192x192xf32>
    %37 = arith.mulf %32, %36 : vector<192x192xf32>
    %38 = arith.truncf %37 : vector<192x192xf32> to vector<192x192xbf16>
    %39 = arith.truncf %24 : vector<192x8xf32> to vector<192x8xbf16>
    %cst_24 = arith.constant dense<0.000000e+00> : vector<192x8xf32>
    %40 = tpu.matmul %38, %39, %cst_24 {dimension_numbers = #tpu.dot_dimension_numbers<[1], [0], [0], [1], [0, 0, 1, 1], [], []>} : vector<192x192xbf16>, vector<192x8xbf16>, vector<192x8xf32> -> vector<192x8xf32>
    %41 = arith.truncf %40 : vector<192x8xf32> to vector<192x8xbf16>
    %c0_25 = arith.constant 0 : index
    %c0_26 = arith.constant 0 : index
    %c0_27 = arith.constant 0 : index
    %42 = vector.load %arg4[%c0_25, %c0_26, %c0_27] : memref<4x8x32xbf16, #tpu.memory_space<vmem>>, vector<1x8x32xbf16>
    %43 = vector.shape_cast %42 : vector<1x8x32xbf16> to vector<8x32xbf16>
    %cst_28 = arith.constant dense<0.000000e+00> : vector<192x32xf32>
    %44 = tpu.matmul %41, %43, %cst_28 {dimension_numbers = #tpu.dot_dimension_numbers<[1], [0], [0], [1], [0, 0, 1, 1], [], []>} : vector<192x8xbf16>, vector<8x32xbf16>, vector<192x32xf32> -> vector<192x32xf32>
    %45 = arith.addf %3, %44 : vector<192x32xf32>
    %c1 = arith.constant 1 : index
    %c0_29 = arith.constant 0 : index
    %c0_30 = arith.constant 0 : index
    %46 = vector.load %arg2[%c1, %c0_29, %c0_30] : memref<12x32x8xbf16, #tpu.memory_space<vmem>>, vector<1x32x8xbf16>
    %47 = vector.shape_cast %46 : vector<1x32x8xbf16> to vector<32x8xbf16>
    %cst_31 = arith.constant dense<0.000000e+00> : vector<192x8xf32>
    %48 = tpu.matmul %2, %47, %cst_31 {dimension_numbers = #tpu.dot_dimension_numbers<[1], [0], [0], [1], [0, 0, 1, 1], [], []>} : vector<192x32xbf16>, vector<32x8xbf16>, vector<192x8xf32> -> vector<192x8xf32>
    %c1_32 = arith.constant 1 : index
    %c0_33 = arith.constant 0 : index
    %c0_34 = arith.constant 0 : index
    %49 = vector.load %arg3[%c1_32, %c0_33, %c0_34] : memref<12x1x8xf32, #tpu.memory_space<vmem>>, vector<1x1x8xf32>
    %50 = vector.shape_cast %49 : vector<1x1x8xf32> to vector<1x8xf32>
    %51 = vector.broadcast %50 : vector<1x8xf32> to vector<192x8xf32>
    %52 = arith.addf %48, %51 : vector<192x8xf32>
    %c5 = arith.constant 5 : index
    %c0_35 = arith.constant 0 : index
    %c0_36 = arith.constant 0 : index
    %53 = vector.load %arg2[%c5, %c0_35, %c0_36] : memref<12x32x8xbf16, #tpu.memory_space<vmem>>, vector<1x32x8xbf16>
    %54 = vector.shape_cast %53 : vector<1x32x8xbf16> to vector<32x8xbf16>
    %cst_37 = arith.constant dense<0.000000e+00> : vector<192x8xf32>
    %55 = tpu.matmul %2, %54, %cst_37 {dimension_numbers = #tpu.dot_dimension_numbers<[1], [0], [0], [1], [0, 0, 1, 1], [], []>} : vector<192x32xbf16>, vector<32x8xbf16>, vector<192x8xf32> -> vector<192x8xf32>
    %c5_38 = arith.constant 5 : index
    %c0_39 = arith.constant 0 : index
    %c0_40 = arith.constant 0 : index
    %56 = vector.load %arg3[%c5_38, %c0_39, %c0_40] : memref<12x1x8xf32, #tpu.memory_space<vmem>>, vector<1x1x8xf32>
    %57 = vector.shape_cast %56 : vector<1x1x8xf32> to vector<1x8xf32>
    %58 = vector.broadcast %57 : vector<1x8xf32> to vector<192x8xf32>
    %59 = arith.addf %55, %58 : vector<192x8xf32>
    %c9 = arith.constant 9 : index
    %c0_41 = arith.constant 0 : index
    %c0_42 = arith.constant 0 : index
    %60 = vector.load %arg2[%c9, %c0_41, %c0_42] : memref<12x32x8xbf16, #tpu.memory_space<vmem>>, vector<1x32x8xbf16>
    %61 = vector.shape_cast %60 : vector<1x32x8xbf16> to vector<32x8xbf16>
    %cst_43 = arith.constant dense<0.000000e+00> : vector<192x8xf32>
    %62 = tpu.matmul %2, %61, %cst_43 {dimension_numbers = #tpu.dot_dimension_numbers<[1], [0], [0], [1], [0, 0, 1, 1], [], []>} : vector<192x32xbf16>, vector<32x8xbf16>, vector<192x8xf32> -> vector<192x8xf32>
    %c9_44 = arith.constant 9 : index
    %c0_45 = arith.constant 0 : index
    %c0_46 = arith.constant 0 : index
    %63 = vector.load %arg3[%c9_44, %c0_45, %c0_46] : memref<12x1x8xf32, #tpu.memory_space<vmem>>, vector<1x1x8xf32>
    %64 = vector.shape_cast %63 : vector<1x1x8xf32> to vector<1x8xf32>
    %65 = vector.broadcast %64 : vector<1x8xf32> to vector<192x8xf32>
    %66 = arith.addf %62, %65 : vector<192x8xf32>
    %67 = arith.truncf %52 : vector<192x8xf32> to vector<192x8xbf16>
    %68 = arith.truncf %59 : vector<192x8xf32> to vector<192x8xbf16>
    %cst_47 = arith.constant dense<0.000000e+00> : vector<192x192xf32>
    %69 = tpu.matmul %67, %68, %cst_47 {dimension_numbers = #tpu.dot_dimension_numbers<[1], [1], [0], [0], [0, 0, 1, 0], [], []>} : vector<192x8xbf16>, vector<192x8xbf16>, vector<192x192xf32> -> vector<192x192xf32>
    %cst_48 = arith.constant dense<0xFF800000> : vector<192xf32>
    %70 = vector.multi_reduction <maximumf>, %69, %cst_48 [1] : vector<192x192xf32> to vector<192xf32>
    %71 = vector.shape_cast %70 : vector<192xf32> to vector<192x1xf32>
    %72 = vector.broadcast %71 : vector<192x1xf32> to vector<192x192xf32>
    %73 = arith.subf %69, %72 : vector<192x192xf32>
    %74 = math.exp %73 : vector<192x192xf32>
    %cst_49 = arith.constant dense<0.000000e+00> : vector<192xf32>
    %75 = vector.multi_reduction <add>, %74, %cst_49 [1] : vector<192x192xf32> to vector<192xf32>
    %76 = vector.shape_cast %75 : vector<192xf32> to vector<192x1xf32>
    %77 = tpu.reciprocal %76 {approx = true} : vector<192x1xf32> -> vector<192x1xf32>
    %78 = vector.broadcast %77 : vector<192x1xf32> to vector<192x192xf32>
    %79 = arith.mulf %74, %78 : vector<192x192xf32>
    %80 = arith.truncf %79 : vector<192x192xf32> to vector<192x192xbf16>
    %81 = arith.truncf %66 : vector<192x8xf32> to vector<192x8xbf16>
    %cst_50 = arith.constant dense<0.000000e+00> : vector<192x8xf32>
    %82 = tpu.matmul %80, %81, %cst_50 {dimension_numbers = #tpu.dot_dimension_numbers<[1], [0], [0], [1], [0, 0, 1, 1], [], []>} : vector<192x192xbf16>, vector<192x8xbf16>, vector<192x8xf32> -> vector<192x8xf32>
    %83 = arith.truncf %82 : vector<192x8xf32> to vector<192x8xbf16>
    %c1_51 = arith.constant 1 : index
    %c0_52 = arith.constant 0 : index
    %c0_53 = arith.constant 0 : index
    %84 = vector.load %arg4[%c1_51, %c0_52, %c0_53] : memref<4x8x32xbf16, #tpu.memory_space<vmem>>, vector<1x8x32xbf16>
    %85 = vector.shape_cast %84 : vector<1x8x32xbf16> to vector<8x32xbf16>
    %cst_54 = arith.constant dense<0.000000e+00> : vector<192x32xf32>
    %86 = tpu.matmul %83, %85, %cst_54 {dimension_numbers = #tpu.dot_dimension_numbers<[1], [0], [0], [1], [0, 0, 1, 1], [], []>} : vector<192x8xbf16>, vector<8x32xbf16>, vector<192x32xf32> -> vector<192x32xf32>
    %87 = arith.addf %45, %86 : vector<192x32xf32>
    %c2 = arith.constant 2 : index
    %c0_55 = arith.constant 0 : index
    %c0_56 = arith.constant 0 : index
    %88 = vector.load %arg2[%c2, %c0_55, %c0_56] : memref<12x32x8xbf16, #tpu.memory_space<vmem>>, vector<1x32x8xbf16>
    %89 = vector.shape_cast %88 : vector<1x32x8xbf16> to vector<32x8xbf16>
    %cst_57 = arith.constant dense<0.000000e+00> : vector<192x8xf32>
    %90 = tpu.matmul %2, %89, %cst_57 {dimension_numbers = #tpu.dot_dimension_numbers<[1], [0], [0], [1], [0, 0, 1, 1], [], []>} : vector<192x32xbf16>, vector<32x8xbf16>, vector<192x8xf32> -> vector<192x8xf32>
    %c2_58 = arith.constant 2 : index
    %c0_59 = arith.constant 0 : index
    %c0_60 = arith.constant 0 : index
    %91 = vector.load %arg3[%c2_58, %c0_59, %c0_60] : memref<12x1x8xf32, #tpu.memory_space<vmem>>, vector<1x1x8xf32>
    %92 = vector.shape_cast %91 : vector<1x1x8xf32> to vector<1x8xf32>
    %93 = vector.broadcast %92 : vector<1x8xf32> to vector<192x8xf32>
    %94 = arith.addf %90, %93 : vector<192x8xf32>
    %c6 = arith.constant 6 : index
    %c0_61 = arith.constant 0 : index
    %c0_62 = arith.constant 0 : index
    %95 = vector.load %arg2[%c6, %c0_61, %c0_62] : memref<12x32x8xbf16, #tpu.memory_space<vmem>>, vector<1x32x8xbf16>
    %96 = vector.shape_cast %95 : vector<1x32x8xbf16> to vector<32x8xbf16>
    %cst_63 = arith.constant dense<0.000000e+00> : vector<192x8xf32>
    %97 = tpu.matmul %2, %96, %cst_63 {dimension_numbers = #tpu.dot_dimension_numbers<[1], [0], [0], [1], [0, 0, 1, 1], [], []>} : vector<192x32xbf16>, vector<32x8xbf16>, vector<192x8xf32> -> vector<192x8xf32>
    %c6_64 = arith.constant 6 : index
    %c0_65 = arith.constant 0 : index
    %c0_66 = arith.constant 0 : index
    %98 = vector.load %arg3[%c6_64, %c0_65, %c0_66] : memref<12x1x8xf32, #tpu.memory_space<vmem>>, vector<1x1x8xf32>
    %99 = vector.shape_cast %98 : vector<1x1x8xf32> to vector<1x8xf32>
    %100 = vector.broadcast %99 : vector<1x8xf32> to vector<192x8xf32>
    %101 = arith.addf %97, %100 : vector<192x8xf32>
    %c10 = arith.constant 10 : index
    %c0_67 = arith.constant 0 : index
    %c0_68 = arith.constant 0 : index
    %102 = vector.load %arg2[%c10, %c0_67, %c0_68] : memref<12x32x8xbf16, #tpu.memory_space<vmem>>, vector<1x32x8xbf16>
    %103 = vector.shape_cast %102 : vector<1x32x8xbf16> to vector<32x8xbf16>
    %cst_69 = arith.constant dense<0.000000e+00> : vector<192x8xf32>
    %104 = tpu.matmul %2, %103, %cst_69 {dimension_numbers = #tpu.dot_dimension_numbers<[1], [0], [0], [1], [0, 0, 1, 1], [], []>} : vector<192x32xbf16>, vector<32x8xbf16>, vector<192x8xf32> -> vector<192x8xf32>
    %c10_70 = arith.constant 10 : index
    %c0_71 = arith.constant 0 : index
    %c0_72 = arith.constant 0 : index
    %105 = vector.load %arg3[%c10_70, %c0_71, %c0_72] : memref<12x1x8xf32, #tpu.memory_space<vmem>>, vector<1x1x8xf32>
    %106 = vector.shape_cast %105 : vector<1x1x8xf32> to vector<1x8xf32>
    %107 = vector.broadcast %106 : vector<1x8xf32> to vector<192x8xf32>
    %108 = arith.addf %104, %107 : vector<192x8xf32>
    %109 = arith.truncf %94 : vector<192x8xf32> to vector<192x8xbf16>
    %110 = arith.truncf %101 : vector<192x8xf32> to vector<192x8xbf16>
    %cst_73 = arith.constant dense<0.000000e+00> : vector<192x192xf32>
    %111 = tpu.matmul %109, %110, %cst_73 {dimension_numbers = #tpu.dot_dimension_numbers<[1], [1], [0], [0], [0, 0, 1, 0], [], []>} : vector<192x8xbf16>, vector<192x8xbf16>, vector<192x192xf32> -> vector<192x192xf32>
    %cst_74 = arith.constant dense<0xFF800000> : vector<192xf32>
    %112 = vector.multi_reduction <maximumf>, %111, %cst_74 [1] : vector<192x192xf32> to vector<192xf32>
    %113 = vector.shape_cast %112 : vector<192xf32> to vector<192x1xf32>
    %114 = vector.broadcast %113 : vector<192x1xf32> to vector<192x192xf32>
    %115 = arith.subf %111, %114 : vector<192x192xf32>
    %116 = math.exp %115 : vector<192x192xf32>
    %cst_75 = arith.constant dense<0.000000e+00> : vector<192xf32>
    %117 = vector.multi_reduction <add>, %116, %cst_75 [1] : vector<192x192xf32> to vector<192xf32>
    %118 = vector.shape_cast %117 : vector<192xf32> to vector<192x1xf32>
    %119 = tpu.reciprocal %118 {approx = true} : vector<192x1xf32> -> vector<192x1xf32>
    %120 = vector.broadcast %119 : vector<192x1xf32> to vector<192x192xf32>
    %121 = arith.mulf %116, %120 : vector<192x192xf32>
    %122 = arith.truncf %121 : vector<192x192xf32> to vector<192x192xbf16>
    %123 = arith.truncf %108 : vector<192x8xf32> to vector<192x8xbf16>
    %cst_76 = arith.constant dense<0.000000e+00> : vector<192x8xf32>
    %124 = tpu.matmul %122, %123, %cst_76 {dimension_numbers = #tpu.dot_dimension_numbers<[1], [0], [0], [1], [0, 0, 1, 1], [], []>} : vector<192x192xbf16>, vector<192x8xbf16>, vector<192x8xf32> -> vector<192x8xf32>
    %125 = arith.truncf %124 : vector<192x8xf32> to vector<192x8xbf16>
    %c2_77 = arith.constant 2 : index
    %c0_78 = arith.constant 0 : index
    %c0_79 = arith.constant 0 : index
    %126 = vector.load %arg4[%c2_77, %c0_78, %c0_79] : memref<4x8x32xbf16, #tpu.memory_space<vmem>>, vector<1x8x32xbf16>
    %127 = vector.shape_cast %126 : vector<1x8x32xbf16> to vector<8x32xbf16>
    %cst_80 = arith.constant dense<0.000000e+00> : vector<192x32xf32>
    %128 = tpu.matmul %125, %127, %cst_80 {dimension_numbers = #tpu.dot_dimension_numbers<[1], [0], [0], [1], [0, 0, 1, 1], [], []>} : vector<192x8xbf16>, vector<8x32xbf16>, vector<192x32xf32> -> vector<192x32xf32>
    %129 = arith.addf %87, %128 : vector<192x32xf32>
    %c3 = arith.constant 3 : index
    %c0_81 = arith.constant 0 : index
    %c0_82 = arith.constant 0 : index
    %130 = vector.load %arg2[%c3, %c0_81, %c0_82] : memref<12x32x8xbf16, #tpu.memory_space<vmem>>, vector<1x32x8xbf16>
    %131 = vector.shape_cast %130 : vector<1x32x8xbf16> to vector<32x8xbf16>
    %cst_83 = arith.constant dense<0.000000e+00> : vector<192x8xf32>
    %132 = tpu.matmul %2, %131, %cst_83 {dimension_numbers = #tpu.dot_dimension_numbers<[1], [0], [0], [1], [0, 0, 1, 1], [], []>} : vector<192x32xbf16>, vector<32x8xbf16>, vector<192x8xf32> -> vector<192x8xf32>
    %c3_84 = arith.constant 3 : index
    %c0_85 = arith.constant 0 : index
    %c0_86 = arith.constant 0 : index
    %133 = vector.load %arg3[%c3_84, %c0_85, %c0_86] : memref<12x1x8xf32, #tpu.memory_space<vmem>>, vector<1x1x8xf32>
    %134 = vector.shape_cast %133 : vector<1x1x8xf32> to vector<1x8xf32>
    %135 = vector.broadcast %134 : vector<1x8xf32> to vector<192x8xf32>
    %136 = arith.addf %132, %135 : vector<192x8xf32>
    %c7 = arith.constant 7 : index
    %c0_87 = arith.constant 0 : index
    %c0_88 = arith.constant 0 : index
    %137 = vector.load %arg2[%c7, %c0_87, %c0_88] : memref<12x32x8xbf16, #tpu.memory_space<vmem>>, vector<1x32x8xbf16>
    %138 = vector.shape_cast %137 : vector<1x32x8xbf16> to vector<32x8xbf16>
    %cst_89 = arith.constant dense<0.000000e+00> : vector<192x8xf32>
    %139 = tpu.matmul %2, %138, %cst_89 {dimension_numbers = #tpu.dot_dimension_numbers<[1], [0], [0], [1], [0, 0, 1, 1], [], []>} : vector<192x32xbf16>, vector<32x8xbf16>, vector<192x8xf32> -> vector<192x8xf32>
    %c7_90 = arith.constant 7 : index
    %c0_91 = arith.constant 0 : index
    %c0_92 = arith.constant 0 : index
    %140 = vector.load %arg3[%c7_90, %c0_91, %c0_92] : memref<12x1x8xf32, #tpu.memory_space<vmem>>, vector<1x1x8xf32>
    %141 = vector.shape_cast %140 : vector<1x1x8xf32> to vector<1x8xf32>
    %142 = vector.broadcast %141 : vector<1x8xf32> to vector<192x8xf32>
    %143 = arith.addf %139, %142 : vector<192x8xf32>
    %c11 = arith.constant 11 : index
    %c0_93 = arith.constant 0 : index
    %c0_94 = arith.constant 0 : index
    %144 = vector.load %arg2[%c11, %c0_93, %c0_94] : memref<12x32x8xbf16, #tpu.memory_space<vmem>>, vector<1x32x8xbf16>
    %145 = vector.shape_cast %144 : vector<1x32x8xbf16> to vector<32x8xbf16>
    %cst_95 = arith.constant dense<0.000000e+00> : vector<192x8xf32>
    %146 = tpu.matmul %2, %145, %cst_95 {dimension_numbers = #tpu.dot_dimension_numbers<[1], [0], [0], [1], [0, 0, 1, 1], [], []>} : vector<192x32xbf16>, vector<32x8xbf16>, vector<192x8xf32> -> vector<192x8xf32>
    %c11_96 = arith.constant 11 : index
    %c0_97 = arith.constant 0 : index
    %c0_98 = arith.constant 0 : index
    %147 = vector.load %arg3[%c11_96, %c0_97, %c0_98] : memref<12x1x8xf32, #tpu.memory_space<vmem>>, vector<1x1x8xf32>
    %148 = vector.shape_cast %147 : vector<1x1x8xf32> to vector<1x8xf32>
    %149 = vector.broadcast %148 : vector<1x8xf32> to vector<192x8xf32>
    %150 = arith.addf %146, %149 : vector<192x8xf32>
    %151 = arith.truncf %136 : vector<192x8xf32> to vector<192x8xbf16>
    %152 = arith.truncf %143 : vector<192x8xf32> to vector<192x8xbf16>
    %cst_99 = arith.constant dense<0.000000e+00> : vector<192x192xf32>
    %153 = tpu.matmul %151, %152, %cst_99 {dimension_numbers = #tpu.dot_dimension_numbers<[1], [1], [0], [0], [0, 0, 1, 0], [], []>} : vector<192x8xbf16>, vector<192x8xbf16>, vector<192x192xf32> -> vector<192x192xf32>
    %cst_100 = arith.constant dense<0xFF800000> : vector<192xf32>
    %154 = vector.multi_reduction <maximumf>, %153, %cst_100 [1] : vector<192x192xf32> to vector<192xf32>
    %155 = vector.shape_cast %154 : vector<192xf32> to vector<192x1xf32>
    %156 = vector.broadcast %155 : vector<192x1xf32> to vector<192x192xf32>
    %157 = arith.subf %153, %156 : vector<192x192xf32>
    %158 = math.exp %157 : vector<192x192xf32>
    %cst_101 = arith.constant dense<0.000000e+00> : vector<192xf32>
    %159 = vector.multi_reduction <add>, %158, %cst_101 [1] : vector<192x192xf32> to vector<192xf32>
    %160 = vector.shape_cast %159 : vector<192xf32> to vector<192x1xf32>
    %161 = tpu.reciprocal %160 {approx = true} : vector<192x1xf32> -> vector<192x1xf32>
    %162 = vector.broadcast %161 : vector<192x1xf32> to vector<192x192xf32>
    %163 = arith.mulf %158, %162 : vector<192x192xf32>
    %164 = arith.truncf %163 : vector<192x192xf32> to vector<192x192xbf16>
    %165 = arith.truncf %150 : vector<192x8xf32> to vector<192x8xbf16>
    %cst_102 = arith.constant dense<0.000000e+00> : vector<192x8xf32>
    %166 = tpu.matmul %164, %165, %cst_102 {dimension_numbers = #tpu.dot_dimension_numbers<[1], [0], [0], [1], [0, 0, 1, 1], [], []>} : vector<192x192xbf16>, vector<192x8xbf16>, vector<192x8xf32> -> vector<192x8xf32>
    %167 = arith.truncf %166 : vector<192x8xf32> to vector<192x8xbf16>
    %c3_103 = arith.constant 3 : index
    %c0_104 = arith.constant 0 : index
    %c0_105 = arith.constant 0 : index
    %168 = vector.load %arg4[%c3_103, %c0_104, %c0_105] : memref<4x8x32xbf16, #tpu.memory_space<vmem>>, vector<1x8x32xbf16>
    %169 = vector.shape_cast %168 : vector<1x8x32xbf16> to vector<8x32xbf16>
    %cst_106 = arith.constant dense<0.000000e+00> : vector<192x32xf32>
    %170 = tpu.matmul %167, %169, %cst_106 {dimension_numbers = #tpu.dot_dimension_numbers<[1], [0], [0], [1], [0, 0, 1, 1], [], []>} : vector<192x8xbf16>, vector<8x32xbf16>, vector<192x32xf32> -> vector<192x32xf32>
    %171 = arith.addf %129, %170 : vector<192x32xf32>
    %c0_107 = arith.constant 0 : index
    %c0_108 = arith.constant 0 : index
    %172 = vector.load %arg5[%c0_107, %c0_108] : memref<1x32xf32, #tpu.memory_space<vmem>>, vector<1x32xf32>
    %173 = vector.broadcast %172 : vector<1x32xf32> to vector<192x32xf32>
    %174 = arith.addf %171, %173 : vector<192x32xf32>
    %c0_109 = arith.constant 0 : index
    %c0_110 = arith.constant 0 : index
    %175 = vector.load %arg6[%c0_109, %c0_110] : memref<64x64xbf16, #tpu.memory_space<vmem>>, vector<32x64xbf16>
    %cst_111 = arith.constant dense<0.000000e+00> : vector<192x64xf32>
    %176 = tpu.matmul %2, %175, %cst_111 {dimension_numbers = #tpu.dot_dimension_numbers<[1], [0], [0], [1], [0, 0, 1, 1], [], []>} : vector<192x32xbf16>, vector<32x64xbf16>, vector<192x64xf32> -> vector<192x64xf32>
    %177 = arith.truncf %174 : vector<192x32xf32> to vector<192x32xbf16>
    %c32 = arith.constant 32 : index
    %c0_112 = arith.constant 0 : index
    %178 = vector.load %arg6[%c32, %c0_112] : memref<64x64xbf16, #tpu.memory_space<vmem>>, vector<32x64xbf16>
    %cst_113 = arith.constant dense<0.000000e+00> : vector<192x64xf32>
    %179 = tpu.matmul %177, %178, %cst_113 {dimension_numbers = #tpu.dot_dimension_numbers<[1], [0], [0], [1], [0, 0, 1, 1], [], []>} : vector<192x32xbf16>, vector<32x64xbf16>, vector<192x64xf32> -> vector<192x64xf32>
    %180 = arith.addf %176, %179 : vector<192x64xf32>
    %c0_114 = arith.constant 0 : index
    %c0_115 = arith.constant 0 : index
    %181 = vector.load %arg7[%c0_114, %c0_115] : memref<1x64xf32, #tpu.memory_space<vmem>>, vector<1x64xf32>
    %182 = vector.broadcast %181 : vector<1x64xf32> to vector<192x64xf32>
    %183 = arith.addf %180, %182 : vector<192x64xf32>
    %cst_116 = arith.constant 0.000000e+00 : f32
    %184 = vector.broadcast %cst_116 : f32 to vector<192x64xf32>
    %185 = arith.maximumf %183, %184 : vector<192x64xf32>
    %186 = arith.truncf %185 : vector<192x64xf32> to vector<192x64xbf16>
    %c0_117 = arith.constant 0 : index
    %c0_118 = arith.constant 0 : index
    %187 = vector.load %arg8[%c0_117, %c0_118] : memref<64x32xbf16, #tpu.memory_space<vmem>>, vector<64x32xbf16>
    %cst_119 = arith.constant dense<0.000000e+00> : vector<192x32xf32>
    %188 = tpu.matmul %186, %187, %cst_119 {dimension_numbers = #tpu.dot_dimension_numbers<[1], [0], [0], [1], [0, 0, 1, 1], [], []>} : vector<192x64xbf16>, vector<64x32xbf16>, vector<192x32xf32> -> vector<192x32xf32>
    %c0_120 = arith.constant 0 : index
    %c0_121 = arith.constant 0 : index
    %189 = vector.load %arg9[%c0_120, %c0_121] : memref<1x32xf32, #tpu.memory_space<vmem>>, vector<1x32xf32>
    %190 = vector.broadcast %189 : vector<1x32xf32> to vector<192x32xf32>
    %191 = arith.addf %188, %190 : vector<192x32xf32>
    %192 = arith.addf %1, %191 : vector<192x32xf32>
    %c0_122 = arith.constant 0 : index
    %c0_123 = arith.constant 0 : index
    %c0_124 = arith.constant 0 : index
    %193 = vector.load %arg11[%c0_122, %c0_123, %c0_124] : memref<1x192x32xf32, #tpu.memory_space<vmem>>, vector<1x192x32xf32>
    %194 = vector.shape_cast %193 : vector<1x192x32xf32> to vector<192x32xf32>
    %195 = vector.shape_cast %192 : vector<192x32xf32> to vector<1x192x32xf32>
    tpu.vector_store %arg11[%c0_122, %c0_123, %c0_124], %195 {strides = array<i32>} : memref<1x192x32xf32, #tpu.memory_space<vmem>>, vector<1x192x32xf32>,
    %c0_125 = arith.constant 0 : index
    %c0_126 = arith.constant 0 : index
    %196 = vector.load %arg10[%c0_125, %c0_126] : memref<48x192xf32, #tpu.memory_space<vmem>>, vector<48x192xf32>
    %cst_127 = arith.constant dense<0.000000e+00> : vector<48x32xf32>
    %197 = tpu.matmul %196, %192, %cst_127 {dimension_numbers = #tpu.dot_dimension_numbers<[1], [0], [0], [1], [0, 0, 1, 1], [], []>} : vector<48x192xf32>, vector<192x32xf32>, vector<48x32xf32> -> vector<48x32xf32>
    %c0_128 = arith.constant 0 : index
    %c0_129 = arith.constant 0 : index
    %c0_130 = arith.constant 0 : index
    %198 = vector.load %arg12[%c0_128, %c0_129, %c0_130] : memref<1x48x32xf32, #tpu.memory_space<vmem>>, vector<1x48x32xf32>
    %199 = vector.shape_cast %198 : vector<1x48x32xf32> to vector<48x32xf32>
    %200 = vector.shape_cast %197 : vector<48x32xf32> to vector<1x48x32xf32>
    tpu.vector_store %arg12[%c0_128, %c0_129, %c0_130], %200 {strides = array<i32>} : memref<1x48x32xf32, #tpu.memory_space<vmem>>, vector<1x48x32xf32>,
    return
  }
  func.func @transform_0(%arg0: i32) -> (i32, i32, i32) {
    %c0_i32 = arith.constant 0 : i32
    %c0_i32_0 = arith.constant 0 : i32
    %c0_i32_1 = arith.constant 0 : i32
    return %arg0, %c0_i32, %c0_i32_0 : i32, i32, i32
  }
  func.func @transform_1(%arg0: i32) -> (i32, i32, i32) {
    %c0_i32 = arith.constant 0 : i32
    %c0_i32_0 = arith.constant 0 : i32
    %c0_i32_1 = arith.constant 0 : i32
    %c0_i32_2 = arith.constant 0 : i32
    return %c0_i32, %c0_i32_0, %c0_i32_1 : i32, i32, i32
  }
  func.func @transform_2(%arg0: i32) -> (i32, i32, i32) {
    %c0_i32 = arith.constant 0 : i32
    %c0_i32_0 = arith.constant 0 : i32
    %c0_i32_1 = arith.constant 0 : i32
    %c0_i32_2 = arith.constant 0 : i32
    return %c0_i32, %c0_i32_0, %c0_i32_1 : i32, i32, i32
  }
  func.func @transform_3(%arg0: i32) -> (i32, i32, i32) {
    %c0_i32 = arith.constant 0 : i32
    %c0_i32_0 = arith.constant 0 : i32
    %c0_i32_1 = arith.constant 0 : i32
    %c0_i32_2 = arith.constant 0 : i32
    return %c0_i32, %c0_i32_0, %c0_i32_1 : i32, i32, i32
  }
  func.func @transform_4(%arg0: i32) -> (i32, i32) {
    %c0_i32 = arith.constant 0 : i32
    %c0_i32_0 = arith.constant 0 : i32
    %c0_i32_1 = arith.constant 0 : i32
    return %c0_i32, %c0_i32_0 : i32, i32
  }
  func.func @transform_5(%arg0: i32) -> (i32, i32) {
    %c0_i32 = arith.constant 0 : i32
    %c0_i32_0 = arith.constant 0 : i32
    %c0_i32_1 = arith.constant 0 : i32
    return %c0_i32, %c0_i32_0 : i32, i32
  }
  func.func @transform_6(%arg0: i32) -> (i32, i32) {
    %c0_i32 = arith.constant 0 : i32
    %c0_i32_0 = arith.constant 0 : i32
    %c0_i32_1 = arith.constant 0 : i32
    return %c0_i32, %c0_i32_0 : i32, i32
  }
  func.func @transform_7(%arg0: i32) -> (i32, i32) {
    %c0_i32 = arith.constant 0 : i32
    %c0_i32_0 = arith.constant 0 : i32
    %c0_i32_1 = arith.constant 0 : i32
    return %c0_i32, %c0_i32_0 : i32, i32
  }
  func.func @transform_8(%arg0: i32) -> (i32, i32) {
    %c0_i32 = arith.constant 0 : i32
    %c0_i32_0 = arith.constant 0 : i32
    %c0_i32_1 = arith.constant 0 : i32
    return %c0_i32, %c0_i32_0 : i32, i32
  }
  func.func @transform_9(%arg0: i32) -> (i32, i32) {
    %c0_i32 = arith.constant 0 : i32
    %c0_i32_0 = arith.constant 0 : i32
    %c0_i32_1 = arith.constant 0 : i32
    return %c0_i32, %c0_i32_0 : i32, i32
  }
  func.func @transform_10(%arg0: i32) -> (i32, i32, i32) {
    %c0_i32 = arith.constant 0 : i32
    %c0_i32_0 = arith.constant 0 : i32
    %c0_i32_1 = arith.constant 0 : i32
    return %arg0, %c0_i32, %c0_i32_0 : i32, i32, i32
  }
  func.func @transform_11(%arg0: i32) -> (i32, i32, i32) {
    %c0_i32 = arith.constant 0 : i32
    %c0_i32_0 = arith.constant 0 : i32
    %c0_i32_1 = arith.constant 0 : i32
    return %arg0, %c0_i32, %c0_i32_0 : i32, i32, i32
  }
}

</mosaic_0001>

<llo_original>
// kernel: _lambda_.1
$region0: #{_lambda_.1}
  #allocation0 [shape = 'u32[]', space=smem, size = 0x4, offset = 0x4, fixed_abs, tag = 'smem constant byte address 0x4 - core index']
  #allocation1 [shape = 'u32[144,128]{1,0:T(1,128)}', space=vmem, size = 0x12000, scoped, tag = 'internal scratch']
  %s0 = inlined_call_operand.vmem [shape: f32[2,192,32], index: 0, kind: input, shape index: {}]
  %s1 = inlined_call_operand.vmem [shape: bf16[12,32,8], index: 1, kind: input, shape index: {}]
  %s2 = inlined_call_operand.vmem [shape: f32[12,1,8], index: 2, kind: input, shape index: {}]
  %s3 = inlined_call_operand.vmem [shape: bf16[4,8,32], index: 3, kind: input, shape index: {}]
  %s4 = inlined_call_operand.vmem [shape: f32[1,32], index: 4, kind: input, shape index: {}]
  %s5 = inlined_call_operand.vmem [shape: bf16[64,64], index: 5, kind: input, shape index: {}]
  %s6 = inlined_call_operand.vmem [shape: f32[1,64], index: 6, kind: input, shape index: {}]
  %s7 = inlined_call_operand.vmem [shape: bf16[64,32], index: 7, kind: input, shape index: {}]
  %s8 = inlined_call_operand.vmem [shape: f32[1,32], index: 8, kind: input, shape index: {}]
  %s9 = inlined_call_operand.vmem [shape: f32[48,192], index: 9, kind: input, shape index: {}]
  %s10 = inlined_call_operand.hbm [shape: f32[2,192,32], index: 10, kind: output, shape index: {0}]
  %s11 = inlined_call_operand.vmem [shape: f32[2,48,32], index: 11, kind: output, shape index: {1}]
  %12 = xla_tuple %s10, %s11
  %s13 = sld [smem:[#allocation0]]
  $region81: #{_lambda_.1} parent=0
    _
  %s15 = ssub.s32 1, %s13
  %s16 = scalar_select 0, %s15, %s13
  $region1: #{_lambda_.1} parent=0
    #allocation2 [shape = 'u8[196608]{0}', space=vmem, size = 0x30000, scoped, tag = 'output window, operand 0']
    #allocation3 [shape = 's32[2]{0}', space=sflag, size = 0x8, scoped, tag = 'scoped memory for _lambda_.1']
    %17 = vsyncpa [#allocation3], 0
    %s18 = scalar_lea.sflag [#allocation3], 1
    %19 = vsyncpa %s18, 0
    loop: start=0, step=1, limit=4
    $region2: #{_lambda_.1} parent=1 // loop_pre_header
      _
    $region3: #{_lambda_.1} parent=1 // loop_header
      %s21 = sphi 0, %s25
      %p22 = scmp.ge.s32.totalorder %s21, 4
      %s31 = sphi 0, %s33
      %s34 = sphi 0, %s31
      %s35 = sphi 0, %s34
      %s51 = sphi 0, %s35
      %s55 = sphi 0, %s55
      %s57 = sphi 0, %s55
      %s58 = sphi 0, %s57
      %s72 = sphi 0, %s58
      %s76 = sphi 0, %s76
      %s78 = sphi 0, %s76
      %s79 = sphi 0, %s78
      %s93 = sphi 0, %s79
      %s97 = sphi 0, %s97
      %s99 = sphi 0, %s97
      %s100 = sphi 0, %s99
      %s114 = sphi 0, %s100
      %s118 = sphi 0, %s118
      %s120 = sphi 0, %s118
      %s121 = sphi 0, %s120
      %s135 = sphi 0, %s121
      %s139 = sphi 0, %s139
      %s141 = sphi 0, %s139
      %s142 = sphi 0, %s141
      %s156 = sphi 0, %s142
      %s160 = sphi 0, %s160
      %s162 = sphi 0, %s160
      %s163 = sphi 0, %s162
      %s177 = sphi 0, %s163
      %s181 = sphi 0, %s181
      %s183 = sphi 0, %s181
      %s184 = sphi 0, %s183
      %s198 = sphi 0, %s184
      %s202 = sphi 0, %s202
      %s204 = sphi 0, %s202
      %s205 = sphi 0, %s204
      %s219 = sphi 0, %s205
      %s223 = sphi 0, %s223
      %s225 = sphi 0, %s223
      %s226 = sphi 0, %s225
      %s240 = sphi 0, %s226
      %s246 = sphi 0, %s248
      %s249 = sphi 0, %s246
      %s250 = sphi 0, %s249
      %s266 = sphi 0, %s250
      %s272 = sphi 0, %s274
      %s275 = sphi 0, %s272
      %s276 = sphi 0, %s275
      %s292 = sphi 0, %s276
    $region4: #{_lambda_.1} parent=1 // loop_header_branch
      %24 = sbr.rel (%p22) target = $region8
    $region5: #{_lambda_.1} parent=1 // loop_body
      %s26 = ssub.s32 %s21, 1
      %s27 = ssub.s32 %s21, 2
      %s28 = sadd.s32 %s21, 1
      %s29 = ssub.s32 %s21, %s28
      %p30 = scmp.eq.s32.totalorder %s29, 0
      %s32 = sadd.s32 %s31, 1
      %s33 = scalar_select %p30, %s31, %s32
      %p36 = pneg %p30
      %p37 = scmp.eq.s32.totalorder %s21, 1
      %p38 = por %p36, %p37
      %p39 = scmp.ne.s32.totalorder %s31, %s34
      %p40 = scmp.eq.s32.totalorder %s21, 0
      %p41 = por %p39, %p40
      %p42 = scmp.ne.s32.totalorder %s31, %s34
      %p43 = scmp.eq.s32.totalorder %s26, 1
      %p44 = por %p42, %p43
      %p45 = scmp.ne.s32.totalorder %s34, %s35
      %p46 = scmp.eq.s32.totalorder %s26, 0
      %p47 = por %p45, %p46
      %p48 = scmp.ne.s32.totalorder %s34, %s35
      %p49 = scmp.eq.s32.totalorder %s27, 1
      %p50 = por %p48, %p49
      %p52 = scmp.ne.s32.totalorder %s35, %s51
      %p53 = scmp.eq.s32.totalorder %s27, 0
      %p54 = por %p52, %p53
      %s56 = sadd.s32 %s55, 1
      %p59 = scmp.eq.s32.totalorder %s21, 1
      %p60 = scmp.ne.s32.totalorder %s55, %s57
      %p61 = scmp.eq.s32.totalorder %s21, 0
      %p62 = por %p60, %p61
      %p63 = scmp.ne.s32.totalorder %s55, %s57
      %p64 = scmp.eq.s32.totalorder %s26, 1
      %p65 = por %p63, %p64
      %p66 = scmp.ne.s32.totalorder %s57, %s58
      %p67 = scmp.eq.s32.totalorder %s26, 0
      %p68 = por %p66, %p67
      %p69 = scmp.ne.s32.totalorder %s57, %s58
      %p70 = scmp.eq.s32.totalorder %s27, 1
      %p71 = por %p69, %p70
      %p73 = scmp.ne.s32.totalorder %s58, %s72
      %p74 = scmp.eq.s32.totalorder %s27, 0
      %p75 = por %p73, %p74
      %s77 = sadd.s32 %s76, 1
      %p80 = scmp.eq.s32.totalorder %s21, 1
      %p81 = scmp.ne.s32.totalorder %s76, %s78
      %p82 = scmp.eq.s32.totalorder %s21, 0
      %p83 = por %p81, %p82
      %p84 = scmp.ne.s32.totalorder %s76, %s78
      %p85 = scmp.eq.s32.totalorder %s26, 1
      %p86 = por %p84, %p85
      %p87 = scmp.ne.s32.totalorder %s78, %s79
      %p88 = scmp.eq.s32.totalorder %s26, 0
      %p89 = por %p87, %p88
      %p90 = scmp.ne.s32.totalorder %s78, %s79
      %p91 = scmp.eq.s32.totalorder %s27, 1
      %p92 = por %p90, %p91
      %p94 = scmp.ne.s32.totalorder %s79, %s93
      %p95 = scmp.eq.s32.totalorder %s27, 0
      %p96 = por %p94, %p95
      %s98 = sadd.s32 %s97, 1
      %p101 = scmp.eq.s32.totalorder %s21, 1
      %p102 = scmp.ne.s32.totalorder %s97, %s99
      %p103 = scmp.eq.s32.totalorder %s21, 0
      %p104 = por %p102, %p103
      %p105 = scmp.ne.s32.totalorder %s97, %s99
      %p106 = scmp.eq.s32.totalorder %s26, 1
      %p107 = por %p105, %p106
      %p108 = scmp.ne.s32.totalorder %s99, %s100
      %p109 = scmp.eq.s32.totalorder %s26, 0
      %p110 = por %p108, %p109
      %p111 = scmp.ne.s32.totalorder %s99, %s100
      %p112 = scmp.eq.s32.totalorder %s27, 1
      %p113 = por %p111, %p112
      %p115 = scmp.ne.s32.totalorder %s100, %s114
      %p116 = scmp.eq.s32.totalorder %s27, 0
      %p117 = por %p115, %p116
      %s119 = sadd.s32 %s118, 1
      %p122 = scmp.eq.s32.totalorder %s21, 1
      %p123 = scmp.ne.s32.totalorder %s118, %s120
      %p124 = scmp.eq.s32.totalorder %s21, 0
      %p125 = por %p123, %p124
      %p126 = scmp.ne.s32.totalorder %s118, %s120
      %p127 = scmp.eq.s32.totalorder %s26, 1
      %p128 = por %p126, %p127
      %p129 = scmp.ne.s32.totalorder %s120, %s121
      %p130 = scmp.eq.s32.totalorder %s26, 0
      %p131 = por %p129, %p130
      %p132 = scmp.ne.s32.totalorder %s120, %s121
      %p133 = scmp.eq.s32.totalorder %s27, 1
      %p134 = por %p132, %p133
      %p136 = scmp.ne.s32.totalorder %s121, %s135
      %p137 = scmp.eq.s32.totalorder %s27, 0
      %p138 = por %p136, %p137
      %s140 = sadd.s32 %s139, 1
      %p143 = scmp.eq.s32.totalorder %s21, 1
      %p144 = scmp.ne.s32.totalorder %s139, %s141
      %p145 = scmp.eq.s32.totalorder %s21, 0
      %p146 = por %p144, %p145
      %p147 = scmp.ne.s32.totalorder %s139, %s141
      %p148 = scmp.eq.s32.totalorder %s26, 1
      %p149 = por %p147, %p148
      %p150 = scmp.ne.s32.totalorder %s141, %s142
      %p151 = scmp.eq.s32.totalorder %s26, 0
      %p152 = por %p150, %p151
      %p153 = scmp.ne.s32.totalorder %s141, %s142
      %p154 = scmp.eq.s32.totalorder %s27, 1
      %p155 = por %p153, %p154
      %p157 = scmp.ne.s32.totalorder %s142, %s156
      %p158 = scmp.eq.s32.totalorder %s27, 0
      %p159 = por %p157, %p158
      %s161 = sadd.s32 %s160, 1
      %p164 = scmp.eq.s32.totalorder %s21, 1
      %p165 = scmp.ne.s32.totalorder %s160, %s162
      %p166 = scmp.eq.s32.totalorder %s21, 0
      %p167 = por %p165, %p166
      %p168 = scmp.ne.s32.totalorder %s160, %s162
      %p169 = scmp.eq.s32.totalorder %s26, 1
      %p170 = por %p168, %p169
      %p171 = scmp.ne.s32.totalorder %s162, %s163
      %p172 = scmp.eq.s32.totalorder %s26, 0
      %p173 = por %p171, %p172
      %p174 = scmp.ne.s32.totalorder %s162, %s163
      %p175 = scmp.eq.s32.totalorder %s27, 1
      %p176 = por %p174, %p175
      %p178 = scmp.ne.s32.totalorder %s163, %s177
      %p179 = scmp.eq.s32.totalorder %s27, 0
      %p180 = por %p178, %p179
      %s182 = sadd.s32 %s181, 1
      %p185 = scmp.eq.s32.totalorder %s21, 1
      %p186 = scmp.ne.s32.totalorder %s181, %s183
      %p187 = scmp.eq.s32.totalorder %s21, 0
      %p188 = por %p186, %p187
      %p189 = scmp.ne.s32.totalorder %s181, %s183
      %p190 = scmp.eq.s32.totalorder %s26, 1
      %p191 = por %p189, %p190
      %p192 = scmp.ne.s32.totalorder %s183, %s184
      %p193 = scmp.eq.s32.totalorder %s26, 0
      %p194 = por %p192, %p193
      %p195 = scmp.ne.s32.totalorder %s183, %s184
      %p196 = scmp.eq.s32.totalorder %s27, 1
      %p197 = por %p195, %p196
      %p199 = scmp.ne.s32.totalorder %s184, %s198
      %p200 = scmp.eq.s32.totalorder %s27, 0
      %p201 = por %p199, %p200
      %s203 = sadd.s32 %s202, 1
      %p206 = scmp.eq.s32.totalorder %s21, 1
      %p207 = scmp.ne.s32.totalorder %s202, %s204
      %p208 = scmp.eq.s32.totalorder %s21, 0
      %p209 = por %p207, %p208
      %p210 = scmp.ne.s32.totalorder %s202, %s204
      %p211 = scmp.eq.s32.totalorder %s26, 1
      %p212 = por %p210, %p211
      %p213 = scmp.ne.s32.totalorder %s204, %s205
      %p214 = scmp.eq.s32.totalorder %s26, 0
      %p215 = por %p213, %p214
      %p216 = scmp.ne.s32.totalorder %s204, %s205
      %p217 = scmp.eq.s32.totalorder %s27, 1
      %p218 = por %p216, %p217
      %p220 = scmp.ne.s32.totalorder %s205, %s219
      %p221 = scmp.eq.s32.totalorder %s27, 0
      %p222 = por %p220, %p221
      %s224 = sadd.s32 %s223, 1
      %p227 = scmp.eq.s32.totalorder %s21, 1
      %p228 = scmp.ne.s32.totalorder %s223, %s225
      %p229 = scmp.eq.s32.totalorder %s21, 0
      %p230 = por %p228, %p229
      %p231 = scmp.ne.s32.totalorder %s223, %s225
      %p232 = scmp.eq.s32.totalorder %s26, 1
      %p233 = por %p231, %p232
      %p234 = scmp.ne.s32.totalorder %s225, %s226
      %p235 = scmp.eq.s32.totalorder %s26, 0
      %p236 = por %p234, %p235
      %p237 = scmp.ne.s32.totalorder %s225, %s226
      %p238 = scmp.eq.s32.totalorder %s27, 1
      %p239 = por %p237, %p238
      %p241 = scmp.ne.s32.totalorder %s226, %s240
      %p242 = scmp.eq.s32.totalorder %s27, 0
      %p243 = por %p241, %p242
      %s244 = ssub.s32 %s21, %s28
      %p245 = scmp.eq.s32.totalorder %s244, 0
      %s247 = sadd.s32 %s246, 1
      %s248 = scalar_select %p245, %s246, %s247
      %p251 = pneg %p245
      %p252 = scmp.eq.s32.totalorder %s21, 1
      %p253 = por %p251, %p252
      %p254 = scmp.ne.s32.totalorder %s246, %s249
      %p255 = scmp.eq.s32.totalorder %s21, 0
      %p256 = por %p254, %p255
      %p257 = scmp.ne.s32.totalorder %s246, %s249
      %p258 = scmp.eq.s32.totalorder %s26, 1
      %p259 = por %p257, %p258
      %p260 = scmp.ne.s32.totalorder %s249, %s250
      %p261 = scmp.eq.s32.totalorder %s26, 0
      %p262 = por %p260, %p261
      %p263 = scmp.ne.s32.totalorder %s249, %s250
      %p264 = scmp.eq.s32.totalorder %s27, 1
      %p265 = por %p263, %p264
      %p267 = scmp.ne.s32.totalorder %s250, %s266
      %p268 = scmp.eq.s32.totalorder %s27, 0
      %p269 = por %p267, %p268
      %s270 = ssub.s32 %s21, %s28
      %p271 = scmp.eq.s32.totalorder %s270, 0
      %s273 = sadd.s32 %s272, 1
      %s274 = scalar_select %p271, %s272, %s273
      %p277 = pneg %p271
      %p278 = scmp.eq.s32.totalorder %s21, 1
      %p279 = por %p277, %p278
      %p280 = scmp.ne.s32.totalorder %s272, %s275
      %p281 = scmp.eq.s32.totalorder %s21, 0
      %p282 = por %p280, %p281
      %p283 = scmp.ne.s32.totalorder %s272, %s275
      %p284 = scmp.eq.s32.totalorder %s26, 1
      %p285 = por %p283, %p284
      %p286 = scmp.ne.s32.totalorder %s275, %s276
      %p287 = scmp.eq.s32.totalorder %s26, 0
      %p288 = por %p286, %p287
      %p289 = scmp.ne.s32.totalorder %s275, %s276
      %p290 = scmp.eq.s32.totalorder %s27, 1
      %p291 = por %p289, %p290
      %p293 = scmp.ne.s32.totalorder %s276, %s292
      %p294 = scmp.eq.s32.totalorder %s27, 0
      %p295 = por %p293, %p294
      %p296 = scmp.le.s32.totalorder 1, %s21
      %p297 = scmp.lt.s32.totalorder %s21, 3
      %p298 = pnand %p296, %p297
      %p299 = pneg %p298
      // Predicated region
      $region9: #{_lambda_.1} parent=5 // pred_check
        _
      $region10: #{_lambda_.1} parent=5 // pred_check_branch
        %301 = sbr.rel (%p298) target = $region12
      $region11: #{_lambda_.1} parent=5 // pred_region
        %s302 = ssub.s32 %s21, 1
        // Predicated region
        $region13: #{_lambda_.1} parent=11 // pred_check
          %p303 = pneg %p68
        $region14: #{_lambda_.1} parent=11 // pred_check_branch
          %305 = sbr.rel (%p303) target = $region16
        $region15: #{_lambda_.1} parent=11 // pred_region
          _
        $region16: #{_lambda_.1} parent=11 // pred_fallthru
          _
        // Predicated region
        $region17: #{_lambda_.1} parent=11 // pred_check
          %p306 = pneg %p89
        $region18: #{_lambda_.1} parent=11 // pred_check_branch
          %308 = sbr.rel (%p306) target = $region20
        $region19: #{_lambda_.1} parent=11 // pred_region
          _
        $region20: #{_lambda_.1} parent=11 // pred_fallthru
          _
        // Predicated region
        $region21: #{_lambda_.1} parent=11 // pred_check
          %p309 = pneg %p110
        $region22: #{_lambda_.1} parent=11 // pred_check_branch
          %311 = sbr.rel (%p309) target = $region24
        $region23: #{_lambda_.1} parent=11 // pred_region
          _
        $region24: #{_lambda_.1} parent=11 // pred_fallthru
          _
        // Predicated region
        $region25: #{_lambda_.1} parent=11 // pred_check
          %p312 = pneg %p131
        $region26: #{_lambda_.1} parent=11 // pred_check_branch
          %314 = sbr.rel (%p312) target = $region28
        $region27: #{_lambda_.1} parent=11 // pred_region
          _
        $region28: #{_lambda_.1} parent=11 // pred_fallthru
          _
        // Predicated region
        $region29: #{_lambda_.1} parent=11 // pred_check
          %p315 = pneg %p152
        $region30: #{_lambda_.1} parent=11 // pred_check_branch
          %317 = sbr.rel (%p315) target = $region32
        $region31: #{_lambda_.1} parent=11 // pred_region
          _
        $region32: #{_lambda_.1} parent=11 // pred_fallthru
          _
        // Predicated region
        $region33: #{_lambda_.1} parent=11 // pred_check
          %p318 = pneg %p173
        $region34: #{_lambda_.1} parent=11 // pred_check_branch
          %320 = sbr.rel (%p318) target = $region36
        $region35: #{_lambda_.1} parent=11 // pred_region
          _
        $region36: #{_lambda_.1} parent=11 // pred_fallthru
          _
        // Predicated region
        $region37: #{_lambda_.1} parent=11 // pred_check
          %p321 = pneg %p194
        $region38: #{_lambda_.1} parent=11 // pred_check_branch
          %323 = sbr.rel (%p321) target = $region40
        $region39: #{_lambda_.1} parent=11 // pred_region
          _
        $region40: #{_lambda_.1} parent=11 // pred_fallthru
          _
        // Predicated region
        $region41: #{_lambda_.1} parent=11 // pred_check
          %p324 = pneg %p215
        $region42: #{_lambda_.1} parent=11 // pred_check_branch
          %326 = sbr.rel (%p324) target = $region44
        $region43: #{_lambda_.1} parent=11 // pred_region
          _
        $region44: #{_lambda_.1} parent=11 // pred_fallthru
          _
        // Predicated region
        $region45: #{_lambda_.1} parent=11 // pred_check
          %p327 = pneg %p236
        $region46: #{_lambda_.1} parent=11 // pred_check_branch
          %329 = sbr.rel (%p327) target = $region48
        $region47: #{_lambda_.1} parent=11 // pred_region
          _
        $region48: #{_lambda_.1} parent=11 // pred_fallthru
          _
      $region12: #{_lambda_.1} parent=5 // pred_fallthru
        _
      %p330 = scmp.lt.s32.totalorder %s21, 2
      // Predicated region
      $region49: #{_lambda_.1} parent=5 // pred_check
        %p331 = pneg %p330
      $region50: #{_lambda_.1} parent=5 // pred_check_branch
        %333 = sbr.rel (%p331) target = $region52
      $region51: #{_lambda_.1} parent=5 // pred_region
        // Predicated region
        $region53: #{_lambda_.1} parent=51 // pred_check
          %p334 = pneg %p41
        $region54: #{_lambda_.1} parent=51 // pred_check_branch
          %336 = sbr.rel (%p334) target = $region56
        $region55: #{_lambda_.1} parent=51 // pred_region
          %p337 = scmp.lt.s32.totalorder %s21, 1
          %s338 = scalar_select %p337, %s21, 1
          %s339 = smul.addr %s338, 24
          %s340 = smul.addr %s339, 8
          %s341 = scalar_lea.vmem %s0, %s340
        $region56: #{_lambda_.1} parent=51 // pred_fallthru
          _
      $region52: #{_lambda_.1} parent=5 // pred_fallthru
        _
      %p342 = scmp.le.s32.totalorder 1, %s21
      %p343 = scmp.lt.s32.totalorder %s21, 3
      %p344 = pnand %p342, %p343
      %p345 = pneg %p344
      // Predicated region
      $region57: #{_lambda_.1} parent=5 // pred_check
        _
      $region58: #{_lambda_.1} parent=5 // pred_check_branch
        %347 = sbr.rel (%p344) target = $region60
      $region59: #{_lambda_.1} parent=5 // pred_region
        %s348 = ssub.s32 %s21, 1
        %p349 = scmp.lt.s32.totalorder %s26, 1
        %s350 = scalar_select %p349, %s26, 1
        %s351 = smul.addr %s350, 24
        %s352 = smul.addr %s351, 8
        %s353 = scalar_lea.vmem %s0, %s352
        %p354 = pneg %p47
        %p355 = pneg %p44
        %p356 = pneg %p68
        %p357 = pneg %p65
        %p358 = pneg %p89
        %p359 = pneg %p86
        %p360 = pneg %p110
        %p361 = pneg %p107
        %p362 = pneg %p131
        %p363 = pneg %p128
        %p364 = pneg %p152
        %p365 = pneg %p149
        %p366 = pneg %p173
        %p367 = pneg %p170
        %p368 = pneg %p194
        %p369 = pneg %p191
        %p370 = pneg %p215
        %p371 = pneg %p212
        %p372 = pneg %p236
        %p373 = pneg %p233
        %p374 = pneg %p262
        %p375 = pneg %p259
        %s376 = sand.u32 %s249, 1
        %s377 = scalar_lea.sflag [#allocation3], %s376
        %s378 = sand.u32 %s249, 1
        %s379 = smul.addr %s378, 192
        %s380 = scalar_lea.vmem [#allocation2], %s379
        %p381 = pneg %p288
        %p382 = pneg %p285
        %p383 = scmp.lt.s32.totalorder %s26, 1
        %s384 = scalar_select %p383, %s26, 1
        %s385 = smul.addr %s384, 6
        %s386 = smul.addr %s385, 8
        %s387 = scalar_lea.vmem %s11, %s386
        %p388 = scmp.lt.s32.totalorder %s26, 1
        %s389 = scalar_select %p388, %s26, 1
        %s390 = smul.addr %s389, 24
        %s391 = smul.addr %s390, 8
        %s392 = scalar_lea.vmem %s0, %s391
        %p393 = scmp.lt.s32.totalorder %s26, 1
        %s394 = scalar_select %p393, %s26, 1
        %s395 = smul.addr %s394, 6
        %s396 = smul.addr %s395, 8
        %s397 = scalar_lea.vmem %s11, %s396
        %v399 = vld [vmem:[%s392] sm:$0xff]
        %v400 = vld [vmem:[%s392 + $0x8] sm:$0xff]
        %v401 = vld [vmem:[%s392 + $0x10] sm:$0xff]
        %v402 = vld [vmem:[%s392 + $0x18] sm:$0xff]
        %v403 = vld [vmem:[%s392 + $0x20] sm:$0xff]
        %v404 = vld [vmem:[%s392 + $0x28] sm:$0xff]
        %v405 = vld [vmem:[%s392 + $0x30] sm:$0xff]
        %v406 = vld [vmem:[%s392 + $0x38] sm:$0xff]
        %v407 = vld [vmem:[%s392 + $0x40] sm:$0xff]
        %v408 = vld [vmem:[%s392 + $0x48] sm:$0xff]
        %v409 = vld [vmem:[%s392 + $0x50] sm:$0xff]
        %v410 = vld [vmem:[%s392 + $0x58] sm:$0xff]
        %v411 = vld [vmem:[%s392 + $0x60] sm:$0xff]
        %v412 = vld [vmem:[%s392 + $0x68] sm:$0xff]
        %v413 = vld [vmem:[%s392 + $0x70] sm:$0xff]
        %v414 = vld [vmem:[%s392 + $0x78] sm:$0xff]
        %v415 = vld [vmem:[%s392 + $0x80] sm:$0xff]
        %v416 = vld [vmem:[%s392 + $0x88] sm:$0xff]
        %v417 = vld [vmem:[%s392 + $0x90] sm:$0xff]
        %v418 = vld [vmem:[%s392 + $0x98] sm:$0xff]
        %v419 = vld [vmem:[%s392 + $0xa0] sm:$0xff]
        %v420 = vld [vmem:[%s392 + $0xa8] sm:$0xff]
        %v421 = vld [vmem:[%s392 + $0xb0] sm:$0xff]
        %v422 = vld [vmem:[%s392 + $0xb8] sm:$0xff]
        %v423 = vpack.c.bf16 %v400, %v399
        %v424 = vpack.c.bf16 %v402, %v401
        %v425 = vpack.c.bf16 %v404, %v403
        %v426 = vpack.c.bf16 %v406, %v405
        %v427 = vpack.c.bf16 %v408, %v407
        %v428 = vpack.c.bf16 %v410, %v409
        %v429 = vpack.c.bf16 %v412, %v411
        %v430 = vpack.c.bf16 %v414, %v413
        %v431 = vpack.c.bf16 %v416, %v415
        %v432 = vpack.c.bf16 %v418, %v417
        %v433 = vpack.c.bf16 %v420, %v419
        %v434 = vpack.c.bf16 %v422, %v421
        %v435 = vld [vmem:[%s1] sm:$0xf]
        %v436 = vld [vmem:[%s1 + $0x4] sm:$0xf]
        %v437 = vld [vmem:[%s1 + $0x8] sm:$0xf]
        %v438 = vld [vmem:[%s1 + $0xc] sm:$0xf]
        %v439 = vld [vmem:[%s2] sm:$0x1]
        %v441 = vlaneseq
        %v442 = vshrl.u32 %v441, 7
        %v443 = vsub.s32 0, %v442
        %v444 = vrot.slane %v439, %v443
        %v450 = vunpack.c.l.b16 %v435
        %v451 = vunpack.c.l.b16 %v436
        %v452 = vunpack.c.l.b16 %v437
        %v453 = vunpack.c.l.b16 %v438
        %v454 = vpack.c.b16 %v451, %v450
        %v455 = vpack.c.b16 %v453, %v452
        %vm458 = vcmask 261120
        %v460 = vsel %vm458, %v423, 0
        %v463 = vsel %vm458, %v424, 0
        %v466 = vsel %vm458, %v425, 0
        %v469 = vsel %vm458, %v426, 0
        %v472 = vsel %vm458, %v427, 0
        %v475 = vsel %vm458, %v428, 0
        %v478 = vsel %vm458, %v429, 0
        %v481 = vsel %vm458, %v430, 0
        %v484 = vsel %vm458, %v431, 0
        %v487 = vsel %vm458, %v432, 0
        %v490 = vsel %vm458, %v433, 0
        %v493 = vsel %vm458, %v434, 0
        %495 = vmatprep.subr.bf16.mxu0 0
        %496 = vmatpush1.bf16.msra.mxu0 %v454
        %497 = vmatprep.subr.bf16.mxu0 0
        %498 = vmatpush1.bf16.msra.mxu0 %v455
        %499 = vmatprep.subr.bf16.mxu0 0
        %500 = vmatpush1.bf16.msra.mxu0 0
        %501 = vmatprep.subr.bf16.mxu0 0
        %502 = vmatpush1.bf16.msra.mxu0 0
        %503 = vmatprep.subr.bf16.mxu0 0
        %504 = vmatpush1.bf16.msra.mxu0 0
        %505 = vmatprep.subr.bf16.mxu0 0
        %506 = vmatpush1.bf16.msra.mxu0 0
        %507 = vmatprep.subr.bf16.mxu0 0
        %508 = vmatpush1.bf16.msra.mxu0 0
        %509 = vmatprep.subr.bf16.mxu0 0
        %510 = vmatpush1.bf16.msra.mxu0 0
        %511 = vmatprep.subr.bf16.mxu0 0
        %512 = vmatpush1.bf16.msra.mxu0 0
        %513 = vmatprep.subr.bf16.mxu0 0
        %514 = vmatpush1.bf16.msra.mxu0 0
        %515 = vmatprep.subr.bf16.mxu0 0
        %516 = vmatpush1.bf16.msra.mxu0 0
        %517 = vmatprep.subr.bf16.mxu0 0
        %518 = vmatpush1.bf16.msra.mxu0 0
        %519 = vmatprep.subr.bf16.mxu0 0
        %520 = vmatpush1.bf16.msra.mxu0 0
        %521 = vmatprep.subr.bf16.mxu0 0
        %522 = vmatpush1.bf16.msra.mxu0 0
        %523 = vmatprep.subr.bf16.mxu0 0
        %524 = vmatpush1.bf16.msra.mxu0 0
        %525 = vmatprep.subr.bf16.mxu0 0
        %526 = vmatpush1.bf16.msra.mxu0 0
        %527 = vmatprep.mubr.bf16.mxu0 0
        %528 = vmatmul.mubr.bf16.gmra.mrb[0].mxu0 %v460
        %v529 = vpop.f32.mrb[0].mxu0
        %v530 = vadd.f32 %v444, %v529
        %v531 = vpop.f32.mrb[0].mxu0
        %v532 = vpop.f32.mrb[0].mxu0
        %v533 = vadd.f32 %v444, %v532
        %v534 = vpop.f32.mrb[0].mxu0
        %535 = vmatprep.mubr.bf16.mxu0 0
        %536 = vmatmul.mubr.bf16.gmra.mrb[0].mxu0 %v463
        %v537 = vpop.f32.mrb[0].mxu0
        %v538 = vadd.f32 %v444, %v537
        %v539 = vpop.f32.mrb[0].mxu0
        %v540 = vpop.f32.mrb[0].mxu0
        %v541 = vadd.f32 %v444, %v540
        %v542 = vpop.f32.mrb[0].mxu0
        %543 = vmatprep.mubr.bf16.mxu0 0
        %544 = vmatmul.mubr.bf16.gmra.mrb[0].mxu0 %v466
        %v545 = vpop.f32.mrb[0].mxu0
        %v546 = vadd.f32 %v444, %v545
        %v547 = vpop.f32.mrb[0].mxu0
        %v548 = vpop.f32.mrb[0].mxu0
        %v549 = vadd.f32 %v444, %v548
        %v550 = vpop.f32.mrb[0].mxu0
        %551 = vmatprep.mubr.bf16.mxu0 0
        %552 = vmatmul.mubr.bf16.gmra.mrb[0].mxu0 %v469
        %v553 = vpop.f32.mrb[0].mxu0
        %v554 = vadd.f32 %v444, %v553
        %v555 = vpop.f32.mrb[0].mxu0
        %v556 = vpop.f32.mrb[0].mxu0
        %v557 = vadd.f32 %v444, %v556
        %v558 = vpop.f32.mrb[0].mxu0
        %559 = vmatprep.mubr.bf16.mxu0 0
        %560 = vmatmul.mubr.bf16.gmra.mrb[0].mxu0 %v472
        %v561 = vpop.f32.mrb[0].mxu0
        %v562 = vadd.f32 %v444, %v561
        %v563 = vpop.f32.mrb[0].mxu0
        %v564 = vpop.f32.mrb[0].mxu0
        %v565 = vadd.f32 %v444, %v564
        %v566 = vpop.f32.mrb[0].mxu0
        %567 = vmatprep.mubr.bf16.mxu0 0
        %568 = vmatmul.mubr.bf16.gmra.mrb[0].mxu0 %v475
        %v569 = vpop.f32.mrb[0].mxu0
        %v570 = vadd.f32 %v444, %v569
        %v571 = vpop.f32.mrb[0].mxu0
        %v572 = vpop.f32.mrb[0].mxu0
        %v573 = vadd.f32 %v444, %v572
        %v574 = vpop.f32.mrb[0].mxu0
        %575 = vmatprep.mubr.bf16.mxu0 0
        %576 = vmatmul.mubr.bf16.gmra.mrb[0].mxu0 %v478
        %v577 = vpop.f32.mrb[0].mxu0
        %v578 = vadd.f32 %v444, %v577
        %v579 = vpop.f32.mrb[0].mxu0
        %v580 = vpop.f32.mrb[0].mxu0
        %v581 = vadd.f32 %v444, %v580
        %v582 = vpop.f32.mrb[0].mxu0
        %583 = vmatprep.mubr.bf16.mxu0 0
        %584 = vmatmul.mubr.bf16.gmra.mrb[0].mxu0 %v481
        %v585 = vpop.f32.mrb[0].mxu0
        %v586 = vadd.f32 %v444, %v585
        %v587 = vpop.f32.mrb[0].mxu0
        %v588 = vpop.f32.mrb[0].mxu0
        %v589 = vadd.f32 %v444, %v588
        %v590 = vpop.f32.mrb[0].mxu0
        %591 = vmatprep.mubr.bf16.mxu0 0
        %592 = vmatmul.mubr.bf16.gmra.mrb[0].mxu0 %v484
        %v593 = vpop.f32.mrb[0].mxu0
        %v594 = vadd.f32 %v444, %v593
        %v595 = vpop.f32.mrb[0].mxu0
        %v596 = vpop.f32.mrb[0].mxu0
        %v597 = vadd.f32 %v444, %v596
        %v598 = vpop.f32.mrb[0].mxu0
        %599 = vmatprep.mubr.bf16.mxu0 0
        %600 = vmatmul.mubr.bf16.gmra.mrb[0].mxu0 %v487
        %v601 = vpop.f32.mrb[0].mxu0
        %v602 = vadd.f32 %v444, %v601
        %v603 = vpop.f32.mrb[0].mxu0
        %v604 = vpop.f32.mrb[0].mxu0
        %v605 = vadd.f32 %v444, %v604
        %v606 = vpop.f32.mrb[0].mxu0
        %607 = vmatprep.mubr.bf16.mxu0 0
        %608 = vmatmul.mubr.bf16.gmra.mrb[0].mxu0 %v490
        %v609 = vpop.f32.mrb[0].mxu0
        %v610 = vadd.f32 %v444, %v609
        %v611 = vpop.f32.mrb[0].mxu0
        %v612 = vpop.f32.mrb[0].mxu0
        %v613 = vadd.f32 %v444, %v612
        %v614 = vpop.f32.mrb[0].mxu0
        %615 = vmatprep.mubr.bf16.mxu0 0
        %616 = vmatmul.mubr.bf16.gmra.mrb[0].mxu0 %v493
        %v617 = vpop.f32.mrb[0].mxu0
        %v618 = vadd.f32 %v444, %v617
        %v619 = vpop.f32.mrb[0].mxu0
        %v620 = vpop.f32.mrb[0].mxu0
        %v621 = vadd.f32 %v444, %v620
        %v622 = vpop.f32.mrb[0].mxu0
        %623 = vdwg.mxu0
        %s624 = scalar_lea.vmem %s1, 64
        %v625 = vld [vmem:[%s624] sm:$0xf]
        %v626 = vld [vmem:[%s624 + $0x4] sm:$0xf]
        %v627 = vld [vmem:[%s624 + $0x8] sm:$0xf]
        %v628 = vld [vmem:[%s624 + $0xc] sm:$0xf]
        %s629 = scalar_lea.vmem %s2, 4
        %v630 = vld [vmem:[%s629] sm:$0x1]
        %v632 = vlaneseq
        %v633 = vshrl.u32 %v632, 7
        %v634 = vsub.s32 0, %v633
        %v635 = vrot.slane %v630, %v634
        %v641 = vunpack.c.l.b16 %v625
        %v642 = vunpack.c.l.b16 %v626
        %v643 = vunpack.c.l.b16 %v627
        %v644 = vunpack.c.l.b16 %v628
        %v645 = vpack.c.b16 %v642, %v641
        %v646 = vpack.c.b16 %v644, %v643
        %649 = vmatprep.subr.bf16.mxu0 0
        %650 = vmatpush1.bf16.msra.mxu0 %v645
        %651 = vmatprep.subr.bf16.mxu0 0
        %652 = vmatpush1.bf16.msra.mxu0 %v646
        %653 = vmatprep.subr.bf16.mxu0 0
        %654 = vmatpush1.bf16.msra.mxu0 0
        %655 = vmatprep.subr.bf16.mxu0 0
        %656 = vmatpush1.bf16.msra.mxu0 0
        %657 = vmatprep.subr.bf16.mxu0 0
        %658 = vmatpush1.bf16.msra.mxu0 0
        %659 = vmatprep.subr.bf16.mxu0 0
        %660 = vmatpush1.bf16.msra.mxu0 0
        %661 = vmatprep.subr.bf16.mxu0 0
        %662 = vmatpush1.bf16.msra.mxu0 0
        %663 = vmatprep.subr.bf16.mxu0 0
        %664 = vmatpush1.bf16.msra.mxu0 0
        %665 = vmatprep.subr.bf16.mxu0 0
        %666 = vmatpush1.bf16.msra.mxu0 0
        %667 = vmatprep.subr.bf16.mxu0 0
        %668 = vmatpush1.bf16.msra.mxu0 0
        %669 = vmatprep.subr.bf16.mxu0 0
        %670 = vmatpush1.bf16.msra.mxu0 0
        %671 = vmatprep.subr.bf16.mxu0 0
        %672 = vmatpush1.bf16.msra.mxu0 0
        %673 = vmatprep.subr.bf16.mxu0 0
        %674 = vmatpush1.bf16.msra.mxu0 0
        %675 = vmatprep.subr.bf16.mxu0 0
        %676 = vmatpush1.bf16.msra.mxu0 0
        %677 = vmatprep.subr.bf16.mxu0 0
        %678 = vmatpush1.bf16.msra.mxu0 0
        %679 = vmatprep.subr.bf16.mxu0 0
        %680 = vmatpush1.bf16.msra.mxu0 0
        %681 = vmatprep.mubr.bf16.mxu0 0
        %682 = vmatmul.mubr.bf16.gmra.mrb[0].mxu0 %v460
        %v683 = vpop.f32.mrb[0].mxu0
        %v684 = vadd.f32 %v635, %v683
        %v685 = vpop.f32.mrb[0].mxu0
        %v686 = vpop.f32.mrb[0].mxu0
        %v687 = vadd.f32 %v635, %v686
        %v688 = vpop.f32.mrb[0].mxu0
        %689 = vmatprep.mubr.bf16.mxu0 0
        %690 = vmatmul.mubr.bf16.gmra.mrb[0].mxu0 %v463
        %v691 = vpop.f32.mrb[0].mxu0
        %v692 = vadd.f32 %v635, %v691
        %v693 = vpop.f32.mrb[0].mxu0
        %v694 = vpop.f32.mrb[0].mxu0
        %v695 = vadd.f32 %v635, %v694
        %v696 = vpop.f32.mrb[0].mxu0
        %697 = vmatprep.mubr.bf16.mxu0 0
        %698 = vmatmul.mubr.bf16.gmra.mrb[0].mxu0 %v466
        %v699 = vpop.f32.mrb[0].mxu0
        %v700 = vadd.f32 %v635, %v699
        %v701 = vpop.f32.mrb[0].mxu0
        %v702 = vpop.f32.mrb[0].mxu0
        %v703 = vadd.f32 %v635, %v702
        %v704 = vpop.f32.mrb[0].mxu0
        %705 = vmatprep.mubr.bf16.mxu0 0
        %706 = vmatmul.mubr.bf16.gmra.mrb[0].mxu0 %v469
        %v707 = vpop.f32.mrb[0].mxu0
        %v708 = vadd.f32 %v635, %v707
        %v709 = vpop.f32.mrb[0].mxu0
        %v710 = vpop.f32.mrb[0].mxu0
        %v711 = vadd.f32 %v635, %v710
        %v712 = vpop.f32.mrb[0].mxu0
        %713 = vmatprep.mubr.bf16.mxu0 0
        %714 = vmatmul.mubr.bf16.gmra.mrb[0].mxu0 %v472
        %v715 = vpop.f32.mrb[0].mxu0
        %v716 = vadd.f32 %v635, %v715
        %v717 = vpop.f32.mrb[0].mxu0
        %v718 = vpop.f32.mrb[0].mxu0
        %v719 = vadd.f32 %v635, %v718
        %v720 = vpop.f32.mrb[0].mxu0
        %721 = vmatprep.mubr.bf16.mxu0 0
        %722 = vmatmul.mubr.bf16.gmra.mrb[0].mxu0 %v475
        %v723 = vpop.f32.mrb[0].mxu0
        %v724 = vadd.f32 %v635, %v723
        %v725 = vpop.f32.mrb[0].mxu0
        %v726 = vpop.f32.mrb[0].mxu0
        %v727 = vadd.f32 %v635, %v726
        %v728 = vpop.f32.mrb[0].mxu0
        %729 = vmatprep.mubr.bf16.mxu0 0
        %730 = vmatmul.mubr.bf16.gmra.mrb[0].mxu0 %v478
        %v731 = vpop.f32.mrb[0].mxu0
        %v732 = vadd.f32 %v635, %v731
        %v733 = vpop.f32.mrb[0].mxu0
        %v734 = vpop.f32.mrb[0].mxu0
        %v735 = vadd.f32 %v635, %v734
        %v736 = vpop.f32.mrb[0].mxu0
        %737 = vmatprep.mubr.bf16.mxu0 0
        %738 = vmatmul.mubr.bf16.gmra.mrb[0].mxu0 %v481
        %v739 = vpop.f32.mrb[0].mxu0
        %v740 = vadd.f32 %v635, %v739
        %v741 = vpop.f32.mrb[0].mxu0
        %v742 = vpop.f32.mrb[0].mxu0
        %v743 = vadd.f32 %v635, %v742
        %v744 = vpop.f32.mrb[0].mxu0
        %745 = vmatprep.mubr.bf16.mxu0 0
        %746 = vmatmul.mubr.bf16.gmra.mrb[0].mxu0 %v484
        %v747 = vpop.f32.mrb[0].mxu0
        %v748 = vadd.f32 %v635, %v747
        %v749 = vpop.f32.mrb[0].mxu0
        %v750 = vpop.f32.mrb[0].mxu0
        %v751 = vadd.f32 %v635, %v750
        %v752 = vpop.f32.mrb[0].mxu0
        %753 = vmatprep.mubr.bf16.mxu0 0
        %754 = vmatmul.mubr.bf16.gmra.mrb[0].mxu0 %v487
        %v755 = vpop.f32.mrb[0].mxu0
        %v756 = vadd.f32 %v635, %v755
        %v757 = vpop.f32.mrb[0].mxu0
        %v758 = vpop.f32.mrb[0].mxu0
        %v759 = vadd.f32 %v635, %v758
        %v760 = vpop.f32.mrb[0].mxu0
        %761 = vmatprep.mubr.bf16.mxu0 0
        %762 = vmatmul.mubr.bf16.gmra.mrb[0].mxu0 %v490
        %v763 = vpop.f32.mrb[0].mxu0
        %v764 = vadd.f32 %v635, %v763
        %v765 = vpop.f32.mrb[0].mxu0
        %v766 = vpop.f32.mrb[0].mxu0
        %v767 = vadd.f32 %v635, %v766
        %v768 = vpop.f32.mrb[0].mxu0
        %769 = vmatprep.mubr.bf16.mxu0 0
        %770 = vmatmul.mubr.bf16.gmra.mrb[0].mxu0 %v493
        %v771 = vpop.f32.mrb[0].mxu0
        %v772 = vadd.f32 %v635, %v771
        %v773 = vpop.f32.mrb[0].mxu0
        %v774 = vpop.f32.mrb[0].mxu0
        %v775 = vadd.f32 %v635, %v774
        %v776 = vpop.f32.mrb[0].mxu0
        %777 = vdwg.mxu0
        %s778 = scalar_lea.vmem %s1, 128
        %v779 = vld [vmem:[%s778] sm:$0xf]
        %v780 = vld [vmem:[%s778 + $0x4] sm:$0xf]
        %v781 = vld [vmem:[%s778 + $0x8] sm:$0xf]
        %v782 = vld [vmem:[%s778 + $0xc] sm:$0xf]
        %s783 = scalar_lea.vmem %s2, 8
        %v784 = vld [vmem:[%s783] sm:$0x1]
        %v786 = vlaneseq
        %v787 = vshrl.u32 %v786, 7
        %v788 = vsub.s32 0, %v787
        %v789 = vrot.slane %v784, %v788
        %v795 = vunpack.c.l.b16 %v779
        %v796 = vunpack.c.l.b16 %v780
        %v797 = vunpack.c.l.b16 %v781
        %v798 = vunpack.c.l.b16 %v782
        %v799 = vpack.c.b16 %v796, %v795
        %v800 = vpack.c.b16 %v798, %v797
        %803 = vmatprep.subr.bf16.mxu0 0
        %804 = vmatpush1.bf16.msra.mxu0 %v799
        %805 = vmatprep.subr.bf16.mxu0 0
        %806 = vmatpush1.bf16.msra.mxu0 %v800
        %807 = vmatprep.subr.bf16.mxu0 0
        %808 = vmatpush1.bf16.msra.mxu0 0
        %809 = vmatprep.subr.bf16.mxu0 0
        %810 = vmatpush1.bf16.msra.mxu0 0
        %811 = vmatprep.subr.bf16.mxu0 0
        %812 = vmatpush1.bf16.msra.mxu0 0
        %813 = vmatprep.subr.bf16.mxu0 0
        %814 = vmatpush1.bf16.msra.mxu0 0
        %815 = vmatprep.subr.bf16.mxu0 0
        %816 = vmatpush1.bf16.msra.mxu0 0
        %817 = vmatprep.subr.bf16.mxu0 0
        %818 = vmatpush1.bf16.msra.mxu0 0
        %819 = vmatprep.subr.bf16.mxu0 0
        %820 = vmatpush1.bf16.msra.mxu0 0
        %821 = vmatprep.subr.bf16.mxu0 0
        %822 = vmatpush1.bf16.msra.mxu0 0
        %823 = vmatprep.subr.bf16.mxu0 0
        %824 = vmatpush1.bf16.msra.mxu0 0
        %825 = vmatprep.subr.bf16.mxu0 0
        %826 = vmatpush1.bf16.msra.mxu0 0
        %827 = vmatprep.subr.bf16.mxu0 0
        %828 = vmatpush1.bf16.msra.mxu0 0
        %829 = vmatprep.subr.bf16.mxu0 0
        %830 = vmatpush1.bf16.msra.mxu0 0
        %831 = vmatprep.subr.bf16.mxu0 0
        %832 = vmatpush1.bf16.msra.mxu0 0
        %833 = vmatprep.subr.bf16.mxu0 0
        %834 = vmatpush1.bf16.msra.mxu0 0
        %835 = vmatprep.mubr.bf16.mxu0 0
        %836 = vmatmul.mubr.bf16.gmra.mrb[0].mxu0 %v460
        %v837 = vpop.f32.mrb[0].mxu0
        %v838 = vadd.f32 %v789, %v837
        %v839 = vpop.f32.mrb[0].mxu0
        %v840 = vpop.f32.mrb[0].mxu0
        %v841 = vadd.f32 %v789, %v840
        %v842 = vpop.f32.mrb[0].mxu0
        %843 = vmatprep.mubr.bf16.mxu0 0
        %844 = vmatmul.mubr.bf16.gmra.mrb[0].mxu0 %v463
        %v845 = vpop.f32.mrb[0].mxu0
        %v846 = vadd.f32 %v789, %v845
        %v847 = vpop.f32.mrb[0].mxu0
        %v848 = vpop.f32.mrb[0].mxu0
        %v849 = vadd.f32 %v789, %v848
        %v850 = vpop.f32.mrb[0].mxu0
        %851 = vmatprep.mubr.bf16.mxu0 0
        %852 = vmatmul.mubr.bf16.gmra.mrb[0].mxu0 %v466
        %v853 = vpop.f32.mrb[0].mxu0
        %v854 = vadd.f32 %v789, %v853
        %v855 = vpop.f32.mrb[0].mxu0
        %v856 = vpop.f32.mrb[0].mxu0
        %v857 = vadd.f32 %v789, %v856
        %v858 = vpop.f32.mrb[0].mxu0
        %859 = vmatprep.mubr.bf16.mxu0 0
        %860 = vmatmul.mubr.bf16.gmra.mrb[0].mxu0 %v469
        %v861 = vpop.f32.mrb[0].mxu0
        %v862 = vadd.f32 %v789, %v861
        %v863 = vpop.f32.mrb[0].mxu0
        %v864 = vpop.f32.mrb[0].mxu0
        %v865 = vadd.f32 %v789, %v864
        %v866 = vpop.f32.mrb[0].mxu0
        %867 = vmatprep.mubr.bf16.mxu0 0
        %868 = vmatmul.mubr.bf16.gmra.mrb[0].mxu0 %v472
        %v869 = vpop.f32.mrb[0].mxu0
        %v870 = vadd.f32 %v789, %v869
        %v871 = vpop.f32.mrb[0].mxu0
        %v872 = vpop.f32.mrb[0].mxu0
        %v873 = vadd.f32 %v789, %v872
        %v874 = vpop.f32.mrb[0].mxu0
        %875 = vmatprep.mubr.bf16.mxu0 0
        %876 = vmatmul.mubr.bf16.gmra.mrb[0].mxu0 %v475
        %v877 = vpop.f32.mrb[0].mxu0
        %v878 = vadd.f32 %v789, %v877
        %v879 = vpop.f32.mrb[0].mxu0
        %v880 = vpop.f32.mrb[0].mxu0
        %v881 = vadd.f32 %v789, %v880
        %v882 = vpop.f32.mrb[0].mxu0
        %883 = vmatprep.mubr.bf16.mxu0 0
        %884 = vmatmul.mubr.bf16.gmra.mrb[0].mxu0 %v478
        %v885 = vpop.f32.mrb[0].mxu0
        %v886 = vadd.f32 %v789, %v885
        %v887 = vpop.f32.mrb[0].mxu0
        %v888 = vpop.f32.mrb[0].mxu0
        %v889 = vadd.f32 %v789, %v888
        %v890 = vpop.f32.mrb[0].mxu0
        %891 = vmatprep.mubr.bf16.mxu0 0
        %892 = vmatmul.mubr.bf16.gmra.mrb[0].mxu0 %v481
        %v893 = vpop.f32.mrb[0].mxu0
        %v894 = vadd.f32 %v789, %v893
        %v895 = vpop.f32.mrb[0].mxu0
        %v896 = vpop.f32.mrb[0].mxu0
        %v897 = vadd.f32 %v789, %v896
        %v898 = vpop.f32.mrb[0].mxu0
        %899 = vmatprep.mubr.bf16.mxu0 0
        %900 = vmatmul.mubr.bf16.gmra.mrb[0].mxu0 %v484
        %v901 = vpop.f32.mrb[0].mxu0
        %v902 = vadd.f32 %v789, %v901
        %v903 = vpop.f32.mrb[0].mxu0
        %v904 = vpop.f32.mrb[0].mxu0
        %v905 = vadd.f32 %v789, %v904
        %v906 = vpop.f32.mrb[0].mxu0
        %907 = vmatprep.mubr.bf16.mxu0 0
        %908 = vmatmul.mubr.bf16.gmra.mrb[0].mxu0 %v487
        %v909 = vpop.f32.mrb[0].mxu0
        %v910 = vadd.f32 %v789, %v909
        %v911 = vpop.f32.mrb[0].mxu0
        %v912 = vpop.f32.mrb[0].mxu0
        %v913 = vadd.f32 %v789, %v912
        %v914 = vpop.f32.mrb[0].mxu0
        %915 = vmatprep.mubr.bf16.mxu0 0
        %916 = vmatmul.mubr.bf16.gmra.mrb[0].mxu0 %v490
        %v917 = vpop.f32.mrb[0].mxu0
        %v918 = vadd.f32 %v789, %v917
        %v919 = vpop.f32.mrb[0].mxu0
        %v920 = vpop.f32.mrb[0].mxu0
        %v921 = vadd.f32 %v789, %v920
        %v922 = vpop.f32.mrb[0].mxu0
        %923 = vmatprep.mubr.bf16.mxu0 0
        %924 = vmatmul.mubr.bf16.gmra.mrb[0].mxu0 %v493
        %v925 = vpop.f32.mrb[0].mxu0
        %v926 = vadd.f32 %v789, %v925
        %v927 = vpop.f32.mrb[0].mxu0
        %v928 = vpop.f32.mrb[0].mxu0
        %v929 = vadd.f32 %v789, %v928
        %v930 = vpop.f32.mrb[0].mxu0
        %931 = vdwg.mxu0
        %v932 = vpack.c.bf16 %v533, %v530
        %v933 = vpack.c.bf16 %v541, %v538
        %v934 = vpack.c.bf16 %v549, %v546
        %v935 = vpack.c.bf16 %v557, %v554
        %v936 = vpack.c.bf16 %v565, %v562
        %v937 = vpack.c.bf16 %v573, %v570
        %v938 = vpack.c.bf16 %v581, %v578
        %v939 = vpack.c.bf16 %v589, %v586
        %v940 = vpack.c.bf16 %v597, %v594
        %v941 = vpack.c.bf16 %v605, %v602
        %v942 = vpack.c.bf16 %v613, %v610
        %v943 = vpack.c.bf16 %v621, %v618
        %v944 = vpack.c.bf16 %v687, %v684
        %v945 = vpack.c.bf16 %v695, %v692
        %v946 = vpack.c.bf16 %v703, %v700
        %v947 = vpack.c.bf16 %v711, %v708
        %v948 = vpack.c.bf16 %v719, %v716
        %v949 = vpack.c.bf16 %v727, %v724
        %v950 = vpack.c.bf16 %v735, %v732
        %v951 = vpack.c.bf16 %v743, %v740
        %v952 = vpack.c.bf16 %v751, %v748
        %v953 = vpack.c.bf16 %v759, %v756
        %v954 = vpack.c.bf16 %v767, %v764
        %v955 = vpack.c.bf16 %v775, %v772
        %vm956 = vcmask 64512
        %v958 = vsel %vm956, %v932, 0
        %v961 = vsel %vm956, %v933, 0
        %v964 = vsel %vm956, %v934, 0
        %v967 = vsel %vm956, %v935, 0
        %v970 = vsel %vm956, %v936, 0
        %v973 = vsel %vm956, %v937, 0
        %v976 = vsel %vm956, %v938, 0
        %v979 = vsel %vm956, %v939, 0
        %v982 = vsel %vm956, %v940, 0
        %v985 = vsel %vm956, %v941, 0
        %v988 = vsel %vm956, %v942, 0
        %v991 = vsel %vm956, %v943, 0
        %v994 = vsel %vm956, %v944, 0
        %v997 = vsel %vm956, %v945, 0
        %v1000 = vsel %vm956, %v946, 0
        %v1003 = vsel %vm956, %v947, 0
        %v1006 = vsel %vm956, %v948, 0
        %v1009 = vsel %vm956, %v949, 0
        %v1012 = vsel %vm956, %v950, 0
        %v1015 = vsel %vm956, %v951, 0
        %v1018 = vsel %vm956, %v952, 0
        %v1021 = vsel %vm956, %v953, 0
        %v1024 = vsel %vm956, %v954, 0
        %v1027 = vsel %vm956, %v955, 0
        %1029 = vmatprep.subr.bf16.mxu0 0
        %1030 = vmatpush1.bf16.xpose.msra.mxu0 %v994
        %1031 = vmatprep.subr.bf16.mxu0 0
        %1032 = vmatpush1.bf16.xpose.msra.mxu0 %v997
        %1033 = vmatprep.subr.bf16.mxu0 0
        %1034 = vmatpush1.bf16.xpose.msra.mxu0 %v1000
        %1035 = vmatprep.subr.bf16.mxu0 0
        %1036 = vmatpush1.bf16.xpose.msra.mxu0 %v1003
        %1037 = vmatprep.subr.bf16.mxu0 0
        %1038 = vmatpush1.bf16.xpose.msra.mxu0 %v1006
        %1039 = vmatprep.subr.bf16.mxu0 0
        %1040 = vmatpush1.bf16.xpose.msra.mxu0 %v1009
        %1041 = vmatprep.subr.bf16.mxu0 0
        %1042 = vmatpush1.bf16.xpose.msra.mxu0 %v1012
        %1043 = vmatprep.subr.bf16.mxu0 0
        %1044 = vmatpush1.bf16.xpose.msra.mxu0 %v1015
        %1045 = vmatprep.subr.bf16.mxu0 0
        %1046 = vmatpush1.bf16.xpose.msra.mxu0 %v1018
        %1047 = vmatprep.subr.bf16.mxu0 0
        %1048 = vmatpush1.bf16.xpose.msra.mxu0 %v1021
        %1049 = vmatprep.subr.bf16.mxu0 0
        %1050 = vmatpush1.bf16.xpose.msra.mxu0 %v1024
        %1051 = vmatprep.subr.bf16.mxu0 0
        %1052 = vmatpush1.bf16.xpose.msra.mxu0 %v1027
        %1053 = vmatprep.subr.bf16.mxu0 0
        %1054 = vmatpush1.bf16.xpose.msra.mxu0 0
        %1055 = vmatprep.subr.bf16.mxu0 0
        %1056 = vmatpush1.bf16.xpose.msra.mxu0 0
        %1057 = vmatprep.subr.bf16.mxu0 0
        %1058 = vmatpush1.bf16.xpose.msra.mxu0 0
        %1059 = vmatprep.subr.bf16.mxu0 0
        %1060 = vmatpush1.bf16.xpose.msra.mxu0 0
        %1061 = vmatprep.mubr.bf16.mxu0 0
        %1062 = vmatmul.mubr.bf16.gmra.mrb[0].mxu0 %v958
        %v1063 = vpop.f32.mrb[0].mxu0
        %v1064 = vadd.f32 0.0, %v1063
        %v1065 = vpop.f32.mrb[0].mxu0
        %v1066 = vadd.f32 0.0, %v1065
        %v1067 = vpop.f32.mrb[0].mxu0
        %v1068 = vadd.f32 0.0, %v1067
        %v1069 = vpop.f32.mrb[0].mxu0
        %v1070 = vadd.f32 0.0, %v1069
        %1071 = vmatprep.mubr.bf16.mxu0 0
        %1072 = vmatmul.mubr.bf16.gmra.mrb[0].mxu0 %v961
        %v1073 = vpop.f32.mrb[0].mxu0
        %v1074 = vadd.f32 0.0, %v1073
        %v1075 = vpop.f32.mrb[0].mxu0
        %v1076 = vadd.f32 0.0, %v1075
        %v1077 = vpop.f32.mrb[0].mxu0
        %v1078 = vadd.f32 0.0, %v1077
        %v1079 = vpop.f32.mrb[0].mxu0
        %v1080 = vadd.f32 0.0, %v1079
        %1081 = vmatprep.mubr.bf16.mxu0 0
        %1082 = vmatmul.mubr.bf16.gmra.mrb[0].mxu0 %v964
        %v1083 = vpop.f32.mrb[0].mxu0
        %v1084 = vadd.f32 0.0, %v1083
        %v1085 = vpop.f32.mrb[0].mxu0
        %v1086 = vadd.f32 0.0, %v1085
        %v1087 = vpop.f32.mrb[0].mxu0
        %v1088 = vadd.f32 0.0, %v1087
        %v1089 = vpop.f32.mrb[0].mxu0
        %v1090 = vadd.f32 0.0, %v1089
        %1091 = vmatprep.mubr.bf16.mxu0 0
        %1092 = vmatmul.mubr.bf16.gmra.mrb[0].mxu0 %v967
        %v1093 = vpop.f32.mrb[0].mxu0
        %v1094 = vadd.f32 0.0, %v1093
        %v1095 = vpop.f32.mrb[0].mxu0
        %v1096 = vadd.f32 0.0, %v1095
        %v1097 = vpop.f32.mrb[0].mxu0
        %v1098 = vadd.f32 0.0, %v1097
        %v1099 = vpop.f32.mrb[0].mxu0
        %v1100 = vadd.f32 0.0, %v1099
        %1101 = vmatprep.mubr.bf16.mxu0 0
        %1102 = vmatmul.mubr.bf16.gmra.mrb[0].mxu0 %v970
        %v1103 = vpop.f32.mrb[0].mxu0
        %v1104 = vadd.f32 0.0, %v1103
        %v1105 = vpop.f32.mrb[0].mxu0
        %v1106 = vadd.f32 0.0, %v1105
        %v1107 = vpop.f32.mrb[0].mxu0
        %v1108 = vadd.f32 0.0, %v1107
        %v1109 = vpop.f32.mrb[0].mxu0
        %v1110 = vadd.f32 0.0, %v1109
        %1111 = vmatprep.mubr.bf16.mxu0 0
        %1112 = vmatmul.mubr.bf16.gmra.mrb[0].mxu0 %v973
        %v1113 = vpop.f32.mrb[0].mxu0
        %v1114 = vadd.f32 0.0, %v1113
        %v1115 = vpop.f32.mrb[0].mxu0
        %v1116 = vadd.f32 0.0, %v1115
        %v1117 = vpop.f32.mrb[0].mxu0
        %v1118 = vadd.f32 0.0, %v1117
        %v1119 = vpop.f32.mrb[0].mxu0
        %v1120 = vadd.f32 0.0, %v1119
        %1121 = vmatprep.mubr.bf16.mxu0 0
        %1122 = vmatmul.mubr.bf16.gmra.mrb[0].mxu0 %v976
        %v1123 = vpop.f32.mrb[0].mxu0
        %v1124 = vadd.f32 0.0, %v1123
        %v1125 = vpop.f32.mrb[0].mxu0
        %v1126 = vadd.f32 0.0, %v1125
        %v1127 = vpop.f32.mrb[0].mxu0
        %v1128 = vadd.f32 0.0, %v1127
        %v1129 = vpop.f32.mrb[0].mxu0
        %v1130 = vadd.f32 0.0, %v1129
        %1131 = vmatprep.mubr.bf16.mxu0 0
        %1132 = vmatmul.mubr.bf16.gmra.mrb[0].mxu0 %v979
        %v1133 = vpop.f32.mrb[0].mxu0
        %v1134 = vadd.f32 0.0, %v1133
        %v1135 = vpop.f32.mrb[0].mxu0
        %v1136 = vadd.f32 0.0, %v1135
        %v1137 = vpop.f32.mrb[0].mxu0
        %v1138 = vadd.f32 0.0, %v1137
        %v1139 = vpop.f32.mrb[0].mxu0
        %v1140 = vadd.f32 0.0, %v1139
        %1141 = vmatprep.mubr.bf16.mxu0 0
        %1142 = vmatmul.mubr.bf16.gmra.mrb[0].mxu0 %v982
        %v1143 = vpop.f32.mrb[0].mxu0
        %v1144 = vadd.f32 0.0, %v1143
        %v1145 = vpop.f32.mrb[0].mxu0
        %v1146 = vadd.f32 0.0, %v1145
        %v1147 = vpop.f32.mrb[0].mxu0
        %v1148 = vadd.f32 0.0, %v1147
        %v1149 = vpop.f32.mrb[0].mxu0
        %v1150 = vadd.f32 0.0, %v1149
        %1151 = vmatprep.mubr.bf16.mxu0 0
        %1152 = vmatmul.mubr.bf16.gmra.mrb[0].mxu0 %v985
        %v1153 = vpop.f32.mrb[0].mxu0
        %v1154 = vadd.f32 0.0, %v1153
        %v1155 = vpop.f32.mrb[0].mxu0
        %v1156 = vadd.f32 0.0, %v1155
        %v1157 = vpop.f32.mrb[0].mxu0
        %v1158 = vadd.f32 0.0, %v1157
        %v1159 = vpop.f32.mrb[0].mxu0
        %v1160 = vadd.f32 0.0, %v1159
        %1161 = vmatprep.mubr.bf16.mxu0 0
        %1162 = vmatmul.mubr.bf16.gmra.mrb[0].mxu0 %v988
        %v1163 = vpop.f32.mrb[0].mxu0
        %v1164 = vadd.f32 0.0, %v1163
        %v1165 = vpop.f32.mrb[0].mxu0
        %v1166 = vadd.f32 0.0, %v1165
        %v1167 = vpop.f32.mrb[0].mxu0
        %v1168 = vadd.f32 0.0, %v1167
        %v1169 = vpop.f32.mrb[0].mxu0
        %v1170 = vadd.f32 0.0, %v1169
        %1171 = vmatprep.mubr.bf16.mxu0 0
        %1172 = vmatmul.mubr.bf16.gmra.mrb[0].mxu0 %v991
        %v1173 = vpop.f32.mrb[0].mxu0
        %v1174 = vadd.f32 0.0, %v1173
        %v1175 = vpop.f32.mrb[0].mxu0
        %v1176 = vadd.f32 0.0, %v1175
        %v1177 = vpop.f32.mrb[0].mxu0
        %v1178 = vadd.f32 0.0, %v1177
        %v1179 = vpop.f32.mrb[0].mxu0
        %v1180 = vadd.f32 0.0, %v1179
        %1181 = vdwg.mxu0
        %vm1182 = vcmask 523264
        %v1183 = vsel %vm1182, %v1066, -inf
        %v1184 = vmax.f32 %v1064, %v1183
        %1185 = vmax.xlane.f32.xlu0 %v1184
        %v1186 = vpop.xlane.xlu0 %1185
        %v1187 = vsel %vm1182, %v1070, -inf
        %v1188 = vmax.f32 %v1068, %v1187
        %1189 = vmax.xlane.f32.xlu0 %v1188
        %v1190 = vpop.xlane.xlu0 %1189
        %v1191 = vsel %vm1182, %v1076, -inf
        %v1192 = vmax.f32 %v1074, %v1191
        %1193 = vmax.xlane.f32.xlu0 %v1192
        %v1194 = vpop.xlane.xlu0 %1193
        %v1195 = vsel %vm1182, %v1080, -inf
        %v1196 = vmax.f32 %v1078, %v1195
        %1197 = vmax.xlane.f32.xlu0 %v1196
        %v1198 = vpop.xlane.xlu0 %1197
        %v1199 = vsel %vm1182, %v1086, -inf
        %v1200 = vmax.f32 %v1084, %v1199
        %1201 = vmax.xlane.f32.xlu0 %v1200
        %v1202 = vpop.xlane.xlu0 %1201
        %v1203 = vsel %vm1182, %v1090, -inf
        %v1204 = vmax.f32 %v1088, %v1203
        %1205 = vmax.xlane.f32.xlu0 %v1204
        %v1206 = vpop.xlane.xlu0 %1205
        %v1207 = vsel %vm1182, %v1096, -inf
        %v1208 = vmax.f32 %v1094, %v1207
        %1209 = vmax.xlane.f32.xlu0 %v1208
        %v1210 = vpop.xlane.xlu0 %1209
        %v1211 = vsel %vm1182, %v1100, -inf
        %v1212 = vmax.f32 %v1098, %v1211
        %1213 = vmax.xlane.f32.xlu0 %v1212
        %v1214 = vpop.xlane.xlu0 %1213
        %v1215 = vsel %vm1182, %v1106, -inf
        %v1216 = vmax.f32 %v1104, %v1215
        %1217 = vmax.xlane.f32.xlu0 %v1216
        %v1218 = vpop.xlane.xlu0 %1217
        %v1219 = vsel %vm1182, %v1110, -inf
        %v1220 = vmax.f32 %v1108, %v1219
        %1221 = vmax.xlane.f32.xlu0 %v1220
        %v1222 = vpop.xlane.xlu0 %1221
        %v1223 = vsel %vm1182, %v1116, -inf
        %v1224 = vmax.f32 %v1114, %v1223
        %1225 = vmax.xlane.f32.xlu0 %v1224
        %v1226 = vpop.xlane.xlu0 %1225
        %v1227 = vsel %vm1182, %v1120, -inf
        %v1228 = vmax.f32 %v1118, %v1227
        %1229 = vmax.xlane.f32.xlu0 %v1228
        %v1230 = vpop.xlane.xlu0 %1229
        %v1231 = vsel %vm1182, %v1126, -inf
        %v1232 = vmax.f32 %v1124, %v1231
        %1233 = vmax.xlane.f32.xlu0 %v1232
        %v1234 = vpop.xlane.xlu0 %1233
        %v1235 = vsel %vm1182, %v1130, -inf
        %v1236 = vmax.f32 %v1128, %v1235
        %1237 = vmax.xlane.f32.xlu0 %v1236
        %v1238 = vpop.xlane.xlu0 %1237
        %v1239 = vsel %vm1182, %v1136, -inf
        %v1240 = vmax.f32 %v1134, %v1239
        %1241 = vmax.xlane.f32.xlu0 %v1240
        %v1242 = vpop.xlane.xlu0 %1241
        %v1243 = vsel %vm1182, %v1140, -inf
        %v1244 = vmax.f32 %v1138, %v1243
        %1245 = vmax.xlane.f32.xlu0 %v1244
        %v1246 = vpop.xlane.xlu0 %1245
        %v1247 = vsel %vm1182, %v1146, -inf
        %v1248 = vmax.f32 %v1144, %v1247
        %1249 = vmax.xlane.f32.xlu0 %v1248
        %v1250 = vpop.xlane.xlu0 %1249
        %v1251 = vsel %vm1182, %v1150, -inf
        %v1252 = vmax.f32 %v1148, %v1251
        %1253 = vmax.xlane.f32.xlu0 %v1252
        %v1254 = vpop.xlane.xlu0 %1253
        %v1255 = vsel %vm1182, %v1156, -inf
        %v1256 = vmax.f32 %v1154, %v1255
        %1257 = vmax.xlane.f32.xlu0 %v1256
        %v1258 = vpop.xlane.xlu0 %1257
        %v1259 = vsel %vm1182, %v1160, -inf
        %v1260 = vmax.f32 %v1158, %v1259
        %1261 = vmax.xlane.f32.xlu0 %v1260
        %v1262 = vpop.xlane.xlu0 %1261
        %v1263 = vsel %vm1182, %v1166, -inf
        %v1264 = vmax.f32 %v1164, %v1263
        %1265 = vmax.xlane.f32.xlu0 %v1264
        %v1266 = vpop.xlane.xlu0 %1265
        %v1267 = vsel %vm1182, %v1170, -inf
        %v1268 = vmax.f32 %v1168, %v1267
        %1269 = vmax.xlane.f32.xlu0 %v1268
        %v1270 = vpop.xlane.xlu0 %1269
        %v1271 = vsel %vm1182, %v1176, -inf
        %v1272 = vmax.f32 %v1174, %v1271
        %1273 = vmax.xlane.f32.xlu0 %v1272
        %v1274 = vpop.xlane.xlu0 %1273
        %v1275 = vsel %vm1182, %v1180, -inf
        %v1276 = vmax.f32 %v1178, %v1275
        %1277 = vmax.xlane.f32.xlu0 %v1276
        %v1278 = vpop.xlane.xlu0 %1277
        %v1279 = vsub.f32 %v1064, %v1186
        %v1280 = vsub.f32 %v1066, %v1186
        %v1281 = vsub.f32 %v1068, %v1190
        %v1282 = vsub.f32 %v1070, %v1190
        %v1283 = vsub.f32 %v1074, %v1194
        %v1284 = vsub.f32 %v1076, %v1194
        %v1285 = vsub.f32 %v1078, %v1198
        %v1286 = vsub.f32 %v1080, %v1198
        %v1287 = vsub.f32 %v1084, %v1202
        %v1288 = vsub.f32 %v1086, %v1202
        %v1289 = vsub.f32 %v1088, %v1206
        %v1290 = vsub.f32 %v1090, %v1206
        %v1291 = vsub.f32 %v1094, %v1210
        %v1292 = vsub.f32 %v1096, %v1210
        %v1293 = vsub.f32 %v1098, %v1214
        %v1294 = vsub.f32 %v1100, %v1214
        %v1295 = vsub.f32 %v1104, %v1218
        %v1296 = vsub.f32 %v1106, %v1218
        %v1297 = vsub.f32 %v1108, %v1222
        %v1298 = vsub.f32 %v1110, %v1222
        %v1299 = vsub.f32 %v1114, %v1226
        %v1300 = vsub.f32 %v1116, %v1226
        %v1301 = vsub.f32 %v1118, %v1230
        %v1302 = vsub.f32 %v1120, %v1230
        %v1303 = vsub.f32 %v1124, %v1234
        %v1304 = vsub.f32 %v1126, %v1234
        %v1305 = vsub.f32 %v1128, %v1238
        %v1306 = vsub.f32 %v1130, %v1238
        %v1307 = vsub.f32 %v1134, %v1242
        %v1308 = vsub.f32 %v1136, %v1242
        %v1309 = vsub.f32 %v1138, %v1246
        %v1310 = vsub.f32 %v1140, %v1246
        %v1311 = vsub.f32 %v1144, %v1250
        %v1312 = vsub.f32 %v1146, %v1250
        %v1313 = vsub.f32 %v1148, %v1254
        %v1314 = vsub.f32 %v1150, %v1254
        %v1315 = vsub.f32 %v1154, %v1258
        %v1316 = vsub.f32 %v1156, %v1258
        %v1317 = vsub.f32 %v1158, %v1262
        %v1318 = vsub.f32 %v1160, %v1262
        %v1319 = vsub.f32 %v1164, %v1266
        %v1320 = vsub.f32 %v1166, %v1266
        %v1321 = vsub.f32 %v1168, %v1270
        %v1322 = vsub.f32 %v1170, %v1270
        %v1323 = vsub.f32 %v1174, %v1274
        %v1324 = vsub.f32 %v1176, %v1274
        %v1325 = vsub.f32 %v1178, %v1278
        %v1326 = vsub.f32 %v1180, %v1278
        %v1327 = vmul.f32 %v1279, 1.442695
        %v1328 = vpow.pop %v1327
        %v1329 = vmul.f32 %v1280, 1.442695
        %v1330 = vpow.pop %v1329
        %v1331 = vmul.f32 %v1281, 1.442695
        %v1332 = vpow.pop %v1331
        %v1333 = vmul.f32 %v1282, 1.442695
        %v1334 = vpow.pop %v1333
        %v1335 = vmul.f32 %v1283, 1.442695
        %v1336 = vpow.pop %v1335
        %v1337 = vmul.f32 %v1284, 1.442695
        %v1338 = vpow.pop %v1337
        %v1339 = vmul.f32 %v1285, 1.442695
        %v1340 = vpow.pop %v1339
        %v1341 = vmul.f32 %v1286, 1.442695
        %v1342 = vpow.pop %v1341
        %v1343 = vmul.f32 %v1287, 1.442695
        %v1344 = vpow.pop %v1343
        %v1345 = vmul.f32 %v1288, 1.442695
        %v1346 = vpow.pop %v1345
        %v1347 = vmul.f32 %v1289, 1.442695
        %v1348 = vpow.pop %v1347
        %v1349 = vmul.f32 %v1290, 1.442695
        %v1350 = vpow.pop %v1349
        %v1351 = vmul.f32 %v1291, 1.442695
        %v1352 = vpow.pop %v1351
        %v1353 = vmul.f32 %v1292, 1.442695
        %v1354 = vpow.pop %v1353
        %v1355 = vmul.f32 %v1293, 1.442695
        %v1356 = vpow.pop %v1355
        %v1357 = vmul.f32 %v1294, 1.442695
        %v1358 = vpow.pop %v1357
        %v1359 = vmul.f32 %v1295, 1.442695
        %v1360 = vpow.pop %v1359
        %v1361 = vmul.f32 %v1296, 1.442695
        %v1362 = vpow.pop %v1361
        %v1363 = vmul.f32 %v1297, 1.442695
        %v1364 = vpow.pop %v1363
        %v1365 = vmul.f32 %v1298, 1.442695
        %v1366 = vpow.pop %v1365
        %v1367 = vmul.f32 %v1299, 1.442695
        %v1368 = vpow.pop %v1367
        %v1369 = vmul.f32 %v1300, 1.442695
        %v1370 = vpow.pop %v1369
        %v1371 = vmul.f32 %v1301, 1.442695
        %v1372 = vpow.pop %v1371
        %v1373 = vmul.f32 %v1302, 1.442695
        %v1374 = vpow.pop %v1373
        %v1375 = vmul.f32 %v1303, 1.442695
        %v1376 = vpow.pop %v1375
        %v1377 = vmul.f32 %v1304, 1.442695
        %v1378 = vpow.pop %v1377
        %v1379 = vmul.f32 %v1305, 1.442695
        %v1380 = vpow.pop %v1379
        %v1381 = vmul.f32 %v1306, 1.442695
        %v1382 = vpow.pop %v1381
        %v1383 = vmul.f32 %v1307, 1.442695
        %v1384 = vpow.pop %v1383
        %v1385 = vmul.f32 %v1308, 1.442695
        %v1386 = vpow.pop %v1385
        %v1387 = vmul.f32 %v1309, 1.442695
        %v1388 = vpow.pop %v1387
        %v1389 = vmul.f32 %v1310, 1.442695
        %v1390 = vpow.pop %v1389
        %v1391 = vmul.f32 %v1311, 1.442695
        %v1392 = vpow.pop %v1391
        %v1393 = vmul.f32 %v1312, 1.442695
        %v1394 = vpow.pop %v1393
        %v1395 = vmul.f32 %v1313, 1.442695
        %v1396 = vpow.pop %v1395
        %v1397 = vmul.f32 %v1314, 1.442695
        %v1398 = vpow.pop %v1397
        %v1399 = vmul.f32 %v1315, 1.442695
        %v1400 = vpow.pop %v1399
        %v1401 = vmul.f32 %v1316, 1.442695
        %v1402 = vpow.pop %v1401
        %v1403 = vmul.f32 %v1317, 1.442695
        %v1404 = vpow.pop %v1403
        %v1405 = vmul.f32 %v1318, 1.442695
        %v1406 = vpow.pop %v1405
        %v1407 = vmul.f32 %v1319, 1.442695
        %v1408 = vpow.pop %v1407
        %v1409 = vmul.f32 %v1320, 1.442695
        %v1410 = vpow.pop %v1409
        %v1411 = vmul.f32 %v1321, 1.442695
        %v1412 = vpow.pop %v1411
        %v1413 = vmul.f32 %v1322, 1.442695
        %v1414 = vpow.pop %v1413
        %v1415 = vmul.f32 %v1323, 1.442695
        %v1416 = vpow.pop %v1415
        %v1417 = vmul.f32 %v1324, 1.442695
        %v1418 = vpow.pop %v1417
        %v1419 = vmul.f32 %v1325, 1.442695
        %v1420 = vpow.pop %v1419
        %v1421 = vmul.f32 %v1326, 1.442695
        %v1422 = vpow.pop %v1421
        %v1423 = vsel %vm1182, %v1330, 0.0
        %v1424 = vadd.f32 %v1328, %v1423
        %1425 = vadd.xlane.f32.xlu0 %v1424
        %v1426 = vpop.xlane.xlu0 %1425
        %v1427 = vsel %vm1182, %v1334, 0.0
        %v1428 = vadd.f32 %v1332, %v1427
        %1429 = vadd.xlane.f32.xlu0 %v1428
        %v1430 = vpop.xlane.xlu0 %1429
        %v1431 = vsel %vm1182, %v1338, 0.0
        %v1432 = vadd.f32 %v1336, %v1431
        %1433 = vadd.xlane.f32.xlu0 %v1432
        %v1434 = vpop.xlane.xlu0 %1433
        %v1435 = vsel %vm1182, %v1342, 0.0
        %v1436 = vadd.f32 %v1340, %v1435
        %1437 = vadd.xlane.f32.xlu0 %v1436
        %v1438 = vpop.xlane.xlu0 %1437
        %v1439 = vsel %vm1182, %v1346, 0.0
        %v1440 = vadd.f32 %v1344, %v1439
        %1441 = vadd.xlane.f32.xlu0 %v1440
        %v1442 = vpop.xlane.xlu0 %1441
        %v1443 = vsel %vm1182, %v1350, 0.0
        %v1444 = vadd.f32 %v1348, %v1443
        %1445 = vadd.xlane.f32.xlu0 %v1444
        %v1446 = vpop.xlane.xlu0 %1445
        %v1447 = vsel %vm1182, %v1354, 0.0
        %v1448 = vadd.f32 %v1352, %v1447
        %1449 = vadd.xlane.f32.xlu0 %v1448
        %v1450 = vpop.xlane.xlu0 %1449
        %v1451 = vsel %vm1182, %v1358, 0.0
        %v1452 = vadd.f32 %v1356, %v1451
        %1453 = vadd.xlane.f32.xlu0 %v1452
        %v1454 = vpop.xlane.xlu0 %1453
        %v1455 = vsel %vm1182, %v1362, 0.0
        %v1456 = vadd.f32 %v1360, %v1455
        %1457 = vadd.xlane.f32.xlu0 %v1456
        %v1458 = vpop.xlane.xlu0 %1457
        %v1459 = vsel %vm1182, %v1366, 0.0
        %v1460 = vadd.f32 %v1364, %v1459
        %1461 = vadd.xlane.f32.xlu0 %v1460
        %v1462 = vpop.xlane.xlu0 %1461
        %v1463 = vsel %vm1182, %v1370, 0.0
        %v1464 = vadd.f32 %v1368, %v1463
        %1465 = vadd.xlane.f32.xlu0 %v1464
        %v1466 = vpop.xlane.xlu0 %1465
        %v1467 = vsel %vm1182, %v1374, 0.0
        %v1468 = vadd.f32 %v1372, %v1467
        %1469 = vadd.xlane.f32.xlu0 %v1468
        %v1470 = vpop.xlane.xlu0 %1469
        %v1471 = vsel %vm1182, %v1378, 0.0
        %v1472 = vadd.f32 %v1376, %v1471
        %1473 = vadd.xlane.f32.xlu0 %v1472
        %v1474 = vpop.xlane.xlu0 %1473
        %v1475 = vsel %vm1182, %v1382, 0.0
        %v1476 = vadd.f32 %v1380, %v1475
        %1477 = vadd.xlane.f32.xlu0 %v1476
        %v1478 = vpop.xlane.xlu0 %1477
        %v1479 = vsel %vm1182, %v1386, 0.0
        %v1480 = vadd.f32 %v1384, %v1479
        %1481 = vadd.xlane.f32.xlu0 %v1480
        %v1482 = vpop.xlane.xlu0 %1481
        %v1483 = vsel %vm1182, %v1390, 0.0
        %v1484 = vadd.f32 %v1388, %v1483
        %1485 = vadd.xlane.f32.xlu0 %v1484
        %v1486 = vpop.xlane.xlu0 %1485
        %v1487 = vsel %vm1182, %v1394, 0.0
        %v1488 = vadd.f32 %v1392, %v1487
        %1489 = vadd.xlane.f32.xlu0 %v1488
        %v1490 = vpop.xlane.xlu0 %1489
        %v1491 = vsel %vm1182, %v1398, 0.0
        %v1492 = vadd.f32 %v1396, %v1491
        %1493 = vadd.xlane.f32.xlu0 %v1492
        %v1494 = vpop.xlane.xlu0 %1493
        %v1495 = vsel %vm1182, %v1402, 0.0
        %v1496 = vadd.f32 %v1400, %v1495
        %1497 = vadd.xlane.f32.xlu0 %v1496
        %v1498 = vpop.xlane.xlu0 %1497
        %v1499 = vsel %vm1182, %v1406, 0.0
        %v1500 = vadd.f32 %v1404, %v1499
        %1501 = vadd.xlane.f32.xlu0 %v1500
        %v1502 = vpop.xlane.xlu0 %1501
        %v1503 = vsel %vm1182, %v1410, 0.0
        %v1504 = vadd.f32 %v1408, %v1503
        %1505 = vadd.xlane.f32.xlu0 %v1504
        %v1506 = vpop.xlane.xlu0 %1505
        %v1507 = vsel %vm1182, %v1414, 0.0
        %v1508 = vadd.f32 %v1412, %v1507
        %1509 = vadd.xlane.f32.xlu0 %v1508
        %v1510 = vpop.xlane.xlu0 %1509
        %v1511 = vsel %vm1182, %v1418, 0.0
        %v1512 = vadd.f32 %v1416, %v1511
        %1513 = vadd.xlane.f32.xlu0 %v1512
        %v1514 = vpop.xlane.xlu0 %1513
        %v1515 = vsel %vm1182, %v1422, 0.0
        %v1516 = vadd.f32 %v1420, %v1515
        %1517 = vadd.xlane.f32.xlu0 %v1516
        %v1518 = vpop.xlane.xlu0 %1517
        %v1519 = vrcp.pop %v1426
        %v1520 = vrcp.pop %v1430
        %v1521 = vrcp.pop %v1434
        %v1522 = vrcp.pop %v1438
        %v1523 = vrcp.pop %v1442
        %v1524 = vrcp.pop %v1446
        %v1525 = vrcp.pop %v1450
        %v1526 = vrcp.pop %v1454
        %v1527 = vrcp.pop %v1458
        %v1528 = vrcp.pop %v1462
        %v1529 = vrcp.pop %v1466
        %v1530 = vrcp.pop %v1470
        %v1531 = vrcp.pop %v1474
        %v1532 = vrcp.pop %v1478
        %v1533 = vrcp.pop %v1482
        %v1534 = vrcp.pop %v1486
        %v1535 = vrcp.pop %v1490
        %v1536 = vrcp.pop %v1494
        %v1537 = vrcp.pop %v1498
        %v1538 = vrcp.pop %v1502
        %v1539 = vrcp.pop %v1506
        %v1540 = vrcp.pop %v1510
        %v1541 = vrcp.pop %v1514
        %v1542 = vrcp.pop %v1518
        %v1543 = vmul.f32 %v1328, %v1519
        %v1544 = vmul.f32 %v1330, %v1519
        %v1545 = vmul.f32 %v1332, %v1520
        %v1546 = vmul.f32 %v1334, %v1520
        %v1547 = vmul.f32 %v1336, %v1521
        %v1548 = vmul.f32 %v1338, %v1521
        %v1549 = vmul.f32 %v1340, %v1522
        %v1550 = vmul.f32 %v1342, %v1522
        %v1551 = vmul.f32 %v1344, %v1523
        %v1552 = vmul.f32 %v1346, %v1523
        %v1553 = vmul.f32 %v1348, %v1524
        %v1554 = vmul.f32 %v1350, %v1524
        %v1555 = vmul.f32 %v1352, %v1525
        %v1556 = vmul.f32 %v1354, %v1525
        %v1557 = vmul.f32 %v1356, %v1526
        %v1558 = vmul.f32 %v1358, %v1526
        %v1559 = vmul.f32 %v1360, %v1527
        %v1560 = vmul.f32 %v1362, %v1527
        %v1561 = vmul.f32 %v1364, %v1528
        %v1562 = vmul.f32 %v1366, %v1528
        %v1563 = vmul.f32 %v1368, %v1529
        %v1564 = vmul.f32 %v1370, %v1529
        %v1565 = vmul.f32 %v1372, %v1530
        %v1566 = vmul.f32 %v1374, %v1530
        %v1567 = vmul.f32 %v1376, %v1531
        %v1568 = vmul.f32 %v1378, %v1531
        %v1569 = vmul.f32 %v1380, %v1532
        %v1570 = vmul.f32 %v1382, %v1532
        %v1571 = vmul.f32 %v1384, %v1533
        %v1572 = vmul.f32 %v1386, %v1533
        %v1573 = vmul.f32 %v1388, %v1534
        %v1574 = vmul.f32 %v1390, %v1534
        %v1575 = vmul.f32 %v1392, %v1535
        %v1576 = vmul.f32 %v1394, %v1535
        %v1577 = vmul.f32 %v1396, %v1536
        %v1578 = vmul.f32 %v1398, %v1536
        %v1579 = vmul.f32 %v1400, %v1537
        %v1580 = vmul.f32 %v1402, %v1537
        %v1581 = vmul.f32 %v1404, %v1538
        %v1582 = vmul.f32 %v1406, %v1538
        %v1583 = vmul.f32 %v1408, %v1539
        %v1584 = vmul.f32 %v1410, %v1539
        %v1585 = vmul.f32 %v1412, %v1540
        %v1586 = vmul.f32 %v1414, %v1540
        %v1587 = vmul.f32 %v1416, %v1541
        %v1588 = vmul.f32 %v1418, %v1541
        %v1589 = vmul.f32 %v1420, %v1542
        %v1590 = vmul.f32 %v1422, %v1542
        %v1591 = vpack.c.bf16 %v1545, %v1543
        %v1592 = vpack.c.bf16 %v1546, %v1544
        %v1593 = vpack.c.bf16 %v1549, %v1547
        %v1594 = vpack.c.bf16 %v1550, %v1548
        %v1595 = vpack.c.bf16 %v1553, %v1551
        %v1596 = vpack.c.bf16 %v1554, %v1552
        %v1597 = vpack.c.bf16 %v1557, %v1555
        %v1598 = vpack.c.bf16 %v1558, %v1556
        %v1599 = vpack.c.bf16 %v1561, %v1559
        %v1600 = vpack.c.bf16 %v1562, %v1560
        %v1601 = vpack.c.bf16 %v1565, %v1563
        %v1602 = vpack.c.bf16 %v1566, %v1564
        %v1603 = vpack.c.bf16 %v1569, %v1567
        %v1604 = vpack.c.bf16 %v1570, %v1568
        %v1605 = vpack.c.bf16 %v1573, %v1571
        %v1606 = vpack.c.bf16 %v1574, %v1572
        %v1607 = vpack.c.bf16 %v1577, %v1575
        %v1608 = vpack.c.bf16 %v1578, %v1576
        %v1609 = vpack.c.bf16 %v1581, %v1579
        %v1610 = vpack.c.bf16 %v1582, %v1580
        %v1611 = vpack.c.bf16 %v1585, %v1583
        %v1612 = vpack.c.bf16 %v1586, %v1584
        %v1613 = vpack.c.bf16 %v1589, %v1587
        %v1614 = vpack.c.bf16 %v1590, %v1588
        %v1615 = vpack.c.bf16 %v841, %v838
        %v1616 = vpack.c.bf16 %v849, %v846
        %v1617 = vpack.c.bf16 %v857, %v854
        %v1618 = vpack.c.bf16 %v865, %v862
        %v1619 = vpack.c.bf16 %v873, %v870
        %v1620 = vpack.c.bf16 %v881, %v878
        %v1621 = vpack.c.bf16 %v889, %v886
        %v1622 = vpack.c.bf16 %v897, %v894
        %v1623 = vpack.c.bf16 %v905, %v902
        %v1624 = vpack.c.bf16 %v913, %v910
        %v1625 = vpack.c.bf16 %v921, %v918
        %v1626 = vpack.c.bf16 %v929, %v926
        %v1628 = vsel %vm1182, %v1592, 0
        %v1631 = vsel %vm1182, %v1594, 0
        %v1634 = vsel %vm1182, %v1596, 0
        %v1637 = vsel %vm1182, %v1598, 0
        %v1640 = vsel %vm1182, %v1600, 0
        %v1643 = vsel %vm1182, %v1602, 0
        %v1646 = vsel %vm1182, %v1604, 0
        %v1649 = vsel %vm1182, %v1606, 0
        %v1652 = vsel %vm1182, %v1608, 0
        %v1655 = vsel %vm1182, %v1610, 0
        %v1658 = vsel %vm1182, %v1612, 0
        %v1661 = vsel %vm1182, %v1614, 0
        %1663 = vmatprep.subr.bf16.mxu0 0
        %1664 = vmatpush1.bf16.msra.mxu0 %v1615
        %1665 = vmatprep.subr.bf16.mxu0 0
        %1666 = vmatpush1.bf16.msra.mxu0 %v1616
        %1667 = vmatprep.subr.bf16.mxu0 0
        %1668 = vmatpush1.bf16.msra.mxu0 %v1617
        %1669 = vmatprep.subr.bf16.mxu0 0
        %1670 = vmatpush1.bf16.msra.mxu0 %v1618
        %1671 = vmatprep.subr.bf16.mxu0 0
        %1672 = vmatpush1.bf16.msra.mxu0 %v1619
        %1673 = vmatprep.subr.bf16.mxu0 0
        %1674 = vmatpush1.bf16.msra.mxu0 %v1620
        %1675 = vmatprep.subr.bf16.mxu0 0
        %1676 = vmatpush1.bf16.msra.mxu0 %v1621
        %1677 = vmatprep.subr.bf16.mxu0 0
        %1678 = vmatpush1.bf16.msra.mxu0 %v1622
        %1679 = vmatprep.subr.bf16.mxu0 0
        %1680 = vmatpush1.bf16.msra.mxu0 %v1623
        %1681 = vmatprep.subr.bf16.mxu0 0
        %1682 = vmatpush1.bf16.msra.mxu0 %v1624
        %1683 = vmatprep.subr.bf16.mxu0 0
        %1684 = vmatpush1.bf16.msra.mxu0 %v1625
        %1685 = vmatprep.subr.bf16.mxu0 0
        %1686 = vmatpush1.bf16.msra.mxu0 %v1626
        %1687 = vmatprep.subr.bf16.mxu0 0
        %1688 = vmatpush1.bf16.msra.mxu0 0
        %1689 = vmatprep.subr.bf16.mxu0 0
        %1690 = vmatpush1.bf16.msra.mxu0 0
        %1691 = vmatprep.subr.bf16.mxu0 0
        %1692 = vmatpush1.bf16.msra.mxu0 0
        %1693 = vmatprep.subr.bf16.mxu0 0
        %1694 = vmatpush1.bf16.msra.mxu0 0
        %1695 = vmatprep.mubr.bf16.mxu0 %v1628
        %1696 = vmatmul.mubr.bf16.gmra.mrb[0].mxu0 %v1591
        %v1697 = vpop.f32.mrb[0].mxu0
        %v1698 = vadd.f32 0.0, %v1697
        %v1699 = vpop.f32.mrb[0].mxu0
        %v1700 = vpop.f32.mrb[0].mxu0
        %v1701 = vadd.f32 0.0, %v1700
        %v1702 = vpop.f32.mrb[0].mxu0
        %1703 = vmatprep.mubr.bf16.mxu0 %v1631
        %1704 = vmatmul.mubr.bf16.gmra.mrb[0].mxu0 %v1593
        %v1705 = vpop.f32.mrb[0].mxu0
        %v1706 = vadd.f32 0.0, %v1705
        %v1707 = vpop.f32.mrb[0].mxu0
        %v1708 = vpop.f32.mrb[0].mxu0
        %v1709 = vadd.f32 0.0, %v1708
        %v1710 = vpop.f32.mrb[0].mxu0
        %1711 = vmatprep.mubr.bf16.mxu0 %v1634
        %1712 = vmatmul.mubr.bf16.gmra.mrb[0].mxu0 %v1595
        %v1713 = vpop.f32.mrb[0].mxu0
        %v1714 = vadd.f32 0.0, %v1713
        %v1715 = vpop.f32.mrb[0].mxu0
        %v1716 = vpop.f32.mrb[0].mxu0
        %v1717 = vadd.f32 0.0, %v1716
        %v1718 = vpop.f32.mrb[0].mxu0
        %1719 = vmatprep.mubr.bf16.mxu0 %v1637
        %1720 = vmatmul.mubr.bf16.gmra.mrb[0].mxu0 %v1597
        %v1721 = vpop.f32.mrb[0].mxu0
        %v1722 = vadd.f32 0.0, %v1721
        %v1723 = vpop.f32.mrb[0].mxu0
        %v1724 = vpop.f32.mrb[0].mxu0
        %v1725 = vadd.f32 0.0, %v1724
        %v1726 = vpop.f32.mrb[0].mxu0
        %1727 = vmatprep.mubr.bf16.mxu0 %v1640
        %1728 = vmatmul.mubr.bf16.gmra.mrb[0].mxu0 %v1599
        %v1729 = vpop.f32.mrb[0].mxu0
        %v1730 = vadd.f32 0.0, %v1729
        %v1731 = vpop.f32.mrb[0].mxu0
        %v1732 = vpop.f32.mrb[0].mxu0
        %v1733 = vadd.f32 0.0, %v1732
        %v1734 = vpop.f32.mrb[0].mxu0
        %1735 = vmatprep.mubr.bf16.mxu0 %v1643
        %1736 = vmatmul.mubr.bf16.gmra.mrb[0].mxu0 %v1601
        %v1737 = vpop.f32.mrb[0].mxu0
        %v1738 = vadd.f32 0.0, %v1737
        %v1739 = vpop.f32.mrb[0].mxu0
        %v1740 = vpop.f32.mrb[0].mxu0
        %v1741 = vadd.f32 0.0, %v1740
        %v1742 = vpop.f32.mrb[0].mxu0
        %1743 = vmatprep.mubr.bf16.mxu0 %v1646
        %1744 = vmatmul.mubr.bf16.gmra.mrb[0].mxu0 %v1603
        %v1745 = vpop.f32.mrb[0].mxu0
        %v1746 = vadd.f32 0.0, %v1745
        %v1747 = vpop.f32.mrb[0].mxu0
        %v1748 = vpop.f32.mrb[0].mxu0
        %v1749 = vadd.f32 0.0, %v1748
        %v1750 = vpop.f32.mrb[0].mxu0
        %1751 = vmatprep.mubr.bf16.mxu0 %v1649
        %1752 = vmatmul.mubr.bf16.gmra.mrb[0].mxu0 %v1605
        %v1753 = vpop.f32.mrb[0].mxu0
        %v1754 = vadd.f32 0.0, %v1753
        %v1755 = vpop.f32.mrb[0].mxu0
        %v1756 = vpop.f32.mrb[0].mxu0
        %v1757 = vadd.f32 0.0, %v1756
        %v1758 = vpop.f32.mrb[0].mxu0
        %1759 = vmatprep.mubr.bf16.mxu0 %v1652
        %1760 = vmatmul.mubr.bf16.gmra.mrb[0].mxu0 %v1607
        %v1761 = vpop.f32.mrb[0].mxu0
        %v1762 = vadd.f32 0.0, %v1761
        %v1763 = vpop.f32.mrb[0].mxu0
        %v1764 = vpop.f32.mrb[0].mxu0
        %v1765 = vadd.f32 0.0, %v1764
        %v1766 = vpop.f32.mrb[0].mxu0
        %1767 = vmatprep.mubr.bf16.mxu0 %v1655
        %1768 = vmatmul.mubr.bf16.gmra.mrb[0].mxu0 %v1609
        %v1769 = vpop.f32.mrb[0].mxu0
        %v1770 = vadd.f32 0.0, %v1769
        %v1771 = vpop.f32.mrb[0].mxu0
        %v1772 = vpop.f32.mrb[0].mxu0
        %v1773 = vadd.f32 0.0, %v1772
        %v1774 = vpop.f32.mrb[0].mxu0
        %1775 = vmatprep.mubr.bf16.mxu0 %v1658
        %1776 = vmatmul.mubr.bf16.gmra.mrb[0].mxu0 %v1611
        %v1777 = vpop.f32.mrb[0].mxu0
        %v1778 = vadd.f32 0.0, %v1777
        %v1779 = vpop.f32.mrb[0].mxu0
        %v1780 = vpop.f32.mrb[0].mxu0
        %v1781 = vadd.f32 0.0, %v1780
        %v1782 = vpop.f32.mrb[0].mxu0
        %1783 = vmatprep.mubr.bf16.mxu0 %v1661
        %1784 = vmatmul.mubr.bf16.gmra.mrb[0].mxu0 %v1613
        %v1785 = vpop.f32.mrb[0].mxu0
        %v1786 = vadd.f32 0.0, %v1785
        %v1787 = vpop.f32.mrb[0].mxu0
        %v1788 = vpop.f32.mrb[0].mxu0
        %v1789 = vadd.f32 0.0, %v1788
        %v1790 = vpop.f32.mrb[0].mxu0
        %1791 = vdwg.mxu0
        %v1792 = vpack.c.bf16 %v1701, %v1698
        %v1793 = vpack.c.bf16 %v1709, %v1706
        %v1794 = vpack.c.bf16 %v1717, %v1714
        %v1795 = vpack.c.bf16 %v1725, %v1722
        %v1796 = vpack.c.bf16 %v1733, %v1730
        %v1797 = vpack.c.bf16 %v1741, %v1738
        %v1798 = vpack.c.bf16 %v1749, %v1746
        %v1799 = vpack.c.bf16 %v1757, %v1754
        %v1800 = vpack.c.bf16 %v1765, %v1762
        %v1801 = vpack.c.bf16 %v1773, %v1770
        %v1802 = vpack.c.bf16 %v1781, %v1778
        %v1803 = vpack.c.bf16 %v1789, %v1786
        %v1804 = vld [vmem:[%s3] sm:$0xf]
        %s1805 = scalar_lea.vmem %s1, 16
        %v1806 = vld [vmem:[%s1805] sm:$0xf]
        %v1807 = vld [vmem:[%s1805 + $0x4] sm:$0xf]
        %v1808 = vld [vmem:[%s1805 + $0x8] sm:$0xf]
        %v1809 = vld [vmem:[%s1805 + $0xc] sm:$0xf]
        %s1810 = scalar_lea.vmem %s2, 1
        %v1811 = vld [vmem:[%s1810] sm:$0x1]
        %v1813 = vlaneseq
        %v1814 = vshrl.u32 %v1813, 7
        %v1815 = vsub.s32 0, %v1814
        %v1816 = vrot.slane %v1811, %v1815
        %v1822 = vunpack.c.l.b16 %v1806
        %v1823 = vunpack.c.l.b16 %v1807
        %v1824 = vunpack.c.l.b16 %v1808
        %v1825 = vunpack.c.l.b16 %v1809
        %v1826 = vpack.c.b16 %v1823, %v1822
        %v1827 = vpack.c.b16 %v1825, %v1824
        %1830 = vmatprep.subr.bf16.mxu0 0
        %1831 = vmatpush1.bf16.msra.mxu0 %v1826
        %1832 = vmatprep.subr.bf16.mxu0 0
        %1833 = vmatpush1.bf16.msra.mxu0 %v1827
        %1834 = vmatprep.subr.bf16.mxu0 0
        %1835 = vmatpush1.bf16.msra.mxu0 0
        %1836 = vmatprep.subr.bf16.mxu0 0
        %1837 = vmatpush1.bf16.msra.mxu0 0
        %1838 = vmatprep.subr.bf16.mxu0 0
        %1839 = vmatpush1.bf16.msra.mxu0 0
        %1840 = vmatprep.subr.bf16.mxu0 0
        %1841 = vmatpush1.bf16.msra.mxu0 0
        %1842 = vmatprep.subr.bf16.mxu0 0
        %1843 = vmatpush1.bf16.msra.mxu0 0
        %1844 = vmatprep.subr.bf16.mxu0 0
        %1845 = vmatpush1.bf16.msra.mxu0 0
        %1846 = vmatprep.subr.bf16.mxu0 0
        %1847 = vmatpush1.bf16.msra.mxu0 0
        %1848 = vmatprep.subr.bf16.mxu0 0
        %1849 = vmatpush1.bf16.msra.mxu0 0
        %1850 = vmatprep.subr.bf16.mxu0 0
        %1851 = vmatpush1.bf16.msra.mxu0 0
        %1852 = vmatprep.subr.bf16.mxu0 0
        %1853 = vmatpush1.bf16.msra.mxu0 0
        %1854 = vmatprep.subr.bf16.mxu0 0
        %1855 = vmatpush1.bf16.msra.mxu0 0
        %1856 = vmatprep.subr.bf16.mxu0 0
        %1857 = vmatpush1.bf16.msra.mxu0 0
        %1858 = vmatprep.subr.bf16.mxu0 0
        %1859 = vmatpush1.bf16.msra.mxu0 0
        %1860 = vmatprep.subr.bf16.mxu0 0
        %1861 = vmatpush1.bf16.msra.mxu0 0
        %1862 = vmatprep.mubr.bf16.mxu0 0
        %1863 = vmatmul.mubr.bf16.gmra.mrb[0].mxu0 %v460
        %v1864 = vpop.f32.mrb[0].mxu0
        %v1865 = vadd.f32 %v1816, %v1864
        %v1866 = vpop.f32.mrb[0].mxu0
        %v1867 = vpop.f32.mrb[0].mxu0
        %v1868 = vadd.f32 %v1816, %v1867
        %v1869 = vpop.f32.mrb[0].mxu0
        %1870 = vmatprep.mubr.bf16.mxu0 0
        %1871 = vmatmul.mubr.bf16.gmra.mrb[0].mxu0 %v463
        %v1872 = vpop.f32.mrb[0].mxu0
        %v1873 = vadd.f32 %v1816, %v1872
        %v1874 = vpop.f32.mrb[0].mxu0
        %v1875 = vpop.f32.mrb[0].mxu0
        %v1876 = vadd.f32 %v1816, %v1875
        %v1877 = vpop.f32.mrb[0].mxu0
        %1878 = vmatprep.mubr.bf16.mxu0 0
        %1879 = vmatmul.mubr.bf16.gmra.mrb[0].mxu0 %v466
        %v1880 = vpop.f32.mrb[0].mxu0
        %v1881 = vadd.f32 %v1816, %v1880
        %v1882 = vpop.f32.mrb[0].mxu0
        %v1883 = vpop.f32.mrb[0].mxu0
        %v1884 = vadd.f32 %v1816, %v1883
        %v1885 = vpop.f32.mrb[0].mxu0
        %1886 = vmatprep.mubr.bf16.mxu0 0
        %1887 = vmatmul.mubr.bf16.gmra.mrb[0].mxu0 %v469
        %v1888 = vpop.f32.mrb[0].mxu0
        %v1889 = vadd.f32 %v1816, %v1888
        %v1890 = vpop.f32.mrb[0].mxu0
        %v1891 = vpop.f32.mrb[0].mxu0
        %v1892 = vadd.f32 %v1816, %v1891
        %v1893 = vpop.f32.mrb[0].mxu0
        %1894 = vmatprep.mubr.bf16.mxu0 0
        %1895 = vmatmul.mubr.bf16.gmra.mrb[0].mxu0 %v472
        %v1896 = vpop.f32.mrb[0].mxu0
        %v1897 = vadd.f32 %v1816, %v1896
        %v1898 = vpop.f32.mrb[0].mxu0
        %v1899 = vpop.f32.mrb[0].mxu0
        %v1900 = vadd.f32 %v1816, %v1899
        %v1901 = vpop.f32.mrb[0].mxu0
        %1902 = vmatprep.mubr.bf16.mxu0 0
        %1903 = vmatmul.mubr.bf16.gmra.mrb[0].mxu0 %v475
        %v1904 = vpop.f32.mrb[0].mxu0
        %v1905 = vadd.f32 %v1816, %v1904
        %v1906 = vpop.f32.mrb[0].mxu0
        %v1907 = vpop.f32.mrb[0].mxu0
        %v1908 = vadd.f32 %v1816, %v1907
        %v1909 = vpop.f32.mrb[0].mxu0
        %1910 = vmatprep.mubr.bf16.mxu0 0
        %1911 = vmatmul.mubr.bf16.gmra.mrb[0].mxu0 %v478
        %v1912 = vpop.f32.mrb[0].mxu0
        %v1913 = vadd.f32 %v1816, %v1912
        %v1914 = vpop.f32.mrb[0].mxu0
        %v1915 = vpop.f32.mrb[0].mxu0
        %v1916 = vadd.f32 %v1816, %v1915
        %v1917 = vpop.f32.mrb[0].mxu0
        %1918 = vmatprep.mubr.bf16.mxu0 0
        %1919 = vmatmul.mubr.bf16.gmra.mrb[0].mxu0 %v481
        %v1920 = vpop.f32.mrb[0].mxu0
        %v1921 = vadd.f32 %v1816, %v1920
        %v1922 = vpop.f32.mrb[0].mxu0
        %v1923 = vpop.f32.mrb[0].mxu0
        %v1924 = vadd.f32 %v1816, %v1923
        %v1925 = vpop.f32.mrb[0].mxu0
        %1926 = vmatprep.mubr.bf16.mxu0 0
        %1927 = vmatmul.mubr.bf16.gmra.mrb[0].mxu0 %v484
        %v1928 = vpop.f32.mrb[0].mxu0
        %v1929 = vadd.f32 %v1816, %v1928
        %v1930 = vpop.f32.mrb[0].mxu0
        %v1931 = vpop.f32.mrb[0].mxu0
        %v1932 = vadd.f32 %v1816, %v1931
        %v1933 = vpop.f32.mrb[0].mxu0
        %1934 = vmatprep.mubr.bf16.mxu0 0
        %1935 = vmatmul.mubr.bf16.gmra.mrb[0].mxu0 %v487
        %v1936 = vpop.f32.mrb[0].mxu0
        %v1937 = vadd.f32 %v1816, %v1936
        %v1938 = vpop.f32.mrb[0].mxu0
        %v1939 = vpop.f32.mrb[0].mxu0
        %v1940 = vadd.f32 %v1816, %v1939
        %v1941 = vpop.f32.mrb[0].mxu0
        %1942 = vmatprep.mubr.bf16.mxu0 0
        %1943 = vmatmul.mubr.bf16.gmra.mrb[0].mxu0 %v490
        %v1944 = vpop.f32.mrb[0].mxu0
        %v1945 = vadd.f32 %v1816, %v1944
        %v1946 = vpop.f32.mrb[0].mxu0
        %v1947 = vpop.f32.mrb[0].mxu0
        %v1948 = vadd.f32 %v1816, %v1947
        %v1949 = vpop.f32.mrb[0].mxu0
        %1950 = vmatprep.mubr.bf16.mxu0 0
        %1951 = vmatmul.mubr.bf16.gmra.mrb[0].mxu0 %v493
        %v1952 = vpop.f32.mrb[0].mxu0
        %v1953 = vadd.f32 %v1816, %v1952
        %v1954 = vpop.f32.mrb[0].mxu0
        %v1955 = vpop.f32.mrb[0].mxu0
        %v1956 = vadd.f32 %v1816, %v1955
        %v1957 = vpop.f32.mrb[0].mxu0
        %1958 = vdwg.mxu0
        %s1959 = scalar_lea.vmem %s1, 80
        %v1960 = vld [vmem:[%s1959] sm:$0xf]
        %v1961 = vld [vmem:[%s1959 + $0x4] sm:$0xf]
        %v1962 = vld [vmem:[%s1959 + $0x8] sm:$0xf]
        %v1963 = vld [vmem:[%s1959 + $0xc] sm:$0xf]
        %s1964 = scalar_lea.vmem %s2, 5
        %v1965 = vld [vmem:[%s1964] sm:$0x1]
        %v1967 = vlaneseq
        %v1968 = vshrl.u32 %v1967, 7
        %v1969 = vsub.s32 0, %v1968
        %v1970 = vrot.slane %v1965, %v1969
        %v1976 = vunpack.c.l.b16 %v1960
        %v1977 = vunpack.c.l.b16 %v1961
        %v1978 = vunpack.c.l.b16 %v1962
        %v1979 = vunpack.c.l.b16 %v1963
        %v1980 = vpack.c.b16 %v1977, %v1976
        %v1981 = vpack.c.b16 %v1979, %v1978
        %1984 = vmatprep.subr.bf16.mxu0 0
        %1985 = vmatpush1.bf16.msra.mxu0 %v1980
        %1986 = vmatprep.subr.bf16.mxu0 0
        %1987 = vmatpush1.bf16.msra.mxu0 %v1981
        %1988 = vmatprep.subr.bf16.mxu0 0
        %1989 = vmatpush1.bf16.msra.mxu0 0
        %1990 = vmatprep.subr.bf16.mxu0 0
        %1991 = vmatpush1.bf16.msra.mxu0 0
        %1992 = vmatprep.subr.bf16.mxu0 0
        %1993 = vmatpush1.bf16.msra.mxu0 0
        %1994 = vmatprep.subr.bf16.mxu0 0
        %1995 = vmatpush1.bf16.msra.mxu0 0
        %1996 = vmatprep.subr.bf16.mxu0 0
        %1997 = vmatpush1.bf16.msra.mxu0 0
        %1998 = vmatprep.subr.bf16.mxu0 0
        %1999 = vmatpush1.bf16.msra.mxu0 0
        %2000 = vmatprep.subr.bf16.mxu0 0
        %2001 = vmatpush1.bf16.msra.mxu0 0
        %2002 = vmatprep.subr.bf16.mxu0 0
        %2003 = vmatpush1.bf16.msra.mxu0 0
        %2004 = vmatprep.subr.bf16.mxu0 0
        %2005 = vmatpush1.bf16.msra.mxu0 0
        %2006 = vmatprep.subr.bf16.mxu0 0
        %2007 = vmatpush1.bf16.msra.mxu0 0
        %2008 = vmatprep.subr.bf16.mxu0 0
        %2009 = vmatpush1.bf16.msra.mxu0 0
        %2010 = vmatprep.subr.bf16.mxu0 0
        %2011 = vmatpush1.bf16.msra.mxu0 0
        %2012 = vmatprep.subr.bf16.mxu0 0
        %2013 = vmatpush1.bf16.msra.mxu0 0
        %2014 = vmatprep.subr.bf16.mxu0 0
        %2015 = vmatpush1.bf16.msra.mxu0 0
        %2016 = vmatprep.mubr.bf16.mxu0 0
        %2017 = vmatmul.mubr.bf16.gmra.mrb[0].mxu0 %v460
        %v2018 = vpop.f32.mrb[0].mxu0
        %v2019 = vadd.f32 %v1970, %v2018
        %v2020 = vpop.f32.mrb[0].mxu0
        %v2021 = vpop.f32.mrb[0].mxu0
        %v2022 = vadd.f32 %v1970, %v2021
        %v2023 = vpop.f32.mrb[0].mxu0
        %2024 = vmatprep.mubr.bf16.mxu0 0
        %2025 = vmatmul.mubr.bf16.gmra.mrb[0].mxu0 %v463
        %v2026 = vpop.f32.mrb[0].mxu0
        %v2027 = vadd.f32 %v1970, %v2026
        %v2028 = vpop.f32.mrb[0].mxu0
        %v2029 = vpop.f32.mrb[0].mxu0
        %v2030 = vadd.f32 %v1970, %v2029
        %v2031 = vpop.f32.mrb[0].mxu0
        %2032 = vmatprep.mubr.bf16.mxu0 0
        %2033 = vmatmul.mubr.bf16.gmra.mrb[0].mxu0 %v466
        %v2034 = vpop.f32.mrb[0].mxu0
        %v2035 = vadd.f32 %v1970, %v2034
        %v2036 = vpop.f32.mrb[0].mxu0
        %v2037 = vpop.f32.mrb[0].mxu0
        %v2038 = vadd.f32 %v1970, %v2037
        %v2039 = vpop.f32.mrb[0].mxu0
        %2040 = vmatprep.mubr.bf16.mxu0 0
        %2041 = vmatmul.mubr.bf16.gmra.mrb[0].mxu0 %v469
        %v2042 = vpop.f32.mrb[0].mxu0
        %v2043 = vadd.f32 %v1970, %v2042
        %v2044 = vpop.f32.mrb[0].mxu0
        %v2045 = vpop.f32.mrb[0].mxu0
        %v2046 = vadd.f32 %v1970, %v2045
        %v2047 = vpop.f32.mrb[0].mxu0
        %2048 = vmatprep.mubr.bf16.mxu0 0
        %2049 = vmatmul.mubr.bf16.gmra.mrb[0].mxu0 %v472
        %v2050 = vpop.f32.mrb[0].mxu0
        %v2051 = vadd.f32 %v1970, %v2050
        %v2052 = vpop.f32.mrb[0].mxu0
        %v2053 = vpop.f32.mrb[0].mxu0
        %v2054 = vadd.f32 %v1970, %v2053
        %v2055 = vpop.f32.mrb[0].mxu0
        %2056 = vmatprep.mubr.bf16.mxu0 0
        %2057 = vmatmul.mubr.bf16.gmra.mrb[0].mxu0 %v475
        %v2058 = vpop.f32.mrb[0].mxu0
        %v2059 = vadd.f32 %v1970, %v2058
        %v2060 = vpop.f32.mrb[0].mxu0
        %v2061 = vpop.f32.mrb[0].mxu0
        %v2062 = vadd.f32 %v1970, %v2061
        %v2063 = vpop.f32.mrb[0].mxu0
        %2064 = vmatprep.mubr.bf16.mxu0 0
        %2065 = vmatmul.mubr.bf16.gmra.mrb[0].mxu0 %v478
        %v2066 = vpop.f32.mrb[0].mxu0
        %v2067 = vadd.f32 %v1970, %v2066
        %v2068 = vpop.f32.mrb[0].mxu0
        %v2069 = vpop.f32.mrb[0].mxu0
        %v2070 = vadd.f32 %v1970, %v2069
        %v2071 = vpop.f32.mrb[0].mxu0
        %2072 = vmatprep.mubr.bf16.mxu0 0
        %2073 = vmatmul.mubr.bf16.gmra.mrb[0].mxu0 %v481
        %v2074 = vpop.f32.mrb[0].mxu0
        %v2075 = vadd.f32 %v1970, %v2074
        %v2076 = vpop.f32.mrb[0].mxu0
        %v2077 = vpop.f32.mrb[0].mxu0
        %v2078 = vadd.f32 %v1970, %v2077
        %v2079 = vpop.f32.mrb[0].mxu0
        %2080 = vmatprep.mubr.bf16.mxu0 0
        %2081 = vmatmul.mubr.bf16.gmra.mrb[0].mxu0 %v484
        %v2082 = vpop.f32.mrb[0].mxu0
        %v2083 = vadd.f32 %v1970, %v2082
        %v2084 = vpop.f32.mrb[0].mxu0
        %v2085 = vpop.f32.mrb[0].mxu0
        %v2086 = vadd.f32 %v1970, %v2085
        %v2087 = vpop.f32.mrb[0].mxu0
        %2088 = vmatprep.mubr.bf16.mxu0 0
        %2089 = vmatmul.mubr.bf16.gmra.mrb[0].mxu0 %v487
        %v2090 = vpop.f32.mrb[0].mxu0
        %v2091 = vadd.f32 %v1970, %v2090
        %v2092 = vpop.f32.mrb[0].mxu0
        %v2093 = vpop.f32.mrb[0].mxu0
        %v2094 = vadd.f32 %v1970, %v2093
        %v2095 = vpop.f32.mrb[0].mxu0
        %2096 = vmatprep.mubr.bf16.mxu0 0
        %2097 = vmatmul.mubr.bf16.gmra.mrb[0].mxu0 %v490
        %v2098 = vpop.f32.mrb[0].mxu0
        %v2099 = vadd.f32 %v1970, %v2098
        %v2100 = vpop.f32.mrb[0].mxu0
        %v2101 = vpop.f32.mrb[0].mxu0
        %v2102 = vadd.f32 %v1970, %v2101
        %v2103 = vpop.f32.mrb[0].mxu0
        %2104 = vmatprep.mubr.bf16.mxu0 0
        %2105 = vmatmul.mubr.bf16.gmra.mrb[0].mxu0 %v493
        %v2106 = vpop.f32.mrb[0].mxu0
        %v2107 = vadd.f32 %v1970, %v2106
        %v2108 = vpop.f32.mrb[0].mxu0
        %v2109 = vpop.f32.mrb[0].mxu0
        %v2110 = vadd.f32 %v1970, %v2109
        %v2111 = vpop.f32.mrb[0].mxu0
        %2112 = vdwg.mxu0
        %s2113 = scalar_lea.vmem %s1, 144
        %v2114 = vld [vmem:[%s2113] sm:$0xf]
        %v2115 = vld [vmem:[%s2113 + $0x4] sm:$0xf]
        %v2116 = vld [vmem:[%s2113 + $0x8] sm:$0xf]
        %v2117 = vld [vmem:[%s2113 + $0xc] sm:$0xf]
        %s2118 = scalar_lea.vmem %s2, 9
        %v2119 = vld [vmem:[%s2118] sm:$0x1]
        %v2121 = vlaneseq
        %v2122 = vshrl.u32 %v2121, 7
        %v2123 = vsub.s32 0, %v2122
        %v2124 = vrot.slane %v2119, %v2123
        %v2130 = vunpack.c.l.b16 %v2114
        %v2131 = vunpack.c.l.b16 %v2115
        %v2132 = vunpack.c.l.b16 %v2116
        %v2133 = vunpack.c.l.b16 %v2117
        %v2134 = vpack.c.b16 %v2131, %v2130
        %v2135 = vpack.c.b16 %v2133, %v2132
        %2138 = vmatprep.subr.bf16.mxu0 0
        %2139 = vmatpush1.bf16.msra.mxu0 %v2134
        %2140 = vmatprep.subr.bf16.mxu0 0
        %2141 = vmatpush1.bf16.msra.mxu0 %v2135
        %2142 = vmatprep.subr.bf16.mxu0 0
        %2143 = vmatpush1.bf16.msra.mxu0 0
        %2144 = vmatprep.subr.bf16.mxu0 0
        %2145 = vmatpush1.bf16.msra.mxu0 0
        %2146 = vmatprep.subr.bf16.mxu0 0
        %2147 = vmatpush1.bf16.msra.mxu0 0
        %2148 = vmatprep.subr.bf16.mxu0 0
        %2149 = vmatpush1.bf16.msra.mxu0 0
        %2150 = vmatprep.subr.bf16.mxu0 0
        %2151 = vmatpush1.bf16.msra.mxu0 0
        %2152 = vmatprep.subr.bf16.mxu0 0
        %2153 = vmatpush1.bf16.msra.mxu0 0
        %2154 = vmatprep.subr.bf16.mxu0 0
        %2155 = vmatpush1.bf16.msra.mxu0 0
        %2156 = vmatprep.subr.bf16.mxu0 0
        %2157 = vmatpush1.bf16.msra.mxu0 0
        %2158 = vmatprep.subr.bf16.mxu0 0
        %2159 = vmatpush1.bf16.msra.mxu0 0
        %2160 = vmatprep.subr.bf16.mxu0 0
        %2161 = vmatpush1.bf16.msra.mxu0 0
        %2162 = vmatprep.subr.bf16.mxu0 0
        %2163 = vmatpush1.bf16.msra.mxu0 0
        %2164 = vmatprep.subr.bf16.mxu0 0
        %2165 = vmatpush1.bf16.msra.mxu0 0
        %2166 = vmatprep.subr.bf16.mxu0 0
        %2167 = vmatpush1.bf16.msra.mxu0 0
        %2168 = vmatprep.subr.bf16.mxu0 0
        %2169 = vmatpush1.bf16.msra.mxu0 0
        %2170 = vmatprep.mubr.bf16.mxu0 0
        %2171 = vmatmul.mubr.bf16.gmra.mrb[0].mxu0 %v460
        %v2172 = vpop.f32.mrb[0].mxu0
        %v2173 = vadd.f32 %v2124, %v2172
        %v2174 = vpop.f32.mrb[0].mxu0
        %v2175 = vpop.f32.mrb[0].mxu0
        %v2176 = vadd.f32 %v2124, %v2175
        %v2177 = vpop.f32.mrb[0].mxu0
        %2178 = vmatprep.mubr.bf16.mxu0 0
        %2179 = vmatmul.mubr.bf16.gmra.mrb[0].mxu0 %v463
        %v2180 = vpop.f32.mrb[0].mxu0
        %v2181 = vadd.f32 %v2124, %v2180
        %v2182 = vpop.f32.mrb[0].mxu0
        %v2183 = vpop.f32.mrb[0].mxu0
        %v2184 = vadd.f32 %v2124, %v2183
        %v2185 = vpop.f32.mrb[0].mxu0
        %2186 = vmatprep.mubr.bf16.mxu0 0
        %2187 = vmatmul.mubr.bf16.gmra.mrb[0].mxu0 %v466
        %v2188 = vpop.f32.mrb[0].mxu0
        %v2189 = vadd.f32 %v2124, %v2188
        %v2190 = vpop.f32.mrb[0].mxu0
        %v2191 = vpop.f32.mrb[0].mxu0
        %v2192 = vadd.f32 %v2124, %v2191
        %v2193 = vpop.f32.mrb[0].mxu0
        %2194 = vmatprep.mubr.bf16.mxu0 0
        %2195 = vmatmul.mubr.bf16.gmra.mrb[0].mxu0 %v469
        %v2196 = vpop.f32.mrb[0].mxu0
        %v2197 = vadd.f32 %v2124, %v2196
        %v2198 = vpop.f32.mrb[0].mxu0
        %v2199 = vpop.f32.mrb[0].mxu0
        %v2200 = vadd.f32 %v2124, %v2199
        %v2201 = vpop.f32.mrb[0].mxu0
        %2202 = vmatprep.mubr.bf16.mxu0 0
        %2203 = vmatmul.mubr.bf16.gmra.mrb[0].mxu0 %v472
        %v2204 = vpop.f32.mrb[0].mxu0
        %v2205 = vadd.f32 %v2124, %v2204
        %v2206 = vpop.f32.mrb[0].mxu0
        %v2207 = vpop.f32.mrb[0].mxu0
        %v2208 = vadd.f32 %v2124, %v2207
        %v2209 = vpop.f32.mrb[0].mxu0
        %2210 = vmatprep.mubr.bf16.mxu0 0
        %2211 = vmatmul.mubr.bf16.gmra.mrb[0].mxu0 %v475
        %v2212 = vpop.f32.mrb[0].mxu0
        %v2213 = vadd.f32 %v2124, %v2212
        %v2214 = vpop.f32.mrb[0].mxu0
        %v2215 = vpop.f32.mrb[0].mxu0
        %v2216 = vadd.f32 %v2124, %v2215
        %v2217 = vpop.f32.mrb[0].mxu0
        %2218 = vmatprep.mubr.bf16.mxu0 0
        %2219 = vmatmul.mubr.bf16.gmra.mrb[0].mxu0 %v478
        %v2220 = vpop.f32.mrb[0].mxu0
        %v2221 = vadd.f32 %v2124, %v2220
        %v2222 = vpop.f32.mrb[0].mxu0
        %v2223 = vpop.f32.mrb[0].mxu0
        %v2224 = vadd.f32 %v2124, %v2223
        %v2225 = vpop.f32.mrb[0].mxu0
        %2226 = vmatprep.mubr.bf16.mxu0 0
        %2227 = vmatmul.mubr.bf16.gmra.mrb[0].mxu0 %v481
        %v2228 = vpop.f32.mrb[0].mxu0
        %v2229 = vadd.f32 %v2124, %v2228
        %v2230 = vpop.f32.mrb[0].mxu0
        %v2231 = vpop.f32.mrb[0].mxu0
        %v2232 = vadd.f32 %v2124, %v2231
        %v2233 = vpop.f32.mrb[0].mxu0
        %2234 = vmatprep.mubr.bf16.mxu0 0
        %2235 = vmatmul.mubr.bf16.gmra.mrb[0].mxu0 %v484
        %v2236 = vpop.f32.mrb[0].mxu0
        %v2237 = vadd.f32 %v2124, %v2236
        %v2238 = vpop.f32.mrb[0].mxu0
        %v2239 = vpop.f32.mrb[0].mxu0
        %v2240 = vadd.f32 %v2124, %v2239
        %v2241 = vpop.f32.mrb[0].mxu0
        %2242 = vmatprep.mubr.bf16.mxu0 0
        %2243 = vmatmul.mubr.bf16.gmra.mrb[0].mxu0 %v487
        %v2244 = vpop.f32.mrb[0].mxu0
        %v2245 = vadd.f32 %v2124, %v2244
        %v2246 = vpop.f32.mrb[0].mxu0
        %v2247 = vpop.f32.mrb[0].mxu0
        %v2248 = vadd.f32 %v2124, %v2247
        %v2249 = vpop.f32.mrb[0].mxu0
        %2250 = vmatprep.mubr.bf16.mxu0 0
        %2251 = vmatmul.mubr.bf16.gmra.mrb[0].mxu0 %v490
        %v2252 = vpop.f32.mrb[0].mxu0
        %v2253 = vadd.f32 %v2124, %v2252
        %v2254 = vpop.f32.mrb[0].mxu0
        %v2255 = vpop.f32.mrb[0].mxu0
        %v2256 = vadd.f32 %v2124, %v2255
        %v2257 = vpop.f32.mrb[0].mxu0
        %2258 = vmatprep.mubr.bf16.mxu0 0
        %2259 = vmatmul.mubr.bf16.gmra.mrb[0].mxu0 %v493
        %v2260 = vpop.f32.mrb[0].mxu0
        %v2261 = vadd.f32 %v2124, %v2260
        %v2262 = vpop.f32.mrb[0].mxu0
        %v2263 = vpop.f32.mrb[0].mxu0
        %v2264 = vadd.f32 %v2124, %v2263
        %v2265 = vpop.f32.mrb[0].mxu0
        %2266 = vdwg.mxu0
        %v2267 = vpack.c.bf16 %v1868, %v1865
        %v2268 = vpack.c.bf16 %v1876, %v1873
        %v2269 = vpack.c.bf16 %v1884, %v1881
        %v2270 = vpack.c.bf16 %v1892, %v1889
        %v2271 = vpack.c.bf16 %v1900, %v1897
        %v2272 = vpack.c.bf16 %v1908, %v1905
        %v2273 = vpack.c.bf16 %v1916, %v1913
        %v2274 = vpack.c.bf16 %v1924, %v1921
        %v2275 = vpack.c.bf16 %v1932, %v1929
        %v2276 = vpack.c.bf16 %v1940, %v1937
        %v2277 = vpack.c.bf16 %v1948, %v1945
        %v2278 = vpack.c.bf16 %v1956, %v1953
        %v2279 = vpack.c.bf16 %v2022, %v2019
        %v2280 = vpack.c.bf16 %v2030, %v2027
        %v2281 = vpack.c.bf16 %v2038, %v2035
        %v2282 = vpack.c.bf16 %v2046, %v2043
        %v2283 = vpack.c.bf16 %v2054, %v2051
        %v2284 = vpack.c.bf16 %v2062, %v2059
        %v2285 = vpack.c.bf16 %v2070, %v2067
        %v2286 = vpack.c.bf16 %v2078, %v2075
        %v2287 = vpack.c.bf16 %v2086, %v2083
        %v2288 = vpack.c.bf16 %v2094, %v2091
        %v2289 = vpack.c.bf16 %v2102, %v2099
        %v2290 = vpack.c.bf16 %v2110, %v2107
        %v2292 = vsel %vm956, %v2267, 0
        %v2295 = vsel %vm956, %v2268, 0
        %v2298 = vsel %vm956, %v2269, 0
        %v2301 = vsel %vm956, %v2270, 0
        %v2304 = vsel %vm956, %v2271, 0
        %v2307 = vsel %vm956, %v2272, 0
        %v2310 = vsel %vm956, %v2273, 0
        %v2313 = vsel %vm956, %v2274, 0
        %v2316 = vsel %vm956, %v2275, 0
        %v2319 = vsel %vm956, %v2276, 0
        %v2322 = vsel %vm956, %v2277, 0
        %v2325 = vsel %vm956, %v2278, 0
        %v2328 = vsel %vm956, %v2279, 0
        %v2331 = vsel %vm956, %v2280, 0
        %v2334 = vsel %vm956, %v2281, 0
        %v2337 = vsel %vm956, %v2282, 0
        %v2340 = vsel %vm956, %v2283, 0
        %v2343 = vsel %vm956, %v2284, 0
        %v2346 = vsel %vm956, %v2285, 0
        %v2349 = vsel %vm956, %v2286, 0
        %v2352 = vsel %vm956, %v2287, 0
        %v2355 = vsel %vm956, %v2288, 0
        %v2358 = vsel %vm956, %v2289, 0
        %v2361 = vsel %vm956, %v2290, 0
        %2363 = vmatprep.subr.bf16.mxu0 0
        %2364 = vmatpush1.bf16.xpose.msra.mxu0 %v2328
        %2365 = vmatprep.subr.bf16.mxu0 0
        %2366 = vmatpush1.bf16.xpose.msra.mxu0 %v2331
        %2367 = vmatprep.subr.bf16.mxu0 0
        %2368 = vmatpush1.bf16.xpose.msra.mxu0 %v2334
        %2369 = vmatprep.subr.bf16.mxu0 0
        %2370 = vmatpush1.bf16.xpose.msra.mxu0 %v2337
        %2371 = vmatprep.subr.bf16.mxu0 0
        %2372 = vmatpush1.bf16.xpose.msra.mxu0 %v2340
        %2373 = vmatprep.subr.bf16.mxu0 0
        %2374 = vmatpush1.bf16.xpose.msra.mxu0 %v2343
        %2375 = vmatprep.subr.bf16.mxu0 0
        %2376 = vmatpush1.bf16.xpose.msra.mxu0 %v2346
        %2377 = vmatprep.subr.bf16.mxu0 0
        %2378 = vmatpush1.bf16.xpose.msra.mxu0 %v2349
        %2379 = vmatprep.subr.bf16.mxu0 0
        %2380 = vmatpush1.bf16.xpose.msra.mxu0 %v2352
        %2381 = vmatprep.subr.bf16.mxu0 0
        %2382 = vmatpush1.bf16.xpose.msra.mxu0 %v2355
        %2383 = vmatprep.subr.bf16.mxu0 0
        %2384 = vmatpush1.bf16.xpose.msra.mxu0 %v2358
        %2385 = vmatprep.subr.bf16.mxu0 0
        %2386 = vmatpush1.bf16.xpose.msra.mxu0 %v2361
        %2387 = vmatprep.subr.bf16.mxu0 0
        %2388 = vmatpush1.bf16.xpose.msra.mxu0 0
        %2389 = vmatprep.subr.bf16.mxu0 0
        %2390 = vmatpush1.bf16.xpose.msra.mxu0 0
        %2391 = vmatprep.subr.bf16.mxu0 0
        %2392 = vmatpush1.bf16.xpose.msra.mxu0 0
        %2393 = vmatprep.subr.bf16.mxu0 0
        %2394 = vmatpush1.bf16.xpose.msra.mxu0 0
        %2395 = vmatprep.mubr.bf16.mxu0 0
        %2396 = vmatmul.mubr.bf16.gmra.mrb[0].mxu0 %v2292
        %v2397 = vpop.f32.mrb[0].mxu0
        %v2398 = vadd.f32 0.0, %v2397
        %v2399 = vpop.f32.mrb[0].mxu0
        %v2400 = vadd.f32 0.0, %v2399
        %v2401 = vpop.f32.mrb[0].mxu0
        %v2402 = vadd.f32 0.0, %v2401
        %v2403 = vpop.f32.mrb[0].mxu0
        %v2404 = vadd.f32 0.0, %v2403
        %2405 = vmatprep.mubr.bf16.mxu0 0
        %2406 = vmatmul.mubr.bf16.gmra.mrb[0].mxu0 %v2295
        %v2407 = vpop.f32.mrb[0].mxu0
        %v2408 = vadd.f32 0.0, %v2407
        %v2409 = vpop.f32.mrb[0].mxu0
        %v2410 = vadd.f32 0.0, %v2409
        %v2411 = vpop.f32.mrb[0].mxu0
        %v2412 = vadd.f32 0.0, %v2411
        %v2413 = vpop.f32.mrb[0].mxu0
        %v2414 = vadd.f32 0.0, %v2413
        %2415 = vmatprep.mubr.bf16.mxu0 0
        %2416 = vmatmul.mubr.bf16.gmra.mrb[0].mxu0 %v2298
        %v2417 = vpop.f32.mrb[0].mxu0
        %v2418 = vadd.f32 0.0, %v2417
        %v2419 = vpop.f32.mrb[0].mxu0
        %v2420 = vadd.f32 0.0, %v2419
        %v2421 = vpop.f32.mrb[0].mxu0
        %v2422 = vadd.f32 0.0, %v2421
        %v2423 = vpop.f32.mrb[0].mxu0
        %v2424 = vadd.f32 0.0, %v2423
        %2425 = vmatprep.mubr.bf16.mxu0 0
        %2426 = vmatmul.mubr.bf16.gmra.mrb[0].mxu0 %v2301
        %v2427 = vpop.f32.mrb[0].mxu0
        %v2428 = vadd.f32 0.0, %v2427
        %v2429 = vpop.f32.mrb[0].mxu0
        %v2430 = vadd.f32 0.0, %v2429
        %v2431 = vpop.f32.mrb[0].mxu0
        %v2432 = vadd.f32 0.0, %v2431
        %v2433 = vpop.f32.mrb[0].mxu0
        %v2434 = vadd.f32 0.0, %v2433
        %2435 = vmatprep.mubr.bf16.mxu0 0
        %2436 = vmatmul.mubr.bf16.gmra.mrb[0].mxu0 %v2304
        %v2437 = vpop.f32.mrb[0].mxu0
        %v2438 = vadd.f32 0.0, %v2437
        %v2439 = vpop.f32.mrb[0].mxu0
        %v2440 = vadd.f32 0.0, %v2439
        %v2441 = vpop.f32.mrb[0].mxu0
        %v2442 = vadd.f32 0.0, %v2441
        %v2443 = vpop.f32.mrb[0].mxu0
        %v2444 = vadd.f32 0.0, %v2443
        %2445 = vmatprep.mubr.bf16.mxu0 0
        %2446 = vmatmul.mubr.bf16.gmra.mrb[0].mxu0 %v2307
        %v2447 = vpop.f32.mrb[0].mxu0
        %v2448 = vadd.f32 0.0, %v2447
        %v2449 = vpop.f32.mrb[0].mxu0
        %v2450 = vadd.f32 0.0, %v2449
        %v2451 = vpop.f32.mrb[0].mxu0
        %v2452 = vadd.f32 0.0, %v2451
        %v2453 = vpop.f32.mrb[0].mxu0
        %v2454 = vadd.f32 0.0, %v2453
        %2455 = vmatprep.mubr.bf16.mxu0 0
        %2456 = vmatmul.mubr.bf16.gmra.mrb[0].mxu0 %v2310
        %v2457 = vpop.f32.mrb[0].mxu0
        %v2458 = vadd.f32 0.0, %v2457
        %v2459 = vpop.f32.mrb[0].mxu0
        %v2460 = vadd.f32 0.0, %v2459
        %v2461 = vpop.f32.mrb[0].mxu0
        %v2462 = vadd.f32 0.0, %v2461
        %v2463 = vpop.f32.mrb[0].mxu0
        %v2464 = vadd.f32 0.0, %v2463
        %2465 = vmatprep.mubr.bf16.mxu0 0
        %2466 = vmatmul.mubr.bf16.gmra.mrb[0].mxu0 %v2313
        %v2467 = vpop.f32.mrb[0].mxu0
        %v2468 = vadd.f32 0.0, %v2467
        %v2469 = vpop.f32.mrb[0].mxu0
        %v2470 = vadd.f32 0.0, %v2469
        %v2471 = vpop.f32.mrb[0].mxu0
        %v2472 = vadd.f32 0.0, %v2471
        %v2473 = vpop.f32.mrb[0].mxu0
        %v2474 = vadd.f32 0.0, %v2473
        %2475 = vmatprep.mubr.bf16.mxu0 0
        %2476 = vmatmul.mubr.bf16.gmra.mrb[0].mxu0 %v2316
        %v2477 = vpop.f32.mrb[0].mxu0
        %v2478 = vadd.f32 0.0, %v2477
        %v2479 = vpop.f32.mrb[0].mxu0
        %v2480 = vadd.f32 0.0, %v2479
        %v2481 = vpop.f32.mrb[0].mxu0
        %v2482 = vadd.f32 0.0, %v2481
        %v2483 = vpop.f32.mrb[0].mxu0
        %v2484 = vadd.f32 0.0, %v2483
        %2485 = vmatprep.mubr.bf16.mxu0 0
        %2486 = vmatmul.mubr.bf16.gmra.mrb[0].mxu0 %v2319
        %v2487 = vpop.f32.mrb[0].mxu0
        %v2488 = vadd.f32 0.0, %v2487
        %v2489 = vpop.f32.mrb[0].mxu0
        %v2490 = vadd.f32 0.0, %v2489
        %v2491 = vpop.f32.mrb[0].mxu0
        %v2492 = vadd.f32 0.0, %v2491
        %v2493 = vpop.f32.mrb[0].mxu0
        %v2494 = vadd.f32 0.0, %v2493
        %2495 = vmatprep.mubr.bf16.mxu0 0
        %2496 = vmatmul.mubr.bf16.gmra.mrb[0].mxu0 %v2322
        %v2497 = vpop.f32.mrb[0].mxu0
        %v2498 = vadd.f32 0.0, %v2497
        %v2499 = vpop.f32.mrb[0].mxu0
        %v2500 = vadd.f32 0.0, %v2499
        %v2501 = vpop.f32.mrb[0].mxu0
        %v2502 = vadd.f32 0.0, %v2501
        %v2503 = vpop.f32.mrb[0].mxu0
        %v2504 = vadd.f32 0.0, %v2503
        %2505 = vmatprep.mubr.bf16.mxu0 0
        %2506 = vmatmul.mubr.bf16.gmra.mrb[0].mxu0 %v2325
        %v2507 = vpop.f32.mrb[0].mxu0
        %v2508 = vadd.f32 0.0, %v2507
        %v2509 = vpop.f32.mrb[0].mxu0
        %v2510 = vadd.f32 0.0, %v2509
        %v2511 = vpop.f32.mrb[0].mxu0
        %v2512 = vadd.f32 0.0, %v2511
        %v2513 = vpop.f32.mrb[0].mxu0
        %v2514 = vadd.f32 0.0, %v2513
        %2515 = vdwg.mxu0
        %v2516 = vsel %vm1182, %v2400, -inf
        %v2517 = vmax.f32 %v2398, %v2516
        %2518 = vmax.xlane.f32.xlu0 %v2517
        %v2519 = vpop.xlane.xlu0 %2518
        %v2520 = vsel %vm1182, %v2404, -inf
        %v2521 = vmax.f32 %v2402, %v2520
        %2522 = vmax.xlane.f32.xlu0 %v2521
        %v2523 = vpop.xlane.xlu0 %2522
        %v2524 = vsel %vm1182, %v2410, -inf
        %v2525 = vmax.f32 %v2408, %v2524
        %2526 = vmax.xlane.f32.xlu0 %v2525
        %v2527 = vpop.xlane.xlu0 %2526
        %v2528 = vsel %vm1182, %v2414, -inf
        %v2529 = vmax.f32 %v2412, %v2528
        %2530 = vmax.xlane.f32.xlu0 %v2529
        %v2531 = vpop.xlane.xlu0 %2530
        %v2532 = vsel %vm1182, %v2420, -inf
        %v2533 = vmax.f32 %v2418, %v2532
        %2534 = vmax.xlane.f32.xlu0 %v2533
        %v2535 = vpop.xlane.xlu0 %2534
        %v2536 = vsel %vm1182, %v2424, -inf
        %v2537 = vmax.f32 %v2422, %v2536
        %2538 = vmax.xlane.f32.xlu0 %v2537
        %v2539 = vpop.xlane.xlu0 %2538
        %v2540 = vsel %vm1182, %v2430, -inf
        %v2541 = vmax.f32 %v2428, %v2540
        %2542 = vmax.xlane.f32.xlu0 %v2541
        %v2543 = vpop.xlane.xlu0 %2542
        %v2544 = vsel %vm1182, %v2434, -inf
        %v2545 = vmax.f32 %v2432, %v2544
        %2546 = vmax.xlane.f32.xlu0 %v2545
        %v2547 = vpop.xlane.xlu0 %2546
        %v2548 = vsel %vm1182, %v2440, -inf
        %v2549 = vmax.f32 %v2438, %v2548
        %2550 = vmax.xlane.f32.xlu0 %v2549
        %v2551 = vpop.xlane.xlu0 %2550
        %v2552 = vsel %vm1182, %v2444, -inf
        %v2553 = vmax.f32 %v2442, %v2552
        %2554 = vmax.xlane.f32.xlu0 %v2553
        %v2555 = vpop.xlane.xlu0 %2554
        %v2556 = vsel %vm1182, %v2450, -inf
        %v2557 = vmax.f32 %v2448, %v2556
        %2558 = vmax.xlane.f32.xlu0 %v2557
        %v2559 = vpop.xlane.xlu0 %2558
        %v2560 = vsel %vm1182, %v2454, -inf
        %v2561 = vmax.f32 %v2452, %v2560
        %2562 = vmax.xlane.f32.xlu0 %v2561
        %v2563 = vpop.xlane.xlu0 %2562
        %v2564 = vsel %vm1182, %v2460, -inf
        %v2565 = vmax.f32 %v2458, %v2564
        %2566 = vmax.xlane.f32.xlu0 %v2565
        %v2567 = vpop.xlane.xlu0 %2566
        %v2568 = vsel %vm1182, %v2464, -inf
        %v2569 = vmax.f32 %v2462, %v2568
        %2570 = vmax.xlane.f32.xlu0 %v2569
        %v2571 = vpop.xlane.xlu0 %2570
        %v2572 = vsel %vm1182, %v2470, -inf
        %v2573 = vmax.f32 %v2468, %v2572
        %2574 = vmax.xlane.f32.xlu0 %v2573
        %v2575 = vpop.xlane.xlu0 %2574
        %v2576 = vsel %vm1182, %v2474, -inf
        %v2577 = vmax.f32 %v2472, %v2576
        %2578 = vmax.xlane.f32.xlu0 %v2577
        %v2579 = vpop.xlane.xlu0 %2578
        %v2580 = vsel %vm1182, %v2480, -inf
        %v2581 = vmax.f32 %v2478, %v2580
        %2582 = vmax.xlane.f32.xlu0 %v2581
        %v2583 = vpop.xlane.xlu0 %2582
        %v2584 = vsel %vm1182, %v2484, -inf
        %v2585 = vmax.f32 %v2482, %v2584
        %2586 = vmax.xlane.f32.xlu0 %v2585
        %v2587 = vpop.xlane.xlu0 %2586
        %v2588 = vsel %vm1182, %v2490, -inf
        %v2589 = vmax.f32 %v2488, %v2588
        %2590 = vmax.xlane.f32.xlu0 %v2589
        %v2591 = vpop.xlane.xlu0 %2590
        %v2592 = vsel %vm1182, %v2494, -inf
        %v2593 = vmax.f32 %v2492, %v2592
        %2594 = vmax.xlane.f32.xlu0 %v2593
        %v2595 = vpop.xlane.xlu0 %2594
        %v2596 = vsel %vm1182, %v2500, -inf
        %v2597 = vmax.f32 %v2498, %v2596
        %2598 = vmax.xlane.f32.xlu0 %v2597
        %v2599 = vpop.xlane.xlu0 %2598
        %v2600 = vsel %vm1182, %v2504, -inf
        %v2601 = vmax.f32 %v2502, %v2600
        %2602 = vmax.xlane.f32.xlu0 %v2601
        %v2603 = vpop.xlane.xlu0 %2602
        %v2604 = vsel %vm1182, %v2510, -inf
        %v2605 = vmax.f32 %v2508, %v2604
        %2606 = vmax.xlane.f32.xlu0 %v2605
        %v2607 = vpop.xlane.xlu0 %2606
        %v2608 = vsel %vm1182, %v2514, -inf
        %v2609 = vmax.f32 %v2512, %v2608
        %2610 = vmax.xlane.f32.xlu0 %v2609
        %v2611 = vpop.xlane.xlu0 %2610
        %v2612 = vsub.f32 %v2398, %v2519
        %v2613 = vsub.f32 %v2400, %v2519
        %v2614 = vsub.f32 %v2402, %v2523
        %v2615 = vsub.f32 %v2404, %v2523
        %v2616 = vsub.f32 %v2408, %v2527
        %v2617 = vsub.f32 %v2410, %v2527
        %v2618 = vsub.f32 %v2412, %v2531
        %v2619 = vsub.f32 %v2414, %v2531
        %v2620 = vsub.f32 %v2418, %v2535
        %v2621 = vsub.f32 %v2420, %v2535
        %v2622 = vsub.f32 %v2422, %v2539
        %v2623 = vsub.f32 %v2424, %v2539
        %v2624 = vsub.f32 %v2428, %v2543
        %v2625 = vsub.f32 %v2430, %v2543
        %v2626 = vsub.f32 %v2432, %v2547
        %v2627 = vsub.f32 %v2434, %v2547
        %v2628 = vsub.f32 %v2438, %v2551
        %v2629 = vsub.f32 %v2440, %v2551
        %v2630 = vsub.f32 %v2442, %v2555
        %v2631 = vsub.f32 %v2444, %v2555
        %v2632 = vsub.f32 %v2448, %v2559
        %v2633 = vsub.f32 %v2450, %v2559
        %v2634 = vsub.f32 %v2452, %v2563
        %v2635 = vsub.f32 %v2454, %v2563
        %v2636 = vsub.f32 %v2458, %v2567
        %v2637 = vsub.f32 %v2460, %v2567
        %v2638 = vsub.f32 %v2462, %v2571
        %v2639 = vsub.f32 %v2464, %v2571
        %v2640 = vsub.f32 %v2468, %v2575
        %v2641 = vsub.f32 %v2470, %v2575
        %v2642 = vsub.f32 %v2472, %v2579
        %v2643 = vsub.f32 %v2474, %v2579
        %v2644 = vsub.f32 %v2478, %v2583
        %v2645 = vsub.f32 %v2480, %v2583
        %v2646 = vsub.f32 %v2482, %v2587
        %v2647 = vsub.f32 %v2484, %v2587
        %v2648 = vsub.f32 %v2488, %v2591
        %v2649 = vsub.f32 %v2490, %v2591
        %v2650 = vsub.f32 %v2492, %v2595
        %v2651 = vsub.f32 %v2494, %v2595
        %v2652 = vsub.f32 %v2498, %v2599
        %v2653 = vsub.f32 %v2500, %v2599
        %v2654 = vsub.f32 %v2502, %v2603
        %v2655 = vsub.f32 %v2504, %v2603
        %v2656 = vsub.f32 %v2508, %v2607
        %v2657 = vsub.f32 %v2510, %v2607
        %v2658 = vsub.f32 %v2512, %v2611
        %v2659 = vsub.f32 %v2514, %v2611
        %v2660 = vmul.f32 %v2612, 1.442695
        %v2661 = vpow.pop %v2660
        %v2662 = vmul.f32 %v2613, 1.442695
        %v2663 = vpow.pop %v2662
        %v2664 = vmul.f32 %v2614, 1.442695
        %v2665 = vpow.pop %v2664
        %v2666 = vmul.f32 %v2615, 1.442695
        %v2667 = vpow.pop %v2666
        %v2668 = vmul.f32 %v2616, 1.442695
        %v2669 = vpow.pop %v2668
        %v2670 = vmul.f32 %v2617, 1.442695
        %v2671 = vpow.pop %v2670
        %v2672 = vmul.f32 %v2618, 1.442695
        %v2673 = vpow.pop %v2672
        %v2674 = vmul.f32 %v2619, 1.442695
        %v2675 = vpow.pop %v2674
        %v2676 = vmul.f32 %v2620, 1.442695
        %v2677 = vpow.pop %v2676
        %v2678 = vmul.f32 %v2621, 1.442695
        %v2679 = vpow.pop %v2678
        %v2680 = vmul.f32 %v2622, 1.442695
        %v2681 = vpow.pop %v2680
        %v2682 = vmul.f32 %v2623, 1.442695
        %v2683 = vpow.pop %v2682
        %v2684 = vmul.f32 %v2624, 1.442695
        %v2685 = vpow.pop %v2684
        %v2686 = vmul.f32 %v2625, 1.442695
        %v2687 = vpow.pop %v2686
        %v2688 = vmul.f32 %v2626, 1.442695
        %v2689 = vpow.pop %v2688
        %v2690 = vmul.f32 %v2627, 1.442695
        %v2691 = vpow.pop %v2690
        %v2692 = vmul.f32 %v2628, 1.442695
        %v2693 = vpow.pop %v2692
        %v2694 = vmul.f32 %v2629, 1.442695
        %v2695 = vpow.pop %v2694
        %v2696 = vmul.f32 %v2630, 1.442695
        %v2697 = vpow.pop %v2696
        %v2698 = vmul.f32 %v2631, 1.442695
        %v2699 = vpow.pop %v2698
        %v2700 = vmul.f32 %v2632, 1.442695
        %v2701 = vpow.pop %v2700
        %v2702 = vmul.f32 %v2633, 1.442695
        %v2703 = vpow.pop %v2702
        %v2704 = vmul.f32 %v2634, 1.442695
        %v2705 = vpow.pop %v2704
        %v2706 = vmul.f32 %v2635, 1.442695
        %v2707 = vpow.pop %v2706
        %v2708 = vmul.f32 %v2636, 1.442695
        %v2709 = vpow.pop %v2708
        %v2710 = vmul.f32 %v2637, 1.442695
        %v2711 = vpow.pop %v2710
        %v2712 = vmul.f32 %v2638, 1.442695
        %v2713 = vpow.pop %v2712
        %v2714 = vmul.f32 %v2639, 1.442695
        %v2715 = vpow.pop %v2714
        %v2716 = vmul.f32 %v2640, 1.442695
        %v2717 = vpow.pop %v2716
        %v2718 = vmul.f32 %v2641, 1.442695
        %v2719 = vpow.pop %v2718
        %v2720 = vmul.f32 %v2642, 1.442695
        %v2721 = vpow.pop %v2720
        %v2722 = vmul.f32 %v2643, 1.442695
        %v2723 = vpow.pop %v2722
        %v2724 = vmul.f32 %v2644, 1.442695
        %v2725 = vpow.pop %v2724
        %v2726 = vmul.f32 %v2645, 1.442695
        %v2727 = vpow.pop %v2726
        %v2728 = vmul.f32 %v2646, 1.442695
        %v2729 = vpow.pop %v2728
        %v2730 = vmul.f32 %v2647, 1.442695
        %v2731 = vpow.pop %v2730
        %v2732 = vmul.f32 %v2648, 1.442695
        %v2733 = vpow.pop %v2732
        %v2734 = vmul.f32 %v2649, 1.442695
        %v2735 = vpow.pop %v2734
        %v2736 = vmul.f32 %v2650, 1.442695
        %v2737 = vpow.pop %v2736
        %v2738 = vmul.f32 %v2651, 1.442695
        %v2739 = vpow.pop %v2738
        %v2740 = vmul.f32 %v2652, 1.442695
        %v2741 = vpow.pop %v2740
        %v2742 = vmul.f32 %v2653, 1.442695
        %v2743 = vpow.pop %v2742
        %v2744 = vmul.f32 %v2654, 1.442695
        %v2745 = vpow.pop %v2744
        %v2746 = vmul.f32 %v2655, 1.442695
        %v2747 = vpow.pop %v2746
        %v2748 = vmul.f32 %v2656, 1.442695
        %v2749 = vpow.pop %v2748
        %v2750 = vmul.f32 %v2657, 1.442695
        %v2751 = vpow.pop %v2750
        %v2752 = vmul.f32 %v2658, 1.442695
        %v2753 = vpow.pop %v2752
        %v2754 = vmul.f32 %v2659, 1.442695
        %v2755 = vpow.pop %v2754
        %v2756 = vsel %vm1182, %v2663, 0.0
        %v2757 = vadd.f32 %v2661, %v2756
        %2758 = vadd.xlane.f32.xlu0 %v2757
        %v2759 = vpop.xlane.xlu0 %2758
        %v2760 = vsel %vm1182, %v2667, 0.0
        %v2761 = vadd.f32 %v2665, %v2760
        %2762 = vadd.xlane.f32.xlu0 %v2761
        %v2763 = vpop.xlane.xlu0 %2762
        %v2764 = vsel %vm1182, %v2671, 0.0
        %v2765 = vadd.f32 %v2669, %v2764
        %2766 = vadd.xlane.f32.xlu0 %v2765
        %v2767 = vpop.xlane.xlu0 %2766
        %v2768 = vsel %vm1182, %v2675, 0.0
        %v2769 = vadd.f32 %v2673, %v2768
        %2770 = vadd.xlane.f32.xlu0 %v2769
        %v2771 = vpop.xlane.xlu0 %2770
        %v2772 = vsel %vm1182, %v2679, 0.0
        %v2773 = vadd.f32 %v2677, %v2772
        %2774 = vadd.xlane.f32.xlu0 %v2773
        %v2775 = vpop.xlane.xlu0 %2774
        %v2776 = vsel %vm1182, %v2683, 0.0
        %v2777 = vadd.f32 %v2681, %v2776
        %2778 = vadd.xlane.f32.xlu0 %v2777
        %v2779 = vpop.xlane.xlu0 %2778
        %v2780 = vsel %vm1182, %v2687, 0.0
        %v2781 = vadd.f32 %v2685, %v2780
        %2782 = vadd.xlane.f32.xlu0 %v2781
        %v2783 = vpop.xlane.xlu0 %2782
        %v2784 = vsel %vm1182, %v2691, 0.0
        %v2785 = vadd.f32 %v2689, %v2784
        %2786 = vadd.xlane.f32.xlu0 %v2785
        %v2787 = vpop.xlane.xlu0 %2786
        %v2788 = vsel %vm1182, %v2695, 0.0
        %v2789 = vadd.f32 %v2693, %v2788
        %2790 = vadd.xlane.f32.xlu0 %v2789
        %v2791 = vpop.xlane.xlu0 %2790
        %v2792 = vsel %vm1182, %v2699, 0.0
        %v2793 = vadd.f32 %v2697, %v2792
        %2794 = vadd.xlane.f32.xlu0 %v2793
        %v2795 = vpop.xlane.xlu0 %2794
        %v2796 = vsel %vm1182, %v2703, 0.0
        %v2797 = vadd.f32 %v2701, %v2796
        %2798 = vadd.xlane.f32.xlu0 %v2797
        %v2799 = vpop.xlane.xlu0 %2798
        %v2800 = vsel %vm1182, %v2707, 0.0
        %v2801 = vadd.f32 %v2705, %v2800
        %2802 = vadd.xlane.f32.xlu0 %v2801
        %v2803 = vpop.xlane.xlu0 %2802
        %v2804 = vsel %vm1182, %v2711, 0.0
        %v2805 = vadd.f32 %v2709, %v2804
        %2806 = vadd.xlane.f32.xlu0 %v2805
        %v2807 = vpop.xlane.xlu0 %2806
        %v2808 = vsel %vm1182, %v2715, 0.0
        %v2809 = vadd.f32 %v2713, %v2808
        %2810 = vadd.xlane.f32.xlu0 %v2809
        %v2811 = vpop.xlane.xlu0 %2810
        %v2812 = vsel %vm1182, %v2719, 0.0
        %v2813 = vadd.f32 %v2717, %v2812
        %2814 = vadd.xlane.f32.xlu0 %v2813
        %v2815 = vpop.xlane.xlu0 %2814
        %v2816 = vsel %vm1182, %v2723, 0.0
        %v2817 = vadd.f32 %v2721, %v2816
        %2818 = vadd.xlane.f32.xlu0 %v2817
        %v2819 = vpop.xlane.xlu0 %2818
        %v2820 = vsel %vm1182, %v2727, 0.0
        %v2821 = vadd.f32 %v2725, %v2820
        %2822 = vadd.xlane.f32.xlu0 %v2821
        %v2823 = vpop.xlane.xlu0 %2822
        %v2824 = vsel %vm1182, %v2731, 0.0
        %v2825 = vadd.f32 %v2729, %v2824
        %2826 = vadd.xlane.f32.xlu0 %v2825
        %v2827 = vpop.xlane.xlu0 %2826
        %v2828 = vsel %vm1182, %v2735, 0.0
        %v2829 = vadd.f32 %v2733, %v2828
        %2830 = vadd.xlane.f32.xlu0 %v2829
        %v2831 = vpop.xlane.xlu0 %2830
        %v2832 = vsel %vm1182, %v2739, 0.0
        %v2833 = vadd.f32 %v2737, %v2832
        %2834 = vadd.xlane.f32.xlu0 %v2833
        %v2835 = vpop.xlane.xlu0 %2834
        %v2836 = vsel %vm1182, %v2743, 0.0
        %v2837 = vadd.f32 %v2741, %v2836
        %2838 = vadd.xlane.f32.xlu0 %v2837
        %v2839 = vpop.xlane.xlu0 %2838
        %v2840 = vsel %vm1182, %v2747, 0.0
        %v2841 = vadd.f32 %v2745, %v2840
        %2842 = vadd.xlane.f32.xlu0 %v2841
        %v2843 = vpop.xlane.xlu0 %2842
        %v2844 = vsel %vm1182, %v2751, 0.0
        %v2845 = vadd.f32 %v2749, %v2844
        %2846 = vadd.xlane.f32.xlu0 %v2845
        %v2847 = vpop.xlane.xlu0 %2846
        %v2848 = vsel %vm1182, %v2755, 0.0
        %v2849 = vadd.f32 %v2753, %v2848
        %2850 = vadd.xlane.f32.xlu0 %v2849
        %v2851 = vpop.xlane.xlu0 %2850
        %v2852 = vrcp.pop %v2759
        %v2853 = vrcp.pop %v2763
        %v2854 = vrcp.pop %v2767
        %v2855 = vrcp.pop %v2771
        %v2856 = vrcp.pop %v2775
        %v2857 = vrcp.pop %v2779
        %v2858 = vrcp.pop %v2783
        %v2859 = vrcp.pop %v2787
        %v2860 = vrcp.pop %v2791
        %v2861 = vrcp.pop %v2795
        %v2862 = vrcp.pop %v2799
        %v2863 = vrcp.pop %v2803
        %v2864 = vrcp.pop %v2807
        %v2865 = vrcp.pop %v2811
        %v2866 = vrcp.pop %v2815
        %v2867 = vrcp.pop %v2819
        %v2868 = vrcp.pop %v2823
        %v2869 = vrcp.pop %v2827
        %v2870 = vrcp.pop %v2831
        %v2871 = vrcp.pop %v2835
        %v2872 = vrcp.pop %v2839
        %v2873 = vrcp.pop %v2843
        %v2874 = vrcp.pop %v2847
        %v2875 = vrcp.pop %v2851
        %v2876 = vmul.f32 %v2661, %v2852
        %v2877 = vmul.f32 %v2663, %v2852
        %v2878 = vmul.f32 %v2665, %v2853
        %v2879 = vmul.f32 %v2667, %v2853
        %v2880 = vmul.f32 %v2669, %v2854
        %v2881 = vmul.f32 %v2671, %v2854
        %v2882 = vmul.f32 %v2673, %v2855
        %v2883 = vmul.f32 %v2675, %v2855
        %v2884 = vmul.f32 %v2677, %v2856
        %v2885 = vmul.f32 %v2679, %v2856
        %v2886 = vmul.f32 %v2681, %v2857
        %v2887 = vmul.f32 %v2683, %v2857
        %v2888 = vmul.f32 %v2685, %v2858
        %v2889 = vmul.f32 %v2687, %v2858
        %v2890 = vmul.f32 %v2689, %v2859
        %v2891 = vmul.f32 %v2691, %v2859
        %v2892 = vmul.f32 %v2693, %v2860
        %v2893 = vmul.f32 %v2695, %v2860
        %v2894 = vmul.f32 %v2697, %v2861
        %v2895 = vmul.f32 %v2699, %v2861
        %v2896 = vmul.f32 %v2701, %v2862
        %v2897 = vmul.f32 %v2703, %v2862
        %v2898 = vmul.f32 %v2705, %v2863
        %v2899 = vmul.f32 %v2707, %v2863
        %v2900 = vmul.f32 %v2709, %v2864
        %v2901 = vmul.f32 %v2711, %v2864
        %v2902 = vmul.f32 %v2713, %v2865
        %v2903 = vmul.f32 %v2715, %v2865
        %v2904 = vmul.f32 %v2717, %v2866
        %v2905 = vmul.f32 %v2719, %v2866
        %v2906 = vmul.f32 %v2721, %v2867
        %v2907 = vmul.f32 %v2723, %v2867
        %v2908 = vmul.f32 %v2725, %v2868
        %v2909 = vmul.f32 %v2727, %v2868
        %v2910 = vmul.f32 %v2729, %v2869
        %v2911 = vmul.f32 %v2731, %v2869
        %v2912 = vmul.f32 %v2733, %v2870
        %v2913 = vmul.f32 %v2735, %v2870
        %v2914 = vmul.f32 %v2737, %v2871
        %v2915 = vmul.f32 %v2739, %v2871
        %v2916 = vmul.f32 %v2741, %v2872
        %v2917 = vmul.f32 %v2743, %v2872
        %v2918 = vmul.f32 %v2745, %v2873
        %v2919 = vmul.f32 %v2747, %v2873
        %v2920 = vmul.f32 %v2749, %v2874
        %v2921 = vmul.f32 %v2751, %v2874
        %v2922 = vmul.f32 %v2753, %v2875
        %v2923 = vmul.f32 %v2755, %v2875
        %v2924 = vpack.c.bf16 %v2878, %v2876
        %v2925 = vpack.c.bf16 %v2879, %v2877
        %v2926 = vpack.c.bf16 %v2882, %v2880
        %v2927 = vpack.c.bf16 %v2883, %v2881
        %v2928 = vpack.c.bf16 %v2886, %v2884
        %v2929 = vpack.c.bf16 %v2887, %v2885
        %v2930 = vpack.c.bf16 %v2890, %v2888
        %v2931 = vpack.c.bf16 %v2891, %v2889
        %v2932 = vpack.c.bf16 %v2894, %v2892
        %v2933 = vpack.c.bf16 %v2895, %v2893
        %v2934 = vpack.c.bf16 %v2898, %v2896
        %v2935 = vpack.c.bf16 %v2899, %v2897
        %v2936 = vpack.c.bf16 %v2902, %v2900
        %v2937 = vpack.c.bf16 %v2903, %v2901
        %v2938 = vpack.c.bf16 %v2906, %v2904
        %v2939 = vpack.c.bf16 %v2907, %v2905
        %v2940 = vpack.c.bf16 %v2910, %v2908
        %v2941 = vpack.c.bf16 %v2911, %v2909
        %v2942 = vpack.c.bf16 %v2914, %v2912
        %v2943 = vpack.c.bf16 %v2915, %v2913
        %v2944 = vpack.c.bf16 %v2918, %v2916
        %v2945 = vpack.c.bf16 %v2919, %v2917
        %v2946 = vpack.c.bf16 %v2922, %v2920
        %v2947 = vpack.c.bf16 %v2923, %v2921
        %v2948 = vpack.c.bf16 %v2176, %v2173
        %v2949 = vpack.c.bf16 %v2184, %v2181
        %v2950 = vpack.c.bf16 %v2192, %v2189
        %v2951 = vpack.c.bf16 %v2200, %v2197
        %v2952 = vpack.c.bf16 %v2208, %v2205
        %v2953 = vpack.c.bf16 %v2216, %v2213
        %v2954 = vpack.c.bf16 %v2224, %v2221
        %v2955 = vpack.c.bf16 %v2232, %v2229
        %v2956 = vpack.c.bf16 %v2240, %v2237
        %v2957 = vpack.c.bf16 %v2248, %v2245
        %v2958 = vpack.c.bf16 %v2256, %v2253
        %v2959 = vpack.c.bf16 %v2264, %v2261
        %v2961 = vsel %vm1182, %v2925, 0
        %v2964 = vsel %vm1182, %v2927, 0
        %v2967 = vsel %vm1182, %v2929, 0
        %v2970 = vsel %vm1182, %v2931, 0
        %v2973 = vsel %vm1182, %v2933, 0
        %v2976 = vsel %vm1182, %v2935, 0
        %v2979 = vsel %vm1182, %v2937, 0
        %v2982 = vsel %vm1182, %v2939, 0
        %v2985 = vsel %vm1182, %v2941, 0
        %v2988 = vsel %vm1182, %v2943, 0
        %v2991 = vsel %vm1182, %v2945, 0
        %v2994 = vsel %vm1182, %v2947, 0
        %2996 = vmatprep.subr.bf16.mxu0 0
        %2997 = vmatpush1.bf16.msra.mxu0 %v2948
        %2998 = vmatprep.subr.bf16.mxu0 0
        %2999 = vmatpush1.bf16.msra.mxu0 %v2949
        %3000 = vmatprep.subr.bf16.mxu0 0
        %3001 = vmatpush1.bf16.msra.mxu0 %v2950
        %3002 = vmatprep.subr.bf16.mxu0 0
        %3003 = vmatpush1.bf16.msra.mxu0 %v2951
        %3004 = vmatprep.subr.bf16.mxu0 0
        %3005 = vmatpush1.bf16.msra.mxu0 %v2952
        %3006 = vmatprep.subr.bf16.mxu0 0
        %3007 = vmatpush1.bf16.msra.mxu0 %v2953
        %3008 = vmatprep.subr.bf16.mxu0 0
        %3009 = vmatpush1.bf16.msra.mxu0 %v2954
        %3010 = vmatprep.subr.bf16.mxu0 0
        %3011 = vmatpush1.bf16.msra.mxu0 %v2955
        %3012 = vmatprep.subr.bf16.mxu0 0
        %3013 = vmatpush1.bf16.msra.mxu0 %v2956
        %3014 = vmatprep.subr.bf16.mxu0 0
        %3015 = vmatpush1.bf16.msra.mxu0 %v2957
        %3016 = vmatprep.subr.bf16.mxu0 0
        %3017 = vmatpush1.bf16.msra.mxu0 %v2958
        %3018 = vmatprep.subr.bf16.mxu0 0
        %3019 = vmatpush1.bf16.msra.mxu0 %v2959
        %3020 = vmatprep.subr.bf16.mxu0 0
        %3021 = vmatpush1.bf16.msra.mxu0 0
        %3022 = vmatprep.subr.bf16.mxu0 0
        %3023 = vmatpush1.bf16.msra.mxu0 0
        %3024 = vmatprep.subr.bf16.mxu0 0
        %3025 = vmatpush1.bf16.msra.mxu0 0
        %3026 = vmatprep.subr.bf16.mxu0 0
        %3027 = vmatpush1.bf16.msra.mxu0 0
        %3028 = vmatprep.mubr.bf16.mxu0 %v2961
        %3029 = vmatmul.mubr.bf16.gmra.mrb[0].mxu0 %v2924
        %v3030 = vpop.f32.mrb[0].mxu0
        %v3031 = vadd.f32 0.0, %v3030
        %v3032 = vpop.f32.mrb[0].mxu0
        %v3033 = vpop.f32.mrb[0].mxu0
        %v3034 = vadd.f32 0.0, %v3033
        %v3035 = vpop.f32.mrb[0].mxu0
        %3036 = vmatprep.mubr.bf16.mxu0 %v2964
        %3037 = vmatmul.mubr.bf16.gmra.mrb[0].mxu0 %v2926
        %v3038 = vpop.f32.mrb[0].mxu0
        %v3039 = vadd.f32 0.0, %v3038
        %v3040 = vpop.f32.mrb[0].mxu0
        %v3041 = vpop.f32.mrb[0].mxu0
        %v3042 = vadd.f32 0.0, %v3041
        %v3043 = vpop.f32.mrb[0].mxu0
        %3044 = vmatprep.mubr.bf16.mxu0 %v2967
        %3045 = vmatmul.mubr.bf16.gmra.mrb[0].mxu0 %v2928
        %v3046 = vpop.f32.mrb[0].mxu0
        %v3047 = vadd.f32 0.0, %v3046
        %v3048 = vpop.f32.mrb[0].mxu0
        %v3049 = vpop.f32.mrb[0].mxu0
        %v3050 = vadd.f32 0.0, %v3049
        %v3051 = vpop.f32.mrb[0].mxu0
        %3052 = vmatprep.mubr.bf16.mxu0 %v2970
        %3053 = vmatmul.mubr.bf16.gmra.mrb[0].mxu0 %v2930
        %v3054 = vpop.f32.mrb[0].mxu0
        %v3055 = vadd.f32 0.0, %v3054
        %v3056 = vpop.f32.mrb[0].mxu0
        %v3057 = vpop.f32.mrb[0].mxu0
        %v3058 = vadd.f32 0.0, %v3057
        %v3059 = vpop.f32.mrb[0].mxu0
        %3060 = vmatprep.mubr.bf16.mxu0 %v2973
        %3061 = vmatmul.mubr.bf16.gmra.mrb[0].mxu0 %v2932
        %v3062 = vpop.f32.mrb[0].mxu0
        %v3063 = vadd.f32 0.0, %v3062
        %v3064 = vpop.f32.mrb[0].mxu0
        %v3065 = vpop.f32.mrb[0].mxu0
        %v3066 = vadd.f32 0.0, %v3065
        %v3067 = vpop.f32.mrb[0].mxu0
        %3068 = vmatprep.mubr.bf16.mxu0 %v2976
        %3069 = vmatmul.mubr.bf16.gmra.mrb[0].mxu0 %v2934
        %v3070 = vpop.f32.mrb[0].mxu0
        %v3071 = vadd.f32 0.0, %v3070
        %v3072 = vpop.f32.mrb[0].mxu0
        %v3073 = vpop.f32.mrb[0].mxu0
        %v3074 = vadd.f32 0.0, %v3073
        %v3075 = vpop.f32.mrb[0].mxu0
        %3076 = vmatprep.mubr.bf16.mxu0 %v2979
        %3077 = vmatmul.mubr.bf16.gmra.mrb[0].mxu0 %v2936
        %v3078 = vpop.f32.mrb[0].mxu0
        %v3079 = vadd.f32 0.0, %v3078
        %v3080 = vpop.f32.mrb[0].mxu0
        %v3081 = vpop.f32.mrb[0].mxu0
        %v3082 = vadd.f32 0.0, %v3081
        %v3083 = vpop.f32.mrb[0].mxu0
        %3084 = vmatprep.mubr.bf16.mxu0 %v2982
        %3085 = vmatmul.mubr.bf16.gmra.mrb[0].mxu0 %v2938
        %v3086 = vpop.f32.mrb[0].mxu0
        %v3087 = vadd.f32 0.0, %v3086
        %v3088 = vpop.f32.mrb[0].mxu0
        %v3089 = vpop.f32.mrb[0].mxu0
        %v3090 = vadd.f32 0.0, %v3089
        %v3091 = vpop.f32.mrb[0].mxu0
        %3092 = vmatprep.mubr.bf16.mxu0 %v2985
        %3093 = vmatmul.mubr.bf16.gmra.mrb[0].mxu0 %v2940
        %v3094 = vpop.f32.mrb[0].mxu0
        %v3095 = vadd.f32 0.0, %v3094
        %v3096 = vpop.f32.mrb[0].mxu0
        %v3097 = vpop.f32.mrb[0].mxu0
        %v3098 = vadd.f32 0.0, %v3097
        %v3099 = vpop.f32.mrb[0].mxu0
        %3100 = vmatprep.mubr.bf16.mxu0 %v2988
        %3101 = vmatmul.mubr.bf16.gmra.mrb[0].mxu0 %v2942
        %v3102 = vpop.f32.mrb[0].mxu0
        %v3103 = vadd.f32 0.0, %v3102
        %v3104 = vpop.f32.mrb[0].mxu0
        %v3105 = vpop.f32.mrb[0].mxu0
        %v3106 = vadd.f32 0.0, %v3105
        %v3107 = vpop.f32.mrb[0].mxu0
        %3108 = vmatprep.mubr.bf16.mxu0 %v2991
        %3109 = vmatmul.mubr.bf16.gmra.mrb[0].mxu0 %v2944
        %v3110 = vpop.f32.mrb[0].mxu0
        %v3111 = vadd.f32 0.0, %v3110
        %v3112 = vpop.f32.mrb[0].mxu0
        %v3113 = vpop.f32.mrb[0].mxu0
        %v3114 = vadd.f32 0.0, %v3113
        %v3115 = vpop.f32.mrb[0].mxu0
        %3116 = vmatprep.mubr.bf16.mxu0 %v2994
        %3117 = vmatmul.mubr.bf16.gmra.mrb[0].mxu0 %v2946
        %v3118 = vpop.f32.mrb[0].mxu0
        %v3119 = vadd.f32 0.0, %v3118
        %v3120 = vpop.f32.mrb[0].mxu0
        %v3121 = vpop.f32.mrb[0].mxu0
        %v3122 = vadd.f32 0.0, %v3121
        %v3123 = vpop.f32.mrb[0].mxu0
        %3124 = vdwg.mxu0
        %v3125 = vpack.c.bf16 %v3034, %v3031
        %v3126 = vpack.c.bf16 %v3042, %v3039
        %v3127 = vpack.c.bf16 %v3050, %v3047
        %v3128 = vpack.c.bf16 %v3058, %v3055
        %v3129 = vpack.c.bf16 %v3066, %v3063
        %v3130 = vpack.c.bf16 %v3074, %v3071
        %v3131 = vpack.c.bf16 %v3082, %v3079
        %v3132 = vpack.c.bf16 %v3090, %v3087
        %v3133 = vpack.c.bf16 %v3098, %v3095
        %v3134 = vpack.c.bf16 %v3106, %v3103
        %v3135 = vpack.c.bf16 %v3114, %v3111
        %v3136 = vpack.c.bf16 %v3122, %v3119
        %s3137 = scalar_lea.vmem %s3, 4
        %v3138 = vld [vmem:[%s3137] sm:$0xf]
        %v3140 = vsel %vm956, %v3125, 0
        %v3143 = vsel %vm956, %v3126, 0
        %v3146 = vsel %vm956, %v3127, 0
        %v3149 = vsel %vm956, %v3128, 0
        %v3152 = vsel %vm956, %v3129, 0
        %v3155 = vsel %vm956, %v3130, 0
        %v3158 = vsel %vm956, %v3131, 0
        %v3161 = vsel %vm956, %v3132, 0
        %v3164 = vsel %vm956, %v3133, 0
        %v3167 = vsel %vm956, %v3134, 0
        %v3170 = vsel %vm956, %v3135, 0
        %v3173 = vsel %vm956, %v3136, 0
        %vm3175 = vcmask 1043456
        %v3177 = vsel %vm3175, %v3138, 0
        %3179 = vmatprep.subr.bf16.mxu0 0
        %3180 = vmatpush1.bf16.msra.mxu0 %v3177
        %3181 = vmatprep.subr.bf16.mxu0 0
        %3182 = vmatpush1.bf16.msra.mxu0 0
        %3183 = vmatprep.subr.bf16.mxu0 0
        %3184 = vmatpush1.bf16.msra.mxu0 0
        %3185 = vmatprep.subr.bf16.mxu0 0
        %3186 = vmatpush1.bf16.msra.mxu0 0
        %3187 = vmatprep.subr.bf16.mxu0 0
        %3188 = vmatpush1.bf16.msra.mxu0 0
        %3189 = vmatprep.subr.bf16.mxu0 0
        %3190 = vmatpush1.bf16.msra.mxu0 0
        %3191 = vmatprep.subr.bf16.mxu0 0
        %3192 = vmatpush1.bf16.msra.mxu0 0
        %3193 = vmatprep.subr.bf16.mxu0 0
        %3194 = vmatpush1.bf16.msra.mxu0 0
        %3195 = vmatprep.subr.bf16.mxu0 0
        %3196 = vmatpush1.bf16.msra.mxu0 0
        %3197 = vmatprep.subr.bf16.mxu0 0
        %3198 = vmatpush1.bf16.msra.mxu0 0
        %3199 = vmatprep.subr.bf16.mxu0 0
        %3200 = vmatpush1.bf16.msra.mxu0 0
        %3201 = vmatprep.subr.bf16.mxu0 0
        %3202 = vmatpush1.bf16.msra.mxu0 0
        %3203 = vmatprep.subr.bf16.mxu0 0
        %3204 = vmatpush1.bf16.msra.mxu0 0
        %3205 = vmatprep.subr.bf16.mxu0 0
        %3206 = vmatpush1.bf16.msra.mxu0 0
        %3207 = vmatprep.subr.bf16.mxu0 0
        %3208 = vmatpush1.bf16.msra.mxu0 0
        %3209 = vmatprep.subr.bf16.mxu0 0
        %3210 = vmatpush1.bf16.msra.mxu0 0
        %3211 = vmatprep.mubr.bf16.mxu0 0
        %3212 = vmatmul.mubr.bf16.gmra.mrb[0].mxu0 %v3140
        %v3213 = vpop.f32.mrb[0].mxu0
        %v3214 = vadd.f32 0.0, %v3213
        %v3215 = vpop.f32.mrb[0].mxu0
        %v3216 = vpop.f32.mrb[0].mxu0
        %v3217 = vadd.f32 0.0, %v3216
        %v3218 = vpop.f32.mrb[0].mxu0
        %3219 = vmatprep.mubr.bf16.mxu0 0
        %3220 = vmatmul.mubr.bf16.gmra.mrb[0].mxu0 %v3143
        %v3221 = vpop.f32.mrb[0].mxu0
        %v3222 = vadd.f32 0.0, %v3221
        %v3223 = vpop.f32.mrb[0].mxu0
        %v3224 = vpop.f32.mrb[0].mxu0
        %v3225 = vadd.f32 0.0, %v3224
        %v3226 = vpop.f32.mrb[0].mxu0
        %3227 = vmatprep.mubr.bf16.mxu0 0
        %3228 = vmatmul.mubr.bf16.gmra.mrb[0].mxu0 %v3146
        %v3229 = vpop.f32.mrb[0].mxu0
        %v3230 = vadd.f32 0.0, %v3229
        %v3231 = vpop.f32.mrb[0].mxu0
        %v3232 = vpop.f32.mrb[0].mxu0
        %v3233 = vadd.f32 0.0, %v3232
        %v3234 = vpop.f32.mrb[0].mxu0
        %3235 = vmatprep.mubr.bf16.mxu0 0
        %3236 = vmatmul.mubr.bf16.gmra.mrb[0].mxu0 %v3149
        %v3237 = vpop.f32.mrb[0].mxu0
        %v3238 = vadd.f32 0.0, %v3237
        %v3239 = vpop.f32.mrb[0].mxu0
        %v3240 = vpop.f32.mrb[0].mxu0
        %v3241 = vadd.f32 0.0, %v3240
        %v3242 = vpop.f32.mrb[0].mxu0
        %3243 = vmatprep.mubr.bf16.mxu0 0
        %3244 = vmatmul.mubr.bf16.gmra.mrb[0].mxu0 %v3152
        %v3245 = vpop.f32.mrb[0].mxu0
        %v3246 = vadd.f32 0.0, %v3245
        %v3247 = vpop.f32.mrb[0].mxu0
        %v3248 = vpop.f32.mrb[0].mxu0
        %v3249 = vadd.f32 0.0, %v3248
        %v3250 = vpop.f32.mrb[0].mxu0
        %3251 = vmatprep.mubr.bf16.mxu0 0
        %3252 = vmatmul.mubr.bf16.gmra.mrb[0].mxu0 %v3155
        %v3253 = vpop.f32.mrb[0].mxu0
        %v3254 = vadd.f32 0.0, %v3253
        %v3255 = vpop.f32.mrb[0].mxu0
        %v3256 = vpop.f32.mrb[0].mxu0
        %v3257 = vadd.f32 0.0, %v3256
        %v3258 = vpop.f32.mrb[0].mxu0
        %3259 = vmatprep.mubr.bf16.mxu0 0
        %3260 = vmatmul.mubr.bf16.gmra.mrb[0].mxu0 %v3158
        %v3261 = vpop.f32.mrb[0].mxu0
        %v3262 = vadd.f32 0.0, %v3261
        %v3263 = vpop.f32.mrb[0].mxu0
        %v3264 = vpop.f32.mrb[0].mxu0
        %v3265 = vadd.f32 0.0, %v3264
        %v3266 = vpop.f32.mrb[0].mxu0
        %3267 = vmatprep.mubr.bf16.mxu0 0
        %3268 = vmatmul.mubr.bf16.gmra.mrb[0].mxu0 %v3161
        %v3269 = vpop.f32.mrb[0].mxu0
        %v3270 = vadd.f32 0.0, %v3269
        %v3271 = vpop.f32.mrb[0].mxu0
        %v3272 = vpop.f32.mrb[0].mxu0
        %v3273 = vadd.f32 0.0, %v3272
        %v3274 = vpop.f32.mrb[0].mxu0
        %3275 = vmatprep.mubr.bf16.mxu0 0
        %3276 = vmatmul.mubr.bf16.gmra.mrb[0].mxu0 %v3164
        %v3277 = vpop.f32.mrb[0].mxu0
        %v3278 = vadd.f32 0.0, %v3277
        %v3279 = vpop.f32.mrb[0].mxu0
        %v3280 = vpop.f32.mrb[0].mxu0
        %v3281 = vadd.f32 0.0, %v3280
        %v3282 = vpop.f32.mrb[0].mxu0
        %3283 = vmatprep.mubr.bf16.mxu0 0
        %3284 = vmatmul.mubr.bf16.gmra.mrb[0].mxu0 %v3167
        %v3285 = vpop.f32.mrb[0].mxu0
        %v3286 = vadd.f32 0.0, %v3285
        %v3287 = vpop.f32.mrb[0].mxu0
        %v3288 = vpop.f32.mrb[0].mxu0
        %v3289 = vadd.f32 0.0, %v3288
        %v3290 = vpop.f32.mrb[0].mxu0
        %3291 = vmatprep.mubr.bf16.mxu0 0
        %3292 = vmatmul.mubr.bf16.gmra.mrb[0].mxu0 %v3170
        %v3293 = vpop.f32.mrb[0].mxu0
        %v3294 = vadd.f32 0.0, %v3293
        %v3295 = vpop.f32.mrb[0].mxu0
        %v3296 = vpop.f32.mrb[0].mxu0
        %v3297 = vadd.f32 0.0, %v3296
        %v3298 = vpop.f32.mrb[0].mxu0
        %3299 = vmatprep.mubr.bf16.mxu0 0
        %3300 = vmatmul.mubr.bf16.gmra.mrb[0].mxu0 %v3173
        %v3301 = vpop.f32.mrb[0].mxu0
        %v3302 = vadd.f32 0.0, %v3301
        %v3303 = vpop.f32.mrb[0].mxu0
        %v3304 = vpop.f32.mrb[0].mxu0
        %v3305 = vadd.f32 0.0, %v3304
        %v3306 = vpop.f32.mrb[0].mxu0
        %3307 = vdwg.mxu0
        %v3309 = vsel %vm956, %v1792, 0
        %v3312 = vsel %vm956, %v1793, 0
        %v3315 = vsel %vm956, %v1794, 0
        %v3318 = vsel %vm956, %v1795, 0
        %v3321 = vsel %vm956, %v1796, 0
        %v3324 = vsel %vm956, %v1797, 0
        %v3327 = vsel %vm956, %v1798, 0
        %v3330 = vsel %vm956, %v1799, 0
        %v3333 = vsel %vm956, %v1800, 0
        %v3336 = vsel %vm956, %v1801, 0
        %v3339 = vsel %vm956, %v1802, 0
        %v3342 = vsel %vm956, %v1803, 0
        %v3345 = vsel %vm3175, %v1804, 0
        %3347 = vmatprep.subr.bf16.mxu0 0
        %3348 = vmatpush1.bf16.msra.mxu0 %v3345
        %3349 = vmatprep.subr.bf16.mxu0 0
        %3350 = vmatpush1.bf16.msra.mxu0 0
        %3351 = vmatprep.subr.bf16.mxu0 0
        %3352 = vmatpush1.bf16.msra.mxu0 0
        %3353 = vmatprep.subr.bf16.mxu0 0
        %3354 = vmatpush1.bf16.msra.mxu0 0
        %3355 = vmatprep.subr.bf16.mxu0 0
        %3356 = vmatpush1.bf16.msra.mxu0 0
        %3357 = vmatprep.subr.bf16.mxu0 0
        %3358 = vmatpush1.bf16.msra.mxu0 0
        %3359 = vmatprep.subr.bf16.mxu0 0
        %3360 = vmatpush1.bf16.msra.mxu0 0
        %3361 = vmatprep.subr.bf16.mxu0 0
        %3362 = vmatpush1.bf16.msra.mxu0 0
        %3363 = vmatprep.subr.bf16.mxu0 0
        %3364 = vmatpush1.bf16.msra.mxu0 0
        %3365 = vmatprep.subr.bf16.mxu0 0
        %3366 = vmatpush1.bf16.msra.mxu0 0
        %3367 = vmatprep.subr.bf16.mxu0 0
        %3368 = vmatpush1.bf16.msra.mxu0 0
        %3369 = vmatprep.subr.bf16.mxu0 0
        %3370 = vmatpush1.bf16.msra.mxu0 0
        %3371 = vmatprep.subr.bf16.mxu0 0
        %3372 = vmatpush1.bf16.msra.mxu0 0
        %3373 = vmatprep.subr.bf16.mxu0 0
        %3374 = vmatpush1.bf16.msra.mxu0 0
        %3375 = vmatprep.subr.bf16.mxu0 0
        %3376 = vmatpush1.bf16.msra.mxu0 0
        %3377 = vmatprep.subr.bf16.mxu0 0
        %3378 = vmatpush1.bf16.msra.mxu0 0
        %3379 = vmatprep.mubr.bf16.mxu0 0
        %3380 = vmatmul.mubr.bf16.gmra.mrb[0].mxu0 %v3309
        %v3381 = vpop.f32.mrb[0].mxu0
        %v3382 = vadd.f32 %v3214, %v3381
        %v3383 = vpop.f32.mrb[0].mxu0
        %v3384 = vpop.f32.mrb[0].mxu0
        %v3385 = vadd.f32 %v3217, %v3384
        %v3386 = vpop.f32.mrb[0].mxu0
        %3387 = vmatprep.mubr.bf16.mxu0 0
        %3388 = vmatmul.mubr.bf16.gmra.mrb[0].mxu0 %v3312
        %v3389 = vpop.f32.mrb[0].mxu0
        %v3390 = vadd.f32 %v3222, %v3389
        %v3391 = vpop.f32.mrb[0].mxu0
        %v3392 = vpop.f32.mrb[0].mxu0
        %v3393 = vadd.f32 %v3225, %v3392
        %v3394 = vpop.f32.mrb[0].mxu0
        %3395 = vmatprep.mubr.bf16.mxu0 0
        %3396 = vmatmul.mubr.bf16.gmra.mrb[0].mxu0 %v3315
        %v3397 = vpop.f32.mrb[0].mxu0
        %v3398 = vadd.f32 %v3230, %v3397
        %v3399 = vpop.f32.mrb[0].mxu0
        %v3400 = vpop.f32.mrb[0].mxu0
        %v3401 = vadd.f32 %v3233, %v3400
        %v3402 = vpop.f32.mrb[0].mxu0
        %3403 = vmatprep.mubr.bf16.mxu0 0
        %3404 = vmatmul.mubr.bf16.gmra.mrb[0].mxu0 %v3318
        %v3405 = vpop.f32.mrb[0].mxu0
        %v3406 = vadd.f32 %v3238, %v3405
        %v3407 = vpop.f32.mrb[0].mxu0
        %v3408 = vpop.f32.mrb[0].mxu0
        %v3409 = vadd.f32 %v3241, %v3408
        %v3410 = vpop.f32.mrb[0].mxu0
        %3411 = vmatprep.mubr.bf16.mxu0 0
        %3412 = vmatmul.mubr.bf16.gmra.mrb[0].mxu0 %v3321
        %v3413 = vpop.f32.mrb[0].mxu0
        %v3414 = vadd.f32 %v3246, %v3413
        %v3415 = vpop.f32.mrb[0].mxu0
        %v3416 = vpop.f32.mrb[0].mxu0
        %v3417 = vadd.f32 %v3249, %v3416
        %v3418 = vpop.f32.mrb[0].mxu0
        %3419 = vmatprep.mubr.bf16.mxu0 0
        %3420 = vmatmul.mubr.bf16.gmra.mrb[0].mxu0 %v3324
        %v3421 = vpop.f32.mrb[0].mxu0
        %v3422 = vadd.f32 %v3254, %v3421
        %v3423 = vpop.f32.mrb[0].mxu0
        %v3424 = vpop.f32.mrb[0].mxu0
        %v3425 = vadd.f32 %v3257, %v3424
        %v3426 = vpop.f32.mrb[0].mxu0
        %3427 = vmatprep.mubr.bf16.mxu0 0
        %3428 = vmatmul.mubr.bf16.gmra.mrb[0].mxu0 %v3327
        %v3429 = vpop.f32.mrb[0].mxu0
        %v3430 = vadd.f32 %v3262, %v3429
        %v3431 = vpop.f32.mrb[0].mxu0
        %v3432 = vpop.f32.mrb[0].mxu0
        %v3433 = vadd.f32 %v3265, %v3432
        %v3434 = vpop.f32.mrb[0].mxu0
        %3435 = vmatprep.mubr.bf16.mxu0 0
        %3436 = vmatmul.mubr.bf16.gmra.mrb[0].mxu0 %v3330
        %v3437 = vpop.f32.mrb[0].mxu0
        %v3438 = vadd.f32 %v3270, %v3437
        %v3439 = vpop.f32.mrb[0].mxu0
        %v3440 = vpop.f32.mrb[0].mxu0
        %v3441 = vadd.f32 %v3273, %v3440
        %v3442 = vpop.f32.mrb[0].mxu0
        %3443 = vmatprep.mubr.bf16.mxu0 0
        %3444 = vmatmul.mubr.bf16.gmra.mrb[0].mxu0 %v3333
        %v3445 = vpop.f32.mrb[0].mxu0
        %v3446 = vadd.f32 %v3278, %v3445
        %v3447 = vpop.f32.mrb[0].mxu0
        %v3448 = vpop.f32.mrb[0].mxu0
        %v3449 = vadd.f32 %v3281, %v3448
        %v3450 = vpop.f32.mrb[0].mxu0
        %3451 = vmatprep.mubr.bf16.mxu0 0
        %3452 = vmatmul.mubr.bf16.gmra.mrb[0].mxu0 %v3336
        %v3453 = vpop.f32.mrb[0].mxu0
        %v3454 = vadd.f32 %v3286, %v3453
        %v3455 = vpop.f32.mrb[0].mxu0
        %v3456 = vpop.f32.mrb[0].mxu0
        %v3457 = vadd.f32 %v3289, %v3456
        %v3458 = vpop.f32.mrb[0].mxu0
        %3459 = vmatprep.mubr.bf16.mxu0 0
        %3460 = vmatmul.mubr.bf16.gmra.mrb[0].mxu0 %v3339
        %v3461 = vpop.f32.mrb[0].mxu0
        %v3462 = vadd.f32 %v3294, %v3461
        %v3463 = vpop.f32.mrb[0].mxu0
        %v3464 = vpop.f32.mrb[0].mxu0
        %v3465 = vadd.f32 %v3297, %v3464
        %v3466 = vpop.f32.mrb[0].mxu0
        %3467 = vmatprep.mubr.bf16.mxu0 0
        %3468 = vmatmul.mubr.bf16.gmra.mrb[0].mxu0 %v3342
        %v3469 = vpop.f32.mrb[0].mxu0
        %v3470 = vadd.f32 %v3302, %v3469
        %v3471 = vpop.f32.mrb[0].mxu0
        %v3472 = vpop.f32.mrb[0].mxu0
        %v3473 = vadd.f32 %v3305, %v3472
        %v3474 = vpop.f32.mrb[0].mxu0
        %3475 = vdwg.mxu0
        %s3476 = scalar_lea.vmem %s1, 32
        %v3477 = vld [vmem:[%s3476] sm:$0xf]
        %v3478 = vld [vmem:[%s3476 + $0x4] sm:$0xf]
        %v3479 = vld [vmem:[%s3476 + $0x8] sm:$0xf]
        %v3480 = vld [vmem:[%s3476 + $0xc] sm:$0xf]
        %s3481 = scalar_lea.vmem %s2, 2
        %v3482 = vld [vmem:[%s3481] sm:$0x1]
        %v3484 = vlaneseq
        %v3485 = vshrl.u32 %v3484, 7
        %v3486 = vsub.s32 0, %v3485
        %v3487 = vrot.slane %v3482, %v3486
        %v3493 = vunpack.c.l.b16 %v3477
        %v3494 = vunpack.c.l.b16 %v3478
        %v3495 = vunpack.c.l.b16 %v3479
        %v3496 = vunpack.c.l.b16 %v3480
        %v3497 = vpack.c.b16 %v3494, %v3493
        %v3498 = vpack.c.b16 %v3496, %v3495
        %3501 = vmatprep.subr.bf16.mxu0 0
        %3502 = vmatpush1.bf16.msra.mxu0 %v3497
        %3503 = vmatprep.subr.bf16.mxu0 0
        %3504 = vmatpush1.bf16.msra.mxu0 %v3498
        %3505 = vmatprep.subr.bf16.mxu0 0
        %3506 = vmatpush1.bf16.msra.mxu0 0
        %3507 = vmatprep.subr.bf16.mxu0 0
        %3508 = vmatpush1.bf16.msra.mxu0 0
        %3509 = vmatprep.subr.bf16.mxu0 0
        %3510 = vmatpush1.bf16.msra.mxu0 0
        %3511 = vmatprep.subr.bf16.mxu0 0
        %3512 = vmatpush1.bf16.msra.mxu0 0
        %3513 = vmatprep.subr.bf16.mxu0 0
        %3514 = vmatpush1.bf16.msra.mxu0 0
        %3515 = vmatprep.subr.bf16.mxu0 0
        %3516 = vmatpush1.bf16.msra.mxu0 0
        %3517 = vmatprep.subr.bf16.mxu0 0
        %3518 = vmatpush1.bf16.msra.mxu0 0
        %3519 = vmatprep.subr.bf16.mxu0 0
        %3520 = vmatpush1.bf16.msra.mxu0 0
        %3521 = vmatprep.subr.bf16.mxu0 0
        %3522 = vmatpush1.bf16.msra.mxu0 0
        %3523 = vmatprep.subr.bf16.mxu0 0
        %3524 = vmatpush1.bf16.msra.mxu0 0
        %3525 = vmatprep.subr.bf16.mxu0 0
        %3526 = vmatpush1.bf16.msra.mxu0 0
        %3527 = vmatprep.subr.bf16.mxu0 0
        %3528 = vmatpush1.bf16.msra.mxu0 0
        %3529 = vmatprep.subr.bf16.mxu0 0
        %3530 = vmatpush1.bf16.msra.mxu0 0
        %3531 = vmatprep.subr.bf16.mxu0 0
        %3532 = vmatpush1.bf16.msra.mxu0 0
        %3533 = vmatprep.mubr.bf16.mxu0 0
        %3534 = vmatmul.mubr.bf16.gmra.mrb[0].mxu0 %v460
        %v3535 = vpop.f32.mrb[0].mxu0
        %v3536 = vadd.f32 %v3487, %v3535
        %v3537 = vpop.f32.mrb[0].mxu0
        %v3538 = vpop.f32.mrb[0].mxu0
        %v3539 = vadd.f32 %v3487, %v3538
        %v3540 = vpop.f32.mrb[0].mxu0
        %3541 = vmatprep.mubr.bf16.mxu0 0
        %3542 = vmatmul.mubr.bf16.gmra.mrb[0].mxu0 %v463
        %v3543 = vpop.f32.mrb[0].mxu0
        %v3544 = vadd.f32 %v3487, %v3543
        %v3545 = vpop.f32.mrb[0].mxu0
        %v3546 = vpop.f32.mrb[0].mxu0
        %v3547 = vadd.f32 %v3487, %v3546
        %v3548 = vpop.f32.mrb[0].mxu0
        %3549 = vmatprep.mubr.bf16.mxu0 0
        %3550 = vmatmul.mubr.bf16.gmra.mrb[0].mxu0 %v466
        %v3551 = vpop.f32.mrb[0].mxu0
        %v3552 = vadd.f32 %v3487, %v3551
        %v3553 = vpop.f32.mrb[0].mxu0
        %v3554 = vpop.f32.mrb[0].mxu0
        %v3555 = vadd.f32 %v3487, %v3554
        %v3556 = vpop.f32.mrb[0].mxu0
        %3557 = vmatprep.mubr.bf16.mxu0 0
        %3558 = vmatmul.mubr.bf16.gmra.mrb[0].mxu0 %v469
        %v3559 = vpop.f32.mrb[0].mxu0
        %v3560 = vadd.f32 %v3487, %v3559
        %v3561 = vpop.f32.mrb[0].mxu0
        %v3562 = vpop.f32.mrb[0].mxu0
        %v3563 = vadd.f32 %v3487, %v3562
        %v3564 = vpop.f32.mrb[0].mxu0
        %3565 = vmatprep.mubr.bf16.mxu0 0
        %3566 = vmatmul.mubr.bf16.gmra.mrb[0].mxu0 %v472
        %v3567 = vpop.f32.mrb[0].mxu0
        %v3568 = vadd.f32 %v3487, %v3567
        %v3569 = vpop.f32.mrb[0].mxu0
        %v3570 = vpop.f32.mrb[0].mxu0
        %v3571 = vadd.f32 %v3487, %v3570
        %v3572 = vpop.f32.mrb[0].mxu0
        %3573 = vmatprep.mubr.bf16.mxu0 0
        %3574 = vmatmul.mubr.bf16.gmra.mrb[0].mxu0 %v475
        %v3575 = vpop.f32.mrb[0].mxu0
        %v3576 = vadd.f32 %v3487, %v3575
        %v3577 = vpop.f32.mrb[0].mxu0
        %v3578 = vpop.f32.mrb[0].mxu0
        %v3579 = vadd.f32 %v3487, %v3578
        %v3580 = vpop.f32.mrb[0].mxu0
        %3581 = vmatprep.mubr.bf16.mxu0 0
        %3582 = vmatmul.mubr.bf16.gmra.mrb[0].mxu0 %v478
        %v3583 = vpop.f32.mrb[0].mxu0
        %v3584 = vadd.f32 %v3487, %v3583
        %v3585 = vpop.f32.mrb[0].mxu0
        %v3586 = vpop.f32.mrb[0].mxu0
        %v3587 = vadd.f32 %v3487, %v3586
        %v3588 = vpop.f32.mrb[0].mxu0
        %3589 = vmatprep.mubr.bf16.mxu0 0
        %3590 = vmatmul.mubr.bf16.gmra.mrb[0].mxu0 %v481
        %v3591 = vpop.f32.mrb[0].mxu0
        %v3592 = vadd.f32 %v3487, %v3591
        %v3593 = vpop.f32.mrb[0].mxu0
        %v3594 = vpop.f32.mrb[0].mxu0
        %v3595 = vadd.f32 %v3487, %v3594
        %v3596 = vpop.f32.mrb[0].mxu0
        %3597 = vmatprep.mubr.bf16.mxu0 0
        %3598 = vmatmul.mubr.bf16.gmra.mrb[0].mxu0 %v484
        %v3599 = vpop.f32.mrb[0].mxu0
        %v3600 = vadd.f32 %v3487, %v3599
        %v3601 = vpop.f32.mrb[0].mxu0
        %v3602 = vpop.f32.mrb[0].mxu0
        %v3603 = vadd.f32 %v3487, %v3602
        %v3604 = vpop.f32.mrb[0].mxu0
        %3605 = vmatprep.mubr.bf16.mxu0 0
        %3606 = vmatmul.mubr.bf16.gmra.mrb[0].mxu0 %v487
        %v3607 = vpop.f32.mrb[0].mxu0
        %v3608 = vadd.f32 %v3487, %v3607
        %v3609 = vpop.f32.mrb[0].mxu0
        %v3610 = vpop.f32.mrb[0].mxu0
        %v3611 = vadd.f32 %v3487, %v3610
        %v3612 = vpop.f32.mrb[0].mxu0
        %3613 = vmatprep.mubr.bf16.mxu0 0
        %3614 = vmatmul.mubr.bf16.gmra.mrb[0].mxu0 %v490
        %v3615 = vpop.f32.mrb[0].mxu0
        %v3616 = vadd.f32 %v3487, %v3615
        %v3617 = vpop.f32.mrb[0].mxu0
        %v3618 = vpop.f32.mrb[0].mxu0
        %v3619 = vadd.f32 %v3487, %v3618
        %v3620 = vpop.f32.mrb[0].mxu0
        %3621 = vmatprep.mubr.bf16.mxu0 0
        %3622 = vmatmul.mubr.bf16.gmra.mrb[0].mxu0 %v493
        %v3623 = vpop.f32.mrb[0].mxu0
        %v3624 = vadd.f32 %v3487, %v3623
        %v3625 = vpop.f32.mrb[0].mxu0
        %v3626 = vpop.f32.mrb[0].mxu0
        %v3627 = vadd.f32 %v3487, %v3626
        %v3628 = vpop.f32.mrb[0].mxu0
        %3629 = vdwg.mxu0
        %s3630 = scalar_lea.vmem %s1, 96
        %v3631 = vld [vmem:[%s3630] sm:$0xf]
        %v3632 = vld [vmem:[%s3630 + $0x4] sm:$0xf]
        %v3633 = vld [vmem:[%s3630 + $0x8] sm:$0xf]
        %v3634 = vld [vmem:[%s3630 + $0xc] sm:$0xf]
        %s3635 = scalar_lea.vmem %s2, 6
        %v3636 = vld [vmem:[%s3635] sm:$0x1]
        %v3638 = vlaneseq
        %v3639 = vshrl.u32 %v3638, 7
        %v3640 = vsub.s32 0, %v3639
        %v3641 = vrot.slane %v3636, %v3640
        %v3647 = vunpack.c.l.b16 %v3631
        %v3648 = vunpack.c.l.b16 %v3632
        %v3649 = vunpack.c.l.b16 %v3633
        %v3650 = vunpack.c.l.b16 %v3634
        %v3651 = vpack.c.b16 %v3648, %v3647
        %v3652 = vpack.c.b16 %v3650, %v3649
        %3655 = vmatprep.subr.bf16.mxu0 0
        %3656 = vmatpush1.bf16.msra.mxu0 %v3651
        %3657 = vmatprep.subr.bf16.mxu0 0
        %3658 = vmatpush1.bf16.msra.mxu0 %v3652
        %3659 = vmatprep.subr.bf16.mxu0 0
        %3660 = vmatpush1.bf16.msra.mxu0 0
        %3661 = vmatprep.subr.bf16.mxu0 0
        %3662 = vmatpush1.bf16.msra.mxu0 0
        %3663 = vmatprep.subr.bf16.mxu0 0
        %3664 = vmatpush1.bf16.msra.mxu0 0
        %3665 = vmatprep.subr.bf16.mxu0 0
        %3666 = vmatpush1.bf16.msra.mxu0 0
        %3667 = vmatprep.subr.bf16.mxu0 0
        %3668 = vmatpush1.bf16.msra.mxu0 0
        %3669 = vmatprep.subr.bf16.mxu0 0
        %3670 = vmatpush1.bf16.msra.mxu0 0
        %3671 = vmatprep.subr.bf16.mxu0 0
        %3672 = vmatpush1.bf16.msra.mxu0 0
        %3673 = vmatprep.subr.bf16.mxu0 0
        %3674 = vmatpush1.bf16.msra.mxu0 0
        %3675 = vmatprep.subr.bf16.mxu0 0
        %3676 = vmatpush1.bf16.msra.mxu0 0
        %3677 = vmatprep.subr.bf16.mxu0 0
        %3678 = vmatpush1.bf16.msra.mxu0 0
        %3679 = vmatprep.subr.bf16.mxu0 0
        %3680 = vmatpush1.bf16.msra.mxu0 0
        %3681 = vmatprep.subr.bf16.mxu0 0
        %3682 = vmatpush1.bf16.msra.mxu0 0
        %3683 = vmatprep.subr.bf16.mxu0 0
        %3684 = vmatpush1.bf16.msra.mxu0 0
        %3685 = vmatprep.subr.bf16.mxu0 0
        %3686 = vmatpush1.bf16.msra.mxu0 0
        %3687 = vmatprep.mubr.bf16.mxu0 0
        %3688 = vmatmul.mubr.bf16.gmra.mrb[0].mxu0 %v460
        %v3689 = vpop.f32.mrb[0].mxu0
        %v3690 = vadd.f32 %v3641, %v3689
        %v3691 = vpop.f32.mrb[0].mxu0
        %v3692 = vpop.f32.mrb[0].mxu0
        %v3693 = vadd.f32 %v3641, %v3692
        %v3694 = vpop.f32.mrb[0].mxu0
        %3695 = vmatprep.mubr.bf16.mxu0 0
        %3696 = vmatmul.mubr.bf16.gmra.mrb[0].mxu0 %v463
        %v3697 = vpop.f32.mrb[0].mxu0
        %v3698 = vadd.f32 %v3641, %v3697
        %v3699 = vpop.f32.mrb[0].mxu0
        %v3700 = vpop.f32.mrb[0].mxu0
        %v3701 = vadd.f32 %v3641, %v3700
        %v3702 = vpop.f32.mrb[0].mxu0
        %3703 = vmatprep.mubr.bf16.mxu0 0
        %3704 = vmatmul.mubr.bf16.gmra.mrb[0].mxu0 %v466
        %v3705 = vpop.f32.mrb[0].mxu0
        %v3706 = vadd.f32 %v3641, %v3705
        %v3707 = vpop.f32.mrb[0].mxu0
        %v3708 = vpop.f32.mrb[0].mxu0
        %v3709 = vadd.f32 %v3641, %v3708
        %v3710 = vpop.f32.mrb[0].mxu0
        %3711 = vmatprep.mubr.bf16.mxu0 0
        %3712 = vmatmul.mubr.bf16.gmra.mrb[0].mxu0 %v469
        %v3713 = vpop.f32.mrb[0].mxu0
        %v3714 = vadd.f32 %v3641, %v3713
        %v3715 = vpop.f32.mrb[0].mxu0
        %v3716 = vpop.f32.mrb[0].mxu0
        %v3717 = vadd.f32 %v3641, %v3716
        %v3718 = vpop.f32.mrb[0].mxu0
        %3719 = vmatprep.mubr.bf16.mxu0 0
        %3720 = vmatmul.mubr.bf16.gmra.mrb[0].mxu0 %v472
        %v3721 = vpop.f32.mrb[0].mxu0
        %v3722 = vadd.f32 %v3641, %v3721
        %v3723 = vpop.f32.mrb[0].mxu0
        %v3724 = vpop.f32.mrb[0].mxu0
        %v3725 = vadd.f32 %v3641, %v3724
        %v3726 = vpop.f32.mrb[0].mxu0
        %3727 = vmatprep.mubr.bf16.mxu0 0
        %3728 = vmatmul.mubr.bf16.gmra.mrb[0].mxu0 %v475
        %v3729 = vpop.f32.mrb[0].mxu0
        %v3730 = vadd.f32 %v3641, %v3729
        %v3731 = vpop.f32.mrb[0].mxu0
        %v3732 = vpop.f32.mrb[0].mxu0
        %v3733 = vadd.f32 %v3641, %v3732
        %v3734 = vpop.f32.mrb[0].mxu0
        %3735 = vmatprep.mubr.bf16.mxu0 0
        %3736 = vmatmul.mubr.bf16.gmra.mrb[0].mxu0 %v478
        %v3737 = vpop.f32.mrb[0].mxu0
        %v3738 = vadd.f32 %v3641, %v3737
        %v3739 = vpop.f32.mrb[0].mxu0
        %v3740 = vpop.f32.mrb[0].mxu0
        %v3741 = vadd.f32 %v3641, %v3740
        %v3742 = vpop.f32.mrb[0].mxu0
        %3743 = vmatprep.mubr.bf16.mxu0 0
        %3744 = vmatmul.mubr.bf16.gmra.mrb[0].mxu0 %v481
        %v3745 = vpop.f32.mrb[0].mxu0
        %v3746 = vadd.f32 %v3641, %v3745
        %v3747 = vpop.f32.mrb[0].mxu0
        %v3748 = vpop.f32.mrb[0].mxu0
        %v3749 = vadd.f32 %v3641, %v3748
        %v3750 = vpop.f32.mrb[0].mxu0
        %3751 = vmatprep.mubr.bf16.mxu0 0
        %3752 = vmatmul.mubr.bf16.gmra.mrb[0].mxu0 %v484
        %v3753 = vpop.f32.mrb[0].mxu0
        %v3754 = vadd.f32 %v3641, %v3753
        %v3755 = vpop.f32.mrb[0].mxu0
        %v3756 = vpop.f32.mrb[0].mxu0
        %v3757 = vadd.f32 %v3641, %v3756
        %v3758 = vpop.f32.mrb[0].mxu0
        %3759 = vmatprep.mubr.bf16.mxu0 0
        %3760 = vmatmul.mubr.bf16.gmra.mrb[0].mxu0 %v487
        %v3761 = vpop.f32.mrb[0].mxu0
        %v3762 = vadd.f32 %v3641, %v3761
        %v3763 = vpop.f32.mrb[0].mxu0
        %v3764 = vpop.f32.mrb[0].mxu0
        %v3765 = vadd.f32 %v3641, %v3764
        %v3766 = vpop.f32.mrb[0].mxu0
        %3767 = vmatprep.mubr.bf16.mxu0 0
        %3768 = vmatmul.mubr.bf16.gmra.mrb[0].mxu0 %v490
        %v3769 = vpop.f32.mrb[0].mxu0
        %v3770 = vadd.f32 %v3641, %v3769
        %v3771 = vpop.f32.mrb[0].mxu0
        %v3772 = vpop.f32.mrb[0].mxu0
        %v3773 = vadd.f32 %v3641, %v3772
        %v3774 = vpop.f32.mrb[0].mxu0
        %3775 = vmatprep.mubr.bf16.mxu0 0
        %3776 = vmatmul.mubr.bf16.gmra.mrb[0].mxu0 %v493
        %v3777 = vpop.f32.mrb[0].mxu0
        %v3778 = vadd.f32 %v3641, %v3777
        %v3779 = vpop.f32.mrb[0].mxu0
        %v3780 = vpop.f32.mrb[0].mxu0
        %v3781 = vadd.f32 %v3641, %v3780
        %v3782 = vpop.f32.mrb[0].mxu0
        %3783 = vdwg.mxu0
        %s3784 = scalar_lea.vmem %s1, 160
        %v3785 = vld [vmem:[%s3784] sm:$0xf]
        %v3786 = vld [vmem:[%s3784 + $0x4] sm:$0xf]
        %v3787 = vld [vmem:[%s3784 + $0x8] sm:$0xf]
        %v3788 = vld [vmem:[%s3784 + $0xc] sm:$0xf]
        %s3789 = scalar_lea.vmem %s2, 10
        %v3790 = vld [vmem:[%s3789] sm:$0x1]
        %v3792 = vlaneseq
        %v3793 = vshrl.u32 %v3792, 7
        %v3794 = vsub.s32 0, %v3793
        %v3795 = vrot.slane %v3790, %v3794
        %v3801 = vunpack.c.l.b16 %v3785
        %v3802 = vunpack.c.l.b16 %v3786
        %v3803 = vunpack.c.l.b16 %v3787
        %v3804 = vunpack.c.l.b16 %v3788
        %v3805 = vpack.c.b16 %v3802, %v3801
        %v3806 = vpack.c.b16 %v3804, %v3803
        %3809 = vmatprep.subr.bf16.mxu0 0
        %3810 = vmatpush1.bf16.msra.mxu0 %v3805
        %3811 = vmatprep.subr.bf16.mxu0 0
        %3812 = vmatpush1.bf16.msra.mxu0 %v3806
        %3813 = vmatprep.subr.bf16.mxu0 0
        %3814 = vmatpush1.bf16.msra.mxu0 0
        %3815 = vmatprep.subr.bf16.mxu0 0
        %3816 = vmatpush1.bf16.msra.mxu0 0
        %3817 = vmatprep.subr.bf16.mxu0 0
        %3818 = vmatpush1.bf16.msra.mxu0 0
        %3819 = vmatprep.subr.bf16.mxu0 0
        %3820 = vmatpush1.bf16.msra.mxu0 0
        %3821 = vmatprep.subr.bf16.mxu0 0
        %3822 = vmatpush1.bf16.msra.mxu0 0
        %3823 = vmatprep.subr.bf16.mxu0 0
        %3824 = vmatpush1.bf16.msra.mxu0 0
        %3825 = vmatprep.subr.bf16.mxu0 0
        %3826 = vmatpush1.bf16.msra.mxu0 0
        %3827 = vmatprep.subr.bf16.mxu0 0
        %3828 = vmatpush1.bf16.msra.mxu0 0
        %3829 = vmatprep.subr.bf16.mxu0 0
        %3830 = vmatpush1.bf16.msra.mxu0 0
        %3831 = vmatprep.subr.bf16.mxu0 0
        %3832 = vmatpush1.bf16.msra.mxu0 0
        %3833 = vmatprep.subr.bf16.mxu0 0
        %3834 = vmatpush1.bf16.msra.mxu0 0
        %3835 = vmatprep.subr.bf16.mxu0 0
        %3836 = vmatpush1.bf16.msra.mxu0 0
        %3837 = vmatprep.subr.bf16.mxu0 0
        %3838 = vmatpush1.bf16.msra.mxu0 0
        %3839 = vmatprep.subr.bf16.mxu0 0
        %3840 = vmatpush1.bf16.msra.mxu0 0
        %3841 = vmatprep.mubr.bf16.mxu0 0
        %3842 = vmatmul.mubr.bf16.gmra.mrb[0].mxu0 %v460
        %v3843 = vpop.f32.mrb[0].mxu0
        %v3844 = vadd.f32 %v3795, %v3843
        %v3845 = vpop.f32.mrb[0].mxu0
        %v3846 = vpop.f32.mrb[0].mxu0
        %v3847 = vadd.f32 %v3795, %v3846
        %v3848 = vpop.f32.mrb[0].mxu0
        %3849 = vmatprep.mubr.bf16.mxu0 0
        %3850 = vmatmul.mubr.bf16.gmra.mrb[0].mxu0 %v463
        %v3851 = vpop.f32.mrb[0].mxu0
        %v3852 = vadd.f32 %v3795, %v3851
        %v3853 = vpop.f32.mrb[0].mxu0
        %v3854 = vpop.f32.mrb[0].mxu0
        %v3855 = vadd.f32 %v3795, %v3854
        %v3856 = vpop.f32.mrb[0].mxu0
        %3857 = vmatprep.mubr.bf16.mxu0 0
        %3858 = vmatmul.mubr.bf16.gmra.mrb[0].mxu0 %v466
        %v3859 = vpop.f32.mrb[0].mxu0
        %v3860 = vadd.f32 %v3795, %v3859
        %v3861 = vpop.f32.mrb[0].mxu0
        %v3862 = vpop.f32.mrb[0].mxu0
        %v3863 = vadd.f32 %v3795, %v3862
        %v3864 = vpop.f32.mrb[0].mxu0
        %3865 = vmatprep.mubr.bf16.mxu0 0
        %3866 = vmatmul.mubr.bf16.gmra.mrb[0].mxu0 %v469
        %v3867 = vpop.f32.mrb[0].mxu0
        %v3868 = vadd.f32 %v3795, %v3867
        %v3869 = vpop.f32.mrb[0].mxu0
        %v3870 = vpop.f32.mrb[0].mxu0
        %v3871 = vadd.f32 %v3795, %v3870
        %v3872 = vpop.f32.mrb[0].mxu0
        %3873 = vmatprep.mubr.bf16.mxu0 0
        %3874 = vmatmul.mubr.bf16.gmra.mrb[0].mxu0 %v472
        %v3875 = vpop.f32.mrb[0].mxu0
        %v3876 = vadd.f32 %v3795, %v3875
        %v3877 = vpop.f32.mrb[0].mxu0
        %v3878 = vpop.f32.mrb[0].mxu0
        %v3879 = vadd.f32 %v3795, %v3878
        %v3880 = vpop.f32.mrb[0].mxu0
        %3881 = vmatprep.mubr.bf16.mxu0 0
        %3882 = vmatmul.mubr.bf16.gmra.mrb[0].mxu0 %v475
        %v3883 = vpop.f32.mrb[0].mxu0
        %v3884 = vadd.f32 %v3795, %v3883
        %v3885 = vpop.f32.mrb[0].mxu0
        %v3886 = vpop.f32.mrb[0].mxu0
        %v3887 = vadd.f32 %v3795, %v3886
        %v3888 = vpop.f32.mrb[0].mxu0
        %3889 = vmatprep.mubr.bf16.mxu0 0
        %3890 = vmatmul.mubr.bf16.gmra.mrb[0].mxu0 %v478
        %v3891 = vpop.f32.mrb[0].mxu0
        %v3892 = vadd.f32 %v3795, %v3891
        %v3893 = vpop.f32.mrb[0].mxu0
        %v3894 = vpop.f32.mrb[0].mxu0
        %v3895 = vadd.f32 %v3795, %v3894
        %v3896 = vpop.f32.mrb[0].mxu0
        %3897 = vmatprep.mubr.bf16.mxu0 0
        %3898 = vmatmul.mubr.bf16.gmra.mrb[0].mxu0 %v481
        %v3899 = vpop.f32.mrb[0].mxu0
        %v3900 = vadd.f32 %v3795, %v3899
        %v3901 = vpop.f32.mrb[0].mxu0
        %v3902 = vpop.f32.mrb[0].mxu0
        %v3903 = vadd.f32 %v3795, %v3902
        %v3904 = vpop.f32.mrb[0].mxu0
        %3905 = vmatprep.mubr.bf16.mxu0 0
        %3906 = vmatmul.mubr.bf16.gmra.mrb[0].mxu0 %v484
        %v3907 = vpop.f32.mrb[0].mxu0
        %v3908 = vadd.f32 %v3795, %v3907
        %v3909 = vpop.f32.mrb[0].mxu0
        %v3910 = vpop.f32.mrb[0].mxu0
        %v3911 = vadd.f32 %v3795, %v3910
        %v3912 = vpop.f32.mrb[0].mxu0
        %3913 = vmatprep.mubr.bf16.mxu0 0
        %3914 = vmatmul.mubr.bf16.gmra.mrb[0].mxu0 %v487
        %v3915 = vpop.f32.mrb[0].mxu0
        %v3916 = vadd.f32 %v3795, %v3915
        %v3917 = vpop.f32.mrb[0].mxu0
        %v3918 = vpop.f32.mrb[0].mxu0
        %v3919 = vadd.f32 %v3795, %v3918
        %v3920 = vpop.f32.mrb[0].mxu0
        %3921 = vmatprep.mubr.bf16.mxu0 0
        %3922 = vmatmul.mubr.bf16.gmra.mrb[0].mxu0 %v490
        %v3923 = vpop.f32.mrb[0].mxu0
        %v3924 = vadd.f32 %v3795, %v3923
        %v3925 = vpop.f32.mrb[0].mxu0
        %v3926 = vpop.f32.mrb[0].mxu0
        %v3927 = vadd.f32 %v3795, %v3926
        %v3928 = vpop.f32.mrb[0].mxu0
        %3929 = vmatprep.mubr.bf16.mxu0 0
        %3930 = vmatmul.mubr.bf16.gmra.mrb[0].mxu0 %v493
        %v3931 = vpop.f32.mrb[0].mxu0
        %v3932 = vadd.f32 %v3795, %v3931
        %v3933 = vpop.f32.mrb[0].mxu0
        %v3934 = vpop.f32.mrb[0].mxu0
        %v3935 = vadd.f32 %v3795, %v3934
        %v3936 = vpop.f32.mrb[0].mxu0
        %3937 = vdwg.mxu0
        %v3938 = vpack.c.bf16 %v3539, %v3536
        %v3939 = vpack.c.bf16 %v3547, %v3544
        %v3940 = vpack.c.bf16 %v3555, %v3552
        %v3941 = vpack.c.bf16 %v3563, %v3560
        %v3942 = vpack.c.bf16 %v3571, %v3568
        %v3943 = vpack.c.bf16 %v3579, %v3576
        %v3944 = vpack.c.bf16 %v3587, %v3584
        %v3945 = vpack.c.bf16 %v3595, %v3592
        %v3946 = vpack.c.bf16 %v3603, %v3600
        %v3947 = vpack.c.bf16 %v3611, %v3608
        %v3948 = vpack.c.bf16 %v3619, %v3616
        %v3949 = vpack.c.bf16 %v3627, %v3624
        %v3950 = vpack.c.bf16 %v3693, %v3690
        %v3951 = vpack.c.bf16 %v3701, %v3698
        %v3952 = vpack.c.bf16 %v3709, %v3706
        %v3953 = vpack.c.bf16 %v3717, %v3714
        %v3954 = vpack.c.bf16 %v3725, %v3722
        %v3955 = vpack.c.bf16 %v3733, %v3730
        %v3956 = vpack.c.bf16 %v3741, %v3738
        %v3957 = vpack.c.bf16 %v3749, %v3746
        %v3958 = vpack.c.bf16 %v3757, %v3754
        %v3959 = vpack.c.bf16 %v3765, %v3762
        %v3960 = vpack.c.bf16 %v3773, %v3770
        %v3961 = vpack.c.bf16 %v3781, %v3778
        %v3963 = vsel %vm956, %v3938, 0
        %v3966 = vsel %vm956, %v3939, 0
        %v3969 = vsel %vm956, %v3940, 0
        %v3972 = vsel %vm956, %v3941, 0
        %v3975 = vsel %vm956, %v3942, 0
        %v3978 = vsel %vm956, %v3943, 0
        %v3981 = vsel %vm956, %v3944, 0
        %v3984 = vsel %vm956, %v3945, 0
        %v3987 = vsel %vm956, %v3946, 0
        %v3990 = vsel %vm956, %v3947, 0
        %v3993 = vsel %vm956, %v3948, 0
        %v3996 = vsel %vm956, %v3949, 0
        %v3999 = vsel %vm956, %v3950, 0
        %v4002 = vsel %vm956, %v3951, 0
        %v4005 = vsel %vm956, %v3952, 0
        %v4008 = vsel %vm956, %v3953, 0
        %v4011 = vsel %vm956, %v3954, 0
        %v4014 = vsel %vm956, %v3955, 0
        %v4017 = vsel %vm956, %v3956, 0
        %v4020 = vsel %vm956, %v3957, 0
        %v4023 = vsel %vm956, %v3958, 0
        %v4026 = vsel %vm956, %v3959, 0
        %v4029 = vsel %vm956, %v3960, 0
        %v4032 = vsel %vm956, %v3961, 0
        %4034 = vmatprep.subr.bf16.mxu0 0
        %4035 = vmatpush1.bf16.xpose.msra.mxu0 %v3999
        %4036 = vmatprep.subr.bf16.mxu0 0
        %4037 = vmatpush1.bf16.xpose.msra.mxu0 %v4002
        %4038 = vmatprep.subr.bf16.mxu0 0
        %4039 = vmatpush1.bf16.xpose.msra.mxu0 %v4005
        %4040 = vmatprep.subr.bf16.mxu0 0
        %4041 = vmatpush1.bf16.xpose.msra.mxu0 %v4008
        %4042 = vmatprep.subr.bf16.mxu0 0
        %4043 = vmatpush1.bf16.xpose.msra.mxu0 %v4011
        %4044 = vmatprep.subr.bf16.mxu0 0
        %4045 = vmatpush1.bf16.xpose.msra.mxu0 %v4014
        %4046 = vmatprep.subr.bf16.mxu0 0
        %4047 = vmatpush1.bf16.xpose.msra.mxu0 %v4017
        %4048 = vmatprep.subr.bf16.mxu0 0
        %4049 = vmatpush1.bf16.xpose.msra.mxu0 %v4020
        %4050 = vmatprep.subr.bf16.mxu0 0
        %4051 = vmatpush1.bf16.xpose.msra.mxu0 %v4023
        %4052 = vmatprep.subr.bf16.mxu0 0
        %4053 = vmatpush1.bf16.xpose.msra.mxu0 %v4026
        %4054 = vmatprep.subr.bf16.mxu0 0
        %4055 = vmatpush1.bf16.xpose.msra.mxu0 %v4029
        %4056 = vmatprep.subr.bf16.mxu0 0
        %4057 = vmatpush1.bf16.xpose.msra.mxu0 %v4032
        %4058 = vmatprep.subr.bf16.mxu0 0
        %4059 = vmatpush1.bf16.xpose.msra.mxu0 0
        %4060 = vmatprep.subr.bf16.mxu0 0
        %4061 = vmatpush1.bf16.xpose.msra.mxu0 0
        %4062 = vmatprep.subr.bf16.mxu0 0
        %4063 = vmatpush1.bf16.xpose.msra.mxu0 0
        %4064 = vmatprep.subr.bf16.mxu0 0
        %4065 = vmatpush1.bf16.xpose.msra.mxu0 0
        %4066 = vmatprep.mubr.bf16.mxu0 0
        %4067 = vmatmul.mubr.bf16.gmra.mrb[0].mxu0 %v3963
        %v4068 = vpop.f32.mrb[0].mxu0
        %v4069 = vadd.f32 0.0, %v4068
        %v4070 = vpop.f32.mrb[0].mxu0
        %v4071 = vadd.f32 0.0, %v4070
        %v4072 = vpop.f32.mrb[0].mxu0
        %v4073 = vadd.f32 0.0, %v4072
        %v4074 = vpop.f32.mrb[0].mxu0
        %v4075 = vadd.f32 0.0, %v4074
        %4076 = vmatprep.mubr.bf16.mxu0 0
        %4077 = vmatmul.mubr.bf16.gmra.mrb[0].mxu0 %v3966
        %v4078 = vpop.f32.mrb[0].mxu0
        %v4079 = vadd.f32 0.0, %v4078
        %v4080 = vpop.f32.mrb[0].mxu0
        %v4081 = vadd.f32 0.0, %v4080
        %v4082 = vpop.f32.mrb[0].mxu0
        %v4083 = vadd.f32 0.0, %v4082
        %v4084 = vpop.f32.mrb[0].mxu0
        %v4085 = vadd.f32 0.0, %v4084
        %4086 = vmatprep.mubr.bf16.mxu0 0
        %4087 = vmatmul.mubr.bf16.gmra.mrb[0].mxu0 %v3969
        %v4088 = vpop.f32.mrb[0].mxu0
        %v4089 = vadd.f32 0.0, %v4088
        %v4090 = vpop.f32.mrb[0].mxu0
        %v4091 = vadd.f32 0.0, %v4090
        %v4092 = vpop.f32.mrb[0].mxu0
        %v4093 = vadd.f32 0.0, %v4092
        %v4094 = vpop.f32.mrb[0].mxu0
        %v4095 = vadd.f32 0.0, %v4094
        %4096 = vmatprep.mubr.bf16.mxu0 0
        %4097 = vmatmul.mubr.bf16.gmra.mrb[0].mxu0 %v3972
        %v4098 = vpop.f32.mrb[0].mxu0
        %v4099 = vadd.f32 0.0, %v4098
        %v4100 = vpop.f32.mrb[0].mxu0
        %v4101 = vadd.f32 0.0, %v4100
        %v4102 = vpop.f32.mrb[0].mxu0
        %v4103 = vadd.f32 0.0, %v4102
        %v4104 = vpop.f32.mrb[0].mxu0
        %v4105 = vadd.f32 0.0, %v4104
        %4106 = vmatprep.mubr.bf16.mxu0 0
        %4107 = vmatmul.mubr.bf16.gmra.mrb[0].mxu0 %v3975
        %v4108 = vpop.f32.mrb[0].mxu0
        %v4109 = vadd.f32 0.0, %v4108
        %v4110 = vpop.f32.mrb[0].mxu0
        %v4111 = vadd.f32 0.0, %v4110
        %v4112 = vpop.f32.mrb[0].mxu0
        %v4113 = vadd.f32 0.0, %v4112
        %v4114 = vpop.f32.mrb[0].mxu0
        %v4115 = vadd.f32 0.0, %v4114
        %4116 = vmatprep.mubr.bf16.mxu0 0
        %4117 = vmatmul.mubr.bf16.gmra.mrb[0].mxu0 %v3978
        %v4118 = vpop.f32.mrb[0].mxu0
        %v4119 = vadd.f32 0.0, %v4118
        %v4120 = vpop.f32.mrb[0].mxu0
        %v4121 = vadd.f32 0.0, %v4120
        %v4122 = vpop.f32.mrb[0].mxu0
        %v4123 = vadd.f32 0.0, %v4122
        %v4124 = vpop.f32.mrb[0].mxu0
        %v4125 = vadd.f32 0.0, %v4124
        %4126 = vmatprep.mubr.bf16.mxu0 0
        %4127 = vmatmul.mubr.bf16.gmra.mrb[0].mxu0 %v3981
        %v4128 = vpop.f32.mrb[0].mxu0
        %v4129 = vadd.f32 0.0, %v4128
        %v4130 = vpop.f32.mrb[0].mxu0
        %v4131 = vadd.f32 0.0, %v4130
        %v4132 = vpop.f32.mrb[0].mxu0
        %v4133 = vadd.f32 0.0, %v4132
        %v4134 = vpop.f32.mrb[0].mxu0
        %v4135 = vadd.f32 0.0, %v4134
        %4136 = vmatprep.mubr.bf16.mxu0 0
        %4137 = vmatmul.mubr.bf16.gmra.mrb[0].mxu0 %v3984
        %v4138 = vpop.f32.mrb[0].mxu0
        %v4139 = vadd.f32 0.0, %v4138
        %v4140 = vpop.f32.mrb[0].mxu0
        %v4141 = vadd.f32 0.0, %v4140
        %v4142 = vpop.f32.mrb[0].mxu0
        %v4143 = vadd.f32 0.0, %v4142
        %v4144 = vpop.f32.mrb[0].mxu0
        %v4145 = vadd.f32 0.0, %v4144
        %4146 = vmatprep.mubr.bf16.mxu0 0
        %4147 = vmatmul.mubr.bf16.gmra.mrb[0].mxu0 %v3987
        %v4148 = vpop.f32.mrb[0].mxu0
        %v4149 = vadd.f32 0.0, %v4148
        %v4150 = vpop.f32.mrb[0].mxu0
        %v4151 = vadd.f32 0.0, %v4150
        %v4152 = vpop.f32.mrb[0].mxu0
        %v4153 = vadd.f32 0.0, %v4152
        %v4154 = vpop.f32.mrb[0].mxu0
        %v4155 = vadd.f32 0.0, %v4154
        %4156 = vmatprep.mubr.bf16.mxu0 0
        %4157 = vmatmul.mubr.bf16.gmra.mrb[0].mxu0 %v3990
        %v4158 = vpop.f32.mrb[0].mxu0
        %v4159 = vadd.f32 0.0, %v4158
        %v4160 = vpop.f32.mrb[0].mxu0
        %v4161 = vadd.f32 0.0, %v4160
        %v4162 = vpop.f32.mrb[0].mxu0
        %v4163 = vadd.f32 0.0, %v4162
        %v4164 = vpop.f32.mrb[0].mxu0
        %v4165 = vadd.f32 0.0, %v4164
        %4166 = vmatprep.mubr.bf16.mxu0 0
        %4167 = vmatmul.mubr.bf16.gmra.mrb[0].mxu0 %v3993
        %v4168 = vpop.f32.mrb[0].mxu0
        %v4169 = vadd.f32 0.0, %v4168
        %v4170 = vpop.f32.mrb[0].mxu0
        %v4171 = vadd.f32 0.0, %v4170
        %v4172 = vpop.f32.mrb[0].mxu0
        %v4173 = vadd.f32 0.0, %v4172
        %v4174 = vpop.f32.mrb[0].mxu0
        %v4175 = vadd.f32 0.0, %v4174
        %4176 = vmatprep.mubr.bf16.mxu0 0
        %4177 = vmatmul.mubr.bf16.gmra.mrb[0].mxu0 %v3996
        %v4178 = vpop.f32.mrb[0].mxu0
        %v4179 = vadd.f32 0.0, %v4178
        %v4180 = vpop.f32.mrb[0].mxu0
        %v4181 = vadd.f32 0.0, %v4180
        %v4182 = vpop.f32.mrb[0].mxu0
        %v4183 = vadd.f32 0.0, %v4182
        %v4184 = vpop.f32.mrb[0].mxu0
        %v4185 = vadd.f32 0.0, %v4184
        %4186 = vdwg.mxu0
        %v4187 = vsel %vm1182, %v4071, -inf
        %v4188 = vmax.f32 %v4069, %v4187
        %4189 = vmax.xlane.f32.xlu0 %v4188
        %v4190 = vpop.xlane.xlu0 %4189
        %v4191 = vsel %vm1182, %v4075, -inf
        %v4192 = vmax.f32 %v4073, %v4191
        %4193 = vmax.xlane.f32.xlu0 %v4192
        %v4194 = vpop.xlane.xlu0 %4193
        %v4195 = vsel %vm1182, %v4081, -inf
        %v4196 = vmax.f32 %v4079, %v4195
        %4197 = vmax.xlane.f32.xlu0 %v4196
        %v4198 = vpop.xlane.xlu0 %4197
        %v4199 = vsel %vm1182, %v4085, -inf
        %v4200 = vmax.f32 %v4083, %v4199
        %4201 = vmax.xlane.f32.xlu0 %v4200
        %v4202 = vpop.xlane.xlu0 %4201
        %v4203 = vsel %vm1182, %v4091, -inf
        %v4204 = vmax.f32 %v4089, %v4203
        %4205 = vmax.xlane.f32.xlu0 %v4204
        %v4206 = vpop.xlane.xlu0 %4205
        %v4207 = vsel %vm1182, %v4095, -inf
        %v4208 = vmax.f32 %v4093, %v4207
        %4209 = vmax.xlane.f32.xlu0 %v4208
        %v4210 = vpop.xlane.xlu0 %4209
        %v4211 = vsel %vm1182, %v4101, -inf
        %v4212 = vmax.f32 %v4099, %v4211
        %4213 = vmax.xlane.f32.xlu0 %v4212
        %v4214 = vpop.xlane.xlu0 %4213
        %v4215 = vsel %vm1182, %v4105, -inf
        %v4216 = vmax.f32 %v4103, %v4215
        %4217 = vmax.xlane.f32.xlu0 %v4216
        %v4218 = vpop.xlane.xlu0 %4217
        %v4219 = vsel %vm1182, %v4111, -inf
        %v4220 = vmax.f32 %v4109, %v4219
        %4221 = vmax.xlane.f32.xlu0 %v4220
        %v4222 = vpop.xlane.xlu0 %4221
        %v4223 = vsel %vm1182, %v4115, -inf
        %v4224 = vmax.f32 %v4113, %v4223
        %4225 = vmax.xlane.f32.xlu0 %v4224
        %v4226 = vpop.xlane.xlu0 %4225
        %v4227 = vsel %vm1182, %v4121, -inf
        %v4228 = vmax.f32 %v4119, %v4227
        %4229 = vmax.xlane.f32.xlu0 %v4228
        %v4230 = vpop.xlane.xlu0 %4229
        %v4231 = vsel %vm1182, %v4125, -inf
        %v4232 = vmax.f32 %v4123, %v4231
        %4233 = vmax.xlane.f32.xlu0 %v4232
        %v4234 = vpop.xlane.xlu0 %4233
        %v4235 = vsel %vm1182, %v4131, -inf
        %v4236 = vmax.f32 %v4129, %v4235
        %4237 = vmax.xlane.f32.xlu0 %v4236
        %v4238 = vpop.xlane.xlu0 %4237
        %v4239 = vsel %vm1182, %v4135, -inf
        %v4240 = vmax.f32 %v4133, %v4239
        %4241 = vmax.xlane.f32.xlu0 %v4240
        %v4242 = vpop.xlane.xlu0 %4241
        %v4243 = vsel %vm1182, %v4141, -inf
        %v4244 = vmax.f32 %v4139, %v4243
        %4245 = vmax.xlane.f32.xlu0 %v4244
        %v4246 = vpop.xlane.xlu0 %4245
        %v4247 = vsel %vm1182, %v4145, -inf
        %v4248 = vmax.f32 %v4143, %v4247
        %4249 = vmax.xlane.f32.xlu0 %v4248
        %v4250 = vpop.xlane.xlu0 %4249
        %v4251 = vsel %vm1182, %v4151, -inf
        %v4252 = vmax.f32 %v4149, %v4251
        %4253 = vmax.xlane.f32.xlu0 %v4252
        %v4254 = vpop.xlane.xlu0 %4253
        %v4255 = vsel %vm1182, %v4155, -inf
        %v4256 = vmax.f32 %v4153, %v4255
        %4257 = vmax.xlane.f32.xlu0 %v4256
        %v4258 = vpop.xlane.xlu0 %4257
        %v4259 = vsel %vm1182, %v4161, -inf
        %v4260 = vmax.f32 %v4159, %v4259
        %4261 = vmax.xlane.f32.xlu0 %v4260
        %v4262 = vpop.xlane.xlu0 %4261
        %v4263 = vsel %vm1182, %v4165, -inf
        %v4264 = vmax.f32 %v4163, %v4263
        %4265 = vmax.xlane.f32.xlu0 %v4264
        %v4266 = vpop.xlane.xlu0 %4265
        %v4267 = vsel %vm1182, %v4171, -inf
        %v4268 = vmax.f32 %v4169, %v4267
        %4269 = vmax.xlane.f32.xlu0 %v4268
        %v4270 = vpop.xlane.xlu0 %4269
        %v4271 = vsel %vm1182, %v4175, -inf
        %v4272 = vmax.f32 %v4173, %v4271
        %4273 = vmax.xlane.f32.xlu0 %v4272
        %v4274 = vpop.xlane.xlu0 %4273
        %v4275 = vsel %vm1182, %v4181, -inf
        %v4276 = vmax.f32 %v4179, %v4275
        %4277 = vmax.xlane.f32.xlu0 %v4276
        %v4278 = vpop.xlane.xlu0 %4277
        %v4279 = vsel %vm1182, %v4185, -inf
        %v4280 = vmax.f32 %v4183, %v4279
        %4281 = vmax.xlane.f32.xlu0 %v4280
        %v4282 = vpop.xlane.xlu0 %4281
        %v4283 = vsub.f32 %v4069, %v4190
        %v4284 = vsub.f32 %v4071, %v4190
        %v4285 = vsub.f32 %v4073, %v4194
        %v4286 = vsub.f32 %v4075, %v4194
        %v4287 = vsub.f32 %v4079, %v4198
        %v4288 = vsub.f32 %v4081, %v4198
        %v4289 = vsub.f32 %v4083, %v4202
        %v4290 = vsub.f32 %v4085, %v4202
        %v4291 = vsub.f32 %v4089, %v4206
        %v4292 = vsub.f32 %v4091, %v4206
        %v4293 = vsub.f32 %v4093, %v4210
        %v4294 = vsub.f32 %v4095, %v4210
        %v4295 = vsub.f32 %v4099, %v4214
        %v4296 = vsub.f32 %v4101, %v4214
        %v4297 = vsub.f32 %v4103, %v4218
        %v4298 = vsub.f32 %v4105, %v4218
        %v4299 = vsub.f32 %v4109, %v4222
        %v4300 = vsub.f32 %v4111, %v4222
        %v4301 = vsub.f32 %v4113, %v4226
        %v4302 = vsub.f32 %v4115, %v4226
        %v4303 = vsub.f32 %v4119, %v4230
        %v4304 = vsub.f32 %v4121, %v4230
        %v4305 = vsub.f32 %v4123, %v4234
        %v4306 = vsub.f32 %v4125, %v4234
        %v4307 = vsub.f32 %v4129, %v4238
        %v4308 = vsub.f32 %v4131, %v4238
        %v4309 = vsub.f32 %v4133, %v4242
        %v4310 = vsub.f32 %v4135, %v4242
        %v4311 = vsub.f32 %v4139, %v4246
        %v4312 = vsub.f32 %v4141, %v4246
        %v4313 = vsub.f32 %v4143, %v4250
        %v4314 = vsub.f32 %v4145, %v4250
        %v4315 = vsub.f32 %v4149, %v4254
        %v4316 = vsub.f32 %v4151, %v4254
        %v4317 = vsub.f32 %v4153, %v4258
        %v4318 = vsub.f32 %v4155, %v4258
        %v4319 = vsub.f32 %v4159, %v4262
        %v4320 = vsub.f32 %v4161, %v4262
        %v4321 = vsub.f32 %v4163, %v4266
        %v4322 = vsub.f32 %v4165, %v4266
        %v4323 = vsub.f32 %v4169, %v4270
        %v4324 = vsub.f32 %v4171, %v4270
        %v4325 = vsub.f32 %v4173, %v4274
        %v4326 = vsub.f32 %v4175, %v4274
        %v4327 = vsub.f32 %v4179, %v4278
        %v4328 = vsub.f32 %v4181, %v4278
        %v4329 = vsub.f32 %v4183, %v4282
        %v4330 = vsub.f32 %v4185, %v4282
        %v4331 = vmul.f32 %v4283, 1.442695
        %v4332 = vpow.pop %v4331
        %v4333 = vmul.f32 %v4284, 1.442695
        %v4334 = vpow.pop %v4333
        %v4335 = vmul.f32 %v4285, 1.442695
        %v4336 = vpow.pop %v4335
        %v4337 = vmul.f32 %v4286, 1.442695
        %v4338 = vpow.pop %v4337
        %v4339 = vmul.f32 %v4287, 1.442695
        %v4340 = vpow.pop %v4339
        %v4341 = vmul.f32 %v4288, 1.442695
        %v4342 = vpow.pop %v4341
        %v4343 = vmul.f32 %v4289, 1.442695
        %v4344 = vpow.pop %v4343
        %v4345 = vmul.f32 %v4290, 1.442695
        %v4346 = vpow.pop %v4345
        %v4347 = vmul.f32 %v4291, 1.442695
        %v4348 = vpow.pop %v4347
        %v4349 = vmul.f32 %v4292, 1.442695
        %v4350 = vpow.pop %v4349
        %v4351 = vmul.f32 %v4293, 1.442695
        %v4352 = vpow.pop %v4351
        %v4353 = vmul.f32 %v4294, 1.442695
        %v4354 = vpow.pop %v4353
        %v4355 = vmul.f32 %v4295, 1.442695
        %v4356 = vpow.pop %v4355
        %v4357 = vmul.f32 %v4296, 1.442695
        %v4358 = vpow.pop %v4357
        %v4359 = vmul.f32 %v4297, 1.442695
        %v4360 = vpow.pop %v4359
        %v4361 = vmul.f32 %v4298, 1.442695
        %v4362 = vpow.pop %v4361
        %v4363 = vmul.f32 %v4299, 1.442695
        %v4364 = vpow.pop %v4363
        %v4365 = vmul.f32 %v4300, 1.442695
        %v4366 = vpow.pop %v4365
        %v4367 = vmul.f32 %v4301, 1.442695
        %v4368 = vpow.pop %v4367
        %v4369 = vmul.f32 %v4302, 1.442695
        %v4370 = vpow.pop %v4369
        %v4371 = vmul.f32 %v4303, 1.442695
        %v4372 = vpow.pop %v4371
        %v4373 = vmul.f32 %v4304, 1.442695
        %v4374 = vpow.pop %v4373
        %v4375 = vmul.f32 %v4305, 1.442695
        %v4376 = vpow.pop %v4375
        %v4377 = vmul.f32 %v4306, 1.442695
        %v4378 = vpow.pop %v4377
        %v4379 = vmul.f32 %v4307, 1.442695
        %v4380 = vpow.pop %v4379
        %v4381 = vmul.f32 %v4308, 1.442695
        %v4382 = vpow.pop %v4381
        %v4383 = vmul.f32 %v4309, 1.442695
        %v4384 = vpow.pop %v4383
        %v4385 = vmul.f32 %v4310, 1.442695
        %v4386 = vpow.pop %v4385
        %v4387 = vmul.f32 %v4311, 1.442695
        %v4388 = vpow.pop %v4387
        %v4389 = vmul.f32 %v4312, 1.442695
        %v4390 = vpow.pop %v4389
        %v4391 = vmul.f32 %v4313, 1.442695
        %v4392 = vpow.pop %v4391
        %v4393 = vmul.f32 %v4314, 1.442695
        %v4394 = vpow.pop %v4393
        %v4395 = vmul.f32 %v4315, 1.442695
        %v4396 = vpow.pop %v4395
        %v4397 = vmul.f32 %v4316, 1.442695
        %v4398 = vpow.pop %v4397
        %v4399 = vmul.f32 %v4317, 1.442695
        %v4400 = vpow.pop %v4399
        %v4401 = vmul.f32 %v4318, 1.442695
        %v4402 = vpow.pop %v4401
        %v4403 = vmul.f32 %v4319, 1.442695
        %v4404 = vpow.pop %v4403
        %v4405 = vmul.f32 %v4320, 1.442695
        %v4406 = vpow.pop %v4405
        %v4407 = vmul.f32 %v4321, 1.442695
        %v4408 = vpow.pop %v4407
        %v4409 = vmul.f32 %v4322, 1.442695
        %v4410 = vpow.pop %v4409
        %v4411 = vmul.f32 %v4323, 1.442695
        %v4412 = vpow.pop %v4411
        %v4413 = vmul.f32 %v4324, 1.442695
        %v4414 = vpow.pop %v4413
        %v4415 = vmul.f32 %v4325, 1.442695
        %v4416 = vpow.pop %v4415
        %v4417 = vmul.f32 %v4326, 1.442695
        %v4418 = vpow.pop %v4417
        %v4419 = vmul.f32 %v4327, 1.442695
        %v4420 = vpow.pop %v4419
        %v4421 = vmul.f32 %v4328, 1.442695
        %v4422 = vpow.pop %v4421
        %v4423 = vmul.f32 %v4329, 1.442695
        %v4424 = vpow.pop %v4423
        %v4425 = vmul.f32 %v4330, 1.442695
        %v4426 = vpow.pop %v4425
        %v4427 = vsel %vm1182, %v4334, 0.0
        %v4428 = vadd.f32 %v4332, %v4427
        %4429 = vadd.xlane.f32.xlu0 %v4428
        %v4430 = vpop.xlane.xlu0 %4429
        %v4431 = vsel %vm1182, %v4338, 0.0
        %v4432 = vadd.f32 %v4336, %v4431
        %4433 = vadd.xlane.f32.xlu0 %v4432
        %v4434 = vpop.xlane.xlu0 %4433
        %v4435 = vsel %vm1182, %v4342, 0.0
        %v4436 = vadd.f32 %v4340, %v4435
        %4437 = vadd.xlane.f32.xlu0 %v4436
        %v4438 = vpop.xlane.xlu0 %4437
        %v4439 = vsel %vm1182, %v4346, 0.0
        %v4440 = vadd.f32 %v4344, %v4439
        %4441 = vadd.xlane.f32.xlu0 %v4440
        %v4442 = vpop.xlane.xlu0 %4441
        %v4443 = vsel %vm1182, %v4350, 0.0
        %v4444 = vadd.f32 %v4348, %v4443
        %4445 = vadd.xlane.f32.xlu0 %v4444
        %v4446 = vpop.xlane.xlu0 %4445
        %v4447 = vsel %vm1182, %v4354, 0.0
        %v4448 = vadd.f32 %v4352, %v4447
        %4449 = vadd.xlane.f32.xlu0 %v4448
        %v4450 = vpop.xlane.xlu0 %4449
        %v4451 = vsel %vm1182, %v4358, 0.0
        %v4452 = vadd.f32 %v4356, %v4451
        %4453 = vadd.xlane.f32.xlu0 %v4452
        %v4454 = vpop.xlane.xlu0 %4453
        %v4455 = vsel %vm1182, %v4362, 0.0
        %v4456 = vadd.f32 %v4360, %v4455
        %4457 = vadd.xlane.f32.xlu0 %v4456
        %v4458 = vpop.xlane.xlu0 %4457
        %v4459 = vsel %vm1182, %v4366, 0.0
        %v4460 = vadd.f32 %v4364, %v4459
        %4461 = vadd.xlane.f32.xlu0 %v4460
        %v4462 = vpop.xlane.xlu0 %4461
        %v4463 = vsel %vm1182, %v4370, 0.0
        %v4464 = vadd.f32 %v4368, %v4463
        %4465 = vadd.xlane.f32.xlu0 %v4464
        %v4466 = vpop.xlane.xlu0 %4465
        %v4467 = vsel %vm1182, %v4374, 0.0
        %v4468 = vadd.f32 %v4372, %v4467
        %4469 = vadd.xlane.f32.xlu0 %v4468
        %v4470 = vpop.xlane.xlu0 %4469
        %v4471 = vsel %vm1182, %v4378, 0.0
        %v4472 = vadd.f32 %v4376, %v4471
        %4473 = vadd.xlane.f32.xlu0 %v4472
        %v4474 = vpop.xlane.xlu0 %4473
        %v4475 = vsel %vm1182, %v4382, 0.0
        %v4476 = vadd.f32 %v4380, %v4475
        %4477 = vadd.xlane.f32.xlu0 %v4476
        %v4478 = vpop.xlane.xlu0 %4477
        %v4479 = vsel %vm1182, %v4386, 0.0
        %v4480 = vadd.f32 %v4384, %v4479
        %4481 = vadd.xlane.f32.xlu0 %v4480
        %v4482 = vpop.xlane.xlu0 %4481
        %v4483 = vsel %vm1182, %v4390, 0.0
        %v4484 = vadd.f32 %v4388, %v4483
        %4485 = vadd.xlane.f32.xlu0 %v4484
        %v4486 = vpop.xlane.xlu0 %4485
        %v4487 = vsel %vm1182, %v4394, 0.0
        %v4488 = vadd.f32 %v4392, %v4487
        %4489 = vadd.xlane.f32.xlu0 %v4488
        %v4490 = vpop.xlane.xlu0 %4489
        %v4491 = vsel %vm1182, %v4398, 0.0
        %v4492 = vadd.f32 %v4396, %v4491
        %4493 = vadd.xlane.f32.xlu0 %v4492
        %v4494 = vpop.xlane.xlu0 %4493
        %v4495 = vsel %vm1182, %v4402, 0.0
        %v4496 = vadd.f32 %v4400, %v4495
        %4497 = vadd.xlane.f32.xlu0 %v4496
        %v4498 = vpop.xlane.xlu0 %4497
        %v4499 = vsel %vm1182, %v4406, 0.0
        %v4500 = vadd.f32 %v4404, %v4499
        %4501 = vadd.xlane.f32.xlu0 %v4500
        %v4502 = vpop.xlane.xlu0 %4501
        %v4503 = vsel %vm1182, %v4410, 0.0
        %v4504 = vadd.f32 %v4408, %v4503
        %4505 = vadd.xlane.f32.xlu0 %v4504
        %v4506 = vpop.xlane.xlu0 %4505
        %v4507 = vsel %vm1182, %v4414, 0.0
        %v4508 = vadd.f32 %v4412, %v4507
        %4509 = vadd.xlane.f32.xlu0 %v4508
        %v4510 = vpop.xlane.xlu0 %4509
        %v4511 = vsel %vm1182, %v4418, 0.0
        %v4512 = vadd.f32 %v4416, %v4511
        %4513 = vadd.xlane.f32.xlu0 %v4512
        %v4514 = vpop.xlane.xlu0 %4513
        %v4515 = vsel %vm1182, %v4422, 0.0
        %v4516 = vadd.f32 %v4420, %v4515
        %4517 = vadd.xlane.f32.xlu0 %v4516
        %v4518 = vpop.xlane.xlu0 %4517
        %v4519 = vsel %vm1182, %v4426, 0.0
        %v4520 = vadd.f32 %v4424, %v4519
        %4521 = vadd.xlane.f32.xlu0 %v4520
        %v4522 = vpop.xlane.xlu0 %4521
        %v4523 = vrcp.pop %v4430
        %v4524 = vrcp.pop %v4434
        %v4525 = vrcp.pop %v4438
        %v4526 = vrcp.pop %v4442
        %v4527 = vrcp.pop %v4446
        %v4528 = vrcp.pop %v4450
        %v4529 = vrcp.pop %v4454
        %v4530 = vrcp.pop %v4458
        %v4531 = vrcp.pop %v4462
        %v4532 = vrcp.pop %v4466
        %v4533 = vrcp.pop %v4470
        %v4534 = vrcp.pop %v4474
        %v4535 = vrcp.pop %v4478
        %v4536 = vrcp.pop %v4482
        %v4537 = vrcp.pop %v4486
        %v4538 = vrcp.pop %v4490
        %v4539 = vrcp.pop %v4494
        %v4540 = vrcp.pop %v4498
        %v4541 = vrcp.pop %v4502
        %v4542 = vrcp.pop %v4506
        %v4543 = vrcp.pop %v4510
        %v4544 = vrcp.pop %v4514
        %v4545 = vrcp.pop %v4518
        %v4546 = vrcp.pop %v4522
        %v4547 = vmul.f32 %v4332, %v4523
        %v4548 = vmul.f32 %v4334, %v4523
        %v4549 = vmul.f32 %v4336, %v4524
        %v4550 = vmul.f32 %v4338, %v4524
        %v4551 = vmul.f32 %v4340, %v4525
        %v4552 = vmul.f32 %v4342, %v4525
        %v4553 = vmul.f32 %v4344, %v4526
        %v4554 = vmul.f32 %v4346, %v4526
        %v4555 = vmul.f32 %v4348, %v4527
        %v4556 = vmul.f32 %v4350, %v4527
        %v4557 = vmul.f32 %v4352, %v4528
        %v4558 = vmul.f32 %v4354, %v4528
        %v4559 = vmul.f32 %v4356, %v4529
        %v4560 = vmul.f32 %v4358, %v4529
        %v4561 = vmul.f32 %v4360, %v4530
        %v4562 = vmul.f32 %v4362, %v4530
        %v4563 = vmul.f32 %v4364, %v4531
        %v4564 = vmul.f32 %v4366, %v4531
        %v4565 = vmul.f32 %v4368, %v4532
        %v4566 = vmul.f32 %v4370, %v4532
        %v4567 = vmul.f32 %v4372, %v4533
        %v4568 = vmul.f32 %v4374, %v4533
        %v4569 = vmul.f32 %v4376, %v4534
        %v4570 = vmul.f32 %v4378, %v4534
        %v4571 = vmul.f32 %v4380, %v4535
        %v4572 = vmul.f32 %v4382, %v4535
        %v4573 = vmul.f32 %v4384, %v4536
        %v4574 = vmul.f32 %v4386, %v4536
        %v4575 = vmul.f32 %v4388, %v4537
        %v4576 = vmul.f32 %v4390, %v4537
        %v4577 = vmul.f32 %v4392, %v4538
        %v4578 = vmul.f32 %v4394, %v4538
        %v4579 = vmul.f32 %v4396, %v4539
        %v4580 = vmul.f32 %v4398, %v4539
        %v4581 = vmul.f32 %v4400, %v4540
        %v4582 = vmul.f32 %v4402, %v4540
        %v4583 = vmul.f32 %v4404, %v4541
        %v4584 = vmul.f32 %v4406, %v4541
        %v4585 = vmul.f32 %v4408, %v4542
        %v4586 = vmul.f32 %v4410, %v4542
        %v4587 = vmul.f32 %v4412, %v4543
        %v4588 = vmul.f32 %v4414, %v4543
        %v4589 = vmul.f32 %v4416, %v4544
        %v4590 = vmul.f32 %v4418, %v4544
        %v4591 = vmul.f32 %v4420, %v4545
        %v4592 = vmul.f32 %v4422, %v4545
        %v4593 = vmul.f32 %v4424, %v4546
        %v4594 = vmul.f32 %v4426, %v4546
        %v4595 = vpack.c.bf16 %v4549, %v4547
        %v4596 = vpack.c.bf16 %v4550, %v4548
        %v4597 = vpack.c.bf16 %v4553, %v4551
        %v4598 = vpack.c.bf16 %v4554, %v4552
        %v4599 = vpack.c.bf16 %v4557, %v4555
        %v4600 = vpack.c.bf16 %v4558, %v4556
        %v4601 = vpack.c.bf16 %v4561, %v4559
        %v4602 = vpack.c.bf16 %v4562, %v4560
        %v4603 = vpack.c.bf16 %v4565, %v4563
        %v4604 = vpack.c.bf16 %v4566, %v4564
        %v4605 = vpack.c.bf16 %v4569, %v4567
        %v4606 = vpack.c.bf16 %v4570, %v4568
        %v4607 = vpack.c.bf16 %v4573, %v4571
        %v4608 = vpack.c.bf16 %v4574, %v4572
        %v4609 = vpack.c.bf16 %v4577, %v4575
        %v4610 = vpack.c.bf16 %v4578, %v4576
        %v4611 = vpack.c.bf16 %v4581, %v4579
        %v4612 = vpack.c.bf16 %v4582, %v4580
        %v4613 = vpack.c.bf16 %v4585, %v4583
        %v4614 = vpack.c.bf16 %v4586, %v4584
        %v4615 = vpack.c.bf16 %v4589, %v4587
        %v4616 = vpack.c.bf16 %v4590, %v4588
        %v4617 = vpack.c.bf16 %v4593, %v4591
        %v4618 = vpack.c.bf16 %v4594, %v4592
        %v4619 = vpack.c.bf16 %v3847, %v3844
        %v4620 = vpack.c.bf16 %v3855, %v3852
        %v4621 = vpack.c.bf16 %v3863, %v3860
        %v4622 = vpack.c.bf16 %v3871, %v3868
        %v4623 = vpack.c.bf16 %v3879, %v3876
        %v4624 = vpack.c.bf16 %v3887, %v3884
        %v4625 = vpack.c.bf16 %v3895, %v3892
        %v4626 = vpack.c.bf16 %v3903, %v3900
        %v4627 = vpack.c.bf16 %v3911, %v3908
        %v4628 = vpack.c.bf16 %v3919, %v3916
        %v4629 = vpack.c.bf16 %v3927, %v3924
        %v4630 = vpack.c.bf16 %v3935, %v3932
        %v4632 = vsel %vm1182, %v4596, 0
        %v4635 = vsel %vm1182, %v4598, 0
        %v4638 = vsel %vm1182, %v4600, 0
        %v4641 = vsel %vm1182, %v4602, 0
        %v4644 = vsel %vm1182, %v4604, 0
        %v4647 = vsel %vm1182, %v4606, 0
        %v4650 = vsel %vm1182, %v4608, 0
        %v4653 = vsel %vm1182, %v4610, 0
        %v4656 = vsel %vm1182, %v4612, 0
        %v4659 = vsel %vm1182, %v4614, 0
        %v4662 = vsel %vm1182, %v4616, 0
        %v4665 = vsel %vm1182, %v4618, 0
        %4667 = vmatprep.subr.bf16.mxu0 0
        %4668 = vmatpush1.bf16.msra.mxu0 %v4619
        %4669 = vmatprep.subr.bf16.mxu0 0
        %4670 = vmatpush1.bf16.msra.mxu0 %v4620
        %4671 = vmatprep.subr.bf16.mxu0 0
        %4672 = vmatpush1.bf16.msra.mxu0 %v4621
        %4673 = vmatprep.subr.bf16.mxu0 0
        %4674 = vmatpush1.bf16.msra.mxu0 %v4622
        %4675 = vmatprep.subr.bf16.mxu0 0
        %4676 = vmatpush1.bf16.msra.mxu0 %v4623
        %4677 = vmatprep.subr.bf16.mxu0 0
        %4678 = vmatpush1.bf16.msra.mxu0 %v4624
        %4679 = vmatprep.subr.bf16.mxu0 0
        %4680 = vmatpush1.bf16.msra.mxu0 %v4625
        %4681 = vmatprep.subr.bf16.mxu0 0
        %4682 = vmatpush1.bf16.msra.mxu0 %v4626
        %4683 = vmatprep.subr.bf16.mxu0 0
        %4684 = vmatpush1.bf16.msra.mxu0 %v4627
        %4685 = vmatprep.subr.bf16.mxu0 0
        %4686 = vmatpush1.bf16.msra.mxu0 %v4628
        %4687 = vmatprep.subr.bf16.mxu0 0
        %4688 = vmatpush1.bf16.msra.mxu0 %v4629
        %4689 = vmatprep.subr.bf16.mxu0 0
        %4690 = vmatpush1.bf16.msra.mxu0 %v4630
        %4691 = vmatprep.subr.bf16.mxu0 0
        %4692 = vmatpush1.bf16.msra.mxu0 0
        %4693 = vmatprep.subr.bf16.mxu0 0
        %4694 = vmatpush1.bf16.msra.mxu0 0
        %4695 = vmatprep.subr.bf16.mxu0 0
        %4696 = vmatpush1.bf16.msra.mxu0 0
        %4697 = vmatprep.subr.bf16.mxu0 0
        %4698 = vmatpush1.bf16.msra.mxu0 0
        %4699 = vmatprep.mubr.bf16.mxu0 %v4632
        %4700 = vmatmul.mubr.bf16.gmra.mrb[0].mxu0 %v4595
        %v4701 = vpop.f32.mrb[0].mxu0
        %v4702 = vadd.f32 0.0, %v4701
        %v4703 = vpop.f32.mrb[0].mxu0
        %v4704 = vpop.f32.mrb[0].mxu0
        %v4705 = vadd.f32 0.0, %v4704
        %v4706 = vpop.f32.mrb[0].mxu0
        %4707 = vmatprep.mubr.bf16.mxu0 %v4635
        %4708 = vmatmul.mubr.bf16.gmra.mrb[0].mxu0 %v4597
        %v4709 = vpop.f32.mrb[0].mxu0
        %v4710 = vadd.f32 0.0, %v4709
        %v4711 = vpop.f32.mrb[0].mxu0
        %v4712 = vpop.f32.mrb[0].mxu0
        %v4713 = vadd.f32 0.0, %v4712
        %v4714 = vpop.f32.mrb[0].mxu0
        %4715 = vmatprep.mubr.bf16.mxu0 %v4638
        %4716 = vmatmul.mubr.bf16.gmra.mrb[0].mxu0 %v4599
        %v4717 = vpop.f32.mrb[0].mxu0
        %v4718 = vadd.f32 0.0, %v4717
        %v4719 = vpop.f32.mrb[0].mxu0
        %v4720 = vpop.f32.mrb[0].mxu0
        %v4721 = vadd.f32 0.0, %v4720
        %v4722 = vpop.f32.mrb[0].mxu0
        %4723 = vmatprep.mubr.bf16.mxu0 %v4641
        %4724 = vmatmul.mubr.bf16.gmra.mrb[0].mxu0 %v4601
        %v4725 = vpop.f32.mrb[0].mxu0
        %v4726 = vadd.f32 0.0, %v4725
        %v4727 = vpop.f32.mrb[0].mxu0
        %v4728 = vpop.f32.mrb[0].mxu0
        %v4729 = vadd.f32 0.0, %v4728
        %v4730 = vpop.f32.mrb[0].mxu0
        %4731 = vmatprep.mubr.bf16.mxu0 %v4644
        %4732 = vmatmul.mubr.bf16.gmra.mrb[0].mxu0 %v4603
        %v4733 = vpop.f32.mrb[0].mxu0
        %v4734 = vadd.f32 0.0, %v4733
        %v4735 = vpop.f32.mrb[0].mxu0
        %v4736 = vpop.f32.mrb[0].mxu0
        %v4737 = vadd.f32 0.0, %v4736
        %v4738 = vpop.f32.mrb[0].mxu0
        %4739 = vmatprep.mubr.bf16.mxu0 %v4647
        %4740 = vmatmul.mubr.bf16.gmra.mrb[0].mxu0 %v4605
        %v4741 = vpop.f32.mrb[0].mxu0
        %v4742 = vadd.f32 0.0, %v4741
        %v4743 = vpop.f32.mrb[0].mxu0
        %v4744 = vpop.f32.mrb[0].mxu0
        %v4745 = vadd.f32 0.0, %v4744
        %v4746 = vpop.f32.mrb[0].mxu0
        %4747 = vmatprep.mubr.bf16.mxu0 %v4650
        %4748 = vmatmul.mubr.bf16.gmra.mrb[0].mxu0 %v4607
        %v4749 = vpop.f32.mrb[0].mxu0
        %v4750 = vadd.f32 0.0, %v4749
        %v4751 = vpop.f32.mrb[0].mxu0
        %v4752 = vpop.f32.mrb[0].mxu0
        %v4753 = vadd.f32 0.0, %v4752
        %v4754 = vpop.f32.mrb[0].mxu0
        %4755 = vmatprep.mubr.bf16.mxu0 %v4653
        %4756 = vmatmul.mubr.bf16.gmra.mrb[0].mxu0 %v4609
        %v4757 = vpop.f32.mrb[0].mxu0
        %v4758 = vadd.f32 0.0, %v4757
        %v4759 = vpop.f32.mrb[0].mxu0
        %v4760 = vpop.f32.mrb[0].mxu0
        %v4761 = vadd.f32 0.0, %v4760
        %v4762 = vpop.f32.mrb[0].mxu0
        %4763 = vmatprep.mubr.bf16.mxu0 %v4656
        %4764 = vmatmul.mubr.bf16.gmra.mrb[0].mxu0 %v4611
        %v4765 = vpop.f32.mrb[0].mxu0
        %v4766 = vadd.f32 0.0, %v4765
        %v4767 = vpop.f32.mrb[0].mxu0
        %v4768 = vpop.f32.mrb[0].mxu0
        %v4769 = vadd.f32 0.0, %v4768
        %v4770 = vpop.f32.mrb[0].mxu0
        %4771 = vmatprep.mubr.bf16.mxu0 %v4659
        %4772 = vmatmul.mubr.bf16.gmra.mrb[0].mxu0 %v4613
        %v4773 = vpop.f32.mrb[0].mxu0
        %v4774 = vadd.f32 0.0, %v4773
        %v4775 = vpop.f32.mrb[0].mxu0
        %v4776 = vpop.f32.mrb[0].mxu0
        %v4777 = vadd.f32 0.0, %v4776
        %v4778 = vpop.f32.mrb[0].mxu0
        %4779 = vmatprep.mubr.bf16.mxu0 %v4662
        %4780 = vmatmul.mubr.bf16.gmra.mrb[0].mxu0 %v4615
        %v4781 = vpop.f32.mrb[0].mxu0
        %v4782 = vadd.f32 0.0, %v4781
        %v4783 = vpop.f32.mrb[0].mxu0
        %v4784 = vpop.f32.mrb[0].mxu0
        %v4785 = vadd.f32 0.0, %v4784
        %v4786 = vpop.f32.mrb[0].mxu0
        %4787 = vmatprep.mubr.bf16.mxu0 %v4665
        %4788 = vmatmul.mubr.bf16.gmra.mrb[0].mxu0 %v4617
        %v4789 = vpop.f32.mrb[0].mxu0
        %v4790 = vadd.f32 0.0, %v4789
        %v4791 = vpop.f32.mrb[0].mxu0
        %v4792 = vpop.f32.mrb[0].mxu0
        %v4793 = vadd.f32 0.0, %v4792
        %v4794 = vpop.f32.mrb[0].mxu0
        %4795 = vdwg.mxu0
        %v4796 = vpack.c.bf16 %v4705, %v4702
        %v4797 = vpack.c.bf16 %v4713, %v4710
        %v4798 = vpack.c.bf16 %v4721, %v4718
        %v4799 = vpack.c.bf16 %v4729, %v4726
        %v4800 = vpack.c.bf16 %v4737, %v4734
        %v4801 = vpack.c.bf16 %v4745, %v4742
        %v4802 = vpack.c.bf16 %v4753, %v4750
        %v4803 = vpack.c.bf16 %v4761, %v4758
        %v4804 = vpack.c.bf16 %v4769, %v4766
        %v4805 = vpack.c.bf16 %v4777, %v4774
        %v4806 = vpack.c.bf16 %v4785, %v4782
        %v4807 = vpack.c.bf16 %v4793, %v4790
        %s4808 = scalar_lea.vmem %s3, 8
        %v4809 = vld [vmem:[%s4808] sm:$0xf]
        %v4811 = vsel %vm956, %v4796, 0
        %v4814 = vsel %vm956, %v4797, 0
        %v4817 = vsel %vm956, %v4798, 0
        %v4820 = vsel %vm956, %v4799, 0
        %v4823 = vsel %vm956, %v4800, 0
        %v4826 = vsel %vm956, %v4801, 0
        %v4829 = vsel %vm956, %v4802, 0
        %v4832 = vsel %vm956, %v4803, 0
        %v4835 = vsel %vm956, %v4804, 0
        %v4838 = vsel %vm956, %v4805, 0
        %v4841 = vsel %vm956, %v4806, 0
        %v4844 = vsel %vm956, %v4807, 0
        %v4847 = vsel %vm3175, %v4809, 0
        %4849 = vmatprep.subr.bf16.mxu0 0
        %4850 = vmatpush1.bf16.msra.mxu0 %v4847
        %4851 = vmatprep.subr.bf16.mxu0 0
        %4852 = vmatpush1.bf16.msra.mxu0 0
        %4853 = vmatprep.subr.bf16.mxu0 0
        %4854 = vmatpush1.bf16.msra.mxu0 0
        %4855 = vmatprep.subr.bf16.mxu0 0
        %4856 = vmatpush1.bf16.msra.mxu0 0
        %4857 = vmatprep.subr.bf16.mxu0 0
        %4858 = vmatpush1.bf16.msra.mxu0 0
        %4859 = vmatprep.subr.bf16.mxu0 0
        %4860 = vmatpush1.bf16.msra.mxu0 0
        %4861 = vmatprep.subr.bf16.mxu0 0
        %4862 = vmatpush1.bf16.msra.mxu0 0
        %4863 = vmatprep.subr.bf16.mxu0 0
        %4864 = vmatpush1.bf16.msra.mxu0 0
        %4865 = vmatprep.subr.bf16.mxu0 0
        %4866 = vmatpush1.bf16.msra.mxu0 0
        %4867 = vmatprep.subr.bf16.mxu0 0
        %4868 = vmatpush1.bf16.msra.mxu0 0
        %4869 = vmatprep.subr.bf16.mxu0 0
        %4870 = vmatpush1.bf16.msra.mxu0 0
        %4871 = vmatprep.subr.bf16.mxu0 0
        %4872 = vmatpush1.bf16.msra.mxu0 0
        %4873 = vmatprep.subr.bf16.mxu0 0
        %4874 = vmatpush1.bf16.msra.mxu0 0
        %4875 = vmatprep.subr.bf16.mxu0 0
        %4876 = vmatpush1.bf16.msra.mxu0 0
        %4877 = vmatprep.subr.bf16.mxu0 0
        %4878 = vmatpush1.bf16.msra.mxu0 0
        %4879 = vmatprep.subr.bf16.mxu0 0
        %4880 = vmatpush1.bf16.msra.mxu0 0
        %4881 = vmatprep.mubr.bf16.mxu0 0
        %4882 = vmatmul.mubr.bf16.gmra.mrb[0].mxu0 %v4811
        %v4883 = vpop.f32.mrb[0].mxu0
        %v4884 = vadd.f32 0.0, %v4883
        %v4885 = vpop.f32.mrb[0].mxu0
        %v4886 = vpop.f32.mrb[0].mxu0
        %v4887 = vadd.f32 0.0, %v4886
        %v4888 = vpop.f32.mrb[0].mxu0
        %4889 = vmatprep.mubr.bf16.mxu0 0
        %4890 = vmatmul.mubr.bf16.gmra.mrb[0].mxu0 %v4814
        %v4891 = vpop.f32.mrb[0].mxu0
        %v4892 = vadd.f32 0.0, %v4891
        %v4893 = vpop.f32.mrb[0].mxu0
        %v4894 = vpop.f32.mrb[0].mxu0
        %v4895 = vadd.f32 0.0, %v4894
        %v4896 = vpop.f32.mrb[0].mxu0
        %4897 = vmatprep.mubr.bf16.mxu0 0
        %4898 = vmatmul.mubr.bf16.gmra.mrb[0].mxu0 %v4817
        %v4899 = vpop.f32.mrb[0].mxu0
        %v4900 = vadd.f32 0.0, %v4899
        %v4901 = vpop.f32.mrb[0].mxu0
        %v4902 = vpop.f32.mrb[0].mxu0
        %v4903 = vadd.f32 0.0, %v4902
        %v4904 = vpop.f32.mrb[0].mxu0
        %4905 = vmatprep.mubr.bf16.mxu0 0
        %4906 = vmatmul.mubr.bf16.gmra.mrb[0].mxu0 %v4820
        %v4907 = vpop.f32.mrb[0].mxu0
        %v4908 = vadd.f32 0.0, %v4907
        %v4909 = vpop.f32.mrb[0].mxu0
        %v4910 = vpop.f32.mrb[0].mxu0
        %v4911 = vadd.f32 0.0, %v4910
        %v4912 = vpop.f32.mrb[0].mxu0
        %4913 = vmatprep.mubr.bf16.mxu0 0
        %4914 = vmatmul.mubr.bf16.gmra.mrb[0].mxu0 %v4823
        %v4915 = vpop.f32.mrb[0].mxu0
        %v4916 = vadd.f32 0.0, %v4915
        %v4917 = vpop.f32.mrb[0].mxu0
        %v4918 = vpop.f32.mrb[0].mxu0
        %v4919 = vadd.f32 0.0, %v4918
        %v4920 = vpop.f32.mrb[0].mxu0
        %4921 = vmatprep.mubr.bf16.mxu0 0
        %4922 = vmatmul.mubr.bf16.gmra.mrb[0].mxu0 %v4826
        %v4923 = vpop.f32.mrb[0].mxu0
        %v4924 = vadd.f32 0.0, %v4923
        %v4925 = vpop.f32.mrb[0].mxu0
        %v4926 = vpop.f32.mrb[0].mxu0
        %v4927 = vadd.f32 0.0, %v4926
        %v4928 = vpop.f32.mrb[0].mxu0
        %4929 = vmatprep.mubr.bf16.mxu0 0
        %4930 = vmatmul.mubr.bf16.gmra.mrb[0].mxu0 %v4829
        %v4931 = vpop.f32.mrb[0].mxu0
        %v4932 = vadd.f32 0.0, %v4931
        %v4933 = vpop.f32.mrb[0].mxu0
        %v4934 = vpop.f32.mrb[0].mxu0
        %v4935 = vadd.f32 0.0, %v4934
        %v4936 = vpop.f32.mrb[0].mxu0
        %4937 = vmatprep.mubr.bf16.mxu0 0
        %4938 = vmatmul.mubr.bf16.gmra.mrb[0].mxu0 %v4832
        %v4939 = vpop.f32.mrb[0].mxu0
        %v4940 = vadd.f32 0.0, %v4939
        %v4941 = vpop.f32.mrb[0].mxu0
        %v4942 = vpop.f32.mrb[0].mxu0
        %v4943 = vadd.f32 0.0, %v4942
        %v4944 = vpop.f32.mrb[0].mxu0
        %4945 = vmatprep.mubr.bf16.mxu0 0
        %4946 = vmatmul.mubr.bf16.gmra.mrb[0].mxu0 %v4835
        %v4947 = vpop.f32.mrb[0].mxu0
        %v4948 = vadd.f32 0.0, %v4947
        %v4949 = vpop.f32.mrb[0].mxu0
        %v4950 = vpop.f32.mrb[0].mxu0
        %v4951 = vadd.f32 0.0, %v4950
        %v4952 = vpop.f32.mrb[0].mxu0
        %4953 = vmatprep.mubr.bf16.mxu0 0
        %4954 = vmatmul.mubr.bf16.gmra.mrb[0].mxu0 %v4838
        %v4955 = vpop.f32.mrb[0].mxu0
        %v4956 = vadd.f32 0.0, %v4955
        %v4957 = vpop.f32.mrb[0].mxu0
        %v4958 = vpop.f32.mrb[0].mxu0
        %v4959 = vadd.f32 0.0, %v4958
        %v4960 = vpop.f32.mrb[0].mxu0
        %4961 = vmatprep.mubr.bf16.mxu0 0
        %4962 = vmatmul.mubr.bf16.gmra.mrb[0].mxu0 %v4841
        %v4963 = vpop.f32.mrb[0].mxu0
        %v4964 = vadd.f32 0.0, %v4963
        %v4965 = vpop.f32.mrb[0].mxu0
        %v4966 = vpop.f32.mrb[0].mxu0
        %v4967 = vadd.f32 0.0, %v4966
        %v4968 = vpop.f32.mrb[0].mxu0
        %4969 = vmatprep.mubr.bf16.mxu0 0
        %4970 = vmatmul.mubr.bf16.gmra.mrb[0].mxu0 %v4844
        %v4971 = vpop.f32.mrb[0].mxu0
        %v4972 = vadd.f32 0.0, %v4971
        %v4973 = vpop.f32.mrb[0].mxu0
        %v4974 = vpop.f32.mrb[0].mxu0
        %v4975 = vadd.f32 0.0, %v4974
        %v4976 = vpop.f32.mrb[0].mxu0
        %4977 = vdwg.mxu0
        %v4978 = vadd.f32 %v3382, %v4884
        %v4979 = vadd.f32 %v3385, %v4887
        %v4980 = vadd.f32 %v3390, %v4892
        %v4981 = vadd.f32 %v3393, %v4895
        %v4982 = vadd.f32 %v3398, %v4900
        %v4983 = vadd.f32 %v3401, %v4903
        %v4984 = vadd.f32 %v3406, %v4908
        %v4985 = vadd.f32 %v3409, %v4911
        %v4986 = vadd.f32 %v3414, %v4916
        %v4987 = vadd.f32 %v3417, %v4919
        %v4988 = vadd.f32 %v3422, %v4924
        %v4989 = vadd.f32 %v3425, %v4927
        %v4990 = vadd.f32 %v3430, %v4932
        %v4991 = vadd.f32 %v3433, %v4935
        %v4992 = vadd.f32 %v3438, %v4940
        %v4993 = vadd.f32 %v3441, %v4943
        %v4994 = vadd.f32 %v3446, %v4948
        %v4995 = vadd.f32 %v3449, %v4951
        %v4996 = vadd.f32 %v3454, %v4956
        %v4997 = vadd.f32 %v3457, %v4959
        %v4998 = vadd.f32 %v3462, %v4964
        %v4999 = vadd.f32 %v3465, %v4967
        %v5000 = vadd.f32 %v3470, %v4972
        %v5001 = vadd.f32 %v3473, %v4975
        %s5002 = scalar_lea.vmem %s1, 48
        %v5003 = vld [vmem:[%s5002] sm:$0xf]
        %v5004 = vld [vmem:[%s5002 + $0x4] sm:$0xf]
        %v5005 = vld [vmem:[%s5002 + $0x8] sm:$0xf]
        %v5006 = vld [vmem:[%s5002 + $0xc] sm:$0xf]
        %s5007 = scalar_lea.vmem %s2, 3
        %v5008 = vld [vmem:[%s5007] sm:$0x1]
        %v5010 = vlaneseq
        %v5011 = vshrl.u32 %v5010, 7
        %v5012 = vsub.s32 0, %v5011
        %v5013 = vrot.slane %v5008, %v5012
        %v5019 = vunpack.c.l.b16 %v5003
        %v5020 = vunpack.c.l.b16 %v5004
        %v5021 = vunpack.c.l.b16 %v5005
        %v5022 = vunpack.c.l.b16 %v5006
        %v5023 = vpack.c.b16 %v5020, %v5019
        %v5024 = vpack.c.b16 %v5022, %v5021
        %5027 = vmatprep.subr.bf16.mxu0 0
        %5028 = vmatpush1.bf16.msra.mxu0 %v5023
        %5029 = vmatprep.subr.bf16.mxu0 0
        %5030 = vmatpush1.bf16.msra.mxu0 %v5024
        %5031 = vmatprep.subr.bf16.mxu0 0
        %5032 = vmatpush1.bf16.msra.mxu0 0
        %5033 = vmatprep.subr.bf16.mxu0 0
        %5034 = vmatpush1.bf16.msra.mxu0 0
        %5035 = vmatprep.subr.bf16.mxu0 0
        %5036 = vmatpush1.bf16.msra.mxu0 0
        %5037 = vmatprep.subr.bf16.mxu0 0
        %5038 = vmatpush1.bf16.msra.mxu0 0
        %5039 = vmatprep.subr.bf16.mxu0 0
        %5040 = vmatpush1.bf16.msra.mxu0 0
        %5041 = vmatprep.subr.bf16.mxu0 0
        %5042 = vmatpush1.bf16.msra.mxu0 0
        %5043 = vmatprep.subr.bf16.mxu0 0
        %5044 = vmatpush1.bf16.msra.mxu0 0
        %5045 = vmatprep.subr.bf16.mxu0 0
        %5046 = vmatpush1.bf16.msra.mxu0 0
        %5047 = vmatprep.subr.bf16.mxu0 0
        %5048 = vmatpush1.bf16.msra.mxu0 0
        %5049 = vmatprep.subr.bf16.mxu0 0
        %5050 = vmatpush1.bf16.msra.mxu0 0
        %5051 = vmatprep.subr.bf16.mxu0 0
        %5052 = vmatpush1.bf16.msra.mxu0 0
        %5053 = vmatprep.subr.bf16.mxu0 0
        %5054 = vmatpush1.bf16.msra.mxu0 0
        %5055 = vmatprep.subr.bf16.mxu0 0
        %5056 = vmatpush1.bf16.msra.mxu0 0
        %5057 = vmatprep.subr.bf16.mxu0 0
        %5058 = vmatpush1.bf16.msra.mxu0 0
        %5059 = vmatprep.mubr.bf16.mxu0 0
        %5060 = vmatmul.mubr.bf16.gmra.mrb[0].mxu0 %v460
        %v5061 = vpop.f32.mrb[0].mxu0
        %v5062 = vadd.f32 %v5013, %v5061
        %v5063 = vpop.f32.mrb[0].mxu0
        %v5064 = vpop.f32.mrb[0].mxu0
        %v5065 = vadd.f32 %v5013, %v5064
        %v5066 = vpop.f32.mrb[0].mxu0
        %5067 = vmatprep.mubr.bf16.mxu0 0
        %5068 = vmatmul.mubr.bf16.gmra.mrb[0].mxu0 %v463
        %v5069 = vpop.f32.mrb[0].mxu0
        %v5070 = vadd.f32 %v5013, %v5069
        %v5071 = vpop.f32.mrb[0].mxu0
        %v5072 = vpop.f32.mrb[0].mxu0
        %v5073 = vadd.f32 %v5013, %v5072
        %v5074 = vpop.f32.mrb[0].mxu0
        %5075 = vmatprep.mubr.bf16.mxu0 0
        %5076 = vmatmul.mubr.bf16.gmra.mrb[0].mxu0 %v466
        %v5077 = vpop.f32.mrb[0].mxu0
        %v5078 = vadd.f32 %v5013, %v5077
        %v5079 = vpop.f32.mrb[0].mxu0
        %v5080 = vpop.f32.mrb[0].mxu0
        %v5081 = vadd.f32 %v5013, %v5080
        %v5082 = vpop.f32.mrb[0].mxu0
        %5083 = vmatprep.mubr.bf16.mxu0 0
        %5084 = vmatmul.mubr.bf16.gmra.mrb[0].mxu0 %v469
        %v5085 = vpop.f32.mrb[0].mxu0
        %v5086 = vadd.f32 %v5013, %v5085
        %v5087 = vpop.f32.mrb[0].mxu0
        %v5088 = vpop.f32.mrb[0].mxu0
        %v5089 = vadd.f32 %v5013, %v5088
        %v5090 = vpop.f32.mrb[0].mxu0
        %5091 = vmatprep.mubr.bf16.mxu0 0
        %5092 = vmatmul.mubr.bf16.gmra.mrb[0].mxu0 %v472
        %v5093 = vpop.f32.mrb[0].mxu0
        %v5094 = vadd.f32 %v5013, %v5093
        %v5095 = vpop.f32.mrb[0].mxu0
        %v5096 = vpop.f32.mrb[0].mxu0
        %v5097 = vadd.f32 %v5013, %v5096
        %v5098 = vpop.f32.mrb[0].mxu0
        %5099 = vmatprep.mubr.bf16.mxu0 0
        %5100 = vmatmul.mubr.bf16.gmra.mrb[0].mxu0 %v475
        %v5101 = vpop.f32.mrb[0].mxu0
        %v5102 = vadd.f32 %v5013, %v5101
        %v5103 = vpop.f32.mrb[0].mxu0
        %v5104 = vpop.f32.mrb[0].mxu0
        %v5105 = vadd.f32 %v5013, %v5104
        %v5106 = vpop.f32.mrb[0].mxu0
        %5107 = vmatprep.mubr.bf16.mxu0 0
        %5108 = vmatmul.mubr.bf16.gmra.mrb[0].mxu0 %v478
        %v5109 = vpop.f32.mrb[0].mxu0
        %v5110 = vadd.f32 %v5013, %v5109
        %v5111 = vpop.f32.mrb[0].mxu0
        %v5112 = vpop.f32.mrb[0].mxu0
        %v5113 = vadd.f32 %v5013, %v5112
        %v5114 = vpop.f32.mrb[0].mxu0
        %5115 = vmatprep.mubr.bf16.mxu0 0
        %5116 = vmatmul.mubr.bf16.gmra.mrb[0].mxu0 %v481
        %v5117 = vpop.f32.mrb[0].mxu0
        %v5118 = vadd.f32 %v5013, %v5117
        %v5119 = vpop.f32.mrb[0].mxu0
        %v5120 = vpop.f32.mrb[0].mxu0
        %v5121 = vadd.f32 %v5013, %v5120
        %v5122 = vpop.f32.mrb[0].mxu0
        %5123 = vmatprep.mubr.bf16.mxu0 0
        %5124 = vmatmul.mubr.bf16.gmra.mrb[0].mxu0 %v484
        %v5125 = vpop.f32.mrb[0].mxu0
        %v5126 = vadd.f32 %v5013, %v5125
        %v5127 = vpop.f32.mrb[0].mxu0
        %v5128 = vpop.f32.mrb[0].mxu0
        %v5129 = vadd.f32 %v5013, %v5128
        %v5130 = vpop.f32.mrb[0].mxu0
        %5131 = vmatprep.mubr.bf16.mxu0 0
        %5132 = vmatmul.mubr.bf16.gmra.mrb[0].mxu0 %v487
        %v5133 = vpop.f32.mrb[0].mxu0
        %v5134 = vadd.f32 %v5013, %v5133
        %v5135 = vpop.f32.mrb[0].mxu0
        %v5136 = vpop.f32.mrb[0].mxu0
        %v5137 = vadd.f32 %v5013, %v5136
        %v5138 = vpop.f32.mrb[0].mxu0
        %5139 = vmatprep.mubr.bf16.mxu0 0
        %5140 = vmatmul.mubr.bf16.gmra.mrb[0].mxu0 %v490
        %v5141 = vpop.f32.mrb[0].mxu0
        %v5142 = vadd.f32 %v5013, %v5141
        %v5143 = vpop.f32.mrb[0].mxu0
        %v5144 = vpop.f32.mrb[0].mxu0
        %v5145 = vadd.f32 %v5013, %v5144
        %v5146 = vpop.f32.mrb[0].mxu0
        %5147 = vmatprep.mubr.bf16.mxu0 0
        %5148 = vmatmul.mubr.bf16.gmra.mrb[0].mxu0 %v493
        %v5149 = vpop.f32.mrb[0].mxu0
        %v5150 = vadd.f32 %v5013, %v5149
        %v5151 = vpop.f32.mrb[0].mxu0
        %v5152 = vpop.f32.mrb[0].mxu0
        %v5153 = vadd.f32 %v5013, %v5152
        %v5154 = vpop.f32.mrb[0].mxu0
        %5155 = vdwg.mxu0
        %s5156 = scalar_lea.vmem %s1, 112
        %v5157 = vld [vmem:[%s5156] sm:$0xf]
        %v5158 = vld [vmem:[%s5156 + $0x4] sm:$0xf]
        %v5159 = vld [vmem:[%s5156 + $0x8] sm:$0xf]
        %v5160 = vld [vmem:[%s5156 + $0xc] sm:$0xf]
        %s5161 = scalar_lea.vmem %s2, 7
        %v5162 = vld [vmem:[%s5161] sm:$0x1]
        %v5164 = vlaneseq
        %v5165 = vshrl.u32 %v5164, 7
        %v5166 = vsub.s32 0, %v5165
        %v5167 = vrot.slane %v5162, %v5166
        %v5173 = vunpack.c.l.b16 %v5157
        %v5174 = vunpack.c.l.b16 %v5158
        %v5175 = vunpack.c.l.b16 %v5159
        %v5176 = vunpack.c.l.b16 %v5160
        %v5177 = vpack.c.b16 %v5174, %v5173
        %v5178 = vpack.c.b16 %v5176, %v5175
        %5181 = vmatprep.subr.bf16.mxu0 0
        %5182 = vmatpush1.bf16.msra.mxu0 %v5177
        %5183 = vmatprep.subr.bf16.mxu0 0
        %5184 = vmatpush1.bf16.msra.mxu0 %v5178
        %5185 = vmatprep.subr.bf16.mxu0 0
        %5186 = vmatpush1.bf16.msra.mxu0 0
        %5187 = vmatprep.subr.bf16.mxu0 0
        %5188 = vmatpush1.bf16.msra.mxu0 0
        %5189 = vmatprep.subr.bf16.mxu0 0
        %5190 = vmatpush1.bf16.msra.mxu0 0
        %5191 = vmatprep.subr.bf16.mxu0 0
        %5192 = vmatpush1.bf16.msra.mxu0 0
        %5193 = vmatprep.subr.bf16.mxu0 0
        %5194 = vmatpush1.bf16.msra.mxu0 0
        %5195 = vmatprep.subr.bf16.mxu0 0
        %5196 = vmatpush1.bf16.msra.mxu0 0
        %5197 = vmatprep.subr.bf16.mxu0 0
        %5198 = vmatpush1.bf16.msra.mxu0 0
        %5199 = vmatprep.subr.bf16.mxu0 0
        %5200 = vmatpush1.bf16.msra.mxu0 0
        %5201 = vmatprep.subr.bf16.mxu0 0
        %5202 = vmatpush1.bf16.msra.mxu0 0
        %5203 = vmatprep.subr.bf16.mxu0 0
        %5204 = vmatpush1.bf16.msra.mxu0 0
        %5205 = vmatprep.subr.bf16.mxu0 0
        %5206 = vmatpush1.bf16.msra.mxu0 0
        %5207 = vmatprep.subr.bf16.mxu0 0
        %5208 = vmatpush1.bf16.msra.mxu0 0
        %5209 = vmatprep.subr.bf16.mxu0 0
        %5210 = vmatpush1.bf16.msra.mxu0 0
        %5211 = vmatprep.subr.bf16.mxu0 0
        %5212 = vmatpush1.bf16.msra.mxu0 0
        %5213 = vmatprep.mubr.bf16.mxu0 0
        %5214 = vmatmul.mubr.bf16.gmra.mrb[0].mxu0 %v460
        %v5215 = vpop.f32.mrb[0].mxu0
        %v5216 = vadd.f32 %v5167, %v5215
        %v5217 = vpop.f32.mrb[0].mxu0
        %v5218 = vpop.f32.mrb[0].mxu0
        %v5219 = vadd.f32 %v5167, %v5218
        %v5220 = vpop.f32.mrb[0].mxu0
        %5221 = vmatprep.mubr.bf16.mxu0 0
        %5222 = vmatmul.mubr.bf16.gmra.mrb[0].mxu0 %v463
        %v5223 = vpop.f32.mrb[0].mxu0
        %v5224 = vadd.f32 %v5167, %v5223
        %v5225 = vpop.f32.mrb[0].mxu0
        %v5226 = vpop.f32.mrb[0].mxu0
        %v5227 = vadd.f32 %v5167, %v5226
        %v5228 = vpop.f32.mrb[0].mxu0
        %5229 = vmatprep.mubr.bf16.mxu0 0
        %5230 = vmatmul.mubr.bf16.gmra.mrb[0].mxu0 %v466
        %v5231 = vpop.f32.mrb[0].mxu0
        %v5232 = vadd.f32 %v5167, %v5231
        %v5233 = vpop.f32.mrb[0].mxu0
        %v5234 = vpop.f32.mrb[0].mxu0
        %v5235 = vadd.f32 %v5167, %v5234
        %v5236 = vpop.f32.mrb[0].mxu0
        %5237 = vmatprep.mubr.bf16.mxu0 0
        %5238 = vmatmul.mubr.bf16.gmra.mrb[0].mxu0 %v469
        %v5239 = vpop.f32.mrb[0].mxu0
        %v5240 = vadd.f32 %v5167, %v5239
        %v5241 = vpop.f32.mrb[0].mxu0
        %v5242 = vpop.f32.mrb[0].mxu0
        %v5243 = vadd.f32 %v5167, %v5242
        %v5244 = vpop.f32.mrb[0].mxu0
        %5245 = vmatprep.mubr.bf16.mxu0 0
        %5246 = vmatmul.mubr.bf16.gmra.mrb[0].mxu0 %v472
        %v5247 = vpop.f32.mrb[0].mxu0
        %v5248 = vadd.f32 %v5167, %v5247
        %v5249 = vpop.f32.mrb[0].mxu0
        %v5250 = vpop.f32.mrb[0].mxu0
        %v5251 = vadd.f32 %v5167, %v5250
        %v5252 = vpop.f32.mrb[0].mxu0
        %5253 = vmatprep.mubr.bf16.mxu0 0
        %5254 = vmatmul.mubr.bf16.gmra.mrb[0].mxu0 %v475
        %v5255 = vpop.f32.mrb[0].mxu0
        %v5256 = vadd.f32 %v5167, %v5255
        %v5257 = vpop.f32.mrb[0].mxu0
        %v5258 = vpop.f32.mrb[0].mxu0
        %v5259 = vadd.f32 %v5167, %v5258
        %v5260 = vpop.f32.mrb[0].mxu0
        %5261 = vmatprep.mubr.bf16.mxu0 0
        %5262 = vmatmul.mubr.bf16.gmra.mrb[0].mxu0 %v478
        %v5263 = vpop.f32.mrb[0].mxu0
        %v5264 = vadd.f32 %v5167, %v5263
        %v5265 = vpop.f32.mrb[0].mxu0
        %v5266 = vpop.f32.mrb[0].mxu0
        %v5267 = vadd.f32 %v5167, %v5266
        %v5268 = vpop.f32.mrb[0].mxu0
        %5269 = vmatprep.mubr.bf16.mxu0 0
        %5270 = vmatmul.mubr.bf16.gmra.mrb[0].mxu0 %v481
        %v5271 = vpop.f32.mrb[0].mxu0
        %v5272 = vadd.f32 %v5167, %v5271
        %v5273 = vpop.f32.mrb[0].mxu0
        %v5274 = vpop.f32.mrb[0].mxu0
        %v5275 = vadd.f32 %v5167, %v5274
        %v5276 = vpop.f32.mrb[0].mxu0
        %5277 = vmatprep.mubr.bf16.mxu0 0
        %5278 = vmatmul.mubr.bf16.gmra.mrb[0].mxu0 %v484
        %v5279 = vpop.f32.mrb[0].mxu0
        %v5280 = vadd.f32 %v5167, %v5279
        %v5281 = vpop.f32.mrb[0].mxu0
        %v5282 = vpop.f32.mrb[0].mxu0
        %v5283 = vadd.f32 %v5167, %v5282
        %v5284 = vpop.f32.mrb[0].mxu0
        %5285 = vmatprep.mubr.bf16.mxu0 0
        %5286 = vmatmul.mubr.bf16.gmra.mrb[0].mxu0 %v487
        %v5287 = vpop.f32.mrb[0].mxu0
        %v5288 = vadd.f32 %v5167, %v5287
        %v5289 = vpop.f32.mrb[0].mxu0
        %v5290 = vpop.f32.mrb[0].mxu0
        %v5291 = vadd.f32 %v5167, %v5290
        %v5292 = vpop.f32.mrb[0].mxu0
        %5293 = vmatprep.mubr.bf16.mxu0 0
        %5294 = vmatmul.mubr.bf16.gmra.mrb[0].mxu0 %v490
        %v5295 = vpop.f32.mrb[0].mxu0
        %v5296 = vadd.f32 %v5167, %v5295
        %v5297 = vpop.f32.mrb[0].mxu0
        %v5298 = vpop.f32.mrb[0].mxu0
        %v5299 = vadd.f32 %v5167, %v5298
        %v5300 = vpop.f32.mrb[0].mxu0
        %5301 = vmatprep.mubr.bf16.mxu0 0
        %5302 = vmatmul.mubr.bf16.gmra.mrb[0].mxu0 %v493
        %v5303 = vpop.f32.mrb[0].mxu0
        %v5304 = vadd.f32 %v5167, %v5303
        %v5305 = vpop.f32.mrb[0].mxu0
        %v5306 = vpop.f32.mrb[0].mxu0
        %v5307 = vadd.f32 %v5167, %v5306
        %v5308 = vpop.f32.mrb[0].mxu0
        %5309 = vdwg.mxu0
        %s5310 = scalar_lea.vmem %s1, 176
        %v5311 = vld [vmem:[%s5310] sm:$0xf]
        %v5312 = vld [vmem:[%s5310 + $0x4] sm:$0xf]
        %v5313 = vld [vmem:[%s5310 + $0x8] sm:$0xf]
        %v5314 = vld [vmem:[%s5310 + $0xc] sm:$0xf]
        %s5315 = scalar_lea.vmem %s2, 11
        %v5316 = vld [vmem:[%s5315] sm:$0x1]
        %v5318 = vlaneseq
        %v5319 = vshrl.u32 %v5318, 7
        %v5320 = vsub.s32 0, %v5319
        %v5321 = vrot.slane %v5316, %v5320
        %v5327 = vunpack.c.l.b16 %v5311
        %v5328 = vunpack.c.l.b16 %v5312
        %v5329 = vunpack.c.l.b16 %v5313
        %v5330 = vunpack.c.l.b16 %v5314
        %v5331 = vpack.c.b16 %v5328, %v5327
        %v5332 = vpack.c.b16 %v5330, %v5329
        %5335 = vmatprep.subr.bf16.mxu0 0
        %5336 = vmatpush1.bf16.msra.mxu0 %v5331
        %5337 = vmatprep.subr.bf16.mxu0 0
        %5338 = vmatpush1.bf16.msra.mxu0 %v5332
        %5339 = vmatprep.subr.bf16.mxu0 0
        %5340 = vmatpush1.bf16.msra.mxu0 0
        %5341 = vmatprep.subr.bf16.mxu0 0
        %5342 = vmatpush1.bf16.msra.mxu0 0
        %5343 = vmatprep.subr.bf16.mxu0 0
        %5344 = vmatpush1.bf16.msra.mxu0 0
        %5345 = vmatprep.subr.bf16.mxu0 0
        %5346 = vmatpush1.bf16.msra.mxu0 0
        %5347 = vmatprep.subr.bf16.mxu0 0
        %5348 = vmatpush1.bf16.msra.mxu0 0
        %5349 = vmatprep.subr.bf16.mxu0 0
        %5350 = vmatpush1.bf16.msra.mxu0 0
        %5351 = vmatprep.subr.bf16.mxu0 0
        %5352 = vmatpush1.bf16.msra.mxu0 0
        %5353 = vmatprep.subr.bf16.mxu0 0
        %5354 = vmatpush1.bf16.msra.mxu0 0
        %5355 = vmatprep.subr.bf16.mxu0 0
        %5356 = vmatpush1.bf16.msra.mxu0 0
        %5357 = vmatprep.subr.bf16.mxu0 0
        %5358 = vmatpush1.bf16.msra.mxu0 0
        %5359 = vmatprep.subr.bf16.mxu0 0
        %5360 = vmatpush1.bf16.msra.mxu0 0
        %5361 = vmatprep.subr.bf16.mxu0 0
        %5362 = vmatpush1.bf16.msra.mxu0 0
        %5363 = vmatprep.subr.bf16.mxu0 0
        %5364 = vmatpush1.bf16.msra.mxu0 0
        %5365 = vmatprep.subr.bf16.mxu0 0
        %5366 = vmatpush1.bf16.msra.mxu0 0
        %5367 = vmatprep.mubr.bf16.mxu0 0
        %5368 = vmatmul.mubr.bf16.gmra.mrb[0].mxu0 %v460
        %v5369 = vpop.f32.mrb[0].mxu0
        %v5370 = vadd.f32 %v5321, %v5369
        %v5371 = vpop.f32.mrb[0].mxu0
        %v5372 = vpop.f32.mrb[0].mxu0
        %v5373 = vadd.f32 %v5321, %v5372
        %v5374 = vpop.f32.mrb[0].mxu0
        %5375 = vmatprep.mubr.bf16.mxu0 0
        %5376 = vmatmul.mubr.bf16.gmra.mrb[0].mxu0 %v463
        %v5377 = vpop.f32.mrb[0].mxu0
        %v5378 = vadd.f32 %v5321, %v5377
        %v5379 = vpop.f32.mrb[0].mxu0
        %v5380 = vpop.f32.mrb[0].mxu0
        %v5381 = vadd.f32 %v5321, %v5380
        %v5382 = vpop.f32.mrb[0].mxu0
        %5383 = vmatprep.mubr.bf16.mxu0 0
        %5384 = vmatmul.mubr.bf16.gmra.mrb[0].mxu0 %v466
        %v5385 = vpop.f32.mrb[0].mxu0
        %v5386 = vadd.f32 %v5321, %v5385
        %v5387 = vpop.f32.mrb[0].mxu0
        %v5388 = vpop.f32.mrb[0].mxu0
        %v5389 = vadd.f32 %v5321, %v5388
        %v5390 = vpop.f32.mrb[0].mxu0
        %5391 = vmatprep.mubr.bf16.mxu0 0
        %5392 = vmatmul.mubr.bf16.gmra.mrb[0].mxu0 %v469
        %v5393 = vpop.f32.mrb[0].mxu0
        %v5394 = vadd.f32 %v5321, %v5393
        %v5395 = vpop.f32.mrb[0].mxu0
        %v5396 = vpop.f32.mrb[0].mxu0
        %v5397 = vadd.f32 %v5321, %v5396
        %v5398 = vpop.f32.mrb[0].mxu0
        %5399 = vmatprep.mubr.bf16.mxu0 0
        %5400 = vmatmul.mubr.bf16.gmra.mrb[0].mxu0 %v472
        %v5401 = vpop.f32.mrb[0].mxu0
        %v5402 = vadd.f32 %v5321, %v5401
        %v5403 = vpop.f32.mrb[0].mxu0
        %v5404 = vpop.f32.mrb[0].mxu0
        %v5405 = vadd.f32 %v5321, %v5404
        %v5406 = vpop.f32.mrb[0].mxu0
        %5407 = vmatprep.mubr.bf16.mxu0 0
        %5408 = vmatmul.mubr.bf16.gmra.mrb[0].mxu0 %v475
        %v5409 = vpop.f32.mrb[0].mxu0
        %v5410 = vadd.f32 %v5321, %v5409
        %v5411 = vpop.f32.mrb[0].mxu0
        %v5412 = vpop.f32.mrb[0].mxu0
        %v5413 = vadd.f32 %v5321, %v5412
        %v5414 = vpop.f32.mrb[0].mxu0
        %5415 = vmatprep.mubr.bf16.mxu0 0
        %5416 = vmatmul.mubr.bf16.gmra.mrb[0].mxu0 %v478
        %v5417 = vpop.f32.mrb[0].mxu0
        %v5418 = vadd.f32 %v5321, %v5417
        %v5419 = vpop.f32.mrb[0].mxu0
        %v5420 = vpop.f32.mrb[0].mxu0
        %v5421 = vadd.f32 %v5321, %v5420
        %v5422 = vpop.f32.mrb[0].mxu0
        %5423 = vmatprep.mubr.bf16.mxu0 0
        %5424 = vmatmul.mubr.bf16.gmra.mrb[0].mxu0 %v481
        %v5425 = vpop.f32.mrb[0].mxu0
        %v5426 = vadd.f32 %v5321, %v5425
        %v5427 = vpop.f32.mrb[0].mxu0
        %v5428 = vpop.f32.mrb[0].mxu0
        %v5429 = vadd.f32 %v5321, %v5428
        %v5430 = vpop.f32.mrb[0].mxu0
        %5431 = vmatprep.mubr.bf16.mxu0 0
        %5432 = vmatmul.mubr.bf16.gmra.mrb[0].mxu0 %v484
        %v5433 = vpop.f32.mrb[0].mxu0
        %v5434 = vadd.f32 %v5321, %v5433
        %v5435 = vpop.f32.mrb[0].mxu0
        %v5436 = vpop.f32.mrb[0].mxu0
        %v5437 = vadd.f32 %v5321, %v5436
        %v5438 = vpop.f32.mrb[0].mxu0
        %5439 = vmatprep.mubr.bf16.mxu0 0
        %5440 = vmatmul.mubr.bf16.gmra.mrb[0].mxu0 %v487
        %v5441 = vpop.f32.mrb[0].mxu0
        %v5442 = vadd.f32 %v5321, %v5441
        %v5443 = vpop.f32.mrb[0].mxu0
        %v5444 = vpop.f32.mrb[0].mxu0
        %v5445 = vadd.f32 %v5321, %v5444
        %v5446 = vpop.f32.mrb[0].mxu0
        %5447 = vmatprep.mubr.bf16.mxu0 0
        %5448 = vmatmul.mubr.bf16.gmra.mrb[0].mxu0 %v490
        %v5449 = vpop.f32.mrb[0].mxu0
        %v5450 = vadd.f32 %v5321, %v5449
        %v5451 = vpop.f32.mrb[0].mxu0
        %v5452 = vpop.f32.mrb[0].mxu0
        %v5453 = vadd.f32 %v5321, %v5452
        %v5454 = vpop.f32.mrb[0].mxu0
        %5455 = vmatprep.mubr.bf16.mxu0 0
        %5456 = vmatmul.mubr.bf16.gmra.mrb[0].mxu0 %v493
        %v5457 = vpop.f32.mrb[0].mxu0
        %v5458 = vadd.f32 %v5321, %v5457
        %v5459 = vpop.f32.mrb[0].mxu0
        %v5460 = vpop.f32.mrb[0].mxu0
        %v5461 = vadd.f32 %v5321, %v5460
        %v5462 = vpop.f32.mrb[0].mxu0
        %5463 = vdwg.mxu0
        %v5464 = vpack.c.bf16 %v5065, %v5062
        %v5465 = vpack.c.bf16 %v5073, %v5070
        %v5466 = vpack.c.bf16 %v5081, %v5078
        %v5467 = vpack.c.bf16 %v5089, %v5086
        %v5468 = vpack.c.bf16 %v5097, %v5094
        %v5469 = vpack.c.bf16 %v5105, %v5102
        %v5470 = vpack.c.bf16 %v5113, %v5110
        %v5471 = vpack.c.bf16 %v5121, %v5118
        %v5472 = vpack.c.bf16 %v5129, %v5126
        %v5473 = vpack.c.bf16 %v5137, %v5134
        %v5474 = vpack.c.bf16 %v5145, %v5142
        %v5475 = vpack.c.bf16 %v5153, %v5150
        %v5476 = vpack.c.bf16 %v5219, %v5216
        %v5477 = vpack.c.bf16 %v5227, %v5224
        %v5478 = vpack.c.bf16 %v5235, %v5232
        %v5479 = vpack.c.bf16 %v5243, %v5240
        %v5480 = vpack.c.bf16 %v5251, %v5248
        %v5481 = vpack.c.bf16 %v5259, %v5256
        %v5482 = vpack.c.bf16 %v5267, %v5264
        %v5483 = vpack.c.bf16 %v5275, %v5272
        %v5484 = vpack.c.bf16 %v5283, %v5280
        %v5485 = vpack.c.bf16 %v5291, %v5288
        %v5486 = vpack.c.bf16 %v5299, %v5296
        %v5487 = vpack.c.bf16 %v5307, %v5304
        %v5489 = vsel %vm956, %v5464, 0
        %v5492 = vsel %vm956, %v5465, 0
        %v5495 = vsel %vm956, %v5466, 0
        %v5498 = vsel %vm956, %v5467, 0
        %v5501 = vsel %vm956, %v5468, 0
        %v5504 = vsel %vm956, %v5469, 0
        %v5507 = vsel %vm956, %v5470, 0
        %v5510 = vsel %vm956, %v5471, 0
        %v5513 = vsel %vm956, %v5472, 0
        %v5516 = vsel %vm956, %v5473, 0
        %v5519 = vsel %vm956, %v5474, 0
        %v5522 = vsel %vm956, %v5475, 0
        %v5525 = vsel %vm956, %v5476, 0
        %v5528 = vsel %vm956, %v5477, 0
        %v5531 = vsel %vm956, %v5478, 0
        %v5534 = vsel %vm956, %v5479, 0
        %v5537 = vsel %vm956, %v5480, 0
        %v5540 = vsel %vm956, %v5481, 0
        %v5543 = vsel %vm956, %v5482, 0
        %v5546 = vsel %vm956, %v5483, 0
        %v5549 = vsel %vm956, %v5484, 0
        %v5552 = vsel %vm956, %v5485, 0
        %v5555 = vsel %vm956, %v5486, 0
        %v5558 = vsel %vm956, %v5487, 0
        %5560 = vmatprep.subr.bf16.mxu0 0
        %5561 = vmatpush1.bf16.xpose.msra.mxu0 %v5525
        %5562 = vmatprep.subr.bf16.mxu0 0
        %5563 = vmatpush1.bf16.xpose.msra.mxu0 %v5528
        %5564 = vmatprep.subr.bf16.mxu0 0
        %5565 = vmatpush1.bf16.xpose.msra.mxu0 %v5531
        %5566 = vmatprep.subr.bf16.mxu0 0
        %5567 = vmatpush1.bf16.xpose.msra.mxu0 %v5534
        %5568 = vmatprep.subr.bf16.mxu0 0
        %5569 = vmatpush1.bf16.xpose.msra.mxu0 %v5537
        %5570 = vmatprep.subr.bf16.mxu0 0
        %5571 = vmatpush1.bf16.xpose.msra.mxu0 %v5540
        %5572 = vmatprep.subr.bf16.mxu0 0
        %5573 = vmatpush1.bf16.xpose.msra.mxu0 %v5543
        %5574 = vmatprep.subr.bf16.mxu0 0
        %5575 = vmatpush1.bf16.xpose.msra.mxu0 %v5546
        %5576 = vmatprep.subr.bf16.mxu0 0
        %5577 = vmatpush1.bf16.xpose.msra.mxu0 %v5549
        %5578 = vmatprep.subr.bf16.mxu0 0
        %5579 = vmatpush1.bf16.xpose.msra.mxu0 %v5552
        %5580 = vmatprep.subr.bf16.mxu0 0
        %5581 = vmatpush1.bf16.xpose.msra.mxu0 %v5555
        %5582 = vmatprep.subr.bf16.mxu0 0
        %5583 = vmatpush1.bf16.xpose.msra.mxu0 %v5558
        %5584 = vmatprep.subr.bf16.mxu0 0
        %5585 = vmatpush1.bf16.xpose.msra.mxu0 0
        %5586 = vmatprep.subr.bf16.mxu0 0
        %5587 = vmatpush1.bf16.xpose.msra.mxu0 0
        %5588 = vmatprep.subr.bf16.mxu0 0
        %5589 = vmatpush1.bf16.xpose.msra.mxu0 0
        %5590 = vmatprep.subr.bf16.mxu0 0
        %5591 = vmatpush1.bf16.xpose.msra.mxu0 0
        %5592 = vmatprep.mubr.bf16.mxu0 0
        %5593 = vmatmul.mubr.bf16.gmra.mrb[0].mxu0 %v5489
        %v5594 = vpop.f32.mrb[0].mxu0
        %v5595 = vadd.f32 0.0, %v5594
        %v5596 = vpop.f32.mrb[0].mxu0
        %v5597 = vadd.f32 0.0, %v5596
        %v5598 = vpop.f32.mrb[0].mxu0
        %v5599 = vadd.f32 0.0, %v5598
        %v5600 = vpop.f32.mrb[0].mxu0
        %v5601 = vadd.f32 0.0, %v5600
        %5602 = vmatprep.mubr.bf16.mxu0 0
        %5603 = vmatmul.mubr.bf16.gmra.mrb[0].mxu0 %v5492
        %v5604 = vpop.f32.mrb[0].mxu0
        %v5605 = vadd.f32 0.0, %v5604
        %v5606 = vpop.f32.mrb[0].mxu0
        %v5607 = vadd.f32 0.0, %v5606
        %v5608 = vpop.f32.mrb[0].mxu0
        %v5609 = vadd.f32 0.0, %v5608
        %v5610 = vpop.f32.mrb[0].mxu0
        %v5611 = vadd.f32 0.0, %v5610
        %5612 = vmatprep.mubr.bf16.mxu0 0
        %5613 = vmatmul.mubr.bf16.gmra.mrb[0].mxu0 %v5495
        %v5614 = vpop.f32.mrb[0].mxu0
        %v5615 = vadd.f32 0.0, %v5614
        %v5616 = vpop.f32.mrb[0].mxu0
        %v5617 = vadd.f32 0.0, %v5616
        %v5618 = vpop.f32.mrb[0].mxu0
        %v5619 = vadd.f32 0.0, %v5618
        %v5620 = vpop.f32.mrb[0].mxu0
        %v5621 = vadd.f32 0.0, %v5620
        %5622 = vmatprep.mubr.bf16.mxu0 0
        %5623 = vmatmul.mubr.bf16.gmra.mrb[0].mxu0 %v5498
        %v5624 = vpop.f32.mrb[0].mxu0
        %v5625 = vadd.f32 0.0, %v5624
        %v5626 = vpop.f32.mrb[0].mxu0
        %v5627 = vadd.f32 0.0, %v5626
        %v5628 = vpop.f32.mrb[0].mxu0
        %v5629 = vadd.f32 0.0, %v5628
        %v5630 = vpop.f32.mrb[0].mxu0
        %v5631 = vadd.f32 0.0, %v5630
        %5632 = vmatprep.mubr.bf16.mxu0 0
        %5633 = vmatmul.mubr.bf16.gmra.mrb[0].mxu0 %v5501
        %v5634 = vpop.f32.mrb[0].mxu0
        %v5635 = vadd.f32 0.0, %v5634
        %v5636 = vpop.f32.mrb[0].mxu0
        %v5637 = vadd.f32 0.0, %v5636
        %v5638 = vpop.f32.mrb[0].mxu0
        %v5639 = vadd.f32 0.0, %v5638
        %v5640 = vpop.f32.mrb[0].mxu0
        %v5641 = vadd.f32 0.0, %v5640
        %5642 = vmatprep.mubr.bf16.mxu0 0
        %5643 = vmatmul.mubr.bf16.gmra.mrb[0].mxu0 %v5504
        %v5644 = vpop.f32.mrb[0].mxu0
        %v5645 = vadd.f32 0.0, %v5644
        %v5646 = vpop.f32.mrb[0].mxu0
        %v5647 = vadd.f32 0.0, %v5646
        %v5648 = vpop.f32.mrb[0].mxu0
        %v5649 = vadd.f32 0.0, %v5648
        %v5650 = vpop.f32.mrb[0].mxu0
        %v5651 = vadd.f32 0.0, %v5650
        %5652 = vmatprep.mubr.bf16.mxu0 0
        %5653 = vmatmul.mubr.bf16.gmra.mrb[0].mxu0 %v5507
        %v5654 = vpop.f32.mrb[0].mxu0
        %v5655 = vadd.f32 0.0, %v5654
        %v5656 = vpop.f32.mrb[0].mxu0
        %v5657 = vadd.f32 0.0, %v5656
        %v5658 = vpop.f32.mrb[0].mxu0
        %v5659 = vadd.f32 0.0, %v5658
        %v5660 = vpop.f32.mrb[0].mxu0
        %v5661 = vadd.f32 0.0, %v5660
        %5662 = vmatprep.mubr.bf16.mxu0 0
        %5663 = vmatmul.mubr.bf16.gmra.mrb[0].mxu0 %v5510
        %v5664 = vpop.f32.mrb[0].mxu0
        %v5665 = vadd.f32 0.0, %v5664
        %v5666 = vpop.f32.mrb[0].mxu0
        %v5667 = vadd.f32 0.0, %v5666
        %v5668 = vpop.f32.mrb[0].mxu0
        %v5669 = vadd.f32 0.0, %v5668
        %v5670 = vpop.f32.mrb[0].mxu0
        %v5671 = vadd.f32 0.0, %v5670
        %5672 = vmatprep.mubr.bf16.mxu0 0
        %5673 = vmatmul.mubr.bf16.gmra.mrb[0].mxu0 %v5513
        %v5674 = vpop.f32.mrb[0].mxu0
        %v5675 = vadd.f32 0.0, %v5674
        %v5676 = vpop.f32.mrb[0].mxu0
        %v5677 = vadd.f32 0.0, %v5676
        %v5678 = vpop.f32.mrb[0].mxu0
        %v5679 = vadd.f32 0.0, %v5678
        %v5680 = vpop.f32.mrb[0].mxu0
        %v5681 = vadd.f32 0.0, %v5680
        %5682 = vmatprep.mubr.bf16.mxu0 0
        %5683 = vmatmul.mubr.bf16.gmra.mrb[0].mxu0 %v5516
        %v5684 = vpop.f32.mrb[0].mxu0
        %v5685 = vadd.f32 0.0, %v5684
        %v5686 = vpop.f32.mrb[0].mxu0
        %v5687 = vadd.f32 0.0, %v5686
        %v5688 = vpop.f32.mrb[0].mxu0
        %v5689 = vadd.f32 0.0, %v5688
        %v5690 = vpop.f32.mrb[0].mxu0
        %v5691 = vadd.f32 0.0, %v5690
        %5692 = vmatprep.mubr.bf16.mxu0 0
        %5693 = vmatmul.mubr.bf16.gmra.mrb[0].mxu0 %v5519
        %v5694 = vpop.f32.mrb[0].mxu0
        %v5695 = vadd.f32 0.0, %v5694
        %v5696 = vpop.f32.mrb[0].mxu0
        %v5697 = vadd.f32 0.0, %v5696
        %v5698 = vpop.f32.mrb[0].mxu0
        %v5699 = vadd.f32 0.0, %v5698
        %v5700 = vpop.f32.mrb[0].mxu0
        %v5701 = vadd.f32 0.0, %v5700
        %5702 = vmatprep.mubr.bf16.mxu0 0
        %5703 = vmatmul.mubr.bf16.gmra.mrb[0].mxu0 %v5522
        %v5704 = vpop.f32.mrb[0].mxu0
        %v5705 = vadd.f32 0.0, %v5704
        %v5706 = vpop.f32.mrb[0].mxu0
        %v5707 = vadd.f32 0.0, %v5706
        %v5708 = vpop.f32.mrb[0].mxu0
        %v5709 = vadd.f32 0.0, %v5708
        %v5710 = vpop.f32.mrb[0].mxu0
        %v5711 = vadd.f32 0.0, %v5710
        %5712 = vdwg.mxu0
        %v5713 = vsel %vm1182, %v5597, -inf
        %v5714 = vmax.f32 %v5595, %v5713
        %5715 = vmax.xlane.f32.xlu0 %v5714
        %v5716 = vpop.xlane.xlu0 %5715
        %v5717 = vsel %vm1182, %v5601, -inf
        %v5718 = vmax.f32 %v5599, %v5717
        %5719 = vmax.xlane.f32.xlu0 %v5718
        %v5720 = vpop.xlane.xlu0 %5719
        %v5721 = vsel %vm1182, %v5607, -inf
        %v5722 = vmax.f32 %v5605, %v5721
        %5723 = vmax.xlane.f32.xlu0 %v5722
        %v5724 = vpop.xlane.xlu0 %5723
        %v5725 = vsel %vm1182, %v5611, -inf
        %v5726 = vmax.f32 %v5609, %v5725
        %5727 = vmax.xlane.f32.xlu0 %v5726
        %v5728 = vpop.xlane.xlu0 %5727
        %v5729 = vsel %vm1182, %v5617, -inf
        %v5730 = vmax.f32 %v5615, %v5729
        %5731 = vmax.xlane.f32.xlu0 %v5730
        %v5732 = vpop.xlane.xlu0 %5731
        %v5733 = vsel %vm1182, %v5621, -inf
        %v5734 = vmax.f32 %v5619, %v5733
        %5735 = vmax.xlane.f32.xlu0 %v5734
        %v5736 = vpop.xlane.xlu0 %5735
        %v5737 = vsel %vm1182, %v5627, -inf
        %v5738 = vmax.f32 %v5625, %v5737
        %5739 = vmax.xlane.f32.xlu0 %v5738
        %v5740 = vpop.xlane.xlu0 %5739
        %v5741 = vsel %vm1182, %v5631, -inf
        %v5742 = vmax.f32 %v5629, %v5741
        %5743 = vmax.xlane.f32.xlu0 %v5742
        %v5744 = vpop.xlane.xlu0 %5743
        %v5745 = vsel %vm1182, %v5637, -inf
        %v5746 = vmax.f32 %v5635, %v5745
        %5747 = vmax.xlane.f32.xlu0 %v5746
        %v5748 = vpop.xlane.xlu0 %5747
        %v5749 = vsel %vm1182, %v5641, -inf
        %v5750 = vmax.f32 %v5639, %v5749
        %5751 = vmax.xlane.f32.xlu0 %v5750
        %v5752 = vpop.xlane.xlu0 %5751
        %v5753 = vsel %vm1182, %v5647, -inf
        %v5754 = vmax.f32 %v5645, %v5753
        %5755 = vmax.xlane.f32.xlu0 %v5754
        %v5756 = vpop.xlane.xlu0 %5755
        %v5757 = vsel %vm1182, %v5651, -inf
        %v5758 = vmax.f32 %v5649, %v5757
        %5759 = vmax.xlane.f32.xlu0 %v5758
        %v5760 = vpop.xlane.xlu0 %5759
        %v5761 = vsel %vm1182, %v5657, -inf
        %v5762 = vmax.f32 %v5655, %v5761
        %5763 = vmax.xlane.f32.xlu0 %v5762
        %v5764 = vpop.xlane.xlu0 %5763
        %v5765 = vsel %vm1182, %v5661, -inf
        %v5766 = vmax.f32 %v5659, %v5765
        %5767 = vmax.xlane.f32.xlu0 %v5766
        %v5768 = vpop.xlane.xlu0 %5767
        %v5769 = vsel %vm1182, %v5667, -inf
        %v5770 = vmax.f32 %v5665, %v5769
        %5771 = vmax.xlane.f32.xlu0 %v5770
        %v5772 = vpop.xlane.xlu0 %5771
        %v5773 = vsel %vm1182, %v5671, -inf
        %v5774 = vmax.f32 %v5669, %v5773
        %5775 = vmax.xlane.f32.xlu0 %v5774
        %v5776 = vpop.xlane.xlu0 %5775
        %v5777 = vsel %vm1182, %v5677, -inf
        %v5778 = vmax.f32 %v5675, %v5777
        %5779 = vmax.xlane.f32.xlu0 %v5778
        %v5780 = vpop.xlane.xlu0 %5779
        %v5781 = vsel %vm1182, %v5681, -inf
        %v5782 = vmax.f32 %v5679, %v5781
        %5783 = vmax.xlane.f32.xlu0 %v5782
        %v5784 = vpop.xlane.xlu0 %5783
        %v5785 = vsel %vm1182, %v5687, -inf
        %v5786 = vmax.f32 %v5685, %v5785
        %5787 = vmax.xlane.f32.xlu0 %v5786
        %v5788 = vpop.xlane.xlu0 %5787
        %v5789 = vsel %vm1182, %v5691, -inf
        %v5790 = vmax.f32 %v5689, %v5789
        %5791 = vmax.xlane.f32.xlu0 %v5790
        %v5792 = vpop.xlane.xlu0 %5791
        %v5793 = vsel %vm1182, %v5697, -inf
        %v5794 = vmax.f32 %v5695, %v5793
        %5795 = vmax.xlane.f32.xlu0 %v5794
        %v5796 = vpop.xlane.xlu0 %5795
        %v5797 = vsel %vm1182, %v5701, -inf
        %v5798 = vmax.f32 %v5699, %v5797
        %5799 = vmax.xlane.f32.xlu0 %v5798
        %v5800 = vpop.xlane.xlu0 %5799
        %v5801 = vsel %vm1182, %v5707, -inf
        %v5802 = vmax.f32 %v5705, %v5801
        %5803 = vmax.xlane.f32.xlu0 %v5802
        %v5804 = vpop.xlane.xlu0 %5803
        %v5805 = vsel %vm1182, %v5711, -inf
        %v5806 = vmax.f32 %v5709, %v5805
        %5807 = vmax.xlane.f32.xlu0 %v5806
        %v5808 = vpop.xlane.xlu0 %5807
        %v5809 = vsub.f32 %v5595, %v5716
        %v5810 = vsub.f32 %v5597, %v5716
        %v5811 = vsub.f32 %v5599, %v5720
        %v5812 = vsub.f32 %v5601, %v5720
        %v5813 = vsub.f32 %v5605, %v5724
        %v5814 = vsub.f32 %v5607, %v5724
        %v5815 = vsub.f32 %v5609, %v5728
        %v5816 = vsub.f32 %v5611, %v5728
        %v5817 = vsub.f32 %v5615, %v5732
        %v5818 = vsub.f32 %v5617, %v5732
        %v5819 = vsub.f32 %v5619, %v5736
        %v5820 = vsub.f32 %v5621, %v5736
        %v5821 = vsub.f32 %v5625, %v5740
        %v5822 = vsub.f32 %v5627, %v5740
        %v5823 = vsub.f32 %v5629, %v5744
        %v5824 = vsub.f32 %v5631, %v5744
        %v5825 = vsub.f32 %v5635, %v5748
        %v5826 = vsub.f32 %v5637, %v5748
        %v5827 = vsub.f32 %v5639, %v5752
        %v5828 = vsub.f32 %v5641, %v5752
        %v5829 = vsub.f32 %v5645, %v5756
        %v5830 = vsub.f32 %v5647, %v5756
        %v5831 = vsub.f32 %v5649, %v5760
        %v5832 = vsub.f32 %v5651, %v5760
        %v5833 = vsub.f32 %v5655, %v5764
        %v5834 = vsub.f32 %v5657, %v5764
        %v5835 = vsub.f32 %v5659, %v5768
        %v5836 = vsub.f32 %v5661, %v5768
        %v5837 = vsub.f32 %v5665, %v5772
        %v5838 = vsub.f32 %v5667, %v5772
        %v5839 = vsub.f32 %v5669, %v5776
        %v5840 = vsub.f32 %v5671, %v5776
        %v5841 = vsub.f32 %v5675, %v5780
        %v5842 = vsub.f32 %v5677, %v5780
        %v5843 = vsub.f32 %v5679, %v5784
        %v5844 = vsub.f32 %v5681, %v5784
        %v5845 = vsub.f32 %v5685, %v5788
        %v5846 = vsub.f32 %v5687, %v5788
        %v5847 = vsub.f32 %v5689, %v5792
        %v5848 = vsub.f32 %v5691, %v5792
        %v5849 = vsub.f32 %v5695, %v5796
        %v5850 = vsub.f32 %v5697, %v5796
        %v5851 = vsub.f32 %v5699, %v5800
        %v5852 = vsub.f32 %v5701, %v5800
        %v5853 = vsub.f32 %v5705, %v5804
        %v5854 = vsub.f32 %v5707, %v5804
        %v5855 = vsub.f32 %v5709, %v5808
        %v5856 = vsub.f32 %v5711, %v5808
        %v5857 = vmul.f32 %v5809, 1.442695
        %v5858 = vpow.pop %v5857
        %v5859 = vmul.f32 %v5810, 1.442695
        %v5860 = vpow.pop %v5859
        %v5861 = vmul.f32 %v5811, 1.442695
        %v5862 = vpow.pop %v5861
        %v5863 = vmul.f32 %v5812, 1.442695
        %v5864 = vpow.pop %v5863
        %v5865 = vmul.f32 %v5813, 1.442695
        %v5866 = vpow.pop %v5865
        %v5867 = vmul.f32 %v5814, 1.442695
        %v5868 = vpow.pop %v5867
        %v5869 = vmul.f32 %v5815, 1.442695
        %v5870 = vpow.pop %v5869
        %v5871 = vmul.f32 %v5816, 1.442695
        %v5872 = vpow.pop %v5871
        %v5873 = vmul.f32 %v5817, 1.442695
        %v5874 = vpow.pop %v5873
        %v5875 = vmul.f32 %v5818, 1.442695
        %v5876 = vpow.pop %v5875
        %v5877 = vmul.f32 %v5819, 1.442695
        %v5878 = vpow.pop %v5877
        %v5879 = vmul.f32 %v5820, 1.442695
        %v5880 = vpow.pop %v5879
        %v5881 = vmul.f32 %v5821, 1.442695
        %v5882 = vpow.pop %v5881
        %v5883 = vmul.f32 %v5822, 1.442695
        %v5884 = vpow.pop %v5883
        %v5885 = vmul.f32 %v5823, 1.442695
        %v5886 = vpow.pop %v5885
        %v5887 = vmul.f32 %v5824, 1.442695
        %v5888 = vpow.pop %v5887
        %v5889 = vmul.f32 %v5825, 1.442695
        %v5890 = vpow.pop %v5889
        %v5891 = vmul.f32 %v5826, 1.442695
        %v5892 = vpow.pop %v5891
        %v5893 = vmul.f32 %v5827, 1.442695
        %v5894 = vpow.pop %v5893
        %v5895 = vmul.f32 %v5828, 1.442695
        %v5896 = vpow.pop %v5895
        %v5897 = vmul.f32 %v5829, 1.442695
        %v5898 = vpow.pop %v5897
        %v5899 = vmul.f32 %v5830, 1.442695
        %v5900 = vpow.pop %v5899
        %v5901 = vmul.f32 %v5831, 1.442695
        %v5902 = vpow.pop %v5901
        %v5903 = vmul.f32 %v5832, 1.442695
        %v5904 = vpow.pop %v5903
        %v5905 = vmul.f32 %v5833, 1.442695
        %v5906 = vpow.pop %v5905
        %v5907 = vmul.f32 %v5834, 1.442695
        %v5908 = vpow.pop %v5907
        %v5909 = vmul.f32 %v5835, 1.442695
        %v5910 = vpow.pop %v5909
        %v5911 = vmul.f32 %v5836, 1.442695
        %v5912 = vpow.pop %v5911
        %v5913 = vmul.f32 %v5837, 1.442695
        %v5914 = vpow.pop %v5913
        %v5915 = vmul.f32 %v5838, 1.442695
        %v5916 = vpow.pop %v5915
        %v5917 = vmul.f32 %v5839, 1.442695
        %v5918 = vpow.pop %v5917
        %v5919 = vmul.f32 %v5840, 1.442695
        %v5920 = vpow.pop %v5919
        %v5921 = vmul.f32 %v5841, 1.442695
        %v5922 = vpow.pop %v5921
        %v5923 = vmul.f32 %v5842, 1.442695
        %v5924 = vpow.pop %v5923
        %v5925 = vmul.f32 %v5843, 1.442695
        %v5926 = vpow.pop %v5925
        %v5927 = vmul.f32 %v5844, 1.442695
        %v5928 = vpow.pop %v5927
        %v5929 = vmul.f32 %v5845, 1.442695
        %v5930 = vpow.pop %v5929
        %v5931 = vmul.f32 %v5846, 1.442695
        %v5932 = vpow.pop %v5931
        %v5933 = vmul.f32 %v5847, 1.442695
        %v5934 = vpow.pop %v5933
        %v5935 = vmul.f32 %v5848, 1.442695
        %v5936 = vpow.pop %v5935
        %v5937 = vmul.f32 %v5849, 1.442695
        %v5938 = vpow.pop %v5937
        %v5939 = vmul.f32 %v5850, 1.442695
        %v5940 = vpow.pop %v5939
        %v5941 = vmul.f32 %v5851, 1.442695
        %v5942 = vpow.pop %v5941
        %v5943 = vmul.f32 %v5852, 1.442695
        %v5944 = vpow.pop %v5943
        %v5945 = vmul.f32 %v5853, 1.442695
        %v5946 = vpow.pop %v5945
        %v5947 = vmul.f32 %v5854, 1.442695
        %v5948 = vpow.pop %v5947
        %v5949 = vmul.f32 %v5855, 1.442695
        %v5950 = vpow.pop %v5949
        %v5951 = vmul.f32 %v5856, 1.442695
        %v5952 = vpow.pop %v5951
        %v5953 = vsel %vm1182, %v5860, 0.0
        %v5954 = vadd.f32 %v5858, %v5953
        %5955 = vadd.xlane.f32.xlu0 %v5954
        %v5956 = vpop.xlane.xlu0 %5955
        %v5957 = vsel %vm1182, %v5864, 0.0
        %v5958 = vadd.f32 %v5862, %v5957
        %5959 = vadd.xlane.f32.xlu0 %v5958
        %v5960 = vpop.xlane.xlu0 %5959
        %v5961 = vsel %vm1182, %v5868, 0.0
        %v5962 = vadd.f32 %v5866, %v5961
        %5963 = vadd.xlane.f32.xlu0 %v5962
        %v5964 = vpop.xlane.xlu0 %5963
        %v5965 = vsel %vm1182, %v5872, 0.0
        %v5966 = vadd.f32 %v5870, %v5965
        %5967 = vadd.xlane.f32.xlu0 %v5966
        %v5968 = vpop.xlane.xlu0 %5967
        %v5969 = vsel %vm1182, %v5876, 0.0
        %v5970 = vadd.f32 %v5874, %v5969
        %5971 = vadd.xlane.f32.xlu0 %v5970
        %v5972 = vpop.xlane.xlu0 %5971
        %v5973 = vsel %vm1182, %v5880, 0.0
        %v5974 = vadd.f32 %v5878, %v5973
        %5975 = vadd.xlane.f32.xlu0 %v5974
        %v5976 = vpop.xlane.xlu0 %5975
        %v5977 = vsel %vm1182, %v5884, 0.0
        %v5978 = vadd.f32 %v5882, %v5977
        %5979 = vadd.xlane.f32.xlu0 %v5978
        %v5980 = vpop.xlane.xlu0 %5979
        %v5981 = vsel %vm1182, %v5888, 0.0
        %v5982 = vadd.f32 %v5886, %v5981
        %5983 = vadd.xlane.f32.xlu0 %v5982
        %v5984 = vpop.xlane.xlu0 %5983
        %v5985 = vsel %vm1182, %v5892, 0.0
        %v5986 = vadd.f32 %v5890, %v5985
        %5987 = vadd.xlane.f32.xlu0 %v5986
        %v5988 = vpop.xlane.xlu0 %5987
        %v5989 = vsel %vm1182, %v5896, 0.0
        %v5990 = vadd.f32 %v5894, %v5989
        %5991 = vadd.xlane.f32.xlu0 %v5990
        %v5992 = vpop.xlane.xlu0 %5991
        %v5993 = vsel %vm1182, %v5900, 0.0
        %v5994 = vadd.f32 %v5898, %v5993
        %5995 = vadd.xlane.f32.xlu0 %v5994
        %v5996 = vpop.xlane.xlu0 %5995
        %v5997 = vsel %vm1182, %v5904, 0.0
        %v5998 = vadd.f32 %v5902, %v5997
        %5999 = vadd.xlane.f32.xlu0 %v5998
        %v6000 = vpop.xlane.xlu0 %5999
        %v6001 = vsel %vm1182, %v5908, 0.0
        %v6002 = vadd.f32 %v5906, %v6001
        %6003 = vadd.xlane.f32.xlu0 %v6002
        %v6004 = vpop.xlane.xlu0 %6003
        %v6005 = vsel %vm1182, %v5912, 0.0
        %v6006 = vadd.f32 %v5910, %v6005
        %6007 = vadd.xlane.f32.xlu0 %v6006
        %v6008 = vpop.xlane.xlu0 %6007
        %v6009 = vsel %vm1182, %v5916, 0.0
        %v6010 = vadd.f32 %v5914, %v6009
        %6011 = vadd.xlane.f32.xlu0 %v6010
        %v6012 = vpop.xlane.xlu0 %6011
        %v6013 = vsel %vm1182, %v5920, 0.0
        %v6014 = vadd.f32 %v5918, %v6013
        %6015 = vadd.xlane.f32.xlu0 %v6014
        %v6016 = vpop.xlane.xlu0 %6015
        %v6017 = vsel %vm1182, %v5924, 0.0
        %v6018 = vadd.f32 %v5922, %v6017
        %6019 = vadd.xlane.f32.xlu0 %v6018
        %v6020 = vpop.xlane.xlu0 %6019
        %v6021 = vsel %vm1182, %v5928, 0.0
        %v6022 = vadd.f32 %v5926, %v6021
        %6023 = vadd.xlane.f32.xlu0 %v6022
        %v6024 = vpop.xlane.xlu0 %6023
        %v6025 = vsel %vm1182, %v5932, 0.0
        %v6026 = vadd.f32 %v5930, %v6025
        %6027 = vadd.xlane.f32.xlu0 %v6026
        %v6028 = vpop.xlane.xlu0 %6027
        %v6029 = vsel %vm1182, %v5936, 0.0
        %v6030 = vadd.f32 %v5934, %v6029
        %6031 = vadd.xlane.f32.xlu0 %v6030
        %v6032 = vpop.xlane.xlu0 %6031
        %v6033 = vsel %vm1182, %v5940, 0.0
        %v6034 = vadd.f32 %v5938, %v6033
        %6035 = vadd.xlane.f32.xlu0 %v6034
        %v6036 = vpop.xlane.xlu0 %6035
        %v6037 = vsel %vm1182, %v5944, 0.0
        %v6038 = vadd.f32 %v5942, %v6037
        %6039 = vadd.xlane.f32.xlu0 %v6038
        %v6040 = vpop.xlane.xlu0 %6039
        %v6041 = vsel %vm1182, %v5948, 0.0
        %v6042 = vadd.f32 %v5946, %v6041
        %6043 = vadd.xlane.f32.xlu0 %v6042
        %v6044 = vpop.xlane.xlu0 %6043
        %v6045 = vsel %vm1182, %v5952, 0.0
        %v6046 = vadd.f32 %v5950, %v6045
        %6047 = vadd.xlane.f32.xlu0 %v6046
        %v6048 = vpop.xlane.xlu0 %6047
        %v6049 = vrcp.pop %v5956
        %v6050 = vrcp.pop %v5960
        %v6051 = vrcp.pop %v5964
        %v6052 = vrcp.pop %v5968
        %v6053 = vrcp.pop %v5972
        %v6054 = vrcp.pop %v5976
        %v6055 = vrcp.pop %v5980
        %v6056 = vrcp.pop %v5984
        %v6057 = vrcp.pop %v5988
        %v6058 = vrcp.pop %v5992
        %v6059 = vrcp.pop %v5996
        %v6060 = vrcp.pop %v6000
        %v6061 = vrcp.pop %v6004
        %v6062 = vrcp.pop %v6008
        %v6063 = vrcp.pop %v6012
        %v6064 = vrcp.pop %v6016
        %v6065 = vrcp.pop %v6020
        %v6066 = vrcp.pop %v6024
        %v6067 = vrcp.pop %v6028
        %v6068 = vrcp.pop %v6032
        %v6069 = vrcp.pop %v6036
        %v6070 = vrcp.pop %v6040
        %v6071 = vrcp.pop %v6044
        %v6072 = vrcp.pop %v6048
        %v6073 = vmul.f32 %v5858, %v6049
        %v6074 = vmul.f32 %v5860, %v6049
        %v6075 = vmul.f32 %v5862, %v6050
        %v6076 = vmul.f32 %v5864, %v6050
        %v6077 = vmul.f32 %v5866, %v6051
        %v6078 = vmul.f32 %v5868, %v6051
        %v6079 = vmul.f32 %v5870, %v6052
        %v6080 = vmul.f32 %v5872, %v6052
        %v6081 = vmul.f32 %v5874, %v6053
        %v6082 = vmul.f32 %v5876, %v6053
        %v6083 = vmul.f32 %v5878, %v6054
        %v6084 = vmul.f32 %v5880, %v6054
        %v6085 = vmul.f32 %v5882, %v6055
        %v6086 = vmul.f32 %v5884, %v6055
        %v6087 = vmul.f32 %v5886, %v6056
        %v6088 = vmul.f32 %v5888, %v6056
        %v6089 = vmul.f32 %v5890, %v6057
        %v6090 = vmul.f32 %v5892, %v6057
        %v6091 = vmul.f32 %v5894, %v6058
        %v6092 = vmul.f32 %v5896, %v6058
        %v6093 = vmul.f32 %v5898, %v6059
        %v6094 = vmul.f32 %v5900, %v6059
        %v6095 = vmul.f32 %v5902, %v6060
        %v6096 = vmul.f32 %v5904, %v6060
        %v6097 = vmul.f32 %v5906, %v6061
        %v6098 = vmul.f32 %v5908, %v6061
        %v6099 = vmul.f32 %v5910, %v6062
        %v6100 = vmul.f32 %v5912, %v6062
        %v6101 = vmul.f32 %v5914, %v6063
        %v6102 = vmul.f32 %v5916, %v6063
        %v6103 = vmul.f32 %v5918, %v6064
        %v6104 = vmul.f32 %v5920, %v6064
        %v6105 = vmul.f32 %v5922, %v6065
        %v6106 = vmul.f32 %v5924, %v6065
        %v6107 = vmul.f32 %v5926, %v6066
        %v6108 = vmul.f32 %v5928, %v6066
        %v6109 = vmul.f32 %v5930, %v6067
        %v6110 = vmul.f32 %v5932, %v6067
        %v6111 = vmul.f32 %v5934, %v6068
        %v6112 = vmul.f32 %v5936, %v6068
        %v6113 = vmul.f32 %v5938, %v6069
        %v6114 = vmul.f32 %v5940, %v6069
        %v6115 = vmul.f32 %v5942, %v6070
        %v6116 = vmul.f32 %v5944, %v6070
        %v6117 = vmul.f32 %v5946, %v6071
        %v6118 = vmul.f32 %v5948, %v6071
        %v6119 = vmul.f32 %v5950, %v6072
        %v6120 = vmul.f32 %v5952, %v6072
        %v6121 = vpack.c.bf16 %v6075, %v6073
        %v6122 = vpack.c.bf16 %v6076, %v6074
        %v6123 = vpack.c.bf16 %v6079, %v6077
        %v6124 = vpack.c.bf16 %v6080, %v6078
        %v6125 = vpack.c.bf16 %v6083, %v6081
        %v6126 = vpack.c.bf16 %v6084, %v6082
        %v6127 = vpack.c.bf16 %v6087, %v6085
        %v6128 = vpack.c.bf16 %v6088, %v6086
        %v6129 = vpack.c.bf16 %v6091, %v6089
        %v6130 = vpack.c.bf16 %v6092, %v6090
        %v6131 = vpack.c.bf16 %v6095, %v6093
        %v6132 = vpack.c.bf16 %v6096, %v6094
        %v6133 = vpack.c.bf16 %v6099, %v6097
        %v6134 = vpack.c.bf16 %v6100, %v6098
        %v6135 = vpack.c.bf16 %v6103, %v6101
        %v6136 = vpack.c.bf16 %v6104, %v6102
        %v6137 = vpack.c.bf16 %v6107, %v6105
        %v6138 = vpack.c.bf16 %v6108, %v6106
        %v6139 = vpack.c.bf16 %v6111, %v6109
        %v6140 = vpack.c.bf16 %v6112, %v6110
        %v6141 = vpack.c.bf16 %v6115, %v6113
        %v6142 = vpack.c.bf16 %v6116, %v6114
        %v6143 = vpack.c.bf16 %v6119, %v6117
        %v6144 = vpack.c.bf16 %v6120, %v6118
        %v6145 = vpack.c.bf16 %v5373, %v5370
        %v6146 = vpack.c.bf16 %v5381, %v5378
        %v6147 = vpack.c.bf16 %v5389, %v5386
        %v6148 = vpack.c.bf16 %v5397, %v5394
        %v6149 = vpack.c.bf16 %v5405, %v5402
        %v6150 = vpack.c.bf16 %v5413, %v5410
        %v6151 = vpack.c.bf16 %v5421, %v5418
        %v6152 = vpack.c.bf16 %v5429, %v5426
        %v6153 = vpack.c.bf16 %v5437, %v5434
        %v6154 = vpack.c.bf16 %v5445, %v5442
        %v6155 = vpack.c.bf16 %v5453, %v5450
        %v6156 = vpack.c.bf16 %v5461, %v5458
        %v6158 = vsel %vm1182, %v6122, 0
        %v6161 = vsel %vm1182, %v6124, 0
        %v6164 = vsel %vm1182, %v6126, 0
        %v6167 = vsel %vm1182, %v6128, 0
        %v6170 = vsel %vm1182, %v6130, 0
        %v6173 = vsel %vm1182, %v6132, 0
        %v6176 = vsel %vm1182, %v6134, 0
        %v6179 = vsel %vm1182, %v6136, 0
        %v6182 = vsel %vm1182, %v6138, 0
        %v6185 = vsel %vm1182, %v6140, 0
        %v6188 = vsel %vm1182, %v6142, 0
        %v6191 = vsel %vm1182, %v6144, 0
        %6193 = vmatprep.subr.bf16.mxu0 0
        %6194 = vmatpush1.bf16.msra.mxu0 %v6145
        %6195 = vmatprep.subr.bf16.mxu0 0
        %6196 = vmatpush1.bf16.msra.mxu0 %v6146
        %6197 = vmatprep.subr.bf16.mxu0 0
        %6198 = vmatpush1.bf16.msra.mxu0 %v6147
        %6199 = vmatprep.subr.bf16.mxu0 0
        %6200 = vmatpush1.bf16.msra.mxu0 %v6148
        %6201 = vmatprep.subr.bf16.mxu0 0
        %6202 = vmatpush1.bf16.msra.mxu0 %v6149
        %6203 = vmatprep.subr.bf16.mxu0 0
        %6204 = vmatpush1.bf16.msra.mxu0 %v6150
        %6205 = vmatprep.subr.bf16.mxu0 0
        %6206 = vmatpush1.bf16.msra.mxu0 %v6151
        %6207 = vmatprep.subr.bf16.mxu0 0
        %6208 = vmatpush1.bf16.msra.mxu0 %v6152
        %6209 = vmatprep.subr.bf16.mxu0 0
        %6210 = vmatpush1.bf16.msra.mxu0 %v6153
        %6211 = vmatprep.subr.bf16.mxu0 0
        %6212 = vmatpush1.bf16.msra.mxu0 %v6154
        %6213 = vmatprep.subr.bf16.mxu0 0
        %6214 = vmatpush1.bf16.msra.mxu0 %v6155
        %6215 = vmatprep.subr.bf16.mxu0 0
        %6216 = vmatpush1.bf16.msra.mxu0 %v6156
        %6217 = vmatprep.subr.bf16.mxu0 0
        %6218 = vmatpush1.bf16.msra.mxu0 0
        %6219 = vmatprep.subr.bf16.mxu0 0
        %6220 = vmatpush1.bf16.msra.mxu0 0
        %6221 = vmatprep.subr.bf16.mxu0 0
        %6222 = vmatpush1.bf16.msra.mxu0 0
        %6223 = vmatprep.subr.bf16.mxu0 0
        %6224 = vmatpush1.bf16.msra.mxu0 0
        %6225 = vmatprep.mubr.bf16.mxu0 %v6158
        %6226 = vmatmul.mubr.bf16.gmra.mrb[0].mxu0 %v6121
        %v6227 = vpop.f32.mrb[0].mxu0
        %v6228 = vadd.f32 0.0, %v6227
        %v6229 = vpop.f32.mrb[0].mxu0
        %v6230 = vpop.f32.mrb[0].mxu0
        %v6231 = vadd.f32 0.0, %v6230
        %v6232 = vpop.f32.mrb[0].mxu0
        %6233 = vmatprep.mubr.bf16.mxu0 %v6161
        %6234 = vmatmul.mubr.bf16.gmra.mrb[0].mxu0 %v6123
        %v6235 = vpop.f32.mrb[0].mxu0
        %v6236 = vadd.f32 0.0, %v6235
        %v6237 = vpop.f32.mrb[0].mxu0
        %v6238 = vpop.f32.mrb[0].mxu0
        %v6239 = vadd.f32 0.0, %v6238
        %v6240 = vpop.f32.mrb[0].mxu0
        %6241 = vmatprep.mubr.bf16.mxu0 %v6164
        %6242 = vmatmul.mubr.bf16.gmra.mrb[0].mxu0 %v6125
        %v6243 = vpop.f32.mrb[0].mxu0
        %v6244 = vadd.f32 0.0, %v6243
        %v6245 = vpop.f32.mrb[0].mxu0
        %v6246 = vpop.f32.mrb[0].mxu0
        %v6247 = vadd.f32 0.0, %v6246
        %v6248 = vpop.f32.mrb[0].mxu0
        %6249 = vmatprep.mubr.bf16.mxu0 %v6167
        %6250 = vmatmul.mubr.bf16.gmra.mrb[0].mxu0 %v6127
        %v6251 = vpop.f32.mrb[0].mxu0
        %v6252 = vadd.f32 0.0, %v6251
        %v6253 = vpop.f32.mrb[0].mxu0
        %v6254 = vpop.f32.mrb[0].mxu0
        %v6255 = vadd.f32 0.0, %v6254
        %v6256 = vpop.f32.mrb[0].mxu0
        %6257 = vmatprep.mubr.bf16.mxu0 %v6170
        %6258 = vmatmul.mubr.bf16.gmra.mrb[0].mxu0 %v6129
        %v6259 = vpop.f32.mrb[0].mxu0
        %v6260 = vadd.f32 0.0, %v6259
        %v6261 = vpop.f32.mrb[0].mxu0
        %v6262 = vpop.f32.mrb[0].mxu0
        %v6263 = vadd.f32 0.0, %v6262
        %v6264 = vpop.f32.mrb[0].mxu0
        %6265 = vmatprep.mubr.bf16.mxu0 %v6173
        %6266 = vmatmul.mubr.bf16.gmra.mrb[0].mxu0 %v6131
        %v6267 = vpop.f32.mrb[0].mxu0
        %v6268 = vadd.f32 0.0, %v6267
        %v6269 = vpop.f32.mrb[0].mxu0
        %v6270 = vpop.f32.mrb[0].mxu0
        %v6271 = vadd.f32 0.0, %v6270
        %v6272 = vpop.f32.mrb[0].mxu0
        %6273 = vmatprep.mubr.bf16.mxu0 %v6176
        %6274 = vmatmul.mubr.bf16.gmra.mrb[0].mxu0 %v6133
        %v6275 = vpop.f32.mrb[0].mxu0
        %v6276 = vadd.f32 0.0, %v6275
        %v6277 = vpop.f32.mrb[0].mxu0
        %v6278 = vpop.f32.mrb[0].mxu0
        %v6279 = vadd.f32 0.0, %v6278
        %v6280 = vpop.f32.mrb[0].mxu0
        %6281 = vmatprep.mubr.bf16.mxu0 %v6179
        %6282 = vmatmul.mubr.bf16.gmra.mrb[0].mxu0 %v6135
        %v6283 = vpop.f32.mrb[0].mxu0
        %v6284 = vadd.f32 0.0, %v6283
        %v6285 = vpop.f32.mrb[0].mxu0
        %v6286 = vpop.f32.mrb[0].mxu0
        %v6287 = vadd.f32 0.0, %v6286
        %v6288 = vpop.f32.mrb[0].mxu0
        %6289 = vmatprep.mubr.bf16.mxu0 %v6182
        %6290 = vmatmul.mubr.bf16.gmra.mrb[0].mxu0 %v6137
        %v6291 = vpop.f32.mrb[0].mxu0
        %v6292 = vadd.f32 0.0, %v6291
        %v6293 = vpop.f32.mrb[0].mxu0
        %v6294 = vpop.f32.mrb[0].mxu0
        %v6295 = vadd.f32 0.0, %v6294
        %v6296 = vpop.f32.mrb[0].mxu0
        %6297 = vmatprep.mubr.bf16.mxu0 %v6185
        %6298 = vmatmul.mubr.bf16.gmra.mrb[0].mxu0 %v6139
        %v6299 = vpop.f32.mrb[0].mxu0
        %v6300 = vadd.f32 0.0, %v6299
        %v6301 = vpop.f32.mrb[0].mxu0
        %v6302 = vpop.f32.mrb[0].mxu0
        %v6303 = vadd.f32 0.0, %v6302
        %v6304 = vpop.f32.mrb[0].mxu0
        %6305 = vmatprep.mubr.bf16.mxu0 %v6188
        %6306 = vmatmul.mubr.bf16.gmra.mrb[0].mxu0 %v6141
        %v6307 = vpop.f32.mrb[0].mxu0
        %v6308 = vadd.f32 0.0, %v6307
        %v6309 = vpop.f32.mrb[0].mxu0
        %v6310 = vpop.f32.mrb[0].mxu0
        %v6311 = vadd.f32 0.0, %v6310
        %v6312 = vpop.f32.mrb[0].mxu0
        %6313 = vmatprep.mubr.bf16.mxu0 %v6191
        %6314 = vmatmul.mubr.bf16.gmra.mrb[0].mxu0 %v6143
        %v6315 = vpop.f32.mrb[0].mxu0
        %v6316 = vadd.f32 0.0, %v6315
        %v6317 = vpop.f32.mrb[0].mxu0
        %v6318 = vpop.f32.mrb[0].mxu0
        %v6319 = vadd.f32 0.0, %v6318
        %v6320 = vpop.f32.mrb[0].mxu0
        %6321 = vdwg.mxu0
        %v6322 = vpack.c.bf16 %v6231, %v6228
        %v6323 = vpack.c.bf16 %v6239, %v6236
        %v6324 = vpack.c.bf16 %v6247, %v6244
        %v6325 = vpack.c.bf16 %v6255, %v6252
        %v6326 = vpack.c.bf16 %v6263, %v6260
        %v6327 = vpack.c.bf16 %v6271, %v6268
        %v6328 = vpack.c.bf16 %v6279, %v6276
        %v6329 = vpack.c.bf16 %v6287, %v6284
        %v6330 = vpack.c.bf16 %v6295, %v6292
        %v6331 = vpack.c.bf16 %v6303, %v6300
        %v6332 = vpack.c.bf16 %v6311, %v6308
        %v6333 = vpack.c.bf16 %v6319, %v6316
        %s6334 = scalar_lea.vmem %s3, 12
        %v6335 = vld [vmem:[%s6334] sm:$0xf]
        %v6337 = vsel %vm956, %v6322, 0
        %v6340 = vsel %vm956, %v6323, 0
        %v6343 = vsel %vm956, %v6324, 0
        %v6346 = vsel %vm956, %v6325, 0
        %v6349 = vsel %vm956, %v6326, 0
        %v6352 = vsel %vm956, %v6327, 0
        %v6355 = vsel %vm956, %v6328, 0
        %v6358 = vsel %vm956, %v6329, 0
        %v6361 = vsel %vm956, %v6330, 0
        %v6364 = vsel %vm956, %v6331, 0
        %v6367 = vsel %vm956, %v6332, 0
        %v6370 = vsel %vm956, %v6333, 0
        %v6373 = vsel %vm3175, %v6335, 0
        %6375 = vmatprep.subr.bf16.mxu0 0
        %6376 = vmatpush1.bf16.msra.mxu0 %v6373
        %6377 = vmatprep.subr.bf16.mxu0 0
        %6378 = vmatpush1.bf16.msra.mxu0 0
        %6379 = vmatprep.subr.bf16.mxu0 0
        %6380 = vmatpush1.bf16.msra.mxu0 0
        %6381 = vmatprep.subr.bf16.mxu0 0
        %6382 = vmatpush1.bf16.msra.mxu0 0
        %6383 = vmatprep.subr.bf16.mxu0 0
        %6384 = vmatpush1.bf16.msra.mxu0 0
        %6385 = vmatprep.subr.bf16.mxu0 0
        %6386 = vmatpush1.bf16.msra.mxu0 0
        %6387 = vmatprep.subr.bf16.mxu0 0
        %6388 = vmatpush1.bf16.msra.mxu0 0
        %6389 = vmatprep.subr.bf16.mxu0 0
        %6390 = vmatpush1.bf16.msra.mxu0 0
        %6391 = vmatprep.subr.bf16.mxu0 0
        %6392 = vmatpush1.bf16.msra.mxu0 0
        %6393 = vmatprep.subr.bf16.mxu0 0
        %6394 = vmatpush1.bf16.msra.mxu0 0
        %6395 = vmatprep.subr.bf16.mxu0 0
        %6396 = vmatpush1.bf16.msra.mxu0 0
        %6397 = vmatprep.subr.bf16.mxu0 0
        %6398 = vmatpush1.bf16.msra.mxu0 0
        %6399 = vmatprep.subr.bf16.mxu0 0
        %6400 = vmatpush1.bf16.msra.mxu0 0
        %6401 = vmatprep.subr.bf16.mxu0 0
        %6402 = vmatpush1.bf16.msra.mxu0 0
        %6403 = vmatprep.subr.bf16.mxu0 0
        %6404 = vmatpush1.bf16.msra.mxu0 0
        %6405 = vmatprep.subr.bf16.mxu0 0
        %6406 = vmatpush1.bf16.msra.mxu0 0
        %6407 = vmatprep.mubr.bf16.mxu0 0
        %6408 = vmatmul.mubr.bf16.gmra.mrb[0].mxu0 %v6337
        %v6409 = vpop.f32.mrb[0].mxu0
        %v6410 = vadd.f32 0.0, %v6409
        %v6411 = vpop.f32.mrb[0].mxu0
        %v6412 = vpop.f32.mrb[0].mxu0
        %v6413 = vadd.f32 0.0, %v6412
        %v6414 = vpop.f32.mrb[0].mxu0
        %6415 = vmatprep.mubr.bf16.mxu0 0
        %6416 = vmatmul.mubr.bf16.gmra.mrb[0].mxu0 %v6340
        %v6417 = vpop.f32.mrb[0].mxu0
        %v6418 = vadd.f32 0.0, %v6417
        %v6419 = vpop.f32.mrb[0].mxu0
        %v6420 = vpop.f32.mrb[0].mxu0
        %v6421 = vadd.f32 0.0, %v6420
        %v6422 = vpop.f32.mrb[0].mxu0
        %6423 = vmatprep.mubr.bf16.mxu0 0
        %6424 = vmatmul.mubr.bf16.gmra.mrb[0].mxu0 %v6343
        %v6425 = vpop.f32.mrb[0].mxu0
        %v6426 = vadd.f32 0.0, %v6425
        %v6427 = vpop.f32.mrb[0].mxu0
        %v6428 = vpop.f32.mrb[0].mxu0
        %v6429 = vadd.f32 0.0, %v6428
        %v6430 = vpop.f32.mrb[0].mxu0
        %6431 = vmatprep.mubr.bf16.mxu0 0
        %6432 = vmatmul.mubr.bf16.gmra.mrb[0].mxu0 %v6346
        %v6433 = vpop.f32.mrb[0].mxu0
        %v6434 = vadd.f32 0.0, %v6433
        %v6435 = vpop.f32.mrb[0].mxu0
        %v6436 = vpop.f32.mrb[0].mxu0
        %v6437 = vadd.f32 0.0, %v6436
        %v6438 = vpop.f32.mrb[0].mxu0
        %6439 = vmatprep.mubr.bf16.mxu0 0
        %6440 = vmatmul.mubr.bf16.gmra.mrb[0].mxu0 %v6349
        %v6441 = vpop.f32.mrb[0].mxu0
        %v6442 = vadd.f32 0.0, %v6441
        %v6443 = vpop.f32.mrb[0].mxu0
        %v6444 = vpop.f32.mrb[0].mxu0
        %v6445 = vadd.f32 0.0, %v6444
        %v6446 = vpop.f32.mrb[0].mxu0
        %6447 = vmatprep.mubr.bf16.mxu0 0
        %6448 = vmatmul.mubr.bf16.gmra.mrb[0].mxu0 %v6352
        %v6449 = vpop.f32.mrb[0].mxu0
        %v6450 = vadd.f32 0.0, %v6449
        %v6451 = vpop.f32.mrb[0].mxu0
        %v6452 = vpop.f32.mrb[0].mxu0
        %v6453 = vadd.f32 0.0, %v6452
        %v6454 = vpop.f32.mrb[0].mxu0
        %6455 = vmatprep.mubr.bf16.mxu0 0
        %6456 = vmatmul.mubr.bf16.gmra.mrb[0].mxu0 %v6355
        %v6457 = vpop.f32.mrb[0].mxu0
        %v6458 = vadd.f32 0.0, %v6457
        %v6459 = vpop.f32.mrb[0].mxu0
        %v6460 = vpop.f32.mrb[0].mxu0
        %v6461 = vadd.f32 0.0, %v6460
        %v6462 = vpop.f32.mrb[0].mxu0
        %6463 = vmatprep.mubr.bf16.mxu0 0
        %6464 = vmatmul.mubr.bf16.gmra.mrb[0].mxu0 %v6358
        %v6465 = vpop.f32.mrb[0].mxu0
        %v6466 = vadd.f32 0.0, %v6465
        %v6467 = vpop.f32.mrb[0].mxu0
        %v6468 = vpop.f32.mrb[0].mxu0
        %v6469 = vadd.f32 0.0, %v6468
        %v6470 = vpop.f32.mrb[0].mxu0
        %6471 = vmatprep.mubr.bf16.mxu0 0
        %6472 = vmatmul.mubr.bf16.gmra.mrb[0].mxu0 %v6361
        %v6473 = vpop.f32.mrb[0].mxu0
        %v6474 = vadd.f32 0.0, %v6473
        %v6475 = vpop.f32.mrb[0].mxu0
        %v6476 = vpop.f32.mrb[0].mxu0
        %v6477 = vadd.f32 0.0, %v6476
        %v6478 = vpop.f32.mrb[0].mxu0
        %6479 = vmatprep.mubr.bf16.mxu0 0
        %6480 = vmatmul.mubr.bf16.gmra.mrb[0].mxu0 %v6364
        %v6481 = vpop.f32.mrb[0].mxu0
        %v6482 = vadd.f32 0.0, %v6481
        %v6483 = vpop.f32.mrb[0].mxu0
        %v6484 = vpop.f32.mrb[0].mxu0
        %v6485 = vadd.f32 0.0, %v6484
        %v6486 = vpop.f32.mrb[0].mxu0
        %6487 = vmatprep.mubr.bf16.mxu0 0
        %6488 = vmatmul.mubr.bf16.gmra.mrb[0].mxu0 %v6367
        %v6489 = vpop.f32.mrb[0].mxu0
        %v6490 = vadd.f32 0.0, %v6489
        %v6491 = vpop.f32.mrb[0].mxu0
        %v6492 = vpop.f32.mrb[0].mxu0
        %v6493 = vadd.f32 0.0, %v6492
        %v6494 = vpop.f32.mrb[0].mxu0
        %6495 = vmatprep.mubr.bf16.mxu0 0
        %6496 = vmatmul.mubr.bf16.gmra.mrb[0].mxu0 %v6370
        %v6497 = vpop.f32.mrb[0].mxu0
        %v6498 = vadd.f32 0.0, %v6497
        %v6499 = vpop.f32.mrb[0].mxu0
        %v6500 = vpop.f32.mrb[0].mxu0
        %v6501 = vadd.f32 0.0, %v6500
        %v6502 = vpop.f32.mrb[0].mxu0
        %6503 = vdwg.mxu0
        %v6504 = vadd.f32 %v4978, %v6410
        %v6505 = vadd.f32 %v4979, %v6413
        %v6506 = vadd.f32 %v4980, %v6418
        %v6507 = vadd.f32 %v4981, %v6421
        %v6508 = vadd.f32 %v4982, %v6426
        %v6509 = vadd.f32 %v4983, %v6429
        %v6510 = vadd.f32 %v4984, %v6434
        %v6511 = vadd.f32 %v4985, %v6437
        %v6512 = vadd.f32 %v4986, %v6442
        %v6513 = vadd.f32 %v4987, %v6445
        %v6514 = vadd.f32 %v4988, %v6450
        %v6515 = vadd.f32 %v4989, %v6453
        %v6516 = vadd.f32 %v4990, %v6458
        %v6517 = vadd.f32 %v4991, %v6461
        %v6518 = vadd.f32 %v4992, %v6466
        %v6519 = vadd.f32 %v4993, %v6469
        %v6520 = vadd.f32 %v4994, %v6474
        %v6521 = vadd.f32 %v4995, %v6477
        %v6522 = vadd.f32 %v4996, %v6482
        %v6523 = vadd.f32 %v4997, %v6485
        %v6524 = vadd.f32 %v4998, %v6490
        %v6525 = vadd.f32 %v4999, %v6493
        %v6526 = vadd.f32 %v5000, %v6498
        %v6527 = vadd.f32 %v5001, %v6501
        %v6528 = vld [vmem:[%s4] sm:$0x1]
        %v6530 = vlaneseq
        %v6531 = vshrl.u32 %v6530, 7
        %v6532 = vsub.s32 0, %v6531
        %v6533 = vrot.slane %v6528, %v6532
        %v6535 = vadd.f32 %v6504, %v6533
        %v6536 = vadd.f32 %v6505, %v6533
        %v6537 = vadd.f32 %v6506, %v6533
        %v6538 = vadd.f32 %v6507, %v6533
        %v6539 = vadd.f32 %v6508, %v6533
        %v6540 = vadd.f32 %v6509, %v6533
        %v6541 = vadd.f32 %v6510, %v6533
        %v6542 = vadd.f32 %v6511, %v6533
        %v6543 = vadd.f32 %v6512, %v6533
        %v6544 = vadd.f32 %v6513, %v6533
        %v6545 = vadd.f32 %v6514, %v6533
        %v6546 = vadd.f32 %v6515, %v6533
        %v6547 = vadd.f32 %v6516, %v6533
        %v6548 = vadd.f32 %v6517, %v6533
        %v6549 = vadd.f32 %v6518, %v6533
        %v6550 = vadd.f32 %v6519, %v6533
        %v6551 = vadd.f32 %v6520, %v6533
        %v6552 = vadd.f32 %v6521, %v6533
        %v6553 = vadd.f32 %v6522, %v6533
        %v6554 = vadd.f32 %v6523, %v6533
        %v6555 = vadd.f32 %v6524, %v6533
        %v6556 = vadd.f32 %v6525, %v6533
        %v6557 = vadd.f32 %v6526, %v6533
        %v6558 = vadd.f32 %v6527, %v6533
        %v6559 = vld [vmem:[%s5] sm:$0xf]
        %v6560 = vld [vmem:[%s5 + $0x4] sm:$0xf]
        %v6561 = vld [vmem:[%s5 + $0x8] sm:$0xf]
        %v6562 = vld [vmem:[%s5 + $0xc] sm:$0xf]
        %v6563 = vpack.c.bf16 %v6536, %v6535
        %v6564 = vpack.c.bf16 %v6538, %v6537
        %v6565 = vpack.c.bf16 %v6540, %v6539
        %v6566 = vpack.c.bf16 %v6542, %v6541
        %v6567 = vpack.c.bf16 %v6544, %v6543
        %v6568 = vpack.c.bf16 %v6546, %v6545
        %v6569 = vpack.c.bf16 %v6548, %v6547
        %v6570 = vpack.c.bf16 %v6550, %v6549
        %v6571 = vpack.c.bf16 %v6552, %v6551
        %v6572 = vpack.c.bf16 %v6554, %v6553
        %v6573 = vpack.c.bf16 %v6556, %v6555
        %v6574 = vpack.c.bf16 %v6558, %v6557
        %v6575 = vld [vmem:[%s5 + $0x10] sm:$0xf]
        %v6576 = vld [vmem:[%s5 + $0x14] sm:$0xf]
        %v6577 = vld [vmem:[%s5 + $0x18] sm:$0xf]
        %v6578 = vld [vmem:[%s5 + $0x1c] sm:$0xf]
        %v6583 = vunpack.c.l.b16 %v6575
        %v6584 = vunpack.c.l.b16 %v6576
        %v6585 = vunpack.c.l.b16 %v6577
        %v6586 = vunpack.c.l.b16 %v6578
        %v6587 = vpack.c.b16 %v6584, %v6583
        %v6588 = vpack.c.b16 %v6586, %v6585
        %v6592 = vsel %vm458, %v6563, 0
        %v6595 = vsel %vm458, %v6564, 0
        %v6598 = vsel %vm458, %v6565, 0
        %v6601 = vsel %vm458, %v6566, 0
        %v6604 = vsel %vm458, %v6567, 0
        %v6607 = vsel %vm458, %v6568, 0
        %v6610 = vsel %vm458, %v6569, 0
        %v6613 = vsel %vm458, %v6570, 0
        %v6616 = vsel %vm458, %v6571, 0
        %v6619 = vsel %vm458, %v6572, 0
        %v6622 = vsel %vm458, %v6573, 0
        %v6625 = vsel %vm458, %v6574, 0
        %6627 = vmatprep.subr.bf16.mxu0 0
        %6628 = vmatpush1.bf16.msra.mxu0 %v6587
        %6629 = vmatprep.subr.bf16.mxu0 0
        %6630 = vmatpush1.bf16.msra.mxu0 %v6588
        %6631 = vmatprep.subr.bf16.mxu0 0
        %6632 = vmatpush1.bf16.msra.mxu0 0
        %6633 = vmatprep.subr.bf16.mxu0 0
        %6634 = vmatpush1.bf16.msra.mxu0 0
        %6635 = vmatprep.subr.bf16.mxu0 0
        %6636 = vmatpush1.bf16.msra.mxu0 0
        %6637 = vmatprep.subr.bf16.mxu0 0
        %6638 = vmatpush1.bf16.msra.mxu0 0
        %6639 = vmatprep.subr.bf16.mxu0 0
        %6640 = vmatpush1.bf16.msra.mxu0 0
        %6641 = vmatprep.subr.bf16.mxu0 0
        %6642 = vmatpush1.bf16.msra.mxu0 0
        %6643 = vmatprep.subr.bf16.mxu0 0
        %6644 = vmatpush1.bf16.msra.mxu0 0
        %6645 = vmatprep.subr.bf16.mxu0 0
        %6646 = vmatpush1.bf16.msra.mxu0 0
        %6647 = vmatprep.subr.bf16.mxu0 0
        %6648 = vmatpush1.bf16.msra.mxu0 0
        %6649 = vmatprep.subr.bf16.mxu0 0
        %6650 = vmatpush1.bf16.msra.mxu0 0
        %6651 = vmatprep.subr.bf16.mxu0 0
        %6652 = vmatpush1.bf16.msra.mxu0 0
        %6653 = vmatprep.subr.bf16.mxu0 0
        %6654 = vmatpush1.bf16.msra.mxu0 0
        %6655 = vmatprep.subr.bf16.mxu0 0
        %6656 = vmatpush1.bf16.msra.mxu0 0
        %6657 = vmatprep.subr.bf16.mxu0 0
        %6658 = vmatpush1.bf16.msra.mxu0 0
        %6659 = vmatprep.mubr.bf16.mxu0 0
        %6660 = vmatmul.mubr.bf16.gmra.mrb[0].mxu0 %v6592
        %v6661 = vpop.f32.mrb[0].mxu0
        %v6662 = vadd.f32 0.0, %v6661
        %v6663 = vpop.f32.mrb[0].mxu0
        %v6664 = vpop.f32.mrb[0].mxu0
        %v6665 = vadd.f32 0.0, %v6664
        %v6666 = vpop.f32.mrb[0].mxu0
        %6667 = vmatprep.mubr.bf16.mxu0 0
        %6668 = vmatmul.mubr.bf16.gmra.mrb[0].mxu0 %v6595
        %v6669 = vpop.f32.mrb[0].mxu0
        %v6670 = vadd.f32 0.0, %v6669
        %v6671 = vpop.f32.mrb[0].mxu0
        %v6672 = vpop.f32.mrb[0].mxu0
        %v6673 = vadd.f32 0.0, %v6672
        %v6674 = vpop.f32.mrb[0].mxu0
        %6675 = vmatprep.mubr.bf16.mxu0 0
        %6676 = vmatmul.mubr.bf16.gmra.mrb[0].mxu0 %v6598
        %v6677 = vpop.f32.mrb[0].mxu0
        %v6678 = vadd.f32 0.0, %v6677
        %v6679 = vpop.f32.mrb[0].mxu0
        %v6680 = vpop.f32.mrb[0].mxu0
        %v6681 = vadd.f32 0.0, %v6680
        %v6682 = vpop.f32.mrb[0].mxu0
        %6683 = vmatprep.mubr.bf16.mxu0 0
        %6684 = vmatmul.mubr.bf16.gmra.mrb[0].mxu0 %v6601
        %v6685 = vpop.f32.mrb[0].mxu0
        %v6686 = vadd.f32 0.0, %v6685
        %v6687 = vpop.f32.mrb[0].mxu0
        %v6688 = vpop.f32.mrb[0].mxu0
        %v6689 = vadd.f32 0.0, %v6688
        %v6690 = vpop.f32.mrb[0].mxu0
        %6691 = vmatprep.mubr.bf16.mxu0 0
        %6692 = vmatmul.mubr.bf16.gmra.mrb[0].mxu0 %v6604
        %v6693 = vpop.f32.mrb[0].mxu0
        %v6694 = vadd.f32 0.0, %v6693
        %v6695 = vpop.f32.mrb[0].mxu0
        %v6696 = vpop.f32.mrb[0].mxu0
        %v6697 = vadd.f32 0.0, %v6696
        %v6698 = vpop.f32.mrb[0].mxu0
        %6699 = vmatprep.mubr.bf16.mxu0 0
        %6700 = vmatmul.mubr.bf16.gmra.mrb[0].mxu0 %v6607
        %v6701 = vpop.f32.mrb[0].mxu0
        %v6702 = vadd.f32 0.0, %v6701
        %v6703 = vpop.f32.mrb[0].mxu0
        %v6704 = vpop.f32.mrb[0].mxu0
        %v6705 = vadd.f32 0.0, %v6704
        %v6706 = vpop.f32.mrb[0].mxu0
        %6707 = vmatprep.mubr.bf16.mxu0 0
        %6708 = vmatmul.mubr.bf16.gmra.mrb[0].mxu0 %v6610
        %v6709 = vpop.f32.mrb[0].mxu0
        %v6710 = vadd.f32 0.0, %v6709
        %v6711 = vpop.f32.mrb[0].mxu0
        %v6712 = vpop.f32.mrb[0].mxu0
        %v6713 = vadd.f32 0.0, %v6712
        %v6714 = vpop.f32.mrb[0].mxu0
        %6715 = vmatprep.mubr.bf16.mxu0 0
        %6716 = vmatmul.mubr.bf16.gmra.mrb[0].mxu0 %v6613
        %v6717 = vpop.f32.mrb[0].mxu0
        %v6718 = vadd.f32 0.0, %v6717
        %v6719 = vpop.f32.mrb[0].mxu0
        %v6720 = vpop.f32.mrb[0].mxu0
        %v6721 = vadd.f32 0.0, %v6720
        %v6722 = vpop.f32.mrb[0].mxu0
        %6723 = vmatprep.mubr.bf16.mxu0 0
        %6724 = vmatmul.mubr.bf16.gmra.mrb[0].mxu0 %v6616
        %v6725 = vpop.f32.mrb[0].mxu0
        %v6726 = vadd.f32 0.0, %v6725
        %v6727 = vpop.f32.mrb[0].mxu0
        %v6728 = vpop.f32.mrb[0].mxu0
        %v6729 = vadd.f32 0.0, %v6728
        %v6730 = vpop.f32.mrb[0].mxu0
        %6731 = vmatprep.mubr.bf16.mxu0 0
        %6732 = vmatmul.mubr.bf16.gmra.mrb[0].mxu0 %v6619
        %v6733 = vpop.f32.mrb[0].mxu0
        %v6734 = vadd.f32 0.0, %v6733
        %v6735 = vpop.f32.mrb[0].mxu0
        %v6736 = vpop.f32.mrb[0].mxu0
        %v6737 = vadd.f32 0.0, %v6736
        %v6738 = vpop.f32.mrb[0].mxu0
        %6739 = vmatprep.mubr.bf16.mxu0 0
        %6740 = vmatmul.mubr.bf16.gmra.mrb[0].mxu0 %v6622
        %v6741 = vpop.f32.mrb[0].mxu0
        %v6742 = vadd.f32 0.0, %v6741
        %v6743 = vpop.f32.mrb[0].mxu0
        %v6744 = vpop.f32.mrb[0].mxu0
        %v6745 = vadd.f32 0.0, %v6744
        %v6746 = vpop.f32.mrb[0].mxu0
        %6747 = vmatprep.mubr.bf16.mxu0 0
        %6748 = vmatmul.mubr.bf16.gmra.mrb[0].mxu0 %v6625
        %v6749 = vpop.f32.mrb[0].mxu0
        %v6750 = vadd.f32 0.0, %v6749
        %v6751 = vpop.f32.mrb[0].mxu0
        %v6752 = vpop.f32.mrb[0].mxu0
        %v6753 = vadd.f32 0.0, %v6752
        %v6754 = vpop.f32.mrb[0].mxu0
        %6755 = vdwg.mxu0
        %v6760 = vunpack.c.l.b16 %v6559
        %v6761 = vunpack.c.l.b16 %v6560
        %v6762 = vunpack.c.l.b16 %v6561
        %v6763 = vunpack.c.l.b16 %v6562
        %v6764 = vpack.c.b16 %v6761, %v6760
        %v6765 = vpack.c.b16 %v6763, %v6762
        %6768 = vmatprep.subr.bf16.mxu0 0
        %6769 = vmatpush1.bf16.msra.mxu0 %v6764
        %6770 = vmatprep.subr.bf16.mxu0 0
        %6771 = vmatpush1.bf16.msra.mxu0 %v6765
        %6772 = vmatprep.subr.bf16.mxu0 0
        %6773 = vmatpush1.bf16.msra.mxu0 0
        %6774 = vmatprep.subr.bf16.mxu0 0
        %6775 = vmatpush1.bf16.msra.mxu0 0
        %6776 = vmatprep.subr.bf16.mxu0 0
        %6777 = vmatpush1.bf16.msra.mxu0 0
        %6778 = vmatprep.subr.bf16.mxu0 0
        %6779 = vmatpush1.bf16.msra.mxu0 0
        %6780 = vmatprep.subr.bf16.mxu0 0
        %6781 = vmatpush1.bf16.msra.mxu0 0
        %6782 = vmatprep.subr.bf16.mxu0 0
        %6783 = vmatpush1.bf16.msra.mxu0 0
        %6784 = vmatprep.subr.bf16.mxu0 0
        %6785 = vmatpush1.bf16.msra.mxu0 0
        %6786 = vmatprep.subr.bf16.mxu0 0
        %6787 = vmatpush1.bf16.msra.mxu0 0
        %6788 = vmatprep.subr.bf16.mxu0 0
        %6789 = vmatpush1.bf16.msra.mxu0 0
        %6790 = vmatprep.subr.bf16.mxu0 0
        %6791 = vmatpush1.bf16.msra.mxu0 0
        %6792 = vmatprep.subr.bf16.mxu0 0
        %6793 = vmatpush1.bf16.msra.mxu0 0
        %6794 = vmatprep.subr.bf16.mxu0 0
        %6795 = vmatpush1.bf16.msra.mxu0 0
        %6796 = vmatprep.subr.bf16.mxu0 0
        %6797 = vmatpush1.bf16.msra.mxu0 0
        %6798 = vmatprep.subr.bf16.mxu0 0
        %6799 = vmatpush1.bf16.msra.mxu0 0
        %6800 = vmatprep.mubr.bf16.mxu0 0
        %6801 = vmatmul.mubr.bf16.gmra.mrb[0].mxu0 %v460
        %v6802 = vpop.f32.mrb[0].mxu0
        %v6803 = vadd.f32 %v6662, %v6802
        %v6804 = vpop.f32.mrb[0].mxu0
        %v6805 = vpop.f32.mrb[0].mxu0
        %v6806 = vadd.f32 %v6665, %v6805
        %v6807 = vpop.f32.mrb[0].mxu0
        %6808 = vmatprep.mubr.bf16.mxu0 0
        %6809 = vmatmul.mubr.bf16.gmra.mrb[0].mxu0 %v463
        %v6810 = vpop.f32.mrb[0].mxu0
        %v6811 = vadd.f32 %v6670, %v6810
        %v6812 = vpop.f32.mrb[0].mxu0
        %v6813 = vpop.f32.mrb[0].mxu0
        %v6814 = vadd.f32 %v6673, %v6813
        %v6815 = vpop.f32.mrb[0].mxu0
        %6816 = vmatprep.mubr.bf16.mxu0 0
        %6817 = vmatmul.mubr.bf16.gmra.mrb[0].mxu0 %v466
        %v6818 = vpop.f32.mrb[0].mxu0
        %v6819 = vadd.f32 %v6678, %v6818
        %v6820 = vpop.f32.mrb[0].mxu0
        %v6821 = vpop.f32.mrb[0].mxu0
        %v6822 = vadd.f32 %v6681, %v6821
        %v6823 = vpop.f32.mrb[0].mxu0
        %6824 = vmatprep.mubr.bf16.mxu0 0
        %6825 = vmatmul.mubr.bf16.gmra.mrb[0].mxu0 %v469
        %v6826 = vpop.f32.mrb[0].mxu0
        %v6827 = vadd.f32 %v6686, %v6826
        %v6828 = vpop.f32.mrb[0].mxu0
        %v6829 = vpop.f32.mrb[0].mxu0
        %v6830 = vadd.f32 %v6689, %v6829
        %v6831 = vpop.f32.mrb[0].mxu0
        %6832 = vmatprep.mubr.bf16.mxu0 0
        %6833 = vmatmul.mubr.bf16.gmra.mrb[0].mxu0 %v472
        %v6834 = vpop.f32.mrb[0].mxu0
        %v6835 = vadd.f32 %v6694, %v6834
        %v6836 = vpop.f32.mrb[0].mxu0
        %v6837 = vpop.f32.mrb[0].mxu0
        %v6838 = vadd.f32 %v6697, %v6837
        %v6839 = vpop.f32.mrb[0].mxu0
        %6840 = vmatprep.mubr.bf16.mxu0 0
        %6841 = vmatmul.mubr.bf16.gmra.mrb[0].mxu0 %v475
        %v6842 = vpop.f32.mrb[0].mxu0
        %v6843 = vadd.f32 %v6702, %v6842
        %v6844 = vpop.f32.mrb[0].mxu0
        %v6845 = vpop.f32.mrb[0].mxu0
        %v6846 = vadd.f32 %v6705, %v6845
        %v6847 = vpop.f32.mrb[0].mxu0
        %6848 = vmatprep.mubr.bf16.mxu0 0
        %6849 = vmatmul.mubr.bf16.gmra.mrb[0].mxu0 %v478
        %v6850 = vpop.f32.mrb[0].mxu0
        %v6851 = vadd.f32 %v6710, %v6850
        %v6852 = vpop.f32.mrb[0].mxu0
        %v6853 = vpop.f32.mrb[0].mxu0
        %v6854 = vadd.f32 %v6713, %v6853
        %v6855 = vpop.f32.mrb[0].mxu0
        %6856 = vmatprep.mubr.bf16.mxu0 0
        %6857 = vmatmul.mubr.bf16.gmra.mrb[0].mxu0 %v481
        %v6858 = vpop.f32.mrb[0].mxu0
        %v6859 = vadd.f32 %v6718, %v6858
        %v6860 = vpop.f32.mrb[0].mxu0
        %v6861 = vpop.f32.mrb[0].mxu0
        %v6862 = vadd.f32 %v6721, %v6861
        %v6863 = vpop.f32.mrb[0].mxu0
        %6864 = vmatprep.mubr.bf16.mxu0 0
        %6865 = vmatmul.mubr.bf16.gmra.mrb[0].mxu0 %v484
        %v6866 = vpop.f32.mrb[0].mxu0
        %v6867 = vadd.f32 %v6726, %v6866
        %v6868 = vpop.f32.mrb[0].mxu0
        %v6869 = vpop.f32.mrb[0].mxu0
        %v6870 = vadd.f32 %v6729, %v6869
        %v6871 = vpop.f32.mrb[0].mxu0
        %6872 = vmatprep.mubr.bf16.mxu0 0
        %6873 = vmatmul.mubr.bf16.gmra.mrb[0].mxu0 %v487
        %v6874 = vpop.f32.mrb[0].mxu0
        %v6875 = vadd.f32 %v6734, %v6874
        %v6876 = vpop.f32.mrb[0].mxu0
        %v6877 = vpop.f32.mrb[0].mxu0
        %v6878 = vadd.f32 %v6737, %v6877
        %v6879 = vpop.f32.mrb[0].mxu0
        %6880 = vmatprep.mubr.bf16.mxu0 0
        %6881 = vmatmul.mubr.bf16.gmra.mrb[0].mxu0 %v490
        %v6882 = vpop.f32.mrb[0].mxu0
        %v6883 = vadd.f32 %v6742, %v6882
        %v6884 = vpop.f32.mrb[0].mxu0
        %v6885 = vpop.f32.mrb[0].mxu0
        %v6886 = vadd.f32 %v6745, %v6885
        %v6887 = vpop.f32.mrb[0].mxu0
        %6888 = vmatprep.mubr.bf16.mxu0 0
        %6889 = vmatmul.mubr.bf16.gmra.mrb[0].mxu0 %v493
        %v6890 = vpop.f32.mrb[0].mxu0
        %v6891 = vadd.f32 %v6750, %v6890
        %v6892 = vpop.f32.mrb[0].mxu0
        %v6893 = vpop.f32.mrb[0].mxu0
        %v6894 = vadd.f32 %v6753, %v6893
        %v6895 = vpop.f32.mrb[0].mxu0
        %6896 = vdwg.mxu0
        %v6897 = vld [vmem:[%s6] sm:$0x1]
        %v6899 = vlaneseq
        %v6900 = vshrl.u32 %v6899, 7
        %v6901 = vsub.s32 0, %v6900
        %v6902 = vrot.slane %v6897, %v6901
        %v6904 = vadd.f32 %v6803, %v6902
        %v6905 = vadd.f32 %v6806, %v6902
        %v6906 = vadd.f32 %v6811, %v6902
        %v6907 = vadd.f32 %v6814, %v6902
        %v6908 = vadd.f32 %v6819, %v6902
        %v6909 = vadd.f32 %v6822, %v6902
        %v6910 = vadd.f32 %v6827, %v6902
        %v6911 = vadd.f32 %v6830, %v6902
        %v6912 = vadd.f32 %v6835, %v6902
        %v6913 = vadd.f32 %v6838, %v6902
        %v6914 = vadd.f32 %v6843, %v6902
        %v6915 = vadd.f32 %v6846, %v6902
        %v6916 = vadd.f32 %v6851, %v6902
        %v6917 = vadd.f32 %v6854, %v6902
        %v6918 = vadd.f32 %v6859, %v6902
        %v6919 = vadd.f32 %v6862, %v6902
        %v6920 = vadd.f32 %v6867, %v6902
        %v6921 = vadd.f32 %v6870, %v6902
        %v6922 = vadd.f32 %v6875, %v6902
        %v6923 = vadd.f32 %v6878, %v6902
        %v6924 = vadd.f32 %v6883, %v6902
        %v6925 = vadd.f32 %v6886, %v6902
        %v6926 = vadd.f32 %v6891, %v6902
        %v6927 = vadd.f32 %v6894, %v6902
        %v6928 = vmax.f32 %v6904, 0.0
        %v6929 = vmax.f32 %v6905, 0.0
        %v6930 = vmax.f32 %v6906, 0.0
        %v6931 = vmax.f32 %v6907, 0.0
        %v6932 = vmax.f32 %v6908, 0.0
        %v6933 = vmax.f32 %v6909, 0.0
        %v6934 = vmax.f32 %v6910, 0.0
        %v6935 = vmax.f32 %v6911, 0.0
        %v6936 = vmax.f32 %v6912, 0.0
        %v6937 = vmax.f32 %v6913, 0.0
        %v6938 = vmax.f32 %v6914, 0.0
        %v6939 = vmax.f32 %v6915, 0.0
        %v6940 = vmax.f32 %v6916, 0.0
        %v6941 = vmax.f32 %v6917, 0.0
        %v6942 = vmax.f32 %v6918, 0.0
        %v6943 = vmax.f32 %v6919, 0.0
        %v6944 = vmax.f32 %v6920, 0.0
        %v6945 = vmax.f32 %v6921, 0.0
        %v6946 = vmax.f32 %v6922, 0.0
        %v6947 = vmax.f32 %v6923, 0.0
        %v6948 = vmax.f32 %v6924, 0.0
        %v6949 = vmax.f32 %v6925, 0.0
        %v6950 = vmax.f32 %v6926, 0.0
        %v6951 = vmax.f32 %v6927, 0.0
        %v6952 = vpack.c.bf16 %v6929, %v6928
        %v6953 = vpack.c.bf16 %v6931, %v6930
        %v6954 = vpack.c.bf16 %v6933, %v6932
        %v6955 = vpack.c.bf16 %v6935, %v6934
        %v6956 = vpack.c.bf16 %v6937, %v6936
        %v6957 = vpack.c.bf16 %v6939, %v6938
        %v6958 = vpack.c.bf16 %v6941, %v6940
        %v6959 = vpack.c.bf16 %v6943, %v6942
        %v6960 = vpack.c.bf16 %v6945, %v6944
        %v6961 = vpack.c.bf16 %v6947, %v6946
        %v6962 = vpack.c.bf16 %v6949, %v6948
        %v6963 = vpack.c.bf16 %v6951, %v6950
        %v6964 = vld [vmem:[%s7] sm:$0xf]
        %v6965 = vld [vmem:[%s7 + $0x4] sm:$0xf]
        %v6966 = vld [vmem:[%s7 + $0x8] sm:$0xf]
        %v6967 = vld [vmem:[%s7 + $0xc] sm:$0xf]
        %v6968 = vld [vmem:[%s7 + $0x10] sm:$0xf]
        %v6969 = vld [vmem:[%s7 + $0x14] sm:$0xf]
        %v6970 = vld [vmem:[%s7 + $0x18] sm:$0xf]
        %v6971 = vld [vmem:[%s7 + $0x1c] sm:$0xf]
        %v6972 = vld [vmem:[%s8] sm:$0x1]
        %v6974 = vlaneseq
        %v6975 = vshrl.u32 %v6974, 7
        %v6976 = vsub.s32 0, %v6975
        %v6977 = vrot.slane %v6972, %v6976
        %v6987 = vunpack.c.l.b16 %v6964
        %v6988 = vunpack.c.l.b16 %v6965
        %v6989 = vunpack.c.l.b16 %v6966
        %v6990 = vunpack.c.l.b16 %v6967
        %v6991 = vunpack.c.l.b16 %v6968
        %v6992 = vunpack.c.l.b16 %v6969
        %v6993 = vunpack.c.l.b16 %v6970
        %v6994 = vunpack.c.l.b16 %v6971
        %v6995 = vpack.c.b16 %v6988, %v6987
        %v6996 = vpack.c.b16 %v6990, %v6989
        %v6997 = vpack.c.b16 %v6992, %v6991
        %v6998 = vpack.c.b16 %v6994, %v6993
        %v7004 = vsel %vm1182, %v6952, 0
        %v7007 = vsel %vm1182, %v6953, 0
        %v7010 = vsel %vm1182, %v6954, 0
        %v7013 = vsel %vm1182, %v6955, 0
        %v7016 = vsel %vm1182, %v6956, 0
        %v7019 = vsel %vm1182, %v6957, 0
        %v7022 = vsel %vm1182, %v6958, 0
        %v7025 = vsel %vm1182, %v6959, 0
        %v7028 = vsel %vm1182, %v6960, 0
        %v7031 = vsel %vm1182, %v6961, 0
        %v7034 = vsel %vm1182, %v6962, 0
        %v7037 = vsel %vm1182, %v6963, 0
        %7039 = vmatprep.subr.bf16.mxu0 0
        %7040 = vmatpush1.bf16.msra.mxu0 %v6995
        %7041 = vmatprep.subr.bf16.mxu0 0
        %7042 = vmatpush1.bf16.msra.mxu0 %v6996
        %7043 = vmatprep.subr.bf16.mxu0 0
        %7044 = vmatpush1.bf16.msra.mxu0 %v6997
        %7045 = vmatprep.subr.bf16.mxu0 0
        %7046 = vmatpush1.bf16.msra.mxu0 %v6998
        %7047 = vmatprep.subr.bf16.mxu0 0
        %7048 = vmatpush1.bf16.msra.mxu0 0
        %7049 = vmatprep.subr.bf16.mxu0 0
        %7050 = vmatpush1.bf16.msra.mxu0 0
        %7051 = vmatprep.subr.bf16.mxu0 0
        %7052 = vmatpush1.bf16.msra.mxu0 0
        %7053 = vmatprep.subr.bf16.mxu0 0
        %7054 = vmatpush1.bf16.msra.mxu0 0
        %7055 = vmatprep.subr.bf16.mxu0 0
        %7056 = vmatpush1.bf16.msra.mxu0 0
        %7057 = vmatprep.subr.bf16.mxu0 0
        %7058 = vmatpush1.bf16.msra.mxu0 0
        %7059 = vmatprep.subr.bf16.mxu0 0
        %7060 = vmatpush1.bf16.msra.mxu0 0
        %7061 = vmatprep.subr.bf16.mxu0 0
        %7062 = vmatpush1.bf16.msra.mxu0 0
        %7063 = vmatprep.subr.bf16.mxu0 0
        %7064 = vmatpush1.bf16.msra.mxu0 0
        %7065 = vmatprep.subr.bf16.mxu0 0
        %7066 = vmatpush1.bf16.msra.mxu0 0
        %7067 = vmatprep.subr.bf16.mxu0 0
        %7068 = vmatpush1.bf16.msra.mxu0 0
        %7069 = vmatprep.subr.bf16.mxu0 0
        %7070 = vmatpush1.bf16.msra.mxu0 0
        %7071 = vmatprep.mubr.bf16.mxu0 0
        %7072 = vmatmul.mubr.bf16.gmra.mrb[0].mxu0 %v7004
        %v7073 = vpop.f32.mrb[0].mxu0
        %v7074 = vadd.f32 %v6977, %v7073
        %v7075 = vpop.f32.mrb[0].mxu0
        %v7076 = vpop.f32.mrb[0].mxu0
        %v7077 = vadd.f32 %v6977, %v7076
        %v7078 = vpop.f32.mrb[0].mxu0
        %7079 = vmatprep.mubr.bf16.mxu0 0
        %7080 = vmatmul.mubr.bf16.gmra.mrb[0].mxu0 %v7007
        %v7081 = vpop.f32.mrb[0].mxu0
        %v7082 = vadd.f32 %v6977, %v7081
        %v7083 = vpop.f32.mrb[0].mxu0
        %v7084 = vpop.f32.mrb[0].mxu0
        %v7085 = vadd.f32 %v6977, %v7084
        %v7086 = vpop.f32.mrb[0].mxu0
        %7087 = vmatprep.mubr.bf16.mxu0 0
        %7088 = vmatmul.mubr.bf16.gmra.mrb[0].mxu0 %v7010
        %v7089 = vpop.f32.mrb[0].mxu0
        %v7090 = vadd.f32 %v6977, %v7089
        %v7091 = vpop.f32.mrb[0].mxu0
        %v7092 = vpop.f32.mrb[0].mxu0
        %v7093 = vadd.f32 %v6977, %v7092
        %v7094 = vpop.f32.mrb[0].mxu0
        %7095 = vmatprep.mubr.bf16.mxu0 0
        %7096 = vmatmul.mubr.bf16.gmra.mrb[0].mxu0 %v7013
        %v7097 = vpop.f32.mrb[0].mxu0
        %v7098 = vadd.f32 %v6977, %v7097
        %v7099 = vpop.f32.mrb[0].mxu0
        %v7100 = vpop.f32.mrb[0].mxu0
        %v7101 = vadd.f32 %v6977, %v7100
        %v7102 = vpop.f32.mrb[0].mxu0
        %7103 = vmatprep.mubr.bf16.mxu0 0
        %7104 = vmatmul.mubr.bf16.gmra.mrb[0].mxu0 %v7016
        %v7105 = vpop.f32.mrb[0].mxu0
        %v7106 = vadd.f32 %v6977, %v7105
        %v7107 = vpop.f32.mrb[0].mxu0
        %v7108 = vpop.f32.mrb[0].mxu0
        %v7109 = vadd.f32 %v6977, %v7108
        %v7110 = vpop.f32.mrb[0].mxu0
        %7111 = vmatprep.mubr.bf16.mxu0 0
        %7112 = vmatmul.mubr.bf16.gmra.mrb[0].mxu0 %v7019
        %v7113 = vpop.f32.mrb[0].mxu0
        %v7114 = vadd.f32 %v6977, %v7113
        %v7115 = vpop.f32.mrb[0].mxu0
        %v7116 = vpop.f32.mrb[0].mxu0
        %v7117 = vadd.f32 %v6977, %v7116
        %v7118 = vpop.f32.mrb[0].mxu0
        %7119 = vmatprep.mubr.bf16.mxu0 0
        %7120 = vmatmul.mubr.bf16.gmra.mrb[0].mxu0 %v7022
        %v7121 = vpop.f32.mrb[0].mxu0
        %v7122 = vadd.f32 %v6977, %v7121
        %v7123 = vpop.f32.mrb[0].mxu0
        %v7124 = vpop.f32.mrb[0].mxu0
        %v7125 = vadd.f32 %v6977, %v7124
        %v7126 = vpop.f32.mrb[0].mxu0
        %7127 = vmatprep.mubr.bf16.mxu0 0
        %7128 = vmatmul.mubr.bf16.gmra.mrb[0].mxu0 %v7025
        %v7129 = vpop.f32.mrb[0].mxu0
        %v7130 = vadd.f32 %v6977, %v7129
        %v7131 = vpop.f32.mrb[0].mxu0
        %v7132 = vpop.f32.mrb[0].mxu0
        %v7133 = vadd.f32 %v6977, %v7132
        %v7134 = vpop.f32.mrb[0].mxu0
        %7135 = vmatprep.mubr.bf16.mxu0 0
        %7136 = vmatmul.mubr.bf16.gmra.mrb[0].mxu0 %v7028
        %v7137 = vpop.f32.mrb[0].mxu0
        %v7138 = vadd.f32 %v6977, %v7137
        %v7139 = vpop.f32.mrb[0].mxu0
        %v7140 = vpop.f32.mrb[0].mxu0
        %v7141 = vadd.f32 %v6977, %v7140
        %v7142 = vpop.f32.mrb[0].mxu0
        %7143 = vmatprep.mubr.bf16.mxu0 0
        %7144 = vmatmul.mubr.bf16.gmra.mrb[0].mxu0 %v7031
        %v7145 = vpop.f32.mrb[0].mxu0
        %v7146 = vadd.f32 %v6977, %v7145
        %v7147 = vpop.f32.mrb[0].mxu0
        %v7148 = vpop.f32.mrb[0].mxu0
        %v7149 = vadd.f32 %v6977, %v7148
        %v7150 = vpop.f32.mrb[0].mxu0
        %7151 = vmatprep.mubr.bf16.mxu0 0
        %7152 = vmatmul.mubr.bf16.gmra.mrb[0].mxu0 %v7034
        %v7153 = vpop.f32.mrb[0].mxu0
        %v7154 = vadd.f32 %v6977, %v7153
        %v7155 = vpop.f32.mrb[0].mxu0
        %v7156 = vpop.f32.mrb[0].mxu0
        %v7157 = vadd.f32 %v6977, %v7156
        %v7158 = vpop.f32.mrb[0].mxu0
        %7159 = vmatprep.mubr.bf16.mxu0 0
        %7160 = vmatmul.mubr.bf16.gmra.mrb[0].mxu0 %v7037
        %v7161 = vpop.f32.mrb[0].mxu0
        %v7162 = vadd.f32 %v6977, %v7161
        %v7163 = vpop.f32.mrb[0].mxu0
        %v7164 = vpop.f32.mrb[0].mxu0
        %v7165 = vadd.f32 %v6977, %v7164
        %v7166 = vpop.f32.mrb[0].mxu0
        %7167 = vdwg.mxu0
        %v7168 = vadd.f32 %v399, %v7074
        %v7169 = vadd.f32 %v400, %v7077
        %v7170 = vadd.f32 %v401, %v7082
        %v7171 = vadd.f32 %v402, %v7085
        %v7172 = vadd.f32 %v403, %v7090
        %v7173 = vadd.f32 %v404, %v7093
        %v7174 = vadd.f32 %v405, %v7098
        %v7175 = vadd.f32 %v406, %v7101
        %v7176 = vadd.f32 %v407, %v7106
        %v7177 = vadd.f32 %v408, %v7109
        %v7178 = vadd.f32 %v409, %v7114
        %v7179 = vadd.f32 %v410, %v7117
        %v7180 = vadd.f32 %v411, %v7122
        %v7181 = vadd.f32 %v412, %v7125
        %v7182 = vadd.f32 %v413, %v7130
        %v7183 = vadd.f32 %v414, %v7133
        %v7184 = vadd.f32 %v415, %v7138
        %v7185 = vadd.f32 %v416, %v7141
        %v7186 = vadd.f32 %v417, %v7146
        %v7187 = vadd.f32 %v418, %v7149
        %v7188 = vadd.f32 %v419, %v7154
        %v7189 = vadd.f32 %v420, %v7157
        %v7190 = vadd.f32 %v421, %v7162
        %v7191 = vadd.f32 %v422, %v7165
        %7192 = vst.msk [vmem:[%s380] sm:$0xff] %vm458, %v7168
        %7193 = vst.msk [vmem:[%s380 + $0x8] sm:$0xff] %vm458, %v7169
        %7194 = vst.msk [vmem:[%s380 + $0x10] sm:$0xff] %vm458, %v7170
        %7195 = vst.msk [vmem:[%s380 + $0x18] sm:$0xff] %vm458, %v7171
        %7196 = vst.msk [vmem:[%s380 + $0x20] sm:$0xff] %vm458, %v7172
        %7197 = vst.msk [vmem:[%s380 + $0x28] sm:$0xff] %vm458, %v7173
        %7198 = vst.msk [vmem:[%s380 + $0x30] sm:$0xff] %vm458, %v7174
        %7199 = vst.msk [vmem:[%s380 + $0x38] sm:$0xff] %vm458, %v7175
        %7200 = vst.msk [vmem:[%s380 + $0x40] sm:$0xff] %vm458, %v7176
        %7201 = vst.msk [vmem:[%s380 + $0x48] sm:$0xff] %vm458, %v7177
        %7202 = vst.msk [vmem:[%s380 + $0x50] sm:$0xff] %vm458, %v7178
        %7203 = vst.msk [vmem:[%s380 + $0x58] sm:$0xff] %vm458, %v7179
        %7204 = vst.msk [vmem:[%s380 + $0x60] sm:$0xff] %vm458, %v7180
        %7205 = vst.msk [vmem:[%s380 + $0x68] sm:$0xff] %vm458, %v7181
        %7206 = vst.msk [vmem:[%s380 + $0x70] sm:$0xff] %vm458, %v7182
        %7207 = vst.msk [vmem:[%s380 + $0x78] sm:$0xff] %vm458, %v7183
        %7208 = vst.msk [vmem:[%s380 + $0x80] sm:$0xff] %vm458, %v7184
        %7209 = vst.msk [vmem:[%s380 + $0x88] sm:$0xff] %vm458, %v7185
        %7210 = vst.msk [vmem:[%s380 + $0x90] sm:$0xff] %vm458, %v7186
        %7211 = vst.msk [vmem:[%s380 + $0x98] sm:$0xff] %vm458, %v7187
        %7212 = vst.msk [vmem:[%s380 + $0xa0] sm:$0xff] %vm458, %v7188
        %7213 = vst.msk [vmem:[%s380 + $0xa8] sm:$0xff] %vm458, %v7189
        %7214 = vst.msk [vmem:[%s380 + $0xb0] sm:$0xff] %vm458, %v7190
        %7215 = vst.msk [vmem:[%s380 + $0xb8] sm:$0xff] %vm458, %v7191
        %v7216 = vld [vmem:[%s9] sm:$0xff]
        %v7217 = vld [vmem:[%s9 + $0x8] sm:$0xff]
        %v7218 = vld [vmem:[%s9 + $0x10] sm:$0xff]
        %v7219 = vld [vmem:[%s9 + $0x18] sm:$0xff]
        %v7220 = vld [vmem:[%s9 + $0x20] sm:$0xff]
        %v7221 = vld [vmem:[%s9 + $0x28] sm:$0xff]
        %v7222 = vld [vmem:[%s9 + $0x30] sm:$0xff]
        %v7223 = vld [vmem:[%s9 + $0x38] sm:$0xff]
        %v7224 = vld [vmem:[%s9 + $0x40] sm:$0xff]
        %v7225 = vld [vmem:[%s9 + $0x48] sm:$0xff]
        %v7226 = vld [vmem:[%s9 + $0x50] sm:$0xff]
        %v7227 = vld [vmem:[%s9 + $0x58] sm:$0xff]
        %v7229 = vsel %vm1182, %v7217, 0
        %v7232 = vsel %vm1182, %v7219, 0
        %v7235 = vsel %vm1182, %v7221, 0
        %v7238 = vsel %vm1182, %v7223, 0
        %v7241 = vsel %vm1182, %v7225, 0
        %v7244 = vsel %vm1182, %v7227, 0
        %7246 = vmatprep.subr.mxu0 0.0
        %7247 = vmatpush1.msra.mxu0 %v7168
        %7248 = vmatprep.subr.mxu0 0.0
        %7249 = vmatpush1.msra.mxu0 %v7169
        %7250 = vmatprep.subr.mxu0 0.0
        %7251 = vmatpush1.msra.mxu0 %v7170
        %7252 = vmatprep.subr.mxu0 0.0
        %7253 = vmatpush1.msra.mxu0 %v7171
        %7254 = vmatprep.subr.mxu0 0.0
        %7255 = vmatpush1.msra.mxu0 %v7172
        %7256 = vmatprep.subr.mxu0 0.0
        %7257 = vmatpush1.msra.mxu0 %v7173
        %7258 = vmatprep.subr.mxu0 0.0
        %7259 = vmatpush1.msra.mxu0 %v7174
        %7260 = vmatprep.subr.mxu0 0.0
        %7261 = vmatpush1.msra.mxu0 %v7175
        %7262 = vmatprep.subr.mxu0 0.0
        %7263 = vmatpush1.msra.mxu0 %v7176
        %7264 = vmatprep.subr.mxu0 0.0
        %7265 = vmatpush1.msra.mxu0 %v7177
        %7266 = vmatprep.subr.mxu0 0.0
        %7267 = vmatpush1.msra.mxu0 %v7178
        %7268 = vmatprep.subr.mxu0 0.0
        %7269 = vmatpush1.msra.mxu0 %v7179
        %7270 = vmatprep.subr.mxu0 0.0
        %7271 = vmatpush1.msra.mxu0 %v7180
        %7272 = vmatprep.subr.mxu0 0.0
        %7273 = vmatpush1.msra.mxu0 %v7181
        %7274 = vmatprep.subr.mxu0 0.0
        %7275 = vmatpush1.msra.mxu0 %v7182
        %7276 = vmatprep.subr.mxu0 0.0
        %7277 = vmatpush1.msra.mxu0 %v7183
        %7278 = vmatprep.subr.mxu0 0.0
        %7279 = vmatpush1.msra.mxu0 %v7184
        %7280 = vmatprep.subr.mxu0 0.0
        %7281 = vmatpush1.msra.mxu0 %v7185
        %7282 = vmatprep.subr.mxu0 0.0
        %7283 = vmatpush1.msra.mxu0 %v7186
        %7284 = vmatprep.subr.mxu0 0.0
        %7285 = vmatpush1.msra.mxu0 %v7187
        %7286 = vmatprep.subr.mxu0 0.0
        %7287 = vmatpush1.msra.mxu0 %v7188
        %7288 = vmatprep.subr.mxu0 0.0
        %7289 = vmatpush1.msra.mxu0 %v7189
        %7290 = vmatprep.subr.mxu0 0.0
        %7291 = vmatpush1.msra.mxu0 %v7190
        %7292 = vmatprep.subr.mxu0 0.0
        %7293 = vmatpush1.msra.mxu0 %v7191
        %7294 = vmatprep.subr.mxu0 0.0
        %7295 = vmatpush1.msra.mxu0 0.0
        %7296 = vmatprep.subr.mxu0 0.0
        %7297 = vmatpush1.msra.mxu0 0.0
        %7298 = vmatprep.subr.mxu0 0.0
        %7299 = vmatpush1.msra.mxu0 0.0
        %7300 = vmatprep.subr.mxu0 0.0
        %7301 = vmatpush1.msra.mxu0 0.0
        %7302 = vmatprep.subr.mxu0 0.0
        %7303 = vmatpush1.msra.mxu0 0.0
        %7304 = vmatprep.subr.mxu0 0.0
        %7305 = vmatpush1.msra.mxu0 0.0
        %7306 = vmatprep.subr.mxu0 0.0
        %7307 = vmatpush1.msra.mxu0 0.0
        %7308 = vmatprep.subr.mxu0 0.0
        %7309 = vmatpush1.msra.mxu0 0.0
        %7310 = vmatprep.mubr.f32.mxu0 %v7229
        %7311 = vmatmul.mubr.f32.gmra.mrb[0].mxu0 %v7216
        %v7312 = vpop.f32.mrb[0].mxu0
        %v7313 = vadd.f32 0.0, %v7312
        %v7314 = vpop.f32.mrb[0].mxu0
        %7315 = vmatprep.mubr.f32.mxu0 %v7232
        %7316 = vmatmul.mubr.f32.gmra.mrb[0].mxu0 %v7218
        %v7317 = vpop.f32.mrb[0].mxu0
        %v7318 = vadd.f32 0.0, %v7317
        %v7319 = vpop.f32.mrb[0].mxu0
        %7320 = vmatprep.mubr.f32.mxu0 %v7235
        %7321 = vmatmul.mubr.f32.gmra.mrb[0].mxu0 %v7220
        %v7322 = vpop.f32.mrb[0].mxu0
        %v7323 = vadd.f32 0.0, %v7322
        %v7324 = vpop.f32.mrb[0].mxu0
        %7325 = vmatprep.mubr.f32.mxu0 %v7238
        %7326 = vmatmul.mubr.f32.gmra.mrb[0].mxu0 %v7222
        %v7327 = vpop.f32.mrb[0].mxu0
        %v7328 = vadd.f32 0.0, %v7327
        %v7329 = vpop.f32.mrb[0].mxu0
        %7330 = vmatprep.mubr.f32.mxu0 %v7241
        %7331 = vmatmul.mubr.f32.gmra.mrb[0].mxu0 %v7224
        %v7332 = vpop.f32.mrb[0].mxu0
        %v7333 = vadd.f32 0.0, %v7332
        %v7334 = vpop.f32.mrb[0].mxu0
        %7335 = vmatprep.mubr.f32.mxu0 %v7244
        %7336 = vmatmul.mubr.f32.gmra.mrb[0].mxu0 %v7226
        %v7337 = vpop.f32.mrb[0].mxu0
        %v7338 = vadd.f32 0.0, %v7337
        %v7339 = vpop.f32.mrb[0].mxu0
        %7340 = vdwg.mxu0
        %7341 = vst.msk [vmem:[%s397] sm:$0xff] %vm458, %v7313
        %7342 = vst.msk [vmem:[%s397 + $0x8] sm:$0xff] %vm458, %v7318
        %7343 = vst.msk [vmem:[%s397 + $0x10] sm:$0xff] %vm458, %v7323
        %7344 = vst.msk [vmem:[%s397 + $0x18] sm:$0xff] %vm458, %v7328
        %7345 = vst.msk [vmem:[%s397 + $0x20] sm:$0xff] %vm458, %v7333
        %7346 = vst.msk [vmem:[%s397 + $0x28] sm:$0xff] %vm458, %v7338
        %s7347 = sand.u32 %s249, 1
        %s7348 = scalar_lea.sflag [#allocation3], %s7347
        %s7349 = sand.u32 %s249, 1
        %s7350 = smul.addr %s7349, 192
        %s7351 = scalar_lea.vmem [#allocation2], %s7350
        %p7352 = scmp.lt.s32.totalorder %s26, 1
        %s7353 = scalar_select %p7352, %s26, 1
        %s7354 = smul.addr %s7353, 6
        %s7355 = smul.addr %s7354, 8
        %s7356 = scalar_lea.vmem %s11, %s7355
        // Predicated region
        $region61: #{_lambda_.1} parent=59 // pred_check
          %p7357 = pneg %p259
        $region62: #{_lambda_.1} parent=59 // pred_check_branch
          %7359 = sbr.rel (%p7357) target = $region64
        $region63: #{_lambda_.1} parent=59 // pred_region
          %s7361 = ssub.s32 3072, 3072
          %7362 = vsyncadd %s7348, %s7361
          %s7363 = smul.addr %s26, 24
          %s7364 = smul.addr %s7363, 128
          %s7365 = scalar_lea.hbm %s10, %s7364
          %s7366 = sshll.u32 %s7351, 4
          %s7367 = int_to_ptr.vmem [resolvable:$true] %s7366
          %7372 = dma.vmem_to_hbm [thread:$0]  %s7367, 3072, %s7365, %s7348, 128, 128, 8
        $region64: #{_lambda_.1} parent=59 // pred_fallthru
          _
        // Predicated region
        $region65: #{_lambda_.1} parent=59 // pred_check
          %p7373 = pneg %p285
        $region66: #{_lambda_.1} parent=59 // pred_check_branch
          %7375 = sbr.rel (%p7373) target = $region68
        $region67: #{_lambda_.1} parent=59 // pred_region
          _
        $region68: #{_lambda_.1} parent=59 // pred_fallthru
          _
      $region60: #{_lambda_.1} parent=5 // pred_fallthru
        _
      %p7376 = scmp.le.s32.totalorder 2, %s21
      // Predicated region
      $region69: #{_lambda_.1} parent=5 // pred_check
        %p7377 = pneg %p7376
      $region70: #{_lambda_.1} parent=5 // pred_check_branch
        %7379 = sbr.rel (%p7377) target = $region72
      $region71: #{_lambda_.1} parent=5 // pred_region
        %s7380 = ssub.s32 %s21, 2
        // Predicated region
        $region73: #{_lambda_.1} parent=71 // pred_check
          %p7381 = pneg %p265
        $region74: #{_lambda_.1} parent=71 // pred_check_branch
          %7383 = sbr.rel (%p7381) target = $region76
        $region75: #{_lambda_.1} parent=71 // pred_region
          %s7384 = sand.u32 %s250, 1
          %s7385 = scalar_lea.sflag [#allocation3], %s7384
          %s7386 = sand.u32 %s250, 1
          %s7387 = smul.addr %s7386, 192
          %s7388 = scalar_lea.vmem [#allocation2], %s7387
          %7389 = dma.done %s7385, 3072
        $region76: #{_lambda_.1} parent=71 // pred_fallthru
          _
        // Predicated region
        $region77: #{_lambda_.1} parent=71 // pred_check
          %p7390 = pneg %p291
        $region78: #{_lambda_.1} parent=71 // pred_check_branch
          %7392 = sbr.rel (%p7390) target = $region80
        $region79: #{_lambda_.1} parent=71 // pred_region
          %p7393 = scmp.lt.s32.totalorder %s27, 1
          %s7394 = scalar_select %p7393, %s27, 1
          %s7395 = smul.addr %s7394, 6
          %s7396 = smul.addr %s7395, 8
          %s7397 = scalar_lea.vmem %s11, %s7396
        $region80: #{_lambda_.1} parent=71 // pred_fallthru
          _
      $region72: #{_lambda_.1} parent=5 // pred_fallthru
        _
    $region6: #{_lambda_.1} parent=1 // loop_footer
      %s25 = sadd.s32 1, %s21
    $region7: #{_lambda_.1} parent=1 // loop_footer_branch
      %20 = sbr.rel target = $region3
    $region8: #{_lambda_.1} parent=1 // loop_exit
      _
    %7398 = vsyncpa [#allocation3], 1
    %s7399 = scalar_lea.sflag [#allocation3], 1
    %7400 = vsyncpa %s7399, 1

</llo_original>
